<compile_context>
chip_gen: v7x
topology: tpu7x:2x2x1
jax: 0.10.0
libtpu: 0.0.40
codegen_flags: <defaults>
</compile_context>

<pallas_src>
import jax
import jax.numpy as jnp
from jax.experimental import pallas as pl
from jax.experimental.pallas import tpu as pltpu

BN_EPS = 1e-5


def _round_up(x, m):
    return ((x + m - 1) // m) * m


# ----------------------------------------------------------------------------
# Kernel 1: conv (im2col matmul, bias+BN folded) + ReLU + 2x2 maxpool
# ----------------------------------------------------------------------------
def _conv_bn_relu_pool_kernel(patch_ref, w_ref, shift_ref, out_ref):
    # patch_ref: [4, TR, K] bf16   (4 = 2x2 pool-window positions, K = 9*Cin)
    # w_ref:     [K, Cout]  bf16   (BN scale already folded into the weight)
    # shift_ref: [1, Cout]  f32    (folded conv-bias + BN shift)
    # out_ref:   [TR, Cout] bf16
    p = patch_ref[...]
    _, tr, k = p.shape
    # One large-M matmul instead of 4 small ones keeps the MXU full.
    z = jnp.dot(p.reshape(4 * tr, k), w_ref[...],
                preferred_element_type=jnp.float32)            # [4*TR, Cout] f32
    # 2x2 max-pool over the 4 row groups; +shift and ReLU commute with the max.
    zmax = jnp.maximum(jnp.maximum(z[0 * tr:1 * tr], z[1 * tr:2 * tr]),
                       jnp.maximum(z[2 * tr:3 * tr], z[3 * tr:4 * tr]))
    out_ref[...] = jnp.maximum(zmax + shift_ref[...], 0.0).astype(out_ref.dtype)


def conv_bn_relu_pool(x_nhwc, w_hwio, bias, gamma, beta, mean, var, *, padding,
                      row_tile=256):
    N, H, W, Cin = x_nhwc.shape
    Cout = w_hwio.shape[-1]

    # im2col in bf16 (glue). Last axis ordered (ky, kx, cin) to match HWIO.
    # TODO(synk): move the 9-tap windowing into the kernel (manual DMA over the
    # padded NHWC input) to avoid materializing the 9x-inflated patches in HBM;
    # conv1's K=9 contraction also underfills the MXU and could be repacked.
    xb = x_nhwc.astype(jnp.bfloat16)
    xp = jnp.pad(xb, ((0, 0), (padding, padding), (padding, padding), (0, 0)))
    HO = xp.shape[1] - 2
    WO = xp.shape[2] - 2
    PH, PW = HO // 2, WO // 2
    cols = [xp[:, ky:ky + HO, kx:kx + WO, :] for ky in range(3) for kx in range(3)]
    pf = jnp.concatenate(cols, axis=-1)                              # [N, HO, WO, 9*Cin]
    parts = [pf[:, dy::2, dx::2, :].reshape(N * PH * PW, 9 * Cin)
             for dy in range(2) for dx in range(2)]
    patches = jnp.stack(parts, axis=0)                               # [4, R, K] bf16

    # Fold conv bias + BatchNorm(eval) into the weight / shift:
    #   (z + b) * scale + shift == z @ (w * scale) + (beta + (b - mean) * scale)
    inv_std = 1.0 / jnp.sqrt(var + BN_EPS)
    scale = gamma * inv_std
    w_mat = (w_hwio.reshape(9 * Cin, Cout) * scale[None, :]).astype(jnp.bfloat16)
    shift = (beta + (bias - mean) * scale).reshape(1, Cout).astype(jnp.float32)

    R, K = patches.shape[1], patches.shape[2]
    TR = min(row_tile, _round_up(R, 8))            # sublane-aligned row tile
    grid = (pl.cdiv(R, TR),)

    out = pl.pallas_call(
        _conv_bn_relu_pool_kernel,
        out_shape=jax.ShapeDtypeStruct((R, Cout), jnp.bfloat16),
        grid=grid,
        in_specs=[
            pl.BlockSpec((4, TR, K), lambda i: (0, i, 0)),   # streamed row tiles
            pl.BlockSpec((K, Cout), lambda i: (0, 0)),       # resident weight
            pl.BlockSpec((1, Cout), lambda i: (0, 0)),       # resident shift
        ],
        out_specs=pl.BlockSpec((TR, Cout), lambda i: (i, 0)),
        compiler_params=pltpu.CompilerParams(dimension_semantics=("parallel",)),
    )(patches, w_mat, shift)
    return out.reshape(N, PH, PW, Cout)


# ----------------------------------------------------------------------------
# Kernel 2: fc1 -> dropout(identity, eval) -> fc2 -> fc3, tiled over batch
# ----------------------------------------------------------------------------
def _mlp_kernel(x_ref, w1_ref, b1_ref, w2_ref, b2_ref, w3_ref, b3_ref, out_ref):
    h = jnp.dot(x_ref[...], w1_ref[...], preferred_element_type=jnp.float32) + b1_ref[...]
    # nn.Dropout2d(0.25): identity in inference mode.
    # TODO(synk): training-mode dropout mask (pltpu.prng_*) and batch-stat BN not implemented.
    h = jnp.dot(h.astype(jnp.bfloat16), w2_ref[...],
                preferred_element_type=jnp.float32) + b2_ref[...]
    out_ref[...] = jnp.dot(h.astype(jnp.bfloat16), w3_ref[...],
                           preferred_element_type=jnp.float32) + b3_ref[...]


def mlp(x_flat, w1, b1, w2, b2, w3, b3, *, batch_tile=128):
    N, D0 = x_flat.shape
    D1, D2, D3 = w1.shape[1], w2.shape[1], w3.shape[1]

    x_bf = x_flat.astype(jnp.bfloat16)
    w1b = w1.astype(jnp.bfloat16)
    w2b = w2.astype(jnp.bfloat16)
    w3b = w3.astype(jnp.bfloat16)
    b1r = b1.reshape(1, D1).astype(jnp.float32)
    b2r = b2.reshape(1, D2).astype(jnp.float32)
    b3r = b3.reshape(1, D3).astype(jnp.float32)

    TN = min(batch_tile, _round_up(N, 8))
    grid = (pl.cdiv(N, TN),)

    return pl.pallas_call(
        _mlp_kernel,
        out_shape=jax.ShapeDtypeStruct((N, D3), jnp.float32),
        grid=grid,
        in_specs=[
            pl.BlockSpec((TN, D0), lambda i: (i, 0)),        # streamed activations
            pl.BlockSpec((D0, D1), lambda i: (0, 0)),        # resident weights/biases
            pl.BlockSpec((1, D1), lambda i: (0, 0)),
            pl.BlockSpec((D1, D2), lambda i: (0, 0)),
            pl.BlockSpec((1, D2), lambda i: (0, 0)),
            pl.BlockSpec((D2, D3), lambda i: (0, 0)),
            pl.BlockSpec((1, D3), lambda i: (0, 0)),
        ],
        out_specs=pl.BlockSpec((TN, D3), lambda i: (i, 0)),
        compiler_params=pltpu.CompilerParams(dimension_semantics=("parallel",)),
    )(x_bf, w1b, b1r, w2b, b2r, w3b, b3r)


# ----------------------------------------------------------------------------
# Full forward (PyTorch takes NCHW; kernels work channel-last)
# ----------------------------------------------------------------------------
def fashion_cnn_forward(x_nchw, p):
    x = jnp.transpose(x_nchw, (0, 2, 3, 1))                                   # NCHW -> NHWC
    x = conv_bn_relu_pool(x, p["w_conv1"], p["b_conv1"], p["bn1_gamma"],
                          p["bn1_beta"], p["bn1_mean"], p["bn1_var"],
                          padding=1)                                          # [N,14,14,32]
    x = conv_bn_relu_pool(x, p["w_conv2"], p["b_conv2"], p["bn2_gamma"],
                          p["bn2_beta"], p["bn2_mean"], p["bn2_var"],
                          padding=0)                                          # [N,6,6,64]
    N, PH, PW, C = x.shape
    # Fold PyTorch's NCHW .view(N, -1) flatten order into fc1's rows once, so
    # the NHWC conv output feeds fc1 directly (no activation transpose).
    w_fc1 = p["w_fc1"].reshape(C, PH, PW, -1).transpose(1, 2, 0, 3).reshape(PH * PW * C, -1)
    x_flat = x.reshape(N, PH * PW * C)                                        # [N, 2304]
    return mlp(x_flat, w_fc1, p["b_fc1"], p["w_fc2"], p["b_fc2"],
               p["w_fc3"], p["b_fc3"])


# ----------------------------------------------------------------------------
# Deterministic synthetic parameter init (PyTorch-like uniform(-1/sqrt(fan_in), ...))
# Conv weights stored HWIO (= torch OIHW permuted); Linear weights stored (in, out).
# ----------------------------------------------------------------------------
def init_params(key):
    ks = jax.random.split(key, 20)

    def u(k, shape, fan_in):
        bound = 1.0 / jnp.sqrt(float(fan_in))
        return jax.random.uniform(k, shape, jnp.float32, -bound, bound)

    p = {}
    p["w_conv1"] = u(ks[0], (3, 3, 1, 32), 1 * 9)
    p["b_conv1"] = u(ks[1], (32,), 1 * 9)
    p["bn1_gamma"] = jax.random.uniform(ks[2], (32,), jnp.float32, 0.5, 1.5)
    p["bn1_beta"] = jax.random.uniform(ks[3], (32,), jnp.float32, -0.1, 0.1)
    p["bn1_mean"] = jax.random.uniform(ks[4], (32,), jnp.float32, -0.1, 0.1)
    p["bn1_var"] = jax.random.uniform(ks[5], (32,), jnp.float32, 0.5, 1.5)

    p["w_conv2"] = u(ks[6], (3, 3, 32, 64), 32 * 9)
    p["b_conv2"] = u(ks[7], (64,), 32 * 9)
    p["bn2_gamma"] = jax.random.uniform(ks[8], (64,), jnp.float32, 0.5, 1.5)
    p["bn2_beta"] = jax.random.uniform(ks[9], (64,), jnp.float32, -0.1, 0.1)
    p["bn2_mean"] = jax.random.uniform(ks[10], (64,), jnp.float32, -0.1, 0.1)
    p["bn2_var"] = jax.random.uniform(ks[11], (64,), jnp.float32, 0.5, 1.5)

    p["w_fc1"] = u(ks[12], (64 * 6 * 6, 600), 64 * 6 * 6)
    p["b_fc1"] = u(ks[13], (600,), 64 * 6 * 6)
    p["w_fc2"] = u(ks[14], (600, 120), 600)
    p["b_fc2"] = u(ks[15], (120,), 600)
    p["w_fc3"] = u(ks[16], (120, 10), 120)
    p["b_fc3"] = u(ks[17], (10,), 120)
    return p


# ----------------------------------------------------------------------------
# Pure-JAX f32 reference for correctness check
# ----------------------------------------------------------------------------
def reference_forward(x_nchw, p):
    hi = jax.lax.Precision.HIGHEST
    x = jnp.transpose(x_nchw, (0, 2, 3, 1))

    def block(x, w, b, g, bt, m, v, pad):
        y = jax.lax.conv_general_dilated(
            x, w, window_strides=(1, 1), padding=[(pad, pad), (pad, pad)],
            dimension_numbers=("NHWC", "HWIO", "NHWC"), precision=hi) + b
        y = (y - m) / jnp.sqrt(v + BN_EPS) * g + bt
        y = jnp.maximum(y, 0.0)
        return jax.lax.reduce_window(y, -jnp.inf, jax.lax.max,
                                     (1, 2, 2, 1), (1, 2, 2, 1), "VALID")

    x = block(x, p["w_conv1"], p["b_conv1"], p["bn1_gamma"], p["bn1_beta"],
              p["bn1_mean"], p["bn1_var"], 1)
    x = block(x, p["w_conv2"], p["b_conv2"], p["bn2_gamma"], p["bn2_beta"],
              p["bn2_mean"], p["bn2_var"], 0)
    x = jnp.transpose(x, (0, 3, 1, 2)).reshape(x.shape[0], -1)
    h = jnp.dot(x, p["w_fc1"], precision=hi) + p["b_fc1"]
    h = jnp.dot(h, p["w_fc2"], precision=hi) + p["b_fc2"]
    return jnp.dot(h, p["w_fc3"], precision=hi) + p["b_fc3"]


if __name__ == "__main__":
    key = jax.random.PRNGKey(0)
    kx, kp = jax.random.split(key)
    # Fashion-MNIST-like input, NCHW as in the PyTorch module: [batch=2, 1, 28, 28]
    x = jax.random.normal(kx, (2, 1, 28, 28), jnp.float32)
    params = init_params(kp)

    fwd = jax.jit(fashion_cnn_forward)
    out = fwd(x, params)
    out = jax.block_until_ready(out)
    assert out.shape == (2, 10), out.shape

    ref = reference_forward(x, params)
    max_err = float(jnp.max(jnp.abs(out - ref)))
    # bf16 MXU inputs (f32 accumulation) -> loosened tolerance vs. f32 reference.
    assert jnp.allclose(out, ref, rtol=5e-2, atol=5e-2), f"max_err={max_err}"
    print("KERNEL_OK")
</pallas_src>

<mosaic_0001>
module attributes {stable_mosaic.version = 11 : i64} {
  func.func @_conv_bn_relu_pool_kernel(%arg0: i32, %arg1: memref<4x256x9xbf16, #tpu.memory_space<vmem>>, %arg2: memref<9x32xbf16, #tpu.memory_space<vmem>>, %arg3: memref<1x32xf32, #tpu.memory_space<vmem>>, %arg4: memref<256x32xbf16, #tpu.memory_space<vmem>>) attributes {dimension_semantics = [#tpu.dimension_semantics<parallel>], iteration_bounds = array<i64: 2>, scalar_prefetch = 0 : i64, scratch_operands = 0 : i64, tpu.core_type = #tpu.core_type<tc>, window_params = [{transform_indices = @transform_0, window_bounds = array<i64: 4, 256, 9>}, {pipeline_mode = #tpu.pipeline_mode<synchronous>, transform_indices = @transform_1, window_bounds = array<i64: 9, 32>}, {pipeline_mode = #tpu.pipeline_mode<synchronous>, transform_indices = @transform_2, window_bounds = array<i64: 1, 32>}, {transform_indices = @transform_3, window_bounds = array<i64: 256, 32>}]} {
    %c0 = arith.constant 0 : index
    %c0_0 = arith.constant 0 : index
    %c0_1 = arith.constant 0 : index
    %0 = vector.load %arg1[%c0, %c0_0, %c0_1] : memref<4x256x9xbf16, #tpu.memory_space<vmem>>, vector<4x256x9xbf16>
    %1 = vector.shape_cast %0 : vector<4x256x9xbf16> to vector<1024x9xbf16>
    %c0_2 = arith.constant 0 : index
    %c0_3 = arith.constant 0 : index
    %2 = vector.load %arg2[%c0_2, %c0_3] : memref<9x32xbf16, #tpu.memory_space<vmem>>, vector<9x32xbf16>
    %cst = arith.constant dense<0.000000e+00> : vector<1024x32xf32>
    %3 = tpu.matmul %1, %2, %cst {dimension_numbers = #tpu.dot_dimension_numbers<[1], [0], [0], [1], [0, 0, 1, 1], [], []>} : vector<1024x9xbf16>, vector<9x32xbf16>, vector<1024x32xf32> -> vector<1024x32xf32>
    %4 = vector.extract_strided_slice %3 {offsets = [0, 0], sizes = [256, 32], strides = [1, 1]} : vector<1024x32xf32> to vector<256x32xf32>
    %5 = vector.extract_strided_slice %3 {offsets = [256, 0], sizes = [256, 32], strides = [1, 1]} : vector<1024x32xf32> to vector<256x32xf32>
    %6 = arith.maximumf %4, %5 : vector<256x32xf32>
    %7 = vector.extract_strided_slice %3 {offsets = [512, 0], sizes = [256, 32], strides = [1, 1]} : vector<1024x32xf32> to vector<256x32xf32>
    %8 = vector.extract_strided_slice %3 {offsets = [768, 0], sizes = [256, 32], strides = [1, 1]} : vector<1024x32xf32> to vector<256x32xf32>
    %9 = arith.maximumf %7, %8 : vector<256x32xf32>
    %10 = arith.maximumf %6, %9 : vector<256x32xf32>
    %c0_4 = arith.constant 0 : index
    %c0_5 = arith.constant 0 : index
    %11 = vector.load %arg3[%c0_4, %c0_5] : memref<1x32xf32, #tpu.memory_space<vmem>>, vector<1x32xf32>
    %12 = vector.broadcast %11 : vector<1x32xf32> to vector<256x32xf32>
    %13 = arith.addf %10, %12 : vector<256x32xf32>
    %cst_6 = arith.constant 0.000000e+00 : f32
    %14 = vector.broadcast %cst_6 : f32 to vector<256x32xf32>
    %15 = arith.maximumf %13, %14 : vector<256x32xf32>
    %16 = arith.truncf %15 : vector<256x32xf32> to vector<256x32xbf16>
    %c0_7 = arith.constant 0 : index
    %c0_8 = arith.constant 0 : index
    %17 = vector.load %arg4[%c0_7, %c0_8] : memref<256x32xbf16, #tpu.memory_space<vmem>>, vector<256x32xbf16>
    tpu.vector_store %arg4[%c0_7, %c0_8], %16 {strides = array<i32>} : memref<256x32xbf16, #tpu.memory_space<vmem>>, vector<256x32xbf16>,
    return
  }
  func.func @transform_0(%arg0: i32) -> (i32, i32, i32) {
    %c0_i32 = arith.constant 0 : i32
    %c0_i32_0 = arith.constant 0 : i32
    %c0_i32_1 = arith.constant 0 : i32
    return %c0_i32, %arg0, %c0_i32_0 : i32, i32, i32
  }
  func.func @transform_1(%arg0: i32) -> (i32, i32) {
    %c0_i32 = arith.constant 0 : i32
    %c0_i32_0 = arith.constant 0 : i32
    %c0_i32_1 = arith.constant 0 : i32
    return %c0_i32, %c0_i32_0 : i32, i32
  }
  func.func @transform_2(%arg0: i32) -> (i32, i32) {
    %c0_i32 = arith.constant 0 : i32
    %c0_i32_0 = arith.constant 0 : i32
    %c0_i32_1 = arith.constant 0 : i32
    return %c0_i32, %c0_i32_0 : i32, i32
  }
  func.func @transform_3(%arg0: i32) -> (i32, i32) {
    %c0_i32 = arith.constant 0 : i32
    %c0_i32_0 = arith.constant 0 : i32
    return %arg0, %c0_i32 : i32, i32
  }
}

module attributes {stable_mosaic.version = 11 : i64} {
  func.func @_conv_bn_relu_pool_kernel(%arg0: i32, %arg1: memref<4x72x288xbf16, #tpu.memory_space<vmem>>, %arg2: memref<288x64xbf16, #tpu.memory_space<vmem>>, %arg3: memref<1x64xf32, #tpu.memory_space<vmem>>, %arg4: memref<72x64xbf16, #tpu.memory_space<vmem>>) attributes {dimension_semantics = [#tpu.dimension_semantics<parallel>], iteration_bounds = array<i64: 1>, scalar_prefetch = 0 : i64, scratch_operands = 0 : i64, tpu.core_type = #tpu.core_type<tc>, window_params = [{transform_indices = @transform_0, window_bounds = array<i64: 4, 72, 288>}, {pipeline_mode = #tpu.pipeline_mode<synchronous>, transform_indices = @transform_1, window_bounds = array<i64: 288, 64>}, {pipeline_mode = #tpu.pipeline_mode<synchronous>, transform_indices = @transform_2, window_bounds = array<i64: 1, 64>}, {transform_indices = @transform_3, window_bounds = array<i64: 72, 64>}]} {
    %c0 = arith.constant 0 : index
    %c0_0 = arith.constant 0 : index
    %c0_1 = arith.constant 0 : index
    %0 = vector.load %arg1[%c0, %c0_0, %c0_1] : memref<4x72x288xbf16, #tpu.memory_space<vmem>>, vector<4x72x288xbf16>
    %1 = vector.shape_cast %0 : vector<4x72x288xbf16> to vector<288x288xbf16>
    %c0_2 = arith.constant 0 : index
    %c0_3 = arith.constant 0 : index
    %2 = vector.load %arg2[%c0_2, %c0_3] : memref<288x64xbf16, #tpu.memory_space<vmem>>, vector<288x64xbf16>
    %cst = arith.constant dense<0.000000e+00> : vector<288x64xf32>
    %3 = tpu.matmul %1, %2, %cst {dimension_numbers = #tpu.dot_dimension_numbers<[1], [0], [0], [1], [0, 0, 1, 1], [], []>} : vector<288x288xbf16>, vector<288x64xbf16>, vector<288x64xf32> -> vector<288x64xf32>
    %4 = vector.extract_strided_slice %3 {offsets = [0, 0], sizes = [72, 64], strides = [1, 1]} : vector<288x64xf32> to vector<72x64xf32>
    %5 = vector.extract_strided_slice %3 {offsets = [72, 0], sizes = [72, 64], strides = [1, 1]} : vector<288x64xf32> to vector<72x64xf32>
    %6 = arith.maximumf %4, %5 : vector<72x64xf32>
    %7 = vector.extract_strided_slice %3 {offsets = [144, 0], sizes = [72, 64], strides = [1, 1]} : vector<288x64xf32> to vector<72x64xf32>
    %8 = vector.extract_strided_slice %3 {offsets = [216, 0], sizes = [72, 64], strides = [1, 1]} : vector<288x64xf32> to vector<72x64xf32>
    %9 = arith.maximumf %7, %8 : vector<72x64xf32>
    %10 = arith.maximumf %6, %9 : vector<72x64xf32>
    %c0_4 = arith.constant 0 : index
    %c0_5 = arith.constant 0 : index
    %11 = vector.load %arg3[%c0_4, %c0_5] : memref<1x64xf32, #tpu.memory_space<vmem>>, vector<1x64xf32>
    %12 = vector.broadcast %11 : vector<1x64xf32> to vector<72x64xf32>
    %13 = arith.addf %10, %12 : vector<72x64xf32>
    %cst_6 = arith.constant 0.000000e+00 : f32
    %14 = vector.broadcast %cst_6 : f32 to vector<72x64xf32>
    %15 = arith.maximumf %13, %14 : vector<72x64xf32>
    %16 = arith.truncf %15 : vector<72x64xf32> to vector<72x64xbf16>
    %c0_7 = arith.constant 0 : index
    %c0_8 = arith.constant 0 : index
    %17 = vector.load %arg4[%c0_7, %c0_8] : memref<72x64xbf16, #tpu.memory_space<vmem>>, vector<72x64xbf16>
    tpu.vector_store %arg4[%c0_7, %c0_8], %16 {strides = array<i32>} : memref<72x64xbf16, #tpu.memory_space<vmem>>, vector<72x64xbf16>,
    return
  }
  func.func @transform_0(%arg0: i32) -> (i32, i32, i32) {
    %c0_i32 = arith.constant 0 : i32
    %c0_i32_0 = arith.constant 0 : i32
    %c0_i32_1 = arith.constant 0 : i32
    return %c0_i32, %arg0, %c0_i32_0 : i32, i32, i32
  }
  func.func @transform_1(%arg0: i32) -> (i32, i32) {
    %c0_i32 = arith.constant 0 : i32
    %c0_i32_0 = arith.constant 0 : i32
    %c0_i32_1 = arith.constant 0 : i32
    return %c0_i32, %c0_i32_0 : i32, i32
  }
  func.func @transform_2(%arg0: i32) -> (i32, i32) {
    %c0_i32 = arith.constant 0 : i32
    %c0_i32_0 = arith.constant 0 : i32
    %c0_i32_1 = arith.constant 0 : i32
    return %c0_i32, %c0_i32_0 : i32, i32
  }
  func.func @transform_3(%arg0: i32) -> (i32, i32) {
    %c0_i32 = arith.constant 0 : i32
    %c0_i32_0 = arith.constant 0 : i32
    return %arg0, %c0_i32 : i32, i32
  }
}

module attributes {stable_mosaic.version = 11 : i64} {
  func.func @_mlp_kernel(%arg0: i32, %arg1: memref<8x2304xbf16, #tpu.memory_space<vmem>>, %arg2: memref<2304x600xbf16, #tpu.memory_space<vmem>>, %arg3: memref<1x600xf32, #tpu.memory_space<vmem>>, %arg4: memref<600x120xbf16, #tpu.memory_space<vmem>>, %arg5: memref<1x120xf32, #tpu.memory_space<vmem>>, %arg6: memref<120x10xbf16, #tpu.memory_space<vmem>>, %arg7: memref<1x10xf32, #tpu.memory_space<vmem>>, %arg8: memref<8x10xf32, #tpu.memory_space<vmem>>) attributes {dimension_semantics = [#tpu.dimension_semantics<parallel>], iteration_bounds = array<i64: 1>, scalar_prefetch = 0 : i64, scratch_operands = 0 : i64, tpu.core_type = #tpu.core_type<tc>, window_params = [{transform_indices = @transform_0, window_bounds = array<i64: 8, 2304>}, {pipeline_mode = #tpu.pipeline_mode<synchronous>, transform_indices = @transform_1, window_bounds = array<i64: 2304, 600>}, {pipeline_mode = #tpu.pipeline_mode<synchronous>, transform_indices = @transform_2, window_bounds = array<i64: 1, 600>}, {pipeline_mode = #tpu.pipeline_mode<synchronous>, transform_indices = @transform_3, window_bounds = array<i64: 600, 120>}, {pipeline_mode = #tpu.pipeline_mode<synchronous>, transform_indices = @transform_4, window_bounds = array<i64: 1, 120>}, {pipeline_mode = #tpu.pipeline_mode<synchronous>, transform_indices = @transform_5, window_bounds = array<i64: 120, 10>}, {pipeline_mode = #tpu.pipeline_mode<synchronous>, transform_indices = @transform_6, window_bounds = array<i64: 1, 10>}, {transform_indices = @transform_7, window_bounds = array<i64: 8, 10>}]} {
    %c0 = arith.constant 0 : index
    %c0_0 = arith.constant 0 : index
    %0 = vector.load %arg1[%c0, %c0_0] : memref<8x2304xbf16, #tpu.memory_space<vmem>>, vector<8x2304xbf16>
    %c0_1 = arith.constant 0 : index
    %c0_2 = arith.constant 0 : index
    %1 = vector.load %arg2[%c0_1, %c0_2] : memref<2304x600xbf16, #tpu.memory_space<vmem>>, vector<2304x600xbf16>
    %cst = arith.constant dense<0.000000e+00> : vector<8x600xf32>
    %2 = tpu.matmul %0, %1, %cst {dimension_numbers = #tpu.dot_dimension_numbers<[1], [0], [0], [1], [0, 0, 1, 1], [], []>} : vector<8x2304xbf16>, vector<2304x600xbf16>, vector<8x600xf32> -> vector<8x600xf32>
    %c0_3 = arith.constant 0 : index
    %c0_4 = arith.constant 0 : index
    %3 = vector.load %arg3[%c0_3, %c0_4] : memref<1x600xf32, #tpu.memory_space<vmem>>, vector<1x600xf32>
    %4 = vector.broadcast %3 : vector<1x600xf32> to vector<8x600xf32>
    %5 = arith.addf %2, %4 : vector<8x600xf32>
    %6 = arith.truncf %5 : vector<8x600xf32> to vector<8x600xbf16>
    %c0_5 = arith.constant 0 : index
    %c0_6 = arith.constant 0 : index
    %7 = vector.load %arg4[%c0_5, %c0_6] : memref<600x120xbf16, #tpu.memory_space<vmem>>, vector<600x120xbf16>
    %cst_7 = arith.constant dense<0.000000e+00> : vector<8x120xf32>
    %8 = tpu.matmul %6, %7, %cst_7 {dimension_numbers = #tpu.dot_dimension_numbers<[1], [0], [0], [1], [0, 0, 1, 1], [], []>} : vector<8x600xbf16>, vector<600x120xbf16>, vector<8x120xf32> -> vector<8x120xf32>
    %c0_8 = arith.constant 0 : index
    %c0_9 = arith.constant 0 : index
    %9 = vector.load %arg5[%c0_8, %c0_9] : memref<1x120xf32, #tpu.memory_space<vmem>>, vector<1x120xf32>
    %10 = vector.broadcast %9 : vector<1x120xf32> to vector<8x120xf32>
    %11 = arith.addf %8, %10 : vector<8x120xf32>
    %12 = arith.truncf %11 : vector<8x120xf32> to vector<8x120xbf16>
    %c0_10 = arith.constant 0 : index
    %c0_11 = arith.constant 0 : index
    %13 = vector.load %arg6[%c0_10, %c0_11] : memref<120x10xbf16, #tpu.memory_space<vmem>>, vector<120x10xbf16>
    %cst_12 = arith.constant dense<0.000000e+00> : vector<8x10xf32>
    %14 = tpu.matmul %12, %13, %cst_12 {dimension_numbers = #tpu.dot_dimension_numbers<[1], [0], [0], [1], [0, 0, 1, 1], [], []>} : vector<8x120xbf16>, vector<120x10xbf16>, vector<8x10xf32> -> vector<8x10xf32>
    %c0_13 = arith.constant 0 : index
    %c0_14 = arith.constant 0 : index
    %15 = vector.load %arg7[%c0_13, %c0_14] : memref<1x10xf32, #tpu.memory_space<vmem>>, vector<1x10xf32>
    %16 = vector.broadcast %15 : vector<1x10xf32> to vector<8x10xf32>
    %17 = arith.addf %14, %16 : vector<8x10xf32>
    %c0_15 = arith.constant 0 : index
    %c0_16 = arith.constant 0 : index
    %18 = vector.load %arg8[%c0_15, %c0_16] : memref<8x10xf32, #tpu.memory_space<vmem>>, vector<8x10xf32>
    tpu.vector_store %arg8[%c0_15, %c0_16], %17 {strides = array<i32>} : memref<8x10xf32, #tpu.memory_space<vmem>>, vector<8x10xf32>,
    return
  }
  func.func @transform_0(%arg0: i32) -> (i32, i32) {
    %c0_i32 = arith.constant 0 : i32
    %c0_i32_0 = arith.constant 0 : i32
    return %arg0, %c0_i32 : i32, i32
  }
  func.func @transform_1(%arg0: i32) -> (i32, i32) {
    %c0_i32 = arith.constant 0 : i32
    %c0_i32_0 = arith.constant 0 : i32
    %c0_i32_1 = arith.constant 0 : i32
    return %c0_i32, %c0_i32_0 : i32, i32
  }
  func.func @transform_2(%arg0: i32) -> (i32, i32) {
    %c0_i32 = arith.constant 0 : i32
    %c0_i32_0 = arith.constant 0 : i32
    %c0_i32_1 = arith.constant 0 : i32
    return %c0_i32, %c0_i32_0 : i32, i32
  }
  func.func @transform_3(%arg0: i32) -> (i32, i32) {
    %c0_i32 = arith.constant 0 : i32
    %c0_i32_0 = arith.constant 0 : i32
    %c0_i32_1 = arith.constant 0 : i32
    return %c0_i32, %c0_i32_0 : i32, i32
  }
  func.func @transform_4(%arg0: i32) -> (i32, i32) {
    %c0_i32 = arith.constant 0 : i32
    %c0_i32_0 = arith.constant 0 : i32
    %c0_i32_1 = arith.constant 0 : i32
    return %c0_i32, %c0_i32_0 : i32, i32
  }
  func.func @transform_5(%arg0: i32) -> (i32, i32) {
    %c0_i32 = arith.constant 0 : i32
    %c0_i32_0 = arith.constant 0 : i32
    %c0_i32_1 = arith.constant 0 : i32
    return %c0_i32, %c0_i32_0 : i32, i32
  }
  func.func @transform_6(%arg0: i32) -> (i32, i32) {
    %c0_i32 = arith.constant 0 : i32
    %c0_i32_0 = arith.constant 0 : i32
    %c0_i32_1 = arith.constant 0 : i32
    return %c0_i32, %c0_i32_0 : i32, i32
  }
  func.func @transform_7(%arg0: i32) -> (i32, i32) {
    %c0_i32 = arith.constant 0 : i32
    %c0_i32_0 = arith.constant 0 : i32
    return %arg0, %c0_i32 : i32, i32
  }
}

</mosaic_0001>

<llo_original>
// kernel: fashion_cnn_forward.3
$region0: #{fashion_cnn_forward.3}
  #allocation0 [shape = 'u32[]', space=smem, size = 0x4, offset = 0x4, fixed_abs, tag = 'smem constant byte address 0x4 - core index']
  #allocation1 [shape = 'u32[144,128]{1,0:T(1,128)}', space=vmem, size = 0x12000, scoped, tag = 'internal scratch']
  %s0 = inlined_call_operand.vmem [shape: bf16[4,392,9], index: 0, kind: input, shape index: {}]
  %s1 = inlined_call_operand.vmem [shape: bf16[9,32], index: 1, kind: input, shape index: {}]
  %s2 = inlined_call_operand.vmem [shape: f32[1,32], index: 2, kind: input, shape index: {}]
  %s3 = inlined_call_operand.vmem [shape: bf16[392,32], index: 3, kind: output, shape index: {}]
  %s4 = sld [smem:[#allocation0]]
  $region151: #{fashion_cnn_forward.3} parent=0
    _
  %s6 = ssub.s32 1, %s4
  %s7 = scalar_select 0, %s6, %s4
  $region1: #{fashion_cnn_forward.3} parent=0
    #allocation2 [shape = 'u8[524288]{0}', space=vmem, size = 0x80000, scoped, tag = 'input window, operand 0']
    #allocation3 [shape = 'u8[131072]{0}', space=vmem, size = 0x20000, scoped, tag = 'output window, operand 0']
    loop: start=0, step=1, limit=4
    $region2: #{fashion_cnn_forward.3} parent=1 // loop_pre_header
      _
    $region3: #{fashion_cnn_forward.3} parent=1 // loop_header
      %s9 = sphi 0, %s13
      %p10 = scmp.ge.s32.totalorder %s9, 4
      %s19 = sphi 0, %s21
      %s22 = sphi 0, %s19
      %s23 = sphi 0, %s22
      %s39 = sphi 0, %s23
      %s43 = sphi 0, %s43
      %s45 = sphi 0, %s43
      %s46 = sphi 0, %s45
      %s60 = sphi 0, %s46
      %s64 = sphi 0, %s64
      %s66 = sphi 0, %s64
      %s67 = sphi 0, %s66
      %s81 = sphi 0, %s67
      %s87 = sphi 0, %s89
      %s90 = sphi 0, %s87
      %s91 = sphi 0, %s90
      %s107 = sphi 0, %s91
    $region4: #{fashion_cnn_forward.3} parent=1 // loop_header_branch
      %12 = sbr.rel (%p10) target = $region8
    $region5: #{fashion_cnn_forward.3} parent=1 // loop_body
      %s14 = ssub.s32 %s9, 1
      %s15 = ssub.s32 %s9, 2
      %s16 = sadd.s32 %s9, 1
      %s17 = ssub.s32 %s9, %s16
      %p18 = scmp.eq.s32.totalorder %s17, 0
      %s20 = sadd.s32 %s19, 1
      %s21 = scalar_select %p18, %s19, %s20
      %p24 = pneg %p18
      %p25 = scmp.eq.s32.totalorder %s9, 1
      %p26 = por %p24, %p25
      %p27 = scmp.ne.s32.totalorder %s19, %s22
      %p28 = scmp.eq.s32.totalorder %s9, 0
      %p29 = por %p27, %p28
      %p30 = scmp.ne.s32.totalorder %s19, %s22
      %p31 = scmp.eq.s32.totalorder %s14, 1
      %p32 = por %p30, %p31
      %p33 = scmp.ne.s32.totalorder %s22, %s23
      %p34 = scmp.eq.s32.totalorder %s14, 0
      %p35 = por %p33, %p34
      %p36 = scmp.ne.s32.totalorder %s22, %s23
      %p37 = scmp.eq.s32.totalorder %s15, 1
      %p38 = por %p36, %p37
      %p40 = scmp.ne.s32.totalorder %s23, %s39
      %p41 = scmp.eq.s32.totalorder %s15, 0
      %p42 = por %p40, %p41
      %s44 = sadd.s32 %s43, 1
      %p47 = scmp.eq.s32.totalorder %s9, 1
      %p48 = scmp.ne.s32.totalorder %s43, %s45
      %p49 = scmp.eq.s32.totalorder %s9, 0
      %p50 = por %p48, %p49
      %p51 = scmp.ne.s32.totalorder %s43, %s45
      %p52 = scmp.eq.s32.totalorder %s14, 1
      %p53 = por %p51, %p52
      %p54 = scmp.ne.s32.totalorder %s45, %s46
      %p55 = scmp.eq.s32.totalorder %s14, 0
      %p56 = por %p54, %p55
      %p57 = scmp.ne.s32.totalorder %s45, %s46
      %p58 = scmp.eq.s32.totalorder %s15, 1
      %p59 = por %p57, %p58
      %p61 = scmp.ne.s32.totalorder %s46, %s60
      %p62 = scmp.eq.s32.totalorder %s15, 0
      %p63 = por %p61, %p62
      %s65 = sadd.s32 %s64, 1
      %p68 = scmp.eq.s32.totalorder %s9, 1
      %p69 = scmp.ne.s32.totalorder %s64, %s66
      %p70 = scmp.eq.s32.totalorder %s9, 0
      %p71 = por %p69, %p70
      %p72 = scmp.ne.s32.totalorder %s64, %s66
      %p73 = scmp.eq.s32.totalorder %s14, 1
      %p74 = por %p72, %p73
      %p75 = scmp.ne.s32.totalorder %s66, %s67
      %p76 = scmp.eq.s32.totalorder %s14, 0
      %p77 = por %p75, %p76
      %p78 = scmp.ne.s32.totalorder %s66, %s67
      %p79 = scmp.eq.s32.totalorder %s15, 1
      %p80 = por %p78, %p79
      %p82 = scmp.ne.s32.totalorder %s67, %s81
      %p83 = scmp.eq.s32.totalorder %s15, 0
      %p84 = por %p82, %p83
      %s85 = ssub.s32 %s9, %s16
      %p86 = scmp.eq.s32.totalorder %s85, 0
      %s88 = sadd.s32 %s87, 1
      %s89 = scalar_select %p86, %s87, %s88
      %p92 = pneg %p86
      %p93 = scmp.eq.s32.totalorder %s9, 1
      %p94 = por %p92, %p93
      %p95 = scmp.ne.s32.totalorder %s87, %s90
      %p96 = scmp.eq.s32.totalorder %s9, 0
      %p97 = por %p95, %p96
      %p98 = scmp.ne.s32.totalorder %s87, %s90
      %p99 = scmp.eq.s32.totalorder %s14, 1
      %p100 = por %p98, %p99
      %p101 = scmp.ne.s32.totalorder %s90, %s91
      %p102 = scmp.eq.s32.totalorder %s14, 0
      %p103 = por %p101, %p102
      %p104 = scmp.ne.s32.totalorder %s90, %s91
      %p105 = scmp.eq.s32.totalorder %s15, 1
      %p106 = por %p104, %p105
      %p108 = scmp.ne.s32.totalorder %s91, %s107
      %p109 = scmp.eq.s32.totalorder %s15, 0
      %p110 = por %p108, %p109
      %p111 = scmp.le.s32.totalorder 1, %s9
      %p112 = scmp.lt.s32.totalorder %s9, 3
      %p113 = pnand %p111, %p112
      %p114 = pneg %p113
      // Predicated region
      $region9: #{fashion_cnn_forward.3} parent=5 // pred_check
        _
      $region10: #{fashion_cnn_forward.3} parent=5 // pred_check_branch
        %116 = sbr.rel (%p113) target = $region12
      $region11: #{fashion_cnn_forward.3} parent=5 // pred_region
        %s117 = ssub.s32 %s9, 1
        // Predicated region
        $region13: #{fashion_cnn_forward.3} parent=11 // pred_check
          %p118 = pneg %p56
        $region14: #{fashion_cnn_forward.3} parent=11 // pred_check_branch
          %120 = sbr.rel (%p118) target = $region16
        $region15: #{fashion_cnn_forward.3} parent=11 // pred_region
          _
        $region16: #{fashion_cnn_forward.3} parent=11 // pred_fallthru
          _
        // Predicated region
        $region17: #{fashion_cnn_forward.3} parent=11 // pred_check
          %p121 = pneg %p77
        $region18: #{fashion_cnn_forward.3} parent=11 // pred_check_branch
          %123 = sbr.rel (%p121) target = $region20
        $region19: #{fashion_cnn_forward.3} parent=11 // pred_region
          _
        $region20: #{fashion_cnn_forward.3} parent=11 // pred_fallthru
          _
      $region12: #{fashion_cnn_forward.3} parent=5 // pred_fallthru
        _
      %p124 = scmp.lt.s32.totalorder %s9, 2
      // Predicated region
      $region21: #{fashion_cnn_forward.3} parent=5 // pred_check
        %p125 = pneg %p124
      $region22: #{fashion_cnn_forward.3} parent=5 // pred_check_branch
        %127 = sbr.rel (%p125) target = $region24
      $region23: #{fashion_cnn_forward.3} parent=5 // pred_region
        // Predicated region
        $region25: #{fashion_cnn_forward.3} parent=23 // pred_check
          %p128 = pneg %p29
        $region26: #{fashion_cnn_forward.3} parent=23 // pred_check_branch
          %130 = sbr.rel (%p128) target = $region28
        $region27: #{fashion_cnn_forward.3} parent=23 // pred_region
          %s131 = sand.u32 %s19, 1
          %s132 = sand.u32 %s19, 1
          %s133 = smul.addr %s132, 512
          %s134 = scalar_lea.vmem [#allocation2], %s133
          %s135 = smul.u32 32, %s9
          %s136 = ssub.s32 49, %s135
          %p137 = scmp.lt.s32.totalorder %s136, 32
          %s138 = scalar_select %p137, %s136, 32
          %s139 = smul.u32 256, %s138
          %p140 = scmp.ne.s32.totalorder 0, %s139
          %s141 = smul.addr %s135, 4
          %s142 = scalar_lea.vmem %s0, %s141
          // Predicated region
          $region29: #{fashion_cnn_forward.3} parent=27 // pred_check
            %p143 = pneg %p140
          $region30: #{fashion_cnn_forward.3} parent=27 // pred_check_branch
            %145 = sbr.rel (%p143) target = $region32
          $region31: #{fashion_cnn_forward.3} parent=27 // pred_region
            // Predicated region
            $region33: #{fashion_cnn_forward.3} parent=31 // pred_check
              _
            $region34: #{fashion_cnn_forward.3} parent=31 // pred_check_branch
              %147 = sbr.rel target = $region36
            $region35: #{fashion_cnn_forward.3} parent=31 // pred_region
              // Predicated region
              $region55: #{fashion_cnn_forward.3} parent=35 // pred_check
                _
              $region56: #{fashion_cnn_forward.3} parent=35 // pred_check_branch
                %328 = sbr.rel (0) target = $region58
              $region57: #{fashion_cnn_forward.3} parent=35 // pred_region
                %s329 = sshrl.u32 %s138, 5
                // While loop
                $region59: #{fashion_cnn_forward.3} parent=57 // loop_pre_header
                  _
                $region60: #{fashion_cnn_forward.3} parent=57 // loop_header
                  %s331 = sphi 0, %s333
                  %p332 = scmp.ge.s32.totalorder %s331, %s329
                  %s336 = sphi 0, %s341
                  %s337 = sphi %s142, %s344
                  %s338 = sphi %s134, %s345
                $region61: #{fashion_cnn_forward.3} parent=57 // loop_header_branch
                  %335 = sbr.rel (%p332) target = $region65
                $region62: #{fashion_cnn_forward.3} parent=57 // loop_body
                  %s339 = sadd.s32 1, %s336
                  %p340 = scmp.ge.s32.totalorder %s339, %s329
                  %s341 = scalar_select %p340, 0, %s339
                  %s342 = smul.u32 %s341, 128
                  %s343 = smul.u32 %s341, 128
                  %s344 = scalar_lea.vmem %s142, %s342
                  %s345 = scalar_lea.vmem %s134, %s343 [#allocation2]
                $region63: #{fashion_cnn_forward.3} parent=57 // loop_footer
                  %s333 = sadd.s32 %s331, 1
                $region64: #{fashion_cnn_forward.3} parent=57 // loop_footer_branch
                  %330 = sbr.rel target = $region60
                $region65: #{fashion_cnn_forward.3} parent=57 // loop_exit
                  _
                %s346 = sshrl.u32 %s138, 5
                %s347 = sand.u32 %s138, 31
                %s348 = smul.u32 %s346, 32
                %s349 = smul.u32 4, %s348
                %s350 = scalar_lea.vmem %s142, %s349
                %s351 = smul.u32 4, %s348
                %s352 = scalar_lea.vmem %s134, %s351 [#allocation2]
                // While loop
                $region66: #{fashion_cnn_forward.3} parent=57 // loop_pre_header
                  _
                $region67: #{fashion_cnn_forward.3} parent=57 // loop_header
                  %s354 = sphi 0, %s356
                  %p355 = scmp.ge.s32.totalorder %s354, %s347
                  %s359 = sphi 0, %s364
                  %s360 = sphi %s350, %s367
                  %s361 = sphi %s352, %s368
                $region68: #{fashion_cnn_forward.3} parent=57 // loop_header_branch
                  %358 = sbr.rel (%p355) target = $region72
                $region69: #{fashion_cnn_forward.3} parent=57 // loop_body
                  %s362 = sadd.s32 1, %s359
                  %p363 = scmp.ge.s32.totalorder %s362, %s347
                  %s364 = scalar_select %p363, 0, %s362
                  %s365 = smul.u32 %s364, 4
                  %s366 = smul.u32 %s364, 4
                  %s367 = scalar_lea.vmem %s350, %s365
                  %s368 = scalar_lea.vmem %s352, %s366 [#allocation2]
                $region70: #{fashion_cnn_forward.3} parent=57 // loop_footer
                  %s356 = sadd.s32 %s354, 1
                $region71: #{fashion_cnn_forward.3} parent=57 // loop_footer_branch
                  %353 = sbr.rel target = $region67
                $region72: #{fashion_cnn_forward.3} parent=57 // loop_exit
                  _
                %s370 = sshrl.u32 %s138, 4
                // While loop
                $region73: #{fashion_cnn_forward.3} parent=57 // loop_pre_header
                  _
                $region74: #{fashion_cnn_forward.3} parent=57 // loop_header
                  %s372 = sphi 0, %s374
                  %p373 = scmp.ge.s32.totalorder %s372, %s370
                  %s377 = sphi 0, %s510
                  %s378 = sphi %s142, %s513
                  %s379 = sphi %s134, %s514
                $region75: #{fashion_cnn_forward.3} parent=57 // loop_header_branch
                  %376 = sbr.rel (%p373) target = $region79
                $region76: #{fashion_cnn_forward.3} parent=57 // loop_body
                  %v380 = vld [vmem:[%s378] sm:$0xf]
                  %381 = vst [vmem:[%s379] sm:$0xf] %v380
                  %v382 = vld [vmem:[%s378 + $0x4] sm:$0xf]
                  %383 = vst [vmem:[%s379 + $0x4] sm:$0xf] %v382
                  %v384 = vld [vmem:[%s378 + $0x8] sm:$0xf]
                  %385 = vst [vmem:[%s379 + $0x8] sm:$0xf] %v384
                  %v386 = vld [vmem:[%s378 + $0xc] sm:$0xf]
                  %387 = vst [vmem:[%s379 + $0xc] sm:$0xf] %v386
                  %v388 = vld [vmem:[%s378 + $0x10] sm:$0xf]
                  %389 = vst [vmem:[%s379 + $0x10] sm:$0xf] %v388
                  %v390 = vld [vmem:[%s378 + $0x14] sm:$0xf]
                  %391 = vst [vmem:[%s379 + $0x14] sm:$0xf] %v390
                  %v392 = vld [vmem:[%s378 + $0x18] sm:$0xf]
                  %393 = vst [vmem:[%s379 + $0x18] sm:$0xf] %v392
                  %v394 = vld [vmem:[%s378 + $0x1c] sm:$0xf]
                  %395 = vst [vmem:[%s379 + $0x1c] sm:$0xf] %v394
                  %v396 = vld [vmem:[%s378 + $0x20] sm:$0xf]
                  %397 = vst [vmem:[%s379 + $0x20] sm:$0xf] %v396
                  %v398 = vld [vmem:[%s378 + $0x24] sm:$0xf]
                  %399 = vst [vmem:[%s379 + $0x24] sm:$0xf] %v398
                  %v400 = vld [vmem:[%s378 + $0x28] sm:$0xf]
                  %401 = vst [vmem:[%s379 + $0x28] sm:$0xf] %v400
                  %v402 = vld [vmem:[%s378 + $0x2c] sm:$0xf]
                  %403 = vst [vmem:[%s379 + $0x2c] sm:$0xf] %v402
                  %v404 = vld [vmem:[%s378 + $0x30] sm:$0xf]
                  %405 = vst [vmem:[%s379 + $0x30] sm:$0xf] %v404
                  %v406 = vld [vmem:[%s378 + $0x34] sm:$0xf]
                  %407 = vst [vmem:[%s379 + $0x34] sm:$0xf] %v406
                  %v408 = vld [vmem:[%s378 + $0x38] sm:$0xf]
                  %409 = vst [vmem:[%s379 + $0x38] sm:$0xf] %v408
                  %v410 = vld [vmem:[%s378 + $0x3c] sm:$0xf]
                  %411 = vst [vmem:[%s379 + $0x3c] sm:$0xf] %v410
                  %v412 = vld [vmem:[%s378 + $0xc4] sm:$0xf]
                  %413 = vst [vmem:[%s379 + $0x80] sm:$0xf] %v412
                  %v414 = vld [vmem:[%s378 + $0xc8] sm:$0xf]
                  %415 = vst [vmem:[%s379 + $0x84] sm:$0xf] %v414
                  %v416 = vld [vmem:[%s378 + $0xcc] sm:$0xf]
                  %417 = vst [vmem:[%s379 + $0x88] sm:$0xf] %v416
                  %v418 = vld [vmem:[%s378 + $0xd0] sm:$0xf]
                  %419 = vst [vmem:[%s379 + $0x8c] sm:$0xf] %v418
                  %v420 = vld [vmem:[%s378 + $0xd4] sm:$0xf]
                  %421 = vst [vmem:[%s379 + $0x90] sm:$0xf] %v420
                  %v422 = vld [vmem:[%s378 + $0xd8] sm:$0xf]
                  %423 = vst [vmem:[%s379 + $0x94] sm:$0xf] %v422
                  %v424 = vld [vmem:[%s378 + $0xdc] sm:$0xf]
                  %425 = vst [vmem:[%s379 + $0x98] sm:$0xf] %v424
                  %v426 = vld [vmem:[%s378 + $0xe0] sm:$0xf]
                  %427 = vst [vmem:[%s379 + $0x9c] sm:$0xf] %v426
                  %v428 = vld [vmem:[%s378 + $0xe4] sm:$0xf]
                  %429 = vst [vmem:[%s379 + $0xa0] sm:$0xf] %v428
                  %v430 = vld [vmem:[%s378 + $0xe8] sm:$0xf]
                  %431 = vst [vmem:[%s379 + $0xa4] sm:$0xf] %v430
                  %v432 = vld [vmem:[%s378 + $0xec] sm:$0xf]
                  %433 = vst [vmem:[%s379 + $0xa8] sm:$0xf] %v432
                  %v434 = vld [vmem:[%s378 + $0xf0] sm:$0xf]
                  %435 = vst [vmem:[%s379 + $0xac] sm:$0xf] %v434
                  %v436 = vld [vmem:[%s378 + $0xf4] sm:$0xf]
                  %437 = vst [vmem:[%s379 + $0xb0] sm:$0xf] %v436
                  %v438 = vld [vmem:[%s378 + $0xf8] sm:$0xf]
                  %439 = vst [vmem:[%s379 + $0xb4] sm:$0xf] %v438
                  %v440 = vld [vmem:[%s378 + $0xfc] sm:$0xf]
                  %441 = vst [vmem:[%s379 + $0xb8] sm:$0xf] %v440
                  %v442 = vld [vmem:[%s378 + $0x100] sm:$0xf]
                  %443 = vst [vmem:[%s379 + $0xbc] sm:$0xf] %v442
                  %v444 = vld [vmem:[%s378 + $0x188] sm:$0xf]
                  %445 = vst [vmem:[%s379 + $0x100] sm:$0xf] %v444
                  %v446 = vld [vmem:[%s378 + $0x18c] sm:$0xf]
                  %447 = vst [vmem:[%s379 + $0x104] sm:$0xf] %v446
                  %v448 = vld [vmem:[%s378 + $0x190] sm:$0xf]
                  %449 = vst [vmem:[%s379 + $0x108] sm:$0xf] %v448
                  %v450 = vld [vmem:[%s378 + $0x194] sm:$0xf]
                  %451 = vst [vmem:[%s379 + $0x10c] sm:$0xf] %v450
                  %v452 = vld [vmem:[%s378 + $0x198] sm:$0xf]
                  %453 = vst [vmem:[%s379 + $0x110] sm:$0xf] %v452
                  %v454 = vld [vmem:[%s378 + $0x19c] sm:$0xf]
                  %455 = vst [vmem:[%s379 + $0x114] sm:$0xf] %v454
                  %v456 = vld [vmem:[%s378 + $0x1a0] sm:$0xf]
                  %457 = vst [vmem:[%s379 + $0x118] sm:$0xf] %v456
                  %v458 = vld [vmem:[%s378 + $0x1a4] sm:$0xf]
                  %459 = vst [vmem:[%s379 + $0x11c] sm:$0xf] %v458
                  %v460 = vld [vmem:[%s378 + $0x1a8] sm:$0xf]
                  %461 = vst [vmem:[%s379 + $0x120] sm:$0xf] %v460
                  %v462 = vld [vmem:[%s378 + $0x1ac] sm:$0xf]
                  %463 = vst [vmem:[%s379 + $0x124] sm:$0xf] %v462
                  %v464 = vld [vmem:[%s378 + $0x1b0] sm:$0xf]
                  %465 = vst [vmem:[%s379 + $0x128] sm:$0xf] %v464
                  %v466 = vld [vmem:[%s378 + $0x1b4] sm:$0xf]
                  %467 = vst [vmem:[%s379 + $0x12c] sm:$0xf] %v466
                  %v468 = vld [vmem:[%s378 + $0x1b8] sm:$0xf]
                  %469 = vst [vmem:[%s379 + $0x130] sm:$0xf] %v468
                  %v470 = vld [vmem:[%s378 + $0x1bc] sm:$0xf]
                  %471 = vst [vmem:[%s379 + $0x134] sm:$0xf] %v470
                  %v472 = vld [vmem:[%s378 + $0x1c0] sm:$0xf]
                  %473 = vst [vmem:[%s379 + $0x138] sm:$0xf] %v472
                  %v474 = vld [vmem:[%s378 + $0x1c4] sm:$0xf]
                  %475 = vst [vmem:[%s379 + $0x13c] sm:$0xf] %v474
                  %v476 = vld [vmem:[%s378 + $0x24c] sm:$0xf]
                  %477 = vst [vmem:[%s379 + $0x180] sm:$0xf] %v476
                  %v478 = vld [vmem:[%s378 + $0x250] sm:$0xf]
                  %479 = vst [vmem:[%s379 + $0x184] sm:$0xf] %v478
                  %v480 = vld [vmem:[%s378 + $0x254] sm:$0xf]
                  %481 = vst [vmem:[%s379 + $0x188] sm:$0xf] %v480
                  %v482 = vld [vmem:[%s378 + $0x258] sm:$0xf]
                  %483 = vst [vmem:[%s379 + $0x18c] sm:$0xf] %v482
                  %v484 = vld [vmem:[%s378 + $0x25c] sm:$0xf]
                  %485 = vst [vmem:[%s379 + $0x190] sm:$0xf] %v484
                  %v486 = vld [vmem:[%s378 + $0x260] sm:$0xf]
                  %487 = vst [vmem:[%s379 + $0x194] sm:$0xf] %v486
                  %v488 = vld [vmem:[%s378 + $0x264] sm:$0xf]
                  %489 = vst [vmem:[%s379 + $0x198] sm:$0xf] %v488
                  %v490 = vld [vmem:[%s378 + $0x268] sm:$0xf]
                  %491 = vst [vmem:[%s379 + $0x19c] sm:$0xf] %v490
                  %v492 = vld [vmem:[%s378 + $0x26c] sm:$0xf]
                  %493 = vst [vmem:[%s379 + $0x1a0] sm:$0xf] %v492
                  %v494 = vld [vmem:[%s378 + $0x270] sm:$0xf]
                  %495 = vst [vmem:[%s379 + $0x1a4] sm:$0xf] %v494
                  %v496 = vld [vmem:[%s378 + $0x274] sm:$0xf]
                  %497 = vst [vmem:[%s379 + $0x1a8] sm:$0xf] %v496
                  %v498 = vld [vmem:[%s378 + $0x278] sm:$0xf]
                  %499 = vst [vmem:[%s379 + $0x1ac] sm:$0xf] %v498
                  %v500 = vld [vmem:[%s378 + $0x27c] sm:$0xf]
                  %501 = vst [vmem:[%s379 + $0x1b0] sm:$0xf] %v500
                  %v502 = vld [vmem:[%s378 + $0x280] sm:$0xf]
                  %503 = vst [vmem:[%s379 + $0x1b4] sm:$0xf] %v502
                  %v504 = vld [vmem:[%s378 + $0x284] sm:$0xf]
                  %505 = vst [vmem:[%s379 + $0x1b8] sm:$0xf] %v504
                  %v506 = vld [vmem:[%s378 + $0x288] sm:$0xf]
                  %507 = vst [vmem:[%s379 + $0x1bc] sm:$0xf] %v506
                  %s508 = sadd.s32 1, %s377
                  %p509 = scmp.ge.s32.totalorder %s508, %s370
                  %s510 = scalar_select %p509, 0, %s508
                  %s511 = smul.u32 %s510, 64
                  %s512 = smul.u32 %s510, 64
                  %s513 = scalar_lea.vmem %s142, %s511
                  %s514 = scalar_lea.vmem %s134, %s512 [#allocation2]
                $region77: #{fashion_cnn_forward.3} parent=57 // loop_footer
                  %s374 = sadd.s32 %s372, 1
                $region78: #{fashion_cnn_forward.3} parent=57 // loop_footer_branch
                  %371 = sbr.rel target = $region74
                $region79: #{fashion_cnn_forward.3} parent=57 // loop_exit
                  _
                %s515 = sshrl.u32 %s138, 4
                %s516 = sand.u32 %s138, 15
                %s517 = smul.u32 %s515, 16
                %s518 = smul.u32 4, %s517
                %s519 = scalar_lea.vmem %s142, %s518
                %s520 = smul.u32 4, %s517
                %s521 = scalar_lea.vmem %s134, %s520 [#allocation2]
                // While loop
                $region80: #{fashion_cnn_forward.3} parent=57 // loop_pre_header
                  _
                $region81: #{fashion_cnn_forward.3} parent=57 // loop_header
                  %s523 = sphi 0, %s525
                  %p524 = scmp.ge.s32.totalorder %s523, %s516
                  %s528 = sphi 0, %s541
                  %s529 = sphi %s519, %s544
                  %s530 = sphi %s521, %s545
                $region82: #{fashion_cnn_forward.3} parent=57 // loop_header_branch
                  %527 = sbr.rel (%p524) target = $region86
                $region83: #{fashion_cnn_forward.3} parent=57 // loop_body
                  %v531 = vld [vmem:[%s529] sm:$0xf]
                  %532 = vst [vmem:[%s530] sm:$0xf] %v531
                  %v533 = vld [vmem:[%s529 + $0xc4] sm:$0xf]
                  %534 = vst [vmem:[%s530 + $0x80] sm:$0xf] %v533
                  %v535 = vld [vmem:[%s529 + $0x188] sm:$0xf]
                  %536 = vst [vmem:[%s530 + $0x100] sm:$0xf] %v535
                  %v537 = vld [vmem:[%s529 + $0x24c] sm:$0xf]
                  %538 = vst [vmem:[%s530 + $0x180] sm:$0xf] %v537
                  %s539 = sadd.s32 1, %s528
                  %p540 = scmp.ge.s32.totalorder %s539, %s516
                  %s541 = scalar_select %p540, 0, %s539
                  %s542 = smul.u32 %s541, 4
                  %s543 = smul.u32 %s541, 4
                  %s544 = scalar_lea.vmem %s519, %s542
                  %s545 = scalar_lea.vmem %s521, %s543 [#allocation2]
                $region84: #{fashion_cnn_forward.3} parent=57 // loop_footer
                  %s525 = sadd.s32 %s523, 1
                $region85: #{fashion_cnn_forward.3} parent=57 // loop_footer_branch
                  %522 = sbr.rel target = $region81
                $region86: #{fashion_cnn_forward.3} parent=57 // loop_exit
                  _
              $region58: #{fashion_cnn_forward.3} parent=35 // pred_fallthru
                _
            $region36: #{fashion_cnn_forward.3} parent=31 // pred_fallthru
              _
            // Predicated region
            $region37: #{fashion_cnn_forward.3} parent=31 // pred_check
              _
            $region38: #{fashion_cnn_forward.3} parent=31 // pred_check_branch
              %149 = sbr.rel (0) target = $region40
            $region39: #{fashion_cnn_forward.3} parent=31 // pred_region
              %s151 = sshrl.u32 %s138, 4
              // While loop
              $region41: #{fashion_cnn_forward.3} parent=39 // loop_pre_header
                _
              $region42: #{fashion_cnn_forward.3} parent=39 // loop_header
                %s153 = sphi 0, %s155
                %p154 = scmp.ge.s32.totalorder %s153, %s151
                %s158 = sphi 0, %s291
                %s159 = sphi %s142, %s294
                %s160 = sphi %s134, %s295
              $region43: #{fashion_cnn_forward.3} parent=39 // loop_header_branch
                %157 = sbr.rel (%p154) target = $region47
              $region44: #{fashion_cnn_forward.3} parent=39 // loop_body
                %v161 = vld [vmem:[%s159] sm:$0xf]
                %162 = vst [vmem:[%s160] sm:$0xf] %v161
                %v163 = vld [vmem:[%s159 + $0x4] sm:$0xf]
                %164 = vst [vmem:[%s160 + $0x4] sm:$0xf] %v163
                %v165 = vld [vmem:[%s159 + $0x8] sm:$0xf]
                %166 = vst [vmem:[%s160 + $0x8] sm:$0xf] %v165
                %v167 = vld [vmem:[%s159 + $0xc] sm:$0xf]
                %168 = vst [vmem:[%s160 + $0xc] sm:$0xf] %v167
                %v169 = vld [vmem:[%s159 + $0x10] sm:$0xf]
                %170 = vst [vmem:[%s160 + $0x10] sm:$0xf] %v169
                %v171 = vld [vmem:[%s159 + $0x14] sm:$0xf]
                %172 = vst [vmem:[%s160 + $0x14] sm:$0xf] %v171
                %v173 = vld [vmem:[%s159 + $0x18] sm:$0xf]
                %174 = vst [vmem:[%s160 + $0x18] sm:$0xf] %v173
                %v175 = vld [vmem:[%s159 + $0x1c] sm:$0xf]
                %176 = vst [vmem:[%s160 + $0x1c] sm:$0xf] %v175
                %v177 = vld [vmem:[%s159 + $0x20] sm:$0xf]
                %178 = vst [vmem:[%s160 + $0x20] sm:$0xf] %v177
                %v179 = vld [vmem:[%s159 + $0x24] sm:$0xf]
                %180 = vst [vmem:[%s160 + $0x24] sm:$0xf] %v179
                %v181 = vld [vmem:[%s159 + $0x28] sm:$0xf]
                %182 = vst [vmem:[%s160 + $0x28] sm:$0xf] %v181
                %v183 = vld [vmem:[%s159 + $0x2c] sm:$0xf]
                %184 = vst [vmem:[%s160 + $0x2c] sm:$0xf] %v183
                %v185 = vld [vmem:[%s159 + $0x30] sm:$0xf]
                %186 = vst [vmem:[%s160 + $0x30] sm:$0xf] %v185
                %v187 = vld [vmem:[%s159 + $0x34] sm:$0xf]
                %188 = vst [vmem:[%s160 + $0x34] sm:$0xf] %v187
                %v189 = vld [vmem:[%s159 + $0x38] sm:$0xf]
                %190 = vst [vmem:[%s160 + $0x38] sm:$0xf] %v189
                %v191 = vld [vmem:[%s159 + $0x3c] sm:$0xf]
                %192 = vst [vmem:[%s160 + $0x3c] sm:$0xf] %v191
                %v193 = vld [vmem:[%s159 + $0xc4] sm:$0xf]
                %194 = vst [vmem:[%s160 + $0x80] sm:$0xf] %v193
                %v195 = vld [vmem:[%s159 + $0xc8] sm:$0xf]
                %196 = vst [vmem:[%s160 + $0x84] sm:$0xf] %v195
                %v197 = vld [vmem:[%s159 + $0xcc] sm:$0xf]
                %198 = vst [vmem:[%s160 + $0x88] sm:$0xf] %v197
                %v199 = vld [vmem:[%s159 + $0xd0] sm:$0xf]
                %200 = vst [vmem:[%s160 + $0x8c] sm:$0xf] %v199
                %v201 = vld [vmem:[%s159 + $0xd4] sm:$0xf]
                %202 = vst [vmem:[%s160 + $0x90] sm:$0xf] %v201
                %v203 = vld [vmem:[%s159 + $0xd8] sm:$0xf]
                %204 = vst [vmem:[%s160 + $0x94] sm:$0xf] %v203
                %v205 = vld [vmem:[%s159 + $0xdc] sm:$0xf]
                %206 = vst [vmem:[%s160 + $0x98] sm:$0xf] %v205
                %v207 = vld [vmem:[%s159 + $0xe0] sm:$0xf]
                %208 = vst [vmem:[%s160 + $0x9c] sm:$0xf] %v207
                %v209 = vld [vmem:[%s159 + $0xe4] sm:$0xf]
                %210 = vst [vmem:[%s160 + $0xa0] sm:$0xf] %v209
                %v211 = vld [vmem:[%s159 + $0xe8] sm:$0xf]
                %212 = vst [vmem:[%s160 + $0xa4] sm:$0xf] %v211
                %v213 = vld [vmem:[%s159 + $0xec] sm:$0xf]
                %214 = vst [vmem:[%s160 + $0xa8] sm:$0xf] %v213
                %v215 = vld [vmem:[%s159 + $0xf0] sm:$0xf]
                %216 = vst [vmem:[%s160 + $0xac] sm:$0xf] %v215
                %v217 = vld [vmem:[%s159 + $0xf4] sm:$0xf]
                %218 = vst [vmem:[%s160 + $0xb0] sm:$0xf] %v217
                %v219 = vld [vmem:[%s159 + $0xf8] sm:$0xf]
                %220 = vst [vmem:[%s160 + $0xb4] sm:$0xf] %v219
                %v221 = vld [vmem:[%s159 + $0xfc] sm:$0xf]
                %222 = vst [vmem:[%s160 + $0xb8] sm:$0xf] %v221
                %v223 = vld [vmem:[%s159 + $0x100] sm:$0xf]
                %224 = vst [vmem:[%s160 + $0xbc] sm:$0xf] %v223
                %v225 = vld [vmem:[%s159 + $0x188] sm:$0xf]
                %226 = vst [vmem:[%s160 + $0x100] sm:$0xf] %v225
                %v227 = vld [vmem:[%s159 + $0x18c] sm:$0xf]
                %228 = vst [vmem:[%s160 + $0x104] sm:$0xf] %v227
                %v229 = vld [vmem:[%s159 + $0x190] sm:$0xf]
                %230 = vst [vmem:[%s160 + $0x108] sm:$0xf] %v229
                %v231 = vld [vmem:[%s159 + $0x194] sm:$0xf]
                %232 = vst [vmem:[%s160 + $0x10c] sm:$0xf] %v231
                %v233 = vld [vmem:[%s159 + $0x198] sm:$0xf]
                %234 = vst [vmem:[%s160 + $0x110] sm:$0xf] %v233
                %v235 = vld [vmem:[%s159 + $0x19c] sm:$0xf]
                %236 = vst [vmem:[%s160 + $0x114] sm:$0xf] %v235
                %v237 = vld [vmem:[%s159 + $0x1a0] sm:$0xf]
                %238 = vst [vmem:[%s160 + $0x118] sm:$0xf] %v237
                %v239 = vld [vmem:[%s159 + $0x1a4] sm:$0xf]
                %240 = vst [vmem:[%s160 + $0x11c] sm:$0xf] %v239
                %v241 = vld [vmem:[%s159 + $0x1a8] sm:$0xf]
                %242 = vst [vmem:[%s160 + $0x120] sm:$0xf] %v241
                %v243 = vld [vmem:[%s159 + $0x1ac] sm:$0xf]
                %244 = vst [vmem:[%s160 + $0x124] sm:$0xf] %v243
                %v245 = vld [vmem:[%s159 + $0x1b0] sm:$0xf]
                %246 = vst [vmem:[%s160 + $0x128] sm:$0xf] %v245
                %v247 = vld [vmem:[%s159 + $0x1b4] sm:$0xf]
                %248 = vst [vmem:[%s160 + $0x12c] sm:$0xf] %v247
                %v249 = vld [vmem:[%s159 + $0x1b8] sm:$0xf]
                %250 = vst [vmem:[%s160 + $0x130] sm:$0xf] %v249
                %v251 = vld [vmem:[%s159 + $0x1bc] sm:$0xf]
                %252 = vst [vmem:[%s160 + $0x134] sm:$0xf] %v251
                %v253 = vld [vmem:[%s159 + $0x1c0] sm:$0xf]
                %254 = vst [vmem:[%s160 + $0x138] sm:$0xf] %v253
                %v255 = vld [vmem:[%s159 + $0x1c4] sm:$0xf]
                %256 = vst [vmem:[%s160 + $0x13c] sm:$0xf] %v255
                %v257 = vld [vmem:[%s159 + $0x24c] sm:$0xf]
                %258 = vst [vmem:[%s160 + $0x180] sm:$0xf] %v257
                %v259 = vld [vmem:[%s159 + $0x250] sm:$0xf]
                %260 = vst [vmem:[%s160 + $0x184] sm:$0xf] %v259
                %v261 = vld [vmem:[%s159 + $0x254] sm:$0xf]
                %262 = vst [vmem:[%s160 + $0x188] sm:$0xf] %v261
                %v263 = vld [vmem:[%s159 + $0x258] sm:$0xf]
                %264 = vst [vmem:[%s160 + $0x18c] sm:$0xf] %v263
                %v265 = vld [vmem:[%s159 + $0x25c] sm:$0xf]
                %266 = vst [vmem:[%s160 + $0x190] sm:$0xf] %v265
                %v267 = vld [vmem:[%s159 + $0x260] sm:$0xf]
                %268 = vst [vmem:[%s160 + $0x194] sm:$0xf] %v267
                %v269 = vld [vmem:[%s159 + $0x264] sm:$0xf]
                %270 = vst [vmem:[%s160 + $0x198] sm:$0xf] %v269
                %v271 = vld [vmem:[%s159 + $0x268] sm:$0xf]
                %272 = vst [vmem:[%s160 + $0x19c] sm:$0xf] %v271
                %v273 = vld [vmem:[%s159 + $0x26c] sm:$0xf]
                %274 = vst [vmem:[%s160 + $0x1a0] sm:$0xf] %v273
                %v275 = vld [vmem:[%s159 + $0x270] sm:$0xf]
                %276 = vst [vmem:[%s160 + $0x1a4] sm:$0xf] %v275
                %v277 = vld [vmem:[%s159 + $0x274] sm:$0xf]
                %278 = vst [vmem:[%s160 + $0x1a8] sm:$0xf] %v277
                %v279 = vld [vmem:[%s159 + $0x278] sm:$0xf]
                %280 = vst [vmem:[%s160 + $0x1ac] sm:$0xf] %v279
                %v281 = vld [vmem:[%s159 + $0x27c] sm:$0xf]
                %282 = vst [vmem:[%s160 + $0x1b0] sm:$0xf] %v281
                %v283 = vld [vmem:[%s159 + $0x280] sm:$0xf]
                %284 = vst [vmem:[%s160 + $0x1b4] sm:$0xf] %v283
                %v285 = vld [vmem:[%s159 + $0x284] sm:$0xf]
                %286 = vst [vmem:[%s160 + $0x1b8] sm:$0xf] %v285
                %v287 = vld [vmem:[%s159 + $0x288] sm:$0xf]
                %288 = vst [vmem:[%s160 + $0x1bc] sm:$0xf] %v287
                %s289 = sadd.s32 1, %s158
                %p290 = scmp.ge.s32.totalorder %s289, %s151
                %s291 = scalar_select %p290, 0, %s289
                %s292 = smul.u32 %s291, 64
                %s293 = smul.u32 %s291, 64
                %s294 = scalar_lea.vmem %s142, %s292
                %s295 = scalar_lea.vmem %s134, %s293 [#allocation2]
              $region45: #{fashion_cnn_forward.3} parent=39 // loop_footer
                %s155 = sadd.s32 %s153, 1
              $region46: #{fashion_cnn_forward.3} parent=39 // loop_footer_branch
                %152 = sbr.rel target = $region42
              $region47: #{fashion_cnn_forward.3} parent=39 // loop_exit
                _
              %s296 = sshrl.u32 %s138, 4
              %s297 = sand.u32 %s138, 15
              %s298 = smul.u32 %s296, 16
              %s299 = smul.u32 4, %s298
              %s300 = scalar_lea.vmem %s142, %s299
              %s301 = smul.u32 4, %s298
              %s302 = scalar_lea.vmem %s134, %s301 [#allocation2]
              // While loop
              $region48: #{fashion_cnn_forward.3} parent=39 // loop_pre_header
                _
              $region49: #{fashion_cnn_forward.3} parent=39 // loop_header
                %s304 = sphi 0, %s306
                %p305 = scmp.ge.s32.totalorder %s304, %s297
                %s309 = sphi 0, %s322
                %s310 = sphi %s300, %s325
                %s311 = sphi %s302, %s326
              $region50: #{fashion_cnn_forward.3} parent=39 // loop_header_branch
                %308 = sbr.rel (%p305) target = $region54
              $region51: #{fashion_cnn_forward.3} parent=39 // loop_body
                %v312 = vld [vmem:[%s310] sm:$0xf]
                %313 = vst [vmem:[%s311] sm:$0xf] %v312
                %v314 = vld [vmem:[%s310 + $0xc4] sm:$0xf]
                %315 = vst [vmem:[%s311 + $0x80] sm:$0xf] %v314
                %v316 = vld [vmem:[%s310 + $0x188] sm:$0xf]
                %317 = vst [vmem:[%s311 + $0x100] sm:$0xf] %v316
                %v318 = vld [vmem:[%s310 + $0x24c] sm:$0xf]
                %319 = vst [vmem:[%s311 + $0x180] sm:$0xf] %v318
                %s320 = sadd.s32 1, %s309
                %p321 = scmp.ge.s32.totalorder %s320, %s297
                %s322 = scalar_select %p321, 0, %s320
                %s323 = smul.u32 %s322, 4
                %s324 = smul.u32 %s322, 4
                %s325 = scalar_lea.vmem %s300, %s323
                %s326 = scalar_lea.vmem %s302, %s324 [#allocation2]
              $region52: #{fashion_cnn_forward.3} parent=39 // loop_footer
                %s306 = sadd.s32 %s304, 1
              $region53: #{fashion_cnn_forward.3} parent=39 // loop_footer_branch
                %303 = sbr.rel target = $region49
              $region54: #{fashion_cnn_forward.3} parent=39 // loop_exit
                _
            $region40: #{fashion_cnn_forward.3} parent=31 // pred_fallthru
              _
          $region32: #{fashion_cnn_forward.3} parent=27 // pred_fallthru
            _
          %546 = vnop
        $region28: #{fashion_cnn_forward.3} parent=23 // pred_fallthru
          _
      $region24: #{fashion_cnn_forward.3} parent=5 // pred_fallthru
        _
      %p547 = scmp.le.s32.totalorder 1, %s9
      %p548 = scmp.lt.s32.totalorder %s9, 3
      %p549 = pnand %p547, %p548
      %p550 = pneg %p549
      // Predicated region
      $region87: #{fashion_cnn_forward.3} parent=5 // pred_check
        _
      $region88: #{fashion_cnn_forward.3} parent=5 // pred_check_branch
        %552 = sbr.rel (%p549) target = $region90
      $region89: #{fashion_cnn_forward.3} parent=5 // pred_region
        %s553 = ssub.s32 %s9, 1
        %s554 = sand.u32 %s22, 1
        %s555 = sand.u32 %s22, 1
        %s556 = smul.addr %s555, 512
        %s557 = scalar_lea.vmem [#allocation2], %s556
        // Predicated region
        $region91: #{fashion_cnn_forward.3} parent=89 // pred_check
          %p558 = pneg %p35
        $region92: #{fashion_cnn_forward.3} parent=89 // pred_check_branch
          %560 = sbr.rel (%p558) target = $region94
        $region93: #{fashion_cnn_forward.3} parent=89 // pred_region
          _
        $region94: #{fashion_cnn_forward.3} parent=89 // pred_fallthru
          _
        %s561 = sand.u32 %s22, 1
        %s562 = sand.u32 %s22, 1
        %s563 = smul.addr %s562, 512
        %s564 = scalar_lea.vmem [#allocation2], %s563
        %p565 = pneg %p35
        %p566 = pneg %p32
        %p567 = pneg %p56
        %p568 = pneg %p53
        %p569 = pneg %p77
        %p570 = pneg %p74
        %p571 = pneg %p103
        %p572 = pneg %p100
        %s573 = sand.u32 %s90, 1
        %s574 = sand.u32 %s90, 1
        %s575 = smul.addr %s574, 128
        %s576 = scalar_lea.vmem [#allocation3], %s575
        %s577 = smul.u32 32, %s14
        %s578 = ssub.s32 49, %s577
        %p579 = scmp.lt.s32.totalorder %s578, 32
        %s580 = scalar_select %p579, %s578, 32
        %s581 = smul.u32 256, %s580
        %s582 = smul.u32 32, %s14
        %s583 = ssub.s32 49, %s582
        %p584 = scmp.lt.s32.totalorder %s583, 32
        %s585 = scalar_select %p584, %s583, 32
        %s586 = smul.u32 64, %s585
        %v588 = vld [vmem:[%s557] sm:$0xf]
        %v589 = vld [vmem:[%s557 + $0x4] sm:$0xf]
        %v590 = vld [vmem:[%s557 + $0x8] sm:$0xf]
        %v591 = vld [vmem:[%s557 + $0xc] sm:$0xf]
        %v592 = vld [vmem:[%s557 + $0x10] sm:$0xf]
        %v593 = vld [vmem:[%s557 + $0x14] sm:$0xf]
        %v594 = vld [vmem:[%s557 + $0x18] sm:$0xf]
        %v595 = vld [vmem:[%s557 + $0x1c] sm:$0xf]
        %v596 = vld [vmem:[%s557 + $0x20] sm:$0xf]
        %v597 = vld [vmem:[%s557 + $0x24] sm:$0xf]
        %v598 = vld [vmem:[%s557 + $0x28] sm:$0xf]
        %v599 = vld [vmem:[%s557 + $0x2c] sm:$0xf]
        %v600 = vld [vmem:[%s557 + $0x30] sm:$0xf]
        %v601 = vld [vmem:[%s557 + $0x34] sm:$0xf]
        %v602 = vld [vmem:[%s557 + $0x38] sm:$0xf]
        %v603 = vld [vmem:[%s557 + $0x3c] sm:$0xf]
        %v604 = vld [vmem:[%s557 + $0x40] sm:$0xf]
        %v605 = vld [vmem:[%s557 + $0x44] sm:$0xf]
        %v606 = vld [vmem:[%s557 + $0x48] sm:$0xf]
        %v607 = vld [vmem:[%s557 + $0x4c] sm:$0xf]
        %v608 = vld [vmem:[%s557 + $0x50] sm:$0xf]
        %v609 = vld [vmem:[%s557 + $0x54] sm:$0xf]
        %v610 = vld [vmem:[%s557 + $0x58] sm:$0xf]
        %v611 = vld [vmem:[%s557 + $0x5c] sm:$0xf]
        %v612 = vld [vmem:[%s557 + $0x60] sm:$0xf]
        %v613 = vld [vmem:[%s557 + $0x64] sm:$0xf]
        %v614 = vld [vmem:[%s557 + $0x68] sm:$0xf]
        %v615 = vld [vmem:[%s557 + $0x6c] sm:$0xf]
        %v616 = vld [vmem:[%s557 + $0x70] sm:$0xf]
        %v617 = vld [vmem:[%s557 + $0x74] sm:$0xf]
        %v618 = vld [vmem:[%s557 + $0x78] sm:$0xf]
        %v619 = vld [vmem:[%s557 + $0x7c] sm:$0xf]
        %v620 = vld [vmem:[%s557 + $0x80] sm:$0xf]
        %v621 = vld [vmem:[%s557 + $0x84] sm:$0xf]
        %v622 = vld [vmem:[%s557 + $0x88] sm:$0xf]
        %v623 = vld [vmem:[%s557 + $0x8c] sm:$0xf]
        %v624 = vld [vmem:[%s557 + $0x90] sm:$0xf]
        %v625 = vld [vmem:[%s557 + $0x94] sm:$0xf]
        %v626 = vld [vmem:[%s557 + $0x98] sm:$0xf]
        %v627 = vld [vmem:[%s557 + $0x9c] sm:$0xf]
        %v628 = vld [vmem:[%s557 + $0xa0] sm:$0xf]
        %v629 = vld [vmem:[%s557 + $0xa4] sm:$0xf]
        %v630 = vld [vmem:[%s557 + $0xa8] sm:$0xf]
        %v631 = vld [vmem:[%s557 + $0xac] sm:$0xf]
        %v632 = vld [vmem:[%s557 + $0xb0] sm:$0xf]
        %v633 = vld [vmem:[%s557 + $0xb4] sm:$0xf]
        %v634 = vld [vmem:[%s557 + $0xb8] sm:$0xf]
        %v635 = vld [vmem:[%s557 + $0xbc] sm:$0xf]
        %v636 = vld [vmem:[%s557 + $0xc0] sm:$0xf]
        %v637 = vld [vmem:[%s557 + $0xc4] sm:$0xf]
        %v638 = vld [vmem:[%s557 + $0xc8] sm:$0xf]
        %v639 = vld [vmem:[%s557 + $0xcc] sm:$0xf]
        %v640 = vld [vmem:[%s557 + $0xd0] sm:$0xf]
        %v641 = vld [vmem:[%s557 + $0xd4] sm:$0xf]
        %v642 = vld [vmem:[%s557 + $0xd8] sm:$0xf]
        %v643 = vld [vmem:[%s557 + $0xdc] sm:$0xf]
        %v644 = vld [vmem:[%s557 + $0xe0] sm:$0xf]
        %v645 = vld [vmem:[%s557 + $0xe4] sm:$0xf]
        %v646 = vld [vmem:[%s557 + $0xe8] sm:$0xf]
        %v647 = vld [vmem:[%s557 + $0xec] sm:$0xf]
        %v648 = vld [vmem:[%s557 + $0xf0] sm:$0xf]
        %v649 = vld [vmem:[%s557 + $0xf4] sm:$0xf]
        %v650 = vld [vmem:[%s557 + $0xf8] sm:$0xf]
        %v651 = vld [vmem:[%s557 + $0xfc] sm:$0xf]
        %v652 = vld [vmem:[%s557 + $0x100] sm:$0xf]
        %v653 = vld [vmem:[%s557 + $0x104] sm:$0xf]
        %v654 = vld [vmem:[%s557 + $0x108] sm:$0xf]
        %v655 = vld [vmem:[%s557 + $0x10c] sm:$0xf]
        %v656 = vld [vmem:[%s557 + $0x110] sm:$0xf]
        %v657 = vld [vmem:[%s557 + $0x114] sm:$0xf]
        %v658 = vld [vmem:[%s557 + $0x118] sm:$0xf]
        %v659 = vld [vmem:[%s557 + $0x11c] sm:$0xf]
        %v660 = vld [vmem:[%s557 + $0x120] sm:$0xf]
        %v661 = vld [vmem:[%s557 + $0x124] sm:$0xf]
        %v662 = vld [vmem:[%s557 + $0x128] sm:$0xf]
        %v663 = vld [vmem:[%s557 + $0x12c] sm:$0xf]
        %v664 = vld [vmem:[%s557 + $0x130] sm:$0xf]
        %v665 = vld [vmem:[%s557 + $0x134] sm:$0xf]
        %v666 = vld [vmem:[%s557 + $0x138] sm:$0xf]
        %v667 = vld [vmem:[%s557 + $0x13c] sm:$0xf]
        %v668 = vld [vmem:[%s557 + $0x140] sm:$0xf]
        %v669 = vld [vmem:[%s557 + $0x144] sm:$0xf]
        %v670 = vld [vmem:[%s557 + $0x148] sm:$0xf]
        %v671 = vld [vmem:[%s557 + $0x14c] sm:$0xf]
        %v672 = vld [vmem:[%s557 + $0x150] sm:$0xf]
        %v673 = vld [vmem:[%s557 + $0x154] sm:$0xf]
        %v674 = vld [vmem:[%s557 + $0x158] sm:$0xf]
        %v675 = vld [vmem:[%s557 + $0x15c] sm:$0xf]
        %v676 = vld [vmem:[%s557 + $0x160] sm:$0xf]
        %v677 = vld [vmem:[%s557 + $0x164] sm:$0xf]
        %v678 = vld [vmem:[%s557 + $0x168] sm:$0xf]
        %v679 = vld [vmem:[%s557 + $0x16c] sm:$0xf]
        %v680 = vld [vmem:[%s557 + $0x170] sm:$0xf]
        %v681 = vld [vmem:[%s557 + $0x174] sm:$0xf]
        %v682 = vld [vmem:[%s557 + $0x178] sm:$0xf]
        %v683 = vld [vmem:[%s557 + $0x17c] sm:$0xf]
        %v684 = vld [vmem:[%s557 + $0x180] sm:$0xf]
        %v685 = vld [vmem:[%s557 + $0x184] sm:$0xf]
        %v686 = vld [vmem:[%s557 + $0x188] sm:$0xf]
        %v687 = vld [vmem:[%s557 + $0x18c] sm:$0xf]
        %v688 = vld [vmem:[%s557 + $0x190] sm:$0xf]
        %v689 = vld [vmem:[%s557 + $0x194] sm:$0xf]
        %v690 = vld [vmem:[%s557 + $0x198] sm:$0xf]
        %v691 = vld [vmem:[%s557 + $0x19c] sm:$0xf]
        %v692 = vld [vmem:[%s557 + $0x1a0] sm:$0xf]
        %v693 = vld [vmem:[%s557 + $0x1a4] sm:$0xf]
        %v694 = vld [vmem:[%s557 + $0x1a8] sm:$0xf]
        %v695 = vld [vmem:[%s557 + $0x1ac] sm:$0xf]
        %v696 = vld [vmem:[%s557 + $0x1b0] sm:$0xf]
        %v697 = vld [vmem:[%s557 + $0x1b4] sm:$0xf]
        %v698 = vld [vmem:[%s557 + $0x1b8] sm:$0xf]
        %v699 = vld [vmem:[%s557 + $0x1bc] sm:$0xf]
        %v700 = vld [vmem:[%s557 + $0x1c0] sm:$0xf]
        %v701 = vld [vmem:[%s557 + $0x1c4] sm:$0xf]
        %v702 = vld [vmem:[%s557 + $0x1c8] sm:$0xf]
        %v703 = vld [vmem:[%s557 + $0x1cc] sm:$0xf]
        %v704 = vld [vmem:[%s557 + $0x1d0] sm:$0xf]
        %v705 = vld [vmem:[%s557 + $0x1d4] sm:$0xf]
        %v706 = vld [vmem:[%s557 + $0x1d8] sm:$0xf]
        %v707 = vld [vmem:[%s557 + $0x1dc] sm:$0xf]
        %v708 = vld [vmem:[%s557 + $0x1e0] sm:$0xf]
        %v709 = vld [vmem:[%s557 + $0x1e4] sm:$0xf]
        %v710 = vld [vmem:[%s557 + $0x1e8] sm:$0xf]
        %v711 = vld [vmem:[%s557 + $0x1ec] sm:$0xf]
        %v712 = vld [vmem:[%s557 + $0x1f0] sm:$0xf]
        %v713 = vld [vmem:[%s557 + $0x1f4] sm:$0xf]
        %v714 = vld [vmem:[%s557 + $0x1f8] sm:$0xf]
        %v715 = vld [vmem:[%s557 + $0x1fc] sm:$0xf]
        %v716 = vld [vmem:[%s1] sm:$0xf]
        %v717 = vld [vmem:[%s1 + $0x4] sm:$0x1]
        %v846 = vunpack.c.l.b16 %v588
        %v847 = vunpack.c.l.b16 %v589
        %v848 = vunpack.c.l.b16 %v590
        %v849 = vunpack.c.l.b16 %v591
        %v850 = vunpack.c.l.b16 %v592
        %v851 = vunpack.c.l.b16 %v593
        %v852 = vunpack.c.l.b16 %v594
        %v853 = vunpack.c.l.b16 %v595
        %v854 = vunpack.c.l.b16 %v596
        %v855 = vunpack.c.l.b16 %v597
        %v856 = vunpack.c.l.b16 %v598
        %v857 = vunpack.c.l.b16 %v599
        %v858 = vunpack.c.l.b16 %v600
        %v859 = vunpack.c.l.b16 %v601
        %v860 = vunpack.c.l.b16 %v602
        %v861 = vunpack.c.l.b16 %v603
        %v862 = vunpack.c.l.b16 %v604
        %v863 = vunpack.c.l.b16 %v605
        %v864 = vunpack.c.l.b16 %v606
        %v865 = vunpack.c.l.b16 %v607
        %v866 = vunpack.c.l.b16 %v608
        %v867 = vunpack.c.l.b16 %v609
        %v868 = vunpack.c.l.b16 %v610
        %v869 = vunpack.c.l.b16 %v611
        %v870 = vunpack.c.l.b16 %v612
        %v871 = vunpack.c.l.b16 %v613
        %v872 = vunpack.c.l.b16 %v614
        %v873 = vunpack.c.l.b16 %v615
        %v874 = vunpack.c.l.b16 %v616
        %v875 = vunpack.c.l.b16 %v617
        %v876 = vunpack.c.l.b16 %v618
        %v877 = vunpack.c.l.b16 %v619
        %v878 = vunpack.c.l.b16 %v620
        %v879 = vunpack.c.l.b16 %v621
        %v880 = vunpack.c.l.b16 %v622
        %v881 = vunpack.c.l.b16 %v623
        %v882 = vunpack.c.l.b16 %v624
        %v883 = vunpack.c.l.b16 %v625
        %v884 = vunpack.c.l.b16 %v626
        %v885 = vunpack.c.l.b16 %v627
        %v886 = vunpack.c.l.b16 %v628
        %v887 = vunpack.c.l.b16 %v629
        %v888 = vunpack.c.l.b16 %v630
        %v889 = vunpack.c.l.b16 %v631
        %v890 = vunpack.c.l.b16 %v632
        %v891 = vunpack.c.l.b16 %v633
        %v892 = vunpack.c.l.b16 %v634
        %v893 = vunpack.c.l.b16 %v635
        %v894 = vunpack.c.l.b16 %v636
        %v895 = vunpack.c.l.b16 %v637
        %v896 = vunpack.c.l.b16 %v638
        %v897 = vunpack.c.l.b16 %v639
        %v898 = vunpack.c.l.b16 %v640
        %v899 = vunpack.c.l.b16 %v641
        %v900 = vunpack.c.l.b16 %v642
        %v901 = vunpack.c.l.b16 %v643
        %v902 = vunpack.c.l.b16 %v644
        %v903 = vunpack.c.l.b16 %v645
        %v904 = vunpack.c.l.b16 %v646
        %v905 = vunpack.c.l.b16 %v647
        %v906 = vunpack.c.l.b16 %v648
        %v907 = vunpack.c.l.b16 %v649
        %v908 = vunpack.c.l.b16 %v650
        %v909 = vunpack.c.l.b16 %v651
        %v910 = vunpack.c.l.b16 %v652
        %v911 = vunpack.c.l.b16 %v653
        %v912 = vunpack.c.l.b16 %v654
        %v913 = vunpack.c.l.b16 %v655
        %v914 = vunpack.c.l.b16 %v656
        %v915 = vunpack.c.l.b16 %v657
        %v916 = vunpack.c.l.b16 %v658
        %v917 = vunpack.c.l.b16 %v659
        %v918 = vunpack.c.l.b16 %v660
        %v919 = vunpack.c.l.b16 %v661
        %v920 = vunpack.c.l.b16 %v662
        %v921 = vunpack.c.l.b16 %v663
        %v922 = vunpack.c.l.b16 %v664
        %v923 = vunpack.c.l.b16 %v665
        %v924 = vunpack.c.l.b16 %v666
        %v925 = vunpack.c.l.b16 %v667
        %v926 = vunpack.c.l.b16 %v668
        %v927 = vunpack.c.l.b16 %v669
        %v928 = vunpack.c.l.b16 %v670
        %v929 = vunpack.c.l.b16 %v671
        %v930 = vunpack.c.l.b16 %v672
        %v931 = vunpack.c.l.b16 %v673
        %v932 = vunpack.c.l.b16 %v674
        %v933 = vunpack.c.l.b16 %v675
        %v934 = vunpack.c.l.b16 %v676
        %v935 = vunpack.c.l.b16 %v677
        %v936 = vunpack.c.l.b16 %v678
        %v937 = vunpack.c.l.b16 %v679
        %v938 = vunpack.c.l.b16 %v680
        %v939 = vunpack.c.l.b16 %v681
        %v940 = vunpack.c.l.b16 %v682
        %v941 = vunpack.c.l.b16 %v683
        %v942 = vunpack.c.l.b16 %v684
        %v943 = vunpack.c.l.b16 %v685
        %v944 = vunpack.c.l.b16 %v686
        %v945 = vunpack.c.l.b16 %v687
        %v946 = vunpack.c.l.b16 %v688
        %v947 = vunpack.c.l.b16 %v689
        %v948 = vunpack.c.l.b16 %v690
        %v949 = vunpack.c.l.b16 %v691
        %v950 = vunpack.c.l.b16 %v692
        %v951 = vunpack.c.l.b16 %v693
        %v952 = vunpack.c.l.b16 %v694
        %v953 = vunpack.c.l.b16 %v695
        %v954 = vunpack.c.l.b16 %v696
        %v955 = vunpack.c.l.b16 %v697
        %v956 = vunpack.c.l.b16 %v698
        %v957 = vunpack.c.l.b16 %v699
        %v958 = vunpack.c.l.b16 %v700
        %v959 = vunpack.c.l.b16 %v701
        %v960 = vunpack.c.l.b16 %v702
        %v961 = vunpack.c.l.b16 %v703
        %v962 = vunpack.c.l.b16 %v704
        %v963 = vunpack.c.l.b16 %v705
        %v964 = vunpack.c.l.b16 %v706
        %v965 = vunpack.c.l.b16 %v707
        %v966 = vunpack.c.l.b16 %v708
        %v967 = vunpack.c.l.b16 %v709
        %v968 = vunpack.c.l.b16 %v710
        %v969 = vunpack.c.l.b16 %v711
        %v970 = vunpack.c.l.b16 %v712
        %v971 = vunpack.c.l.b16 %v713
        %v972 = vunpack.c.l.b16 %v714
        %v973 = vunpack.c.l.b16 %v715
        %v974 = vpack.c.b16 %v847, %v846
        %v975 = vpack.c.b16 %v849, %v848
        %v976 = vpack.c.b16 %v851, %v850
        %v977 = vpack.c.b16 %v853, %v852
        %v978 = vpack.c.b16 %v855, %v854
        %v979 = vpack.c.b16 %v857, %v856
        %v980 = vpack.c.b16 %v859, %v858
        %v981 = vpack.c.b16 %v861, %v860
        %v982 = vpack.c.b16 %v863, %v862
        %v983 = vpack.c.b16 %v865, %v864
        %v984 = vpack.c.b16 %v867, %v866
        %v985 = vpack.c.b16 %v869, %v868
        %v986 = vpack.c.b16 %v871, %v870
        %v987 = vpack.c.b16 %v873, %v872
        %v988 = vpack.c.b16 %v875, %v874
        %v989 = vpack.c.b16 %v877, %v876
        %v990 = vpack.c.b16 %v879, %v878
        %v991 = vpack.c.b16 %v881, %v880
        %v992 = vpack.c.b16 %v883, %v882
        %v993 = vpack.c.b16 %v885, %v884
        %v994 = vpack.c.b16 %v887, %v886
        %v995 = vpack.c.b16 %v889, %v888
        %v996 = vpack.c.b16 %v891, %v890
        %v997 = vpack.c.b16 %v893, %v892
        %v998 = vpack.c.b16 %v895, %v894
        %v999 = vpack.c.b16 %v897, %v896
        %v1000 = vpack.c.b16 %v899, %v898
        %v1001 = vpack.c.b16 %v901, %v900
        %v1002 = vpack.c.b16 %v903, %v902
        %v1003 = vpack.c.b16 %v905, %v904
        %v1004 = vpack.c.b16 %v907, %v906
        %v1005 = vpack.c.b16 %v909, %v908
        %v1006 = vpack.c.b16 %v911, %v910
        %v1007 = vpack.c.b16 %v913, %v912
        %v1008 = vpack.c.b16 %v915, %v914
        %v1009 = vpack.c.b16 %v917, %v916
        %v1010 = vpack.c.b16 %v919, %v918
        %v1011 = vpack.c.b16 %v921, %v920
        %v1012 = vpack.c.b16 %v923, %v922
        %v1013 = vpack.c.b16 %v925, %v924
        %v1014 = vpack.c.b16 %v927, %v926
        %v1015 = vpack.c.b16 %v929, %v928
        %v1016 = vpack.c.b16 %v931, %v930
        %v1017 = vpack.c.b16 %v933, %v932
        %v1018 = vpack.c.b16 %v935, %v934
        %v1019 = vpack.c.b16 %v937, %v936
        %v1020 = vpack.c.b16 %v939, %v938
        %v1021 = vpack.c.b16 %v941, %v940
        %v1022 = vpack.c.b16 %v943, %v942
        %v1023 = vpack.c.b16 %v945, %v944
        %v1024 = vpack.c.b16 %v947, %v946
        %v1025 = vpack.c.b16 %v949, %v948
        %v1026 = vpack.c.b16 %v951, %v950
        %v1027 = vpack.c.b16 %v953, %v952
        %v1028 = vpack.c.b16 %v955, %v954
        %v1029 = vpack.c.b16 %v957, %v956
        %v1030 = vpack.c.b16 %v959, %v958
        %v1031 = vpack.c.b16 %v961, %v960
        %v1032 = vpack.c.b16 %v963, %v962
        %v1033 = vpack.c.b16 %v965, %v964
        %v1034 = vpack.c.b16 %v967, %v966
        %v1035 = vpack.c.b16 %v969, %v968
        %v1036 = vpack.c.b16 %v971, %v970
        %v1037 = vpack.c.b16 %v973, %v972
        %v1040 = vunpack.c.l.b16 %v716
        %v1041 = vunpack.c.l.b16 %v717
        %v1042 = vpack.c.b16 %v1041, %v1040
        %vm1043 = vcmask 72704
        %v1045 = vsel %vm1043, %v974, 0
        %v1048 = vsel %vm1043, %v975, 0
        %v1051 = vsel %vm1043, %v976, 0
        %v1054 = vsel %vm1043, %v977, 0
        %v1057 = vsel %vm1043, %v978, 0
        %v1060 = vsel %vm1043, %v979, 0
        %v1063 = vsel %vm1043, %v980, 0
        %v1066 = vsel %vm1043, %v981, 0
        %v1069 = vsel %vm1043, %v982, 0
        %v1072 = vsel %vm1043, %v983, 0
        %v1075 = vsel %vm1043, %v984, 0
        %v1078 = vsel %vm1043, %v985, 0
        %v1081 = vsel %vm1043, %v986, 0
        %v1084 = vsel %vm1043, %v987, 0
        %v1087 = vsel %vm1043, %v988, 0
        %v1090 = vsel %vm1043, %v989, 0
        %v1093 = vsel %vm1043, %v990, 0
        %v1096 = vsel %vm1043, %v991, 0
        %v1099 = vsel %vm1043, %v992, 0
        %v1102 = vsel %vm1043, %v993, 0
        %v1105 = vsel %vm1043, %v994, 0
        %v1108 = vsel %vm1043, %v995, 0
        %v1111 = vsel %vm1043, %v996, 0
        %v1114 = vsel %vm1043, %v997, 0
        %v1117 = vsel %vm1043, %v998, 0
        %v1120 = vsel %vm1043, %v999, 0
        %v1123 = vsel %vm1043, %v1000, 0
        %v1126 = vsel %vm1043, %v1001, 0
        %v1129 = vsel %vm1043, %v1002, 0
        %v1132 = vsel %vm1043, %v1003, 0
        %v1135 = vsel %vm1043, %v1004, 0
        %v1138 = vsel %vm1043, %v1005, 0
        %v1141 = vsel %vm1043, %v1006, 0
        %v1144 = vsel %vm1043, %v1007, 0
        %v1147 = vsel %vm1043, %v1008, 0
        %v1150 = vsel %vm1043, %v1009, 0
        %v1153 = vsel %vm1043, %v1010, 0
        %v1156 = vsel %vm1043, %v1011, 0
        %v1159 = vsel %vm1043, %v1012, 0
        %v1162 = vsel %vm1043, %v1013, 0
        %v1165 = vsel %vm1043, %v1014, 0
        %v1168 = vsel %vm1043, %v1015, 0
        %v1171 = vsel %vm1043, %v1016, 0
        %v1174 = vsel %vm1043, %v1017, 0
        %v1177 = vsel %vm1043, %v1018, 0
        %v1180 = vsel %vm1043, %v1019, 0
        %v1183 = vsel %vm1043, %v1020, 0
        %v1186 = vsel %vm1043, %v1021, 0
        %v1189 = vsel %vm1043, %v1022, 0
        %v1192 = vsel %vm1043, %v1023, 0
        %v1195 = vsel %vm1043, %v1024, 0
        %v1198 = vsel %vm1043, %v1025, 0
        %v1201 = vsel %vm1043, %v1026, 0
        %v1204 = vsel %vm1043, %v1027, 0
        %v1207 = vsel %vm1043, %v1028, 0
        %v1210 = vsel %vm1043, %v1029, 0
        %v1213 = vsel %vm1043, %v1030, 0
        %v1216 = vsel %vm1043, %v1031, 0
        %v1219 = vsel %vm1043, %v1032, 0
        %v1222 = vsel %vm1043, %v1033, 0
        %v1225 = vsel %vm1043, %v1034, 0
        %v1228 = vsel %vm1043, %v1035, 0
        %v1231 = vsel %vm1043, %v1036, 0
        %v1234 = vsel %vm1043, %v1037, 0
        %vm1236 = vcmask 1043456
        %vm1237 = vcmask 1044480
        %v1238 = vsel %vm1236, 4294967295, 65535
        %v1239 = vsel %vm1237, %v1238, 0
        %v1241 = vand.u32 %v1042, %v1239
        %1243 = vmatprep.subr.bf16.mxu0 0
        %1244 = vmatpush1.bf16.msra.mxu0 %v1241
        %1245 = vmatprep.subr.bf16.mxu0 0
        %1246 = vmatpush1.bf16.msra.mxu0 0
        %1247 = vmatprep.subr.bf16.mxu0 0
        %1248 = vmatpush1.bf16.msra.mxu0 0
        %1249 = vmatprep.subr.bf16.mxu0 0
        %1250 = vmatpush1.bf16.msra.mxu0 0
        %1251 = vmatprep.subr.bf16.mxu0 0
        %1252 = vmatpush1.bf16.msra.mxu0 0
        %1253 = vmatprep.subr.bf16.mxu0 0
        %1254 = vmatpush1.bf16.msra.mxu0 0
        %1255 = vmatprep.subr.bf16.mxu0 0
        %1256 = vmatpush1.bf16.msra.mxu0 0
        %1257 = vmatprep.subr.bf16.mxu0 0
        %1258 = vmatpush1.bf16.msra.mxu0 0
        %1259 = vmatprep.subr.bf16.mxu0 0
        %1260 = vmatpush1.bf16.msra.mxu0 0
        %1261 = vmatprep.subr.bf16.mxu0 0
        %1262 = vmatpush1.bf16.msra.mxu0 0
        %1263 = vmatprep.subr.bf16.mxu0 0
        %1264 = vmatpush1.bf16.msra.mxu0 0
        %1265 = vmatprep.subr.bf16.mxu0 0
        %1266 = vmatpush1.bf16.msra.mxu0 0
        %1267 = vmatprep.subr.bf16.mxu0 0
        %1268 = vmatpush1.bf16.msra.mxu0 0
        %1269 = vmatprep.subr.bf16.mxu0 0
        %1270 = vmatpush1.bf16.msra.mxu0 0
        %1271 = vmatprep.subr.bf16.mxu0 0
        %1272 = vmatpush1.bf16.msra.mxu0 0
        %1273 = vmatprep.subr.bf16.mxu0 0
        %1274 = vmatpush1.bf16.msra.mxu0 0
        %1275 = vmatprep.mubr.bf16.mxu0 0
        %1276 = vmatmul.mubr.bf16.gmra.mrb[0].mxu0 %v1045
        %v1277 = vpop.f32.mrb[0].mxu0
        %v1278 = vadd.f32 0.0, %v1277
        %v1279 = vpop.f32.mrb[0].mxu0
        %v1280 = vpop.f32.mrb[0].mxu0
        %v1281 = vadd.f32 0.0, %v1280
        %v1282 = vpop.f32.mrb[0].mxu0
        %1283 = vmatprep.mubr.bf16.mxu0 0
        %1284 = vmatmul.mubr.bf16.gmra.mrb[0].mxu0 %v1048
        %v1285 = vpop.f32.mrb[0].mxu0
        %v1286 = vadd.f32 0.0, %v1285
        %v1287 = vpop.f32.mrb[0].mxu0
        %v1288 = vpop.f32.mrb[0].mxu0
        %v1289 = vadd.f32 0.0, %v1288
        %v1290 = vpop.f32.mrb[0].mxu0
        %1291 = vmatprep.mubr.bf16.mxu0 0
        %1292 = vmatmul.mubr.bf16.gmra.mrb[0].mxu0 %v1051
        %v1293 = vpop.f32.mrb[0].mxu0
        %v1294 = vadd.f32 0.0, %v1293
        %v1295 = vpop.f32.mrb[0].mxu0
        %v1296 = vpop.f32.mrb[0].mxu0
        %v1297 = vadd.f32 0.0, %v1296
        %v1298 = vpop.f32.mrb[0].mxu0
        %1299 = vmatprep.mubr.bf16.mxu0 0
        %1300 = vmatmul.mubr.bf16.gmra.mrb[0].mxu0 %v1054
        %v1301 = vpop.f32.mrb[0].mxu0
        %v1302 = vadd.f32 0.0, %v1301
        %v1303 = vpop.f32.mrb[0].mxu0
        %v1304 = vpop.f32.mrb[0].mxu0
        %v1305 = vadd.f32 0.0, %v1304
        %v1306 = vpop.f32.mrb[0].mxu0
        %1307 = vmatprep.mubr.bf16.mxu0 0
        %1308 = vmatmul.mubr.bf16.gmra.mrb[0].mxu0 %v1057
        %v1309 = vpop.f32.mrb[0].mxu0
        %v1310 = vadd.f32 0.0, %v1309
        %v1311 = vpop.f32.mrb[0].mxu0
        %v1312 = vpop.f32.mrb[0].mxu0
        %v1313 = vadd.f32 0.0, %v1312
        %v1314 = vpop.f32.mrb[0].mxu0
        %1315 = vmatprep.mubr.bf16.mxu0 0
        %1316 = vmatmul.mubr.bf16.gmra.mrb[0].mxu0 %v1060
        %v1317 = vpop.f32.mrb[0].mxu0
        %v1318 = vadd.f32 0.0, %v1317
        %v1319 = vpop.f32.mrb[0].mxu0
        %v1320 = vpop.f32.mrb[0].mxu0
        %v1321 = vadd.f32 0.0, %v1320
        %v1322 = vpop.f32.mrb[0].mxu0
        %1323 = vmatprep.mubr.bf16.mxu0 0
        %1324 = vmatmul.mubr.bf16.gmra.mrb[0].mxu0 %v1063
        %v1325 = vpop.f32.mrb[0].mxu0
        %v1326 = vadd.f32 0.0, %v1325
        %v1327 = vpop.f32.mrb[0].mxu0
        %v1328 = vpop.f32.mrb[0].mxu0
        %v1329 = vadd.f32 0.0, %v1328
        %v1330 = vpop.f32.mrb[0].mxu0
        %1331 = vmatprep.mubr.bf16.mxu0 0
        %1332 = vmatmul.mubr.bf16.gmra.mrb[0].mxu0 %v1066
        %v1333 = vpop.f32.mrb[0].mxu0
        %v1334 = vadd.f32 0.0, %v1333
        %v1335 = vpop.f32.mrb[0].mxu0
        %v1336 = vpop.f32.mrb[0].mxu0
        %v1337 = vadd.f32 0.0, %v1336
        %v1338 = vpop.f32.mrb[0].mxu0
        %1339 = vmatprep.mubr.bf16.mxu0 0
        %1340 = vmatmul.mubr.bf16.gmra.mrb[0].mxu0 %v1069
        %v1341 = vpop.f32.mrb[0].mxu0
        %v1342 = vadd.f32 0.0, %v1341
        %v1343 = vpop.f32.mrb[0].mxu0
        %v1344 = vpop.f32.mrb[0].mxu0
        %v1345 = vadd.f32 0.0, %v1344
        %v1346 = vpop.f32.mrb[0].mxu0
        %1347 = vmatprep.mubr.bf16.mxu0 0
        %1348 = vmatmul.mubr.bf16.gmra.mrb[0].mxu0 %v1072
        %v1349 = vpop.f32.mrb[0].mxu0
        %v1350 = vadd.f32 0.0, %v1349
        %v1351 = vpop.f32.mrb[0].mxu0
        %v1352 = vpop.f32.mrb[0].mxu0
        %v1353 = vadd.f32 0.0, %v1352
        %v1354 = vpop.f32.mrb[0].mxu0
        %1355 = vmatprep.mubr.bf16.mxu0 0
        %1356 = vmatmul.mubr.bf16.gmra.mrb[0].mxu0 %v1075
        %v1357 = vpop.f32.mrb[0].mxu0
        %v1358 = vadd.f32 0.0, %v1357
        %v1359 = vpop.f32.mrb[0].mxu0
        %v1360 = vpop.f32.mrb[0].mxu0
        %v1361 = vadd.f32 0.0, %v1360
        %v1362 = vpop.f32.mrb[0].mxu0
        %1363 = vmatprep.mubr.bf16.mxu0 0
        %1364 = vmatmul.mubr.bf16.gmra.mrb[0].mxu0 %v1078
        %v1365 = vpop.f32.mrb[0].mxu0
        %v1366 = vadd.f32 0.0, %v1365
        %v1367 = vpop.f32.mrb[0].mxu0
        %v1368 = vpop.f32.mrb[0].mxu0
        %v1369 = vadd.f32 0.0, %v1368
        %v1370 = vpop.f32.mrb[0].mxu0
        %1371 = vmatprep.mubr.bf16.mxu0 0
        %1372 = vmatmul.mubr.bf16.gmra.mrb[0].mxu0 %v1081
        %v1373 = vpop.f32.mrb[0].mxu0
        %v1374 = vadd.f32 0.0, %v1373
        %v1375 = vpop.f32.mrb[0].mxu0
        %v1376 = vpop.f32.mrb[0].mxu0
        %v1377 = vadd.f32 0.0, %v1376
        %v1378 = vpop.f32.mrb[0].mxu0
        %1379 = vmatprep.mubr.bf16.mxu0 0
        %1380 = vmatmul.mubr.bf16.gmra.mrb[0].mxu0 %v1084
        %v1381 = vpop.f32.mrb[0].mxu0
        %v1382 = vadd.f32 0.0, %v1381
        %v1383 = vpop.f32.mrb[0].mxu0
        %v1384 = vpop.f32.mrb[0].mxu0
        %v1385 = vadd.f32 0.0, %v1384
        %v1386 = vpop.f32.mrb[0].mxu0
        %1387 = vmatprep.mubr.bf16.mxu0 0
        %1388 = vmatmul.mubr.bf16.gmra.mrb[0].mxu0 %v1087
        %v1389 = vpop.f32.mrb[0].mxu0
        %v1390 = vadd.f32 0.0, %v1389
        %v1391 = vpop.f32.mrb[0].mxu0
        %v1392 = vpop.f32.mrb[0].mxu0
        %v1393 = vadd.f32 0.0, %v1392
        %v1394 = vpop.f32.mrb[0].mxu0
        %1395 = vmatprep.mubr.bf16.mxu0 0
        %1396 = vmatmul.mubr.bf16.gmra.mrb[0].mxu0 %v1090
        %v1397 = vpop.f32.mrb[0].mxu0
        %v1398 = vadd.f32 0.0, %v1397
        %v1399 = vpop.f32.mrb[0].mxu0
        %v1400 = vpop.f32.mrb[0].mxu0
        %v1401 = vadd.f32 0.0, %v1400
        %v1402 = vpop.f32.mrb[0].mxu0
        %1403 = vmatprep.mubr.bf16.mxu0 0
        %1404 = vmatmul.mubr.bf16.gmra.mrb[0].mxu0 %v1093
        %v1405 = vpop.f32.mrb[0].mxu0
        %v1406 = vadd.f32 0.0, %v1405
        %v1407 = vpop.f32.mrb[0].mxu0
        %v1408 = vpop.f32.mrb[0].mxu0
        %v1409 = vadd.f32 0.0, %v1408
        %v1410 = vpop.f32.mrb[0].mxu0
        %1411 = vmatprep.mubr.bf16.mxu0 0
        %1412 = vmatmul.mubr.bf16.gmra.mrb[0].mxu0 %v1096
        %v1413 = vpop.f32.mrb[0].mxu0
        %v1414 = vadd.f32 0.0, %v1413
        %v1415 = vpop.f32.mrb[0].mxu0
        %v1416 = vpop.f32.mrb[0].mxu0
        %v1417 = vadd.f32 0.0, %v1416
        %v1418 = vpop.f32.mrb[0].mxu0
        %1419 = vmatprep.mubr.bf16.mxu0 0
        %1420 = vmatmul.mubr.bf16.gmra.mrb[0].mxu0 %v1099
        %v1421 = vpop.f32.mrb[0].mxu0
        %v1422 = vadd.f32 0.0, %v1421
        %v1423 = vpop.f32.mrb[0].mxu0
        %v1424 = vpop.f32.mrb[0].mxu0
        %v1425 = vadd.f32 0.0, %v1424
        %v1426 = vpop.f32.mrb[0].mxu0
        %1427 = vmatprep.mubr.bf16.mxu0 0
        %1428 = vmatmul.mubr.bf16.gmra.mrb[0].mxu0 %v1102
        %v1429 = vpop.f32.mrb[0].mxu0
        %v1430 = vadd.f32 0.0, %v1429
        %v1431 = vpop.f32.mrb[0].mxu0
        %v1432 = vpop.f32.mrb[0].mxu0
        %v1433 = vadd.f32 0.0, %v1432
        %v1434 = vpop.f32.mrb[0].mxu0
        %1435 = vmatprep.mubr.bf16.mxu0 0
        %1436 = vmatmul.mubr.bf16.gmra.mrb[0].mxu0 %v1105
        %v1437 = vpop.f32.mrb[0].mxu0
        %v1438 = vadd.f32 0.0, %v1437
        %v1439 = vpop.f32.mrb[0].mxu0
        %v1440 = vpop.f32.mrb[0].mxu0
        %v1441 = vadd.f32 0.0, %v1440
        %v1442 = vpop.f32.mrb[0].mxu0
        %1443 = vmatprep.mubr.bf16.mxu0 0
        %1444 = vmatmul.mubr.bf16.gmra.mrb[0].mxu0 %v1108
        %v1445 = vpop.f32.mrb[0].mxu0
        %v1446 = vadd.f32 0.0, %v1445
        %v1447 = vpop.f32.mrb[0].mxu0
        %v1448 = vpop.f32.mrb[0].mxu0
        %v1449 = vadd.f32 0.0, %v1448
        %v1450 = vpop.f32.mrb[0].mxu0
        %1451 = vmatprep.mubr.bf16.mxu0 0
        %1452 = vmatmul.mubr.bf16.gmra.mrb[0].mxu0 %v1111
        %v1453 = vpop.f32.mrb[0].mxu0
        %v1454 = vadd.f32 0.0, %v1453
        %v1455 = vpop.f32.mrb[0].mxu0
        %v1456 = vpop.f32.mrb[0].mxu0
        %v1457 = vadd.f32 0.0, %v1456
        %v1458 = vpop.f32.mrb[0].mxu0
        %1459 = vmatprep.mubr.bf16.mxu0 0
        %1460 = vmatmul.mubr.bf16.gmra.mrb[0].mxu0 %v1114
        %v1461 = vpop.f32.mrb[0].mxu0
        %v1462 = vadd.f32 0.0, %v1461
        %v1463 = vpop.f32.mrb[0].mxu0
        %v1464 = vpop.f32.mrb[0].mxu0
        %v1465 = vadd.f32 0.0, %v1464
        %v1466 = vpop.f32.mrb[0].mxu0
        %1467 = vmatprep.mubr.bf16.mxu0 0
        %1468 = vmatmul.mubr.bf16.gmra.mrb[0].mxu0 %v1117
        %v1469 = vpop.f32.mrb[0].mxu0
        %v1470 = vadd.f32 0.0, %v1469
        %v1471 = vpop.f32.mrb[0].mxu0
        %v1472 = vpop.f32.mrb[0].mxu0
        %v1473 = vadd.f32 0.0, %v1472
        %v1474 = vpop.f32.mrb[0].mxu0
        %1475 = vmatprep.mubr.bf16.mxu0 0
        %1476 = vmatmul.mubr.bf16.gmra.mrb[0].mxu0 %v1120
        %v1477 = vpop.f32.mrb[0].mxu0
        %v1478 = vadd.f32 0.0, %v1477
        %v1479 = vpop.f32.mrb[0].mxu0
        %v1480 = vpop.f32.mrb[0].mxu0
        %v1481 = vadd.f32 0.0, %v1480
        %v1482 = vpop.f32.mrb[0].mxu0
        %1483 = vmatprep.mubr.bf16.mxu0 0
        %1484 = vmatmul.mubr.bf16.gmra.mrb[0].mxu0 %v1123
        %v1485 = vpop.f32.mrb[0].mxu0
        %v1486 = vadd.f32 0.0, %v1485
        %v1487 = vpop.f32.mrb[0].mxu0
        %v1488 = vpop.f32.mrb[0].mxu0
        %v1489 = vadd.f32 0.0, %v1488
        %v1490 = vpop.f32.mrb[0].mxu0
        %1491 = vmatprep.mubr.bf16.mxu0 0
        %1492 = vmatmul.mubr.bf16.gmra.mrb[0].mxu0 %v1126
        %v1493 = vpop.f32.mrb[0].mxu0
        %v1494 = vadd.f32 0.0, %v1493
        %v1495 = vpop.f32.mrb[0].mxu0
        %v1496 = vpop.f32.mrb[0].mxu0
        %v1497 = vadd.f32 0.0, %v1496
        %v1498 = vpop.f32.mrb[0].mxu0
        %1499 = vmatprep.mubr.bf16.mxu0 0
        %1500 = vmatmul.mubr.bf16.gmra.mrb[0].mxu0 %v1129
        %v1501 = vpop.f32.mrb[0].mxu0
        %v1502 = vadd.f32 0.0, %v1501
        %v1503 = vpop.f32.mrb[0].mxu0
        %v1504 = vpop.f32.mrb[0].mxu0
        %v1505 = vadd.f32 0.0, %v1504
        %v1506 = vpop.f32.mrb[0].mxu0
        %1507 = vmatprep.mubr.bf16.mxu0 0
        %1508 = vmatmul.mubr.bf16.gmra.mrb[0].mxu0 %v1132
        %v1509 = vpop.f32.mrb[0].mxu0
        %v1510 = vadd.f32 0.0, %v1509
        %v1511 = vpop.f32.mrb[0].mxu0
        %v1512 = vpop.f32.mrb[0].mxu0
        %v1513 = vadd.f32 0.0, %v1512
        %v1514 = vpop.f32.mrb[0].mxu0
        %1515 = vmatprep.mubr.bf16.mxu0 0
        %1516 = vmatmul.mubr.bf16.gmra.mrb[0].mxu0 %v1135
        %v1517 = vpop.f32.mrb[0].mxu0
        %v1518 = vadd.f32 0.0, %v1517
        %v1519 = vpop.f32.mrb[0].mxu0
        %v1520 = vpop.f32.mrb[0].mxu0
        %v1521 = vadd.f32 0.0, %v1520
        %v1522 = vpop.f32.mrb[0].mxu0
        %1523 = vmatprep.mubr.bf16.mxu0 0
        %1524 = vmatmul.mubr.bf16.gmra.mrb[0].mxu0 %v1138
        %v1525 = vpop.f32.mrb[0].mxu0
        %v1526 = vadd.f32 0.0, %v1525
        %v1527 = vpop.f32.mrb[0].mxu0
        %v1528 = vpop.f32.mrb[0].mxu0
        %v1529 = vadd.f32 0.0, %v1528
        %v1530 = vpop.f32.mrb[0].mxu0
        %1531 = vmatprep.mubr.bf16.mxu0 0
        %1532 = vmatmul.mubr.bf16.gmra.mrb[0].mxu0 %v1141
        %v1533 = vpop.f32.mrb[0].mxu0
        %v1534 = vadd.f32 0.0, %v1533
        %v1535 = vpop.f32.mrb[0].mxu0
        %v1536 = vpop.f32.mrb[0].mxu0
        %v1537 = vadd.f32 0.0, %v1536
        %v1538 = vpop.f32.mrb[0].mxu0
        %1539 = vmatprep.mubr.bf16.mxu0 0
        %1540 = vmatmul.mubr.bf16.gmra.mrb[0].mxu0 %v1144
        %v1541 = vpop.f32.mrb[0].mxu0
        %v1542 = vadd.f32 0.0, %v1541
        %v1543 = vpop.f32.mrb[0].mxu0
        %v1544 = vpop.f32.mrb[0].mxu0
        %v1545 = vadd.f32 0.0, %v1544
        %v1546 = vpop.f32.mrb[0].mxu0
        %1547 = vmatprep.mubr.bf16.mxu0 0
        %1548 = vmatmul.mubr.bf16.gmra.mrb[0].mxu0 %v1147
        %v1549 = vpop.f32.mrb[0].mxu0
        %v1550 = vadd.f32 0.0, %v1549
        %v1551 = vpop.f32.mrb[0].mxu0
        %v1552 = vpop.f32.mrb[0].mxu0
        %v1553 = vadd.f32 0.0, %v1552
        %v1554 = vpop.f32.mrb[0].mxu0
        %1555 = vmatprep.mubr.bf16.mxu0 0
        %1556 = vmatmul.mubr.bf16.gmra.mrb[0].mxu0 %v1150
        %v1557 = vpop.f32.mrb[0].mxu0
        %v1558 = vadd.f32 0.0, %v1557
        %v1559 = vpop.f32.mrb[0].mxu0
        %v1560 = vpop.f32.mrb[0].mxu0
        %v1561 = vadd.f32 0.0, %v1560
        %v1562 = vpop.f32.mrb[0].mxu0
        %1563 = vmatprep.mubr.bf16.mxu0 0
        %1564 = vmatmul.mubr.bf16.gmra.mrb[0].mxu0 %v1153
        %v1565 = vpop.f32.mrb[0].mxu0
        %v1566 = vadd.f32 0.0, %v1565
        %v1567 = vpop.f32.mrb[0].mxu0
        %v1568 = vpop.f32.mrb[0].mxu0
        %v1569 = vadd.f32 0.0, %v1568
        %v1570 = vpop.f32.mrb[0].mxu0
        %1571 = vmatprep.mubr.bf16.mxu0 0
        %1572 = vmatmul.mubr.bf16.gmra.mrb[0].mxu0 %v1156
        %v1573 = vpop.f32.mrb[0].mxu0
        %v1574 = vadd.f32 0.0, %v1573
        %v1575 = vpop.f32.mrb[0].mxu0
        %v1576 = vpop.f32.mrb[0].mxu0
        %v1577 = vadd.f32 0.0, %v1576
        %v1578 = vpop.f32.mrb[0].mxu0
        %1579 = vmatprep.mubr.bf16.mxu0 0
        %1580 = vmatmul.mubr.bf16.gmra.mrb[0].mxu0 %v1159
        %v1581 = vpop.f32.mrb[0].mxu0
        %v1582 = vadd.f32 0.0, %v1581
        %v1583 = vpop.f32.mrb[0].mxu0
        %v1584 = vpop.f32.mrb[0].mxu0
        %v1585 = vadd.f32 0.0, %v1584
        %v1586 = vpop.f32.mrb[0].mxu0
        %1587 = vmatprep.mubr.bf16.mxu0 0
        %1588 = vmatmul.mubr.bf16.gmra.mrb[0].mxu0 %v1162
        %v1589 = vpop.f32.mrb[0].mxu0
        %v1590 = vadd.f32 0.0, %v1589
        %v1591 = vpop.f32.mrb[0].mxu0
        %v1592 = vpop.f32.mrb[0].mxu0
        %v1593 = vadd.f32 0.0, %v1592
        %v1594 = vpop.f32.mrb[0].mxu0
        %1595 = vmatprep.mubr.bf16.mxu0 0
        %1596 = vmatmul.mubr.bf16.gmra.mrb[0].mxu0 %v1165
        %v1597 = vpop.f32.mrb[0].mxu0
        %v1598 = vadd.f32 0.0, %v1597
        %v1599 = vpop.f32.mrb[0].mxu0
        %v1600 = vpop.f32.mrb[0].mxu0
        %v1601 = vadd.f32 0.0, %v1600
        %v1602 = vpop.f32.mrb[0].mxu0
        %1603 = vmatprep.mubr.bf16.mxu0 0
        %1604 = vmatmul.mubr.bf16.gmra.mrb[0].mxu0 %v1168
        %v1605 = vpop.f32.mrb[0].mxu0
        %v1606 = vadd.f32 0.0, %v1605
        %v1607 = vpop.f32.mrb[0].mxu0
        %v1608 = vpop.f32.mrb[0].mxu0
        %v1609 = vadd.f32 0.0, %v1608
        %v1610 = vpop.f32.mrb[0].mxu0
        %1611 = vmatprep.mubr.bf16.mxu0 0
        %1612 = vmatmul.mubr.bf16.gmra.mrb[0].mxu0 %v1171
        %v1613 = vpop.f32.mrb[0].mxu0
        %v1614 = vadd.f32 0.0, %v1613
        %v1615 = vpop.f32.mrb[0].mxu0
        %v1616 = vpop.f32.mrb[0].mxu0
        %v1617 = vadd.f32 0.0, %v1616
        %v1618 = vpop.f32.mrb[0].mxu0
        %1619 = vmatprep.mubr.bf16.mxu0 0
        %1620 = vmatmul.mubr.bf16.gmra.mrb[0].mxu0 %v1174
        %v1621 = vpop.f32.mrb[0].mxu0
        %v1622 = vadd.f32 0.0, %v1621
        %v1623 = vpop.f32.mrb[0].mxu0
        %v1624 = vpop.f32.mrb[0].mxu0
        %v1625 = vadd.f32 0.0, %v1624
        %v1626 = vpop.f32.mrb[0].mxu0
        %1627 = vmatprep.mubr.bf16.mxu0 0
        %1628 = vmatmul.mubr.bf16.gmra.mrb[0].mxu0 %v1177
        %v1629 = vpop.f32.mrb[0].mxu0
        %v1630 = vadd.f32 0.0, %v1629
        %v1631 = vpop.f32.mrb[0].mxu0
        %v1632 = vpop.f32.mrb[0].mxu0
        %v1633 = vadd.f32 0.0, %v1632
        %v1634 = vpop.f32.mrb[0].mxu0
        %1635 = vmatprep.mubr.bf16.mxu0 0
        %1636 = vmatmul.mubr.bf16.gmra.mrb[0].mxu0 %v1180
        %v1637 = vpop.f32.mrb[0].mxu0
        %v1638 = vadd.f32 0.0, %v1637
        %v1639 = vpop.f32.mrb[0].mxu0
        %v1640 = vpop.f32.mrb[0].mxu0
        %v1641 = vadd.f32 0.0, %v1640
        %v1642 = vpop.f32.mrb[0].mxu0
        %1643 = vmatprep.mubr.bf16.mxu0 0
        %1644 = vmatmul.mubr.bf16.gmra.mrb[0].mxu0 %v1183
        %v1645 = vpop.f32.mrb[0].mxu0
        %v1646 = vadd.f32 0.0, %v1645
        %v1647 = vpop.f32.mrb[0].mxu0
        %v1648 = vpop.f32.mrb[0].mxu0
        %v1649 = vadd.f32 0.0, %v1648
        %v1650 = vpop.f32.mrb[0].mxu0
        %1651 = vmatprep.mubr.bf16.mxu0 0
        %1652 = vmatmul.mubr.bf16.gmra.mrb[0].mxu0 %v1186
        %v1653 = vpop.f32.mrb[0].mxu0
        %v1654 = vadd.f32 0.0, %v1653
        %v1655 = vpop.f32.mrb[0].mxu0
        %v1656 = vpop.f32.mrb[0].mxu0
        %v1657 = vadd.f32 0.0, %v1656
        %v1658 = vpop.f32.mrb[0].mxu0
        %1659 = vmatprep.mubr.bf16.mxu0 0
        %1660 = vmatmul.mubr.bf16.gmra.mrb[0].mxu0 %v1189
        %v1661 = vpop.f32.mrb[0].mxu0
        %v1662 = vadd.f32 0.0, %v1661
        %v1663 = vpop.f32.mrb[0].mxu0
        %v1664 = vpop.f32.mrb[0].mxu0
        %v1665 = vadd.f32 0.0, %v1664
        %v1666 = vpop.f32.mrb[0].mxu0
        %1667 = vmatprep.mubr.bf16.mxu0 0
        %1668 = vmatmul.mubr.bf16.gmra.mrb[0].mxu0 %v1192
        %v1669 = vpop.f32.mrb[0].mxu0
        %v1670 = vadd.f32 0.0, %v1669
        %v1671 = vpop.f32.mrb[0].mxu0
        %v1672 = vpop.f32.mrb[0].mxu0
        %v1673 = vadd.f32 0.0, %v1672
        %v1674 = vpop.f32.mrb[0].mxu0
        %1675 = vmatprep.mubr.bf16.mxu0 0
        %1676 = vmatmul.mubr.bf16.gmra.mrb[0].mxu0 %v1195
        %v1677 = vpop.f32.mrb[0].mxu0
        %v1678 = vadd.f32 0.0, %v1677
        %v1679 = vpop.f32.mrb[0].mxu0
        %v1680 = vpop.f32.mrb[0].mxu0
        %v1681 = vadd.f32 0.0, %v1680
        %v1682 = vpop.f32.mrb[0].mxu0
        %1683 = vmatprep.mubr.bf16.mxu0 0
        %1684 = vmatmul.mubr.bf16.gmra.mrb[0].mxu0 %v1198
        %v1685 = vpop.f32.mrb[0].mxu0
        %v1686 = vadd.f32 0.0, %v1685
        %v1687 = vpop.f32.mrb[0].mxu0
        %v1688 = vpop.f32.mrb[0].mxu0
        %v1689 = vadd.f32 0.0, %v1688
        %v1690 = vpop.f32.mrb[0].mxu0
        %1691 = vmatprep.mubr.bf16.mxu0 0
        %1692 = vmatmul.mubr.bf16.gmra.mrb[0].mxu0 %v1201
        %v1693 = vpop.f32.mrb[0].mxu0
        %v1694 = vadd.f32 0.0, %v1693
        %v1695 = vpop.f32.mrb[0].mxu0
        %v1696 = vpop.f32.mrb[0].mxu0
        %v1697 = vadd.f32 0.0, %v1696
        %v1698 = vpop.f32.mrb[0].mxu0
        %1699 = vmatprep.mubr.bf16.mxu0 0
        %1700 = vmatmul.mubr.bf16.gmra.mrb[0].mxu0 %v1204
        %v1701 = vpop.f32.mrb[0].mxu0
        %v1702 = vadd.f32 0.0, %v1701
        %v1703 = vpop.f32.mrb[0].mxu0
        %v1704 = vpop.f32.mrb[0].mxu0
        %v1705 = vadd.f32 0.0, %v1704
        %v1706 = vpop.f32.mrb[0].mxu0
        %1707 = vmatprep.mubr.bf16.mxu0 0
        %1708 = vmatmul.mubr.bf16.gmra.mrb[0].mxu0 %v1207
        %v1709 = vpop.f32.mrb[0].mxu0
        %v1710 = vadd.f32 0.0, %v1709
        %v1711 = vpop.f32.mrb[0].mxu0
        %v1712 = vpop.f32.mrb[0].mxu0
        %v1713 = vadd.f32 0.0, %v1712
        %v1714 = vpop.f32.mrb[0].mxu0
        %1715 = vmatprep.mubr.bf16.mxu0 0
        %1716 = vmatmul.mubr.bf16.gmra.mrb[0].mxu0 %v1210
        %v1717 = vpop.f32.mrb[0].mxu0
        %v1718 = vadd.f32 0.0, %v1717
        %v1719 = vpop.f32.mrb[0].mxu0
        %v1720 = vpop.f32.mrb[0].mxu0
        %v1721 = vadd.f32 0.0, %v1720
        %v1722 = vpop.f32.mrb[0].mxu0
        %1723 = vmatprep.mubr.bf16.mxu0 0
        %1724 = vmatmul.mubr.bf16.gmra.mrb[0].mxu0 %v1213
        %v1725 = vpop.f32.mrb[0].mxu0
        %v1726 = vadd.f32 0.0, %v1725
        %v1727 = vpop.f32.mrb[0].mxu0
        %v1728 = vpop.f32.mrb[0].mxu0
        %v1729 = vadd.f32 0.0, %v1728
        %v1730 = vpop.f32.mrb[0].mxu0
        %1731 = vmatprep.mubr.bf16.mxu0 0
        %1732 = vmatmul.mubr.bf16.gmra.mrb[0].mxu0 %v1216
        %v1733 = vpop.f32.mrb[0].mxu0
        %v1734 = vadd.f32 0.0, %v1733
        %v1735 = vpop.f32.mrb[0].mxu0
        %v1736 = vpop.f32.mrb[0].mxu0
        %v1737 = vadd.f32 0.0, %v1736
        %v1738 = vpop.f32.mrb[0].mxu0
        %1739 = vmatprep.mubr.bf16.mxu0 0
        %1740 = vmatmul.mubr.bf16.gmra.mrb[0].mxu0 %v1219
        %v1741 = vpop.f32.mrb[0].mxu0
        %v1742 = vadd.f32 0.0, %v1741
        %v1743 = vpop.f32.mrb[0].mxu0
        %v1744 = vpop.f32.mrb[0].mxu0
        %v1745 = vadd.f32 0.0, %v1744
        %v1746 = vpop.f32.mrb[0].mxu0
        %1747 = vmatprep.mubr.bf16.mxu0 0
        %1748 = vmatmul.mubr.bf16.gmra.mrb[0].mxu0 %v1222
        %v1749 = vpop.f32.mrb[0].mxu0
        %v1750 = vadd.f32 0.0, %v1749
        %v1751 = vpop.f32.mrb[0].mxu0
        %v1752 = vpop.f32.mrb[0].mxu0
        %v1753 = vadd.f32 0.0, %v1752
        %v1754 = vpop.f32.mrb[0].mxu0
        %1755 = vmatprep.mubr.bf16.mxu0 0
        %1756 = vmatmul.mubr.bf16.gmra.mrb[0].mxu0 %v1225
        %v1757 = vpop.f32.mrb[0].mxu0
        %v1758 = vadd.f32 0.0, %v1757
        %v1759 = vpop.f32.mrb[0].mxu0
        %v1760 = vpop.f32.mrb[0].mxu0
        %v1761 = vadd.f32 0.0, %v1760
        %v1762 = vpop.f32.mrb[0].mxu0
        %1763 = vmatprep.mubr.bf16.mxu0 0
        %1764 = vmatmul.mubr.bf16.gmra.mrb[0].mxu0 %v1228
        %v1765 = vpop.f32.mrb[0].mxu0
        %v1766 = vadd.f32 0.0, %v1765
        %v1767 = vpop.f32.mrb[0].mxu0
        %v1768 = vpop.f32.mrb[0].mxu0
        %v1769 = vadd.f32 0.0, %v1768
        %v1770 = vpop.f32.mrb[0].mxu0
        %1771 = vmatprep.mubr.bf16.mxu0 0
        %1772 = vmatmul.mubr.bf16.gmra.mrb[0].mxu0 %v1231
        %v1773 = vpop.f32.mrb[0].mxu0
        %v1774 = vadd.f32 0.0, %v1773
        %v1775 = vpop.f32.mrb[0].mxu0
        %v1776 = vpop.f32.mrb[0].mxu0
        %v1777 = vadd.f32 0.0, %v1776
        %v1778 = vpop.f32.mrb[0].mxu0
        %1779 = vmatprep.mubr.bf16.mxu0 0
        %1780 = vmatmul.mubr.bf16.gmra.mrb[0].mxu0 %v1234
        %v1781 = vpop.f32.mrb[0].mxu0
        %v1782 = vadd.f32 0.0, %v1781
        %v1783 = vpop.f32.mrb[0].mxu0
        %v1784 = vpop.f32.mrb[0].mxu0
        %v1785 = vadd.f32 0.0, %v1784
        %v1786 = vpop.f32.mrb[0].mxu0
        %1787 = vdwg.mxu0
        %v1788 = vmax.f32 %v1278, %v1406
        %v1789 = vmax.f32 %v1281, %v1409
        %v1790 = vmax.f32 %v1286, %v1414
        %v1791 = vmax.f32 %v1289, %v1417
        %v1792 = vmax.f32 %v1294, %v1422
        %v1793 = vmax.f32 %v1297, %v1425
        %v1794 = vmax.f32 %v1302, %v1430
        %v1795 = vmax.f32 %v1305, %v1433
        %v1796 = vmax.f32 %v1310, %v1438
        %v1797 = vmax.f32 %v1313, %v1441
        %v1798 = vmax.f32 %v1318, %v1446
        %v1799 = vmax.f32 %v1321, %v1449
        %v1800 = vmax.f32 %v1326, %v1454
        %v1801 = vmax.f32 %v1329, %v1457
        %v1802 = vmax.f32 %v1334, %v1462
        %v1803 = vmax.f32 %v1337, %v1465
        %v1804 = vmax.f32 %v1342, %v1470
        %v1805 = vmax.f32 %v1345, %v1473
        %v1806 = vmax.f32 %v1350, %v1478
        %v1807 = vmax.f32 %v1353, %v1481
        %v1808 = vmax.f32 %v1358, %v1486
        %v1809 = vmax.f32 %v1361, %v1489
        %v1810 = vmax.f32 %v1366, %v1494
        %v1811 = vmax.f32 %v1369, %v1497
        %v1812 = vmax.f32 %v1374, %v1502
        %v1813 = vmax.f32 %v1377, %v1505
        %v1814 = vmax.f32 %v1382, %v1510
        %v1815 = vmax.f32 %v1385, %v1513
        %v1816 = vmax.f32 %v1390, %v1518
        %v1817 = vmax.f32 %v1393, %v1521
        %v1818 = vmax.f32 %v1398, %v1526
        %v1819 = vmax.f32 %v1401, %v1529
        %v1820 = vmax.f32 %v1534, %v1662
        %v1821 = vmax.f32 %v1537, %v1665
        %v1822 = vmax.f32 %v1542, %v1670
        %v1823 = vmax.f32 %v1545, %v1673
        %v1824 = vmax.f32 %v1550, %v1678
        %v1825 = vmax.f32 %v1553, %v1681
        %v1826 = vmax.f32 %v1558, %v1686
        %v1827 = vmax.f32 %v1561, %v1689
        %v1828 = vmax.f32 %v1566, %v1694
        %v1829 = vmax.f32 %v1569, %v1697
        %v1830 = vmax.f32 %v1574, %v1702
        %v1831 = vmax.f32 %v1577, %v1705
        %v1832 = vmax.f32 %v1582, %v1710
        %v1833 = vmax.f32 %v1585, %v1713
        %v1834 = vmax.f32 %v1590, %v1718
        %v1835 = vmax.f32 %v1593, %v1721
        %v1836 = vmax.f32 %v1598, %v1726
        %v1837 = vmax.f32 %v1601, %v1729
        %v1838 = vmax.f32 %v1606, %v1734
        %v1839 = vmax.f32 %v1609, %v1737
        %v1840 = vmax.f32 %v1614, %v1742
        %v1841 = vmax.f32 %v1617, %v1745
        %v1842 = vmax.f32 %v1622, %v1750
        %v1843 = vmax.f32 %v1625, %v1753
        %v1844 = vmax.f32 %v1630, %v1758
        %v1845 = vmax.f32 %v1633, %v1761
        %v1846 = vmax.f32 %v1638, %v1766
        %v1847 = vmax.f32 %v1641, %v1769
        %v1848 = vmax.f32 %v1646, %v1774
        %v1849 = vmax.f32 %v1649, %v1777
        %v1850 = vmax.f32 %v1654, %v1782
        %v1851 = vmax.f32 %v1657, %v1785
        %v1852 = vmax.f32 %v1788, %v1820
        %v1853 = vmax.f32 %v1789, %v1821
        %v1854 = vmax.f32 %v1790, %v1822
        %v1855 = vmax.f32 %v1791, %v1823
        %v1856 = vmax.f32 %v1792, %v1824
        %v1857 = vmax.f32 %v1793, %v1825
        %v1858 = vmax.f32 %v1794, %v1826
        %v1859 = vmax.f32 %v1795, %v1827
        %v1860 = vmax.f32 %v1796, %v1828
        %v1861 = vmax.f32 %v1797, %v1829
        %v1862 = vmax.f32 %v1798, %v1830
        %v1863 = vmax.f32 %v1799, %v1831
        %v1864 = vmax.f32 %v1800, %v1832
        %v1865 = vmax.f32 %v1801, %v1833
        %v1866 = vmax.f32 %v1802, %v1834
        %v1867 = vmax.f32 %v1803, %v1835
        %v1868 = vmax.f32 %v1804, %v1836
        %v1869 = vmax.f32 %v1805, %v1837
        %v1870 = vmax.f32 %v1806, %v1838
        %v1871 = vmax.f32 %v1807, %v1839
        %v1872 = vmax.f32 %v1808, %v1840
        %v1873 = vmax.f32 %v1809, %v1841
        %v1874 = vmax.f32 %v1810, %v1842
        %v1875 = vmax.f32 %v1811, %v1843
        %v1876 = vmax.f32 %v1812, %v1844
        %v1877 = vmax.f32 %v1813, %v1845
        %v1878 = vmax.f32 %v1814, %v1846
        %v1879 = vmax.f32 %v1815, %v1847
        %v1880 = vmax.f32 %v1816, %v1848
        %v1881 = vmax.f32 %v1817, %v1849
        %v1882 = vmax.f32 %v1818, %v1850
        %v1883 = vmax.f32 %v1819, %v1851
        %v1884 = vld [vmem:[%s2] sm:$0x1]
        %v1886 = vlaneseq
        %v1887 = vshrl.u32 %v1886, 7
        %v1888 = vsub.s32 0, %v1887
        %v1889 = vrot.slane %v1884, %v1888
        %v1891 = vadd.f32 %v1852, %v1889
        %v1892 = vadd.f32 %v1853, %v1889
        %v1893 = vadd.f32 %v1854, %v1889
        %v1894 = vadd.f32 %v1855, %v1889
        %v1895 = vadd.f32 %v1856, %v1889
        %v1896 = vadd.f32 %v1857, %v1889
        %v1897 = vadd.f32 %v1858, %v1889
        %v1898 = vadd.f32 %v1859, %v1889
        %v1899 = vadd.f32 %v1860, %v1889
        %v1900 = vadd.f32 %v1861, %v1889
        %v1901 = vadd.f32 %v1862, %v1889
        %v1902 = vadd.f32 %v1863, %v1889
        %v1903 = vadd.f32 %v1864, %v1889
        %v1904 = vadd.f32 %v1865, %v1889
        %v1905 = vadd.f32 %v1866, %v1889
        %v1906 = vadd.f32 %v1867, %v1889
        %v1907 = vadd.f32 %v1868, %v1889
        %v1908 = vadd.f32 %v1869, %v1889
        %v1909 = vadd.f32 %v1870, %v1889
        %v1910 = vadd.f32 %v1871, %v1889
        %v1911 = vadd.f32 %v1872, %v1889
        %v1912 = vadd.f32 %v1873, %v1889
        %v1913 = vadd.f32 %v1874, %v1889
        %v1914 = vadd.f32 %v1875, %v1889
        %v1915 = vadd.f32 %v1876, %v1889
        %v1916 = vadd.f32 %v1877, %v1889
        %v1917 = vadd.f32 %v1878, %v1889
        %v1918 = vadd.f32 %v1879, %v1889
        %v1919 = vadd.f32 %v1880, %v1889
        %v1920 = vadd.f32 %v1881, %v1889
        %v1921 = vadd.f32 %v1882, %v1889
        %v1922 = vadd.f32 %v1883, %v1889
        %v1923 = vmax.f32 %v1891, 0.0
        %v1924 = vmax.f32 %v1892, 0.0
        %v1925 = vmax.f32 %v1893, 0.0
        %v1926 = vmax.f32 %v1894, 0.0
        %v1927 = vmax.f32 %v1895, 0.0
        %v1928 = vmax.f32 %v1896, 0.0
        %v1929 = vmax.f32 %v1897, 0.0
        %v1930 = vmax.f32 %v1898, 0.0
        %v1931 = vmax.f32 %v1899, 0.0
        %v1932 = vmax.f32 %v1900, 0.0
        %v1933 = vmax.f32 %v1901, 0.0
        %v1934 = vmax.f32 %v1902, 0.0
        %v1935 = vmax.f32 %v1903, 0.0
        %v1936 = vmax.f32 %v1904, 0.0
        %v1937 = vmax.f32 %v1905, 0.0
        %v1938 = vmax.f32 %v1906, 0.0
        %v1939 = vmax.f32 %v1907, 0.0
        %v1940 = vmax.f32 %v1908, 0.0
        %v1941 = vmax.f32 %v1909, 0.0
        %v1942 = vmax.f32 %v1910, 0.0
        %v1943 = vmax.f32 %v1911, 0.0
        %v1944 = vmax.f32 %v1912, 0.0
        %v1945 = vmax.f32 %v1913, 0.0
        %v1946 = vmax.f32 %v1914, 0.0
        %v1947 = vmax.f32 %v1915, 0.0
        %v1948 = vmax.f32 %v1916, 0.0
        %v1949 = vmax.f32 %v1917, 0.0
        %v1950 = vmax.f32 %v1918, 0.0
        %v1951 = vmax.f32 %v1919, 0.0
        %v1952 = vmax.f32 %v1920, 0.0
        %v1953 = vmax.f32 %v1921, 0.0
        %v1954 = vmax.f32 %v1922, 0.0
        %v1955 = vpack.c.bf16 %v1924, %v1923
        %v1956 = vpack.c.bf16 %v1926, %v1925
        %v1957 = vpack.c.bf16 %v1928, %v1927
        %v1958 = vpack.c.bf16 %v1930, %v1929
        %v1959 = vpack.c.bf16 %v1932, %v1931
        %v1960 = vpack.c.bf16 %v1934, %v1933
        %v1961 = vpack.c.bf16 %v1936, %v1935
        %v1962 = vpack.c.bf16 %v1938, %v1937
        %v1963 = vpack.c.bf16 %v1940, %v1939
        %v1964 = vpack.c.bf16 %v1942, %v1941
        %v1965 = vpack.c.bf16 %v1944, %v1943
        %v1966 = vpack.c.bf16 %v1946, %v1945
        %v1967 = vpack.c.bf16 %v1948, %v1947
        %v1968 = vpack.c.bf16 %v1950, %v1949
        %v1969 = vpack.c.bf16 %v1952, %v1951
        %v1970 = vpack.c.bf16 %v1954, %v1953
        %v1987 = vunpack.c.l.b16 %v1955
        %v1988 = vunpack.c.h.b16 %v1955
        %v1989 = vunpack.c.l.b16 %v1956
        %v1990 = vunpack.c.h.b16 %v1956
        %v1991 = vunpack.c.l.b16 %v1957
        %v1992 = vunpack.c.h.b16 %v1957
        %v1993 = vunpack.c.l.b16 %v1958
        %v1994 = vunpack.c.h.b16 %v1958
        %v1995 = vunpack.c.l.b16 %v1959
        %v1996 = vunpack.c.h.b16 %v1959
        %v1997 = vunpack.c.l.b16 %v1960
        %v1998 = vunpack.c.h.b16 %v1960
        %v1999 = vunpack.c.l.b16 %v1961
        %v2000 = vunpack.c.h.b16 %v1961
        %v2001 = vunpack.c.l.b16 %v1962
        %v2002 = vunpack.c.h.b16 %v1962
        %v2003 = vunpack.c.l.b16 %v1963
        %v2004 = vunpack.c.h.b16 %v1963
        %v2005 = vunpack.c.l.b16 %v1964
        %v2006 = vunpack.c.h.b16 %v1964
        %v2007 = vunpack.c.l.b16 %v1965
        %v2008 = vunpack.c.h.b16 %v1965
        %v2009 = vunpack.c.l.b16 %v1966
        %v2010 = vunpack.c.h.b16 %v1966
        %v2011 = vunpack.c.l.b16 %v1967
        %v2012 = vunpack.c.h.b16 %v1967
        %v2013 = vunpack.c.l.b16 %v1968
        %v2014 = vunpack.c.h.b16 %v1968
        %v2015 = vunpack.c.l.b16 %v1969
        %v2016 = vunpack.c.h.b16 %v1969
        %v2017 = vunpack.c.l.b16 %v1970
        %v2018 = vunpack.c.h.b16 %v1970
        %v2019 = vpack.c.b16 %v1987, %v1987
        %v2020 = vpack.c.b16 %v1988, %v1988
        %v2021 = vpack.c.b16 %v1989, %v1989
        %v2022 = vpack.c.b16 %v1990, %v1990
        %v2023 = vpack.c.b16 %v1991, %v1991
        %v2024 = vpack.c.b16 %v1992, %v1992
        %v2025 = vpack.c.b16 %v1993, %v1993
        %v2026 = vpack.c.b16 %v1994, %v1994
        %v2027 = vpack.c.b16 %v1995, %v1995
        %v2028 = vpack.c.b16 %v1996, %v1996
        %v2029 = vpack.c.b16 %v1997, %v1997
        %v2030 = vpack.c.b16 %v1998, %v1998
        %v2031 = vpack.c.b16 %v1999, %v1999
        %v2032 = vpack.c.b16 %v2000, %v2000
        %v2033 = vpack.c.b16 %v2001, %v2001
        %v2034 = vpack.c.b16 %v2002, %v2002
        %v2035 = vpack.c.b16 %v2003, %v2003
        %v2036 = vpack.c.b16 %v2004, %v2004
        %v2037 = vpack.c.b16 %v2005, %v2005
        %v2038 = vpack.c.b16 %v2006, %v2006
        %v2039 = vpack.c.b16 %v2007, %v2007
        %v2040 = vpack.c.b16 %v2008, %v2008
        %v2041 = vpack.c.b16 %v2009, %v2009
        %v2042 = vpack.c.b16 %v2010, %v2010
        %v2043 = vpack.c.b16 %v2011, %v2011
        %v2044 = vpack.c.b16 %v2012, %v2012
        %v2045 = vpack.c.b16 %v2013, %v2013
        %v2046 = vpack.c.b16 %v2014, %v2014
        %v2047 = vpack.c.b16 %v2015, %v2015
        %v2048 = vpack.c.b16 %v2016, %v2016
        %v2049 = vpack.c.b16 %v2017, %v2017
        %v2050 = vpack.c.b16 %v2018, %v2018
        %vm2083 = vcmask 257024
        %2084 = vst.msk [vmem:[%s576] sm:$0xf] %vm2083, %v2019
        %2085 = vst.msk [vmem:[%s576 + $0x4] sm:$0xf] %vm2083, %v2020
        %2086 = vst.msk [vmem:[%s576 + $0x8] sm:$0xf] %vm2083, %v2021
        %2087 = vst.msk [vmem:[%s576 + $0xc] sm:$0xf] %vm2083, %v2022
        %2088 = vst.msk [vmem:[%s576 + $0x10] sm:$0xf] %vm2083, %v2023
        %2089 = vst.msk [vmem:[%s576 + $0x14] sm:$0xf] %vm2083, %v2024
        %2090 = vst.msk [vmem:[%s576 + $0x18] sm:$0xf] %vm2083, %v2025
        %2091 = vst.msk [vmem:[%s576 + $0x1c] sm:$0xf] %vm2083, %v2026
        %2092 = vst.msk [vmem:[%s576 + $0x20] sm:$0xf] %vm2083, %v2027
        %2093 = vst.msk [vmem:[%s576 + $0x24] sm:$0xf] %vm2083, %v2028
        %2094 = vst.msk [vmem:[%s576 + $0x28] sm:$0xf] %vm2083, %v2029
        %2095 = vst.msk [vmem:[%s576 + $0x2c] sm:$0xf] %vm2083, %v2030
        %2096 = vst.msk [vmem:[%s576 + $0x30] sm:$0xf] %vm2083, %v2031
        %2097 = vst.msk [vmem:[%s576 + $0x34] sm:$0xf] %vm2083, %v2032
        %2098 = vst.msk [vmem:[%s576 + $0x38] sm:$0xf] %vm2083, %v2033
        %2099 = vst.msk [vmem:[%s576 + $0x3c] sm:$0xf] %vm2083, %v2034
        %2100 = vst.msk [vmem:[%s576 + $0x40] sm:$0xf] %vm2083, %v2035
        %2101 = vst.msk [vmem:[%s576 + $0x44] sm:$0xf] %vm2083, %v2036
        %2102 = vst.msk [vmem:[%s576 + $0x48] sm:$0xf] %vm2083, %v2037
        %2103 = vst.msk [vmem:[%s576 + $0x4c] sm:$0xf] %vm2083, %v2038
        %2104 = vst.msk [vmem:[%s576 + $0x50] sm:$0xf] %vm2083, %v2039
        %2105 = vst.msk [vmem:[%s576 + $0x54] sm:$0xf] %vm2083, %v2040
        %2106 = vst.msk [vmem:[%s576 + $0x58] sm:$0xf] %vm2083, %v2041
        %2107 = vst.msk [vmem:[%s576 + $0x5c] sm:$0xf] %vm2083, %v2042
        %2108 = vst.msk [vmem:[%s576 + $0x60] sm:$0xf] %vm2083, %v2043
        %2109 = vst.msk [vmem:[%s576 + $0x64] sm:$0xf] %vm2083, %v2044
        %2110 = vst.msk [vmem:[%s576 + $0x68] sm:$0xf] %vm2083, %v2045
        %2111 = vst.msk [vmem:[%s576 + $0x6c] sm:$0xf] %vm2083, %v2046
        %2112 = vst.msk [vmem:[%s576 + $0x70] sm:$0xf] %vm2083, %v2047
        %2113 = vst.msk [vmem:[%s576 + $0x74] sm:$0xf] %vm2083, %v2048
        %2114 = vst.msk [vmem:[%s576 + $0x78] sm:$0xf] %vm2083, %v2049
        %2115 = vst.msk [vmem:[%s576 + $0x7c] sm:$0xf] %vm2083, %v2050
        %s2116 = sand.u32 %s90, 1
        %s2117 = sand.u32 %s90, 1
        %s2118 = smul.addr %s2117, 128
        %s2119 = scalar_lea.vmem [#allocation3], %s2118
        // Predicated region
        $region95: #{fashion_cnn_forward.3} parent=89 // pred_check
          %p2120 = pneg %p100
        $region96: #{fashion_cnn_forward.3} parent=89 // pred_check_branch
          %2122 = sbr.rel (%p2120) target = $region98
        $region97: #{fashion_cnn_forward.3} parent=89 // pred_region
          %s2123 = smul.u32 32, %s14
          %s2124 = ssub.s32 49, %s2123
          %p2125 = scmp.lt.s32.totalorder %s2124, 32
          %s2126 = scalar_select %p2125, %s2124, 32
          %s2127 = smul.u32 64, %s2126
          %p2128 = scmp.ne.s32.totalorder 0, %s2127
          %s2129 = smul.addr %s2123, 4
          %s2130 = scalar_lea.vmem %s3, %s2129
          // Predicated region
          $region99: #{fashion_cnn_forward.3} parent=97 // pred_check
            %p2131 = pneg %p2128
          $region100: #{fashion_cnn_forward.3} parent=97 // pred_check_branch
            %2133 = sbr.rel (%p2131) target = $region102
          $region101: #{fashion_cnn_forward.3} parent=97 // pred_region
            // Predicated region
            $region103: #{fashion_cnn_forward.3} parent=101 // pred_check
              _
            $region104: #{fashion_cnn_forward.3} parent=101 // pred_check_branch
              %2135 = sbr.rel target = $region106
            $region105: #{fashion_cnn_forward.3} parent=101 // pred_region
              // Predicated region
              $region125: #{fashion_cnn_forward.3} parent=105 // pred_check
                _
              $region126: #{fashion_cnn_forward.3} parent=105 // pred_check_branch
                %2246 = sbr.rel (0) target = $region128
              $region127: #{fashion_cnn_forward.3} parent=105 // pred_region
                %s2248 = sshrl.u32 %s2126, 5
                // While loop
                $region129: #{fashion_cnn_forward.3} parent=127 // loop_pre_header
                  _
                $region130: #{fashion_cnn_forward.3} parent=127 // loop_header
                  %s2250 = sphi 0, %s2252
                  %p2251 = scmp.ge.s32.totalorder %s2250, %s2248
                  %s2255 = sphi 0, %s2324
                  %s2256 = sphi %s2119, %s2327
                  %s2257 = sphi %s2130, %s2328
                $region131: #{fashion_cnn_forward.3} parent=127 // loop_header_branch
                  %2254 = sbr.rel (%p2251) target = $region135
                $region132: #{fashion_cnn_forward.3} parent=127 // loop_body
                  %v2258 = vld [vmem:[%s2256] sm:$0xf]
                  %2259 = vst [vmem:[%s2257] sm:$0xf] %v2258
                  %v2260 = vld [vmem:[%s2256 + $0x4] sm:$0xf]
                  %2261 = vst [vmem:[%s2257 + $0x4] sm:$0xf] %v2260
                  %v2262 = vld [vmem:[%s2256 + $0x8] sm:$0xf]
                  %2263 = vst [vmem:[%s2257 + $0x8] sm:$0xf] %v2262
                  %v2264 = vld [vmem:[%s2256 + $0xc] sm:$0xf]
                  %2265 = vst [vmem:[%s2257 + $0xc] sm:$0xf] %v2264
                  %v2266 = vld [vmem:[%s2256 + $0x10] sm:$0xf]
                  %2267 = vst [vmem:[%s2257 + $0x10] sm:$0xf] %v2266
                  %v2268 = vld [vmem:[%s2256 + $0x14] sm:$0xf]
                  %2269 = vst [vmem:[%s2257 + $0x14] sm:$0xf] %v2268
                  %v2270 = vld [vmem:[%s2256 + $0x18] sm:$0xf]
                  %2271 = vst [vmem:[%s2257 + $0x18] sm:$0xf] %v2270
                  %v2272 = vld [vmem:[%s2256 + $0x1c] sm:$0xf]
                  %2273 = vst [vmem:[%s2257 + $0x1c] sm:$0xf] %v2272
                  %v2274 = vld [vmem:[%s2256 + $0x20] sm:$0xf]
                  %2275 = vst [vmem:[%s2257 + $0x20] sm:$0xf] %v2274
                  %v2276 = vld [vmem:[%s2256 + $0x24] sm:$0xf]
                  %2277 = vst [vmem:[%s2257 + $0x24] sm:$0xf] %v2276
                  %v2278 = vld [vmem:[%s2256 + $0x28] sm:$0xf]
                  %2279 = vst [vmem:[%s2257 + $0x28] sm:$0xf] %v2278
                  %v2280 = vld [vmem:[%s2256 + $0x2c] sm:$0xf]
                  %2281 = vst [vmem:[%s2257 + $0x2c] sm:$0xf] %v2280
                  %v2282 = vld [vmem:[%s2256 + $0x30] sm:$0xf]
                  %2283 = vst [vmem:[%s2257 + $0x30] sm:$0xf] %v2282
                  %v2284 = vld [vmem:[%s2256 + $0x34] sm:$0xf]
                  %2285 = vst [vmem:[%s2257 + $0x34] sm:$0xf] %v2284
                  %v2286 = vld [vmem:[%s2256 + $0x38] sm:$0xf]
                  %2287 = vst [vmem:[%s2257 + $0x38] sm:$0xf] %v2286
                  %v2288 = vld [vmem:[%s2256 + $0x3c] sm:$0xf]
                  %2289 = vst [vmem:[%s2257 + $0x3c] sm:$0xf] %v2288
                  %v2290 = vld [vmem:[%s2256 + $0x40] sm:$0xf]
                  %2291 = vst [vmem:[%s2257 + $0x40] sm:$0xf] %v2290
                  %v2292 = vld [vmem:[%s2256 + $0x44] sm:$0xf]
                  %2293 = vst [vmem:[%s2257 + $0x44] sm:$0xf] %v2292
                  %v2294 = vld [vmem:[%s2256 + $0x48] sm:$0xf]
                  %2295 = vst [vmem:[%s2257 + $0x48] sm:$0xf] %v2294
                  %v2296 = vld [vmem:[%s2256 + $0x4c] sm:$0xf]
                  %2297 = vst [vmem:[%s2257 + $0x4c] sm:$0xf] %v2296
                  %v2298 = vld [vmem:[%s2256 + $0x50] sm:$0xf]
                  %2299 = vst [vmem:[%s2257 + $0x50] sm:$0xf] %v2298
                  %v2300 = vld [vmem:[%s2256 + $0x54] sm:$0xf]
                  %2301 = vst [vmem:[%s2257 + $0x54] sm:$0xf] %v2300
                  %v2302 = vld [vmem:[%s2256 + $0x58] sm:$0xf]
                  %2303 = vst [vmem:[%s2257 + $0x58] sm:$0xf] %v2302
                  %v2304 = vld [vmem:[%s2256 + $0x5c] sm:$0xf]
                  %2305 = vst [vmem:[%s2257 + $0x5c] sm:$0xf] %v2304
                  %v2306 = vld [vmem:[%s2256 + $0x60] sm:$0xf]
                  %2307 = vst [vmem:[%s2257 + $0x60] sm:$0xf] %v2306
                  %v2308 = vld [vmem:[%s2256 + $0x64] sm:$0xf]
                  %2309 = vst [vmem:[%s2257 + $0x64] sm:$0xf] %v2308
                  %v2310 = vld [vmem:[%s2256 + $0x68] sm:$0xf]
                  %2311 = vst [vmem:[%s2257 + $0x68] sm:$0xf] %v2310
                  %v2312 = vld [vmem:[%s2256 + $0x6c] sm:$0xf]
                  %2313 = vst [vmem:[%s2257 + $0x6c] sm:$0xf] %v2312
                  %v2314 = vld [vmem:[%s2256 + $0x70] sm:$0xf]
                  %2315 = vst [vmem:[%s2257 + $0x70] sm:$0xf] %v2314
                  %v2316 = vld [vmem:[%s2256 + $0x74] sm:$0xf]
                  %2317 = vst [vmem:[%s2257 + $0x74] sm:$0xf] %v2316
                  %v2318 = vld [vmem:[%s2256 + $0x78] sm:$0xf]
                  %2319 = vst [vmem:[%s2257 + $0x78] sm:$0xf] %v2318
                  %v2320 = vld [vmem:[%s2256 + $0x7c] sm:$0xf]
                  %2321 = vst [vmem:[%s2257 + $0x7c] sm:$0xf] %v2320
                  %s2322 = sadd.s32 1, %s2255
                  %p2323 = scmp.ge.s32.totalorder %s2322, %s2248
                  %s2324 = scalar_select %p2323, 0, %s2322
                  %s2325 = smul.u32 %s2324, 128
                  %s2326 = smul.u32 %s2324, 128
                  %s2327 = scalar_lea.vmem %s2119, %s2325 [#allocation3]
                  %s2328 = scalar_lea.vmem %s2130, %s2326
                $region133: #{fashion_cnn_forward.3} parent=127 // loop_footer
                  %s2252 = sadd.s32 %s2250, 1
                $region134: #{fashion_cnn_forward.3} parent=127 // loop_footer_branch
                  %2249 = sbr.rel target = $region130
                $region135: #{fashion_cnn_forward.3} parent=127 // loop_exit
                  _
                %s2329 = sshrl.u32 %s2126, 5
                %s2330 = sand.u32 %s2126, 31
                %s2331 = smul.u32 %s2329, 32
                %s2332 = smul.u32 4, %s2331
                %s2333 = scalar_lea.vmem %s2119, %s2332 [#allocation3]
                %s2334 = smul.u32 4, %s2331
                %s2335 = scalar_lea.vmem %s2130, %s2334
                // While loop
                $region136: #{fashion_cnn_forward.3} parent=127 // loop_pre_header
                  _
                $region137: #{fashion_cnn_forward.3} parent=127 // loop_header
                  %s2337 = sphi 0, %s2339
                  %p2338 = scmp.ge.s32.totalorder %s2337, %s2330
                  %s2342 = sphi 0, %s2349
                  %s2343 = sphi %s2333, %s2352
                  %s2344 = sphi %s2335, %s2353
                $region138: #{fashion_cnn_forward.3} parent=127 // loop_header_branch
                  %2341 = sbr.rel (%p2338) target = $region142
                $region139: #{fashion_cnn_forward.3} parent=127 // loop_body
                  %v2345 = vld [vmem:[%s2343] sm:$0xf]
                  %2346 = vst [vmem:[%s2344] sm:$0xf] %v2345
                  %s2347 = sadd.s32 1, %s2342
                  %p2348 = scmp.ge.s32.totalorder %s2347, %s2330
                  %s2349 = scalar_select %p2348, 0, %s2347
                  %s2350 = smul.u32 %s2349, 4
                  %s2351 = smul.u32 %s2349, 4
                  %s2352 = scalar_lea.vmem %s2333, %s2350 [#allocation3]
                  %s2353 = scalar_lea.vmem %s2335, %s2351
                $region140: #{fashion_cnn_forward.3} parent=127 // loop_footer
                  %s2339 = sadd.s32 %s2337, 1
                $region141: #{fashion_cnn_forward.3} parent=127 // loop_footer_branch
                  %2336 = sbr.rel target = $region137
                $region142: #{fashion_cnn_forward.3} parent=127 // loop_exit
                  _
              $region128: #{fashion_cnn_forward.3} parent=105 // pred_fallthru
                _
            $region106: #{fashion_cnn_forward.3} parent=101 // pred_fallthru
              _
            // Predicated region
            $region107: #{fashion_cnn_forward.3} parent=101 // pred_check
              _
            $region108: #{fashion_cnn_forward.3} parent=101 // pred_check_branch
              %2137 = sbr.rel (0) target = $region110
            $region109: #{fashion_cnn_forward.3} parent=101 // pred_region
              %s2139 = sshrl.u32 %s2126, 5
              // While loop
              $region111: #{fashion_cnn_forward.3} parent=109 // loop_pre_header
                _
              $region112: #{fashion_cnn_forward.3} parent=109 // loop_header
                %s2141 = sphi 0, %s2143
                %p2142 = scmp.ge.s32.totalorder %s2141, %s2139
                %s2146 = sphi 0, %s2215
                %s2147 = sphi %s2119, %s2218
                %s2148 = sphi %s2130, %s2219
              $region113: #{fashion_cnn_forward.3} parent=109 // loop_header_branch
                %2145 = sbr.rel (%p2142) target = $region117
              $region114: #{fashion_cnn_forward.3} parent=109 // loop_body
                %v2149 = vld [vmem:[%s2147] sm:$0xf]
                %2150 = vst [vmem:[%s2148] sm:$0xf] %v2149
                %v2151 = vld [vmem:[%s2147 + $0x4] sm:$0xf]
                %2152 = vst [vmem:[%s2148 + $0x4] sm:$0xf] %v2151
                %v2153 = vld [vmem:[%s2147 + $0x8] sm:$0xf]
                %2154 = vst [vmem:[%s2148 + $0x8] sm:$0xf] %v2153
                %v2155 = vld [vmem:[%s2147 + $0xc] sm:$0xf]
                %2156 = vst [vmem:[%s2148 + $0xc] sm:$0xf] %v2155
                %v2157 = vld [vmem:[%s2147 + $0x10] sm:$0xf]
                %2158 = vst [vmem:[%s2148 + $0x10] sm:$0xf] %v2157
                %v2159 = vld [vmem:[%s2147 + $0x14] sm:$0xf]
                %2160 = vst [vmem:[%s2148 + $0x14] sm:$0xf] %v2159
                %v2161 = vld [vmem:[%s2147 + $0x18] sm:$0xf]
                %2162 = vst [vmem:[%s2148 + $0x18] sm:$0xf] %v2161
                %v2163 = vld [vmem:[%s2147 + $0x1c] sm:$0xf]
                %2164 = vst [vmem:[%s2148 + $0x1c] sm:$0xf] %v2163
                %v2165 = vld [vmem:[%s2147 + $0x20] sm:$0xf]
                %2166 = vst [vmem:[%s2148 + $0x20] sm:$0xf] %v2165
                %v2167 = vld [vmem:[%s2147 + $0x24] sm:$0xf]
                %2168 = vst [vmem:[%s2148 + $0x24] sm:$0xf] %v2167
                %v2169 = vld [vmem:[%s2147 + $0x28] sm:$0xf]
                %2170 = vst [vmem:[%s2148 + $0x28] sm:$0xf] %v2169
                %v2171 = vld [vmem:[%s2147 + $0x2c] sm:$0xf]
                %2172 = vst [vmem:[%s2148 + $0x2c] sm:$0xf] %v2171
                %v2173 = vld [vmem:[%s2147 + $0x30] sm:$0xf]
                %2174 = vst [vmem:[%s2148 + $0x30] sm:$0xf] %v2173
                %v2175 = vld [vmem:[%s2147 + $0x34] sm:$0xf]
                %2176 = vst [vmem:[%s2148 + $0x34] sm:$0xf] %v2175
                %v2177 = vld [vmem:[%s2147 + $0x38] sm:$0xf]
                %2178 = vst [vmem:[%s2148 + $0x38] sm:$0xf] %v2177
                %v2179 = vld [vmem:[%s2147 + $0x3c] sm:$0xf]
                %2180 = vst [vmem:[%s2148 + $0x3c] sm:$0xf] %v2179
                %v2181 = vld [vmem:[%s2147 + $0x40] sm:$0xf]
                %2182 = vst [vmem:[%s2148 + $0x40] sm:$0xf] %v2181
                %v2183 = vld [vmem:[%s2147 + $0x44] sm:$0xf]
                %2184 = vst [vmem:[%s2148 + $0x44] sm:$0xf] %v2183
                %v2185 = vld [vmem:[%s2147 + $0x48] sm:$0xf]
                %2186 = vst [vmem:[%s2148 + $0x48] sm:$0xf] %v2185
                %v2187 = vld [vmem:[%s2147 + $0x4c] sm:$0xf]
                %2188 = vst [vmem:[%s2148 + $0x4c] sm:$0xf] %v2187
                %v2189 = vld [vmem:[%s2147 + $0x50] sm:$0xf]
                %2190 = vst [vmem:[%s2148 + $0x50] sm:$0xf] %v2189
                %v2191 = vld [vmem:[%s2147 + $0x54] sm:$0xf]
                %2192 = vst [vmem:[%s2148 + $0x54] sm:$0xf] %v2191
                %v2193 = vld [vmem:[%s2147 + $0x58] sm:$0xf]
                %2194 = vst [vmem:[%s2148 + $0x58] sm:$0xf] %v2193
                %v2195 = vld [vmem:[%s2147 + $0x5c] sm:$0xf]
                %2196 = vst [vmem:[%s2148 + $0x5c] sm:$0xf] %v2195
                %v2197 = vld [vmem:[%s2147 + $0x60] sm:$0xf]
                %2198 = vst [vmem:[%s2148 + $0x60] sm:$0xf] %v2197
                %v2199 = vld [vmem:[%s2147 + $0x64] sm:$0xf]
                %2200 = vst [vmem:[%s2148 + $0x64] sm:$0xf] %v2199
                %v2201 = vld [vmem:[%s2147 + $0x68] sm:$0xf]
                %2202 = vst [vmem:[%s2148 + $0x68] sm:$0xf] %v2201
                %v2203 = vld [vmem:[%s2147 + $0x6c] sm:$0xf]
                %2204 = vst [vmem:[%s2148 + $0x6c] sm:$0xf] %v2203
                %v2205 = vld [vmem:[%s2147 + $0x70] sm:$0xf]
                %2206 = vst [vmem:[%s2148 + $0x70] sm:$0xf] %v2205
                %v2207 = vld [vmem:[%s2147 + $0x74] sm:$0xf]
                %2208 = vst [vmem:[%s2148 + $0x74] sm:$0xf] %v2207
                %v2209 = vld [vmem:[%s2147 + $0x78] sm:$0xf]
                %2210 = vst [vmem:[%s2148 + $0x78] sm:$0xf] %v2209
                %v2211 = vld [vmem:[%s2147 + $0x7c] sm:$0xf]
                %2212 = vst [vmem:[%s2148 + $0x7c] sm:$0xf] %v2211
                %s2213 = sadd.s32 1, %s2146
                %p2214 = scmp.ge.s32.totalorder %s2213, %s2139
                %s2215 = scalar_select %p2214, 0, %s2213
                %s2216 = smul.u32 %s2215, 128
                %s2217 = smul.u32 %s2215, 128
                %s2218 = scalar_lea.vmem %s2119, %s2216 [#allocation3]
                %s2219 = scalar_lea.vmem %s2130, %s2217
              $region115: #{fashion_cnn_forward.3} parent=109 // loop_footer
                %s2143 = sadd.s32 %s2141, 1
              $region116: #{fashion_cnn_forward.3} parent=109 // loop_footer_branch
                %2140 = sbr.rel target = $region112
              $region117: #{fashion_cnn_forward.3} parent=109 // loop_exit
                _
              %s2220 = sshrl.u32 %s2126, 5
              %s2221 = sand.u32 %s2126, 31
              %s2222 = smul.u32 %s2220, 32
              %s2223 = smul.u32 4, %s2222
              %s2224 = scalar_lea.vmem %s2119, %s2223 [#allocation3]
              %s2225 = smul.u32 4, %s2222
              %s2226 = scalar_lea.vmem %s2130, %s2225
              // While loop
              $region118: #{fashion_cnn_forward.3} parent=109 // loop_pre_header
                _
              $region119: #{fashion_cnn_forward.3} parent=109 // loop_header
                %s2228 = sphi 0, %s2230
                %p2229 = scmp.ge.s32.totalorder %s2228, %s2221
                %s2233 = sphi 0, %s2240
                %s2234 = sphi %s2224, %s2243
                %s2235 = sphi %s2226, %s2244
              $region120: #{fashion_cnn_forward.3} parent=109 // loop_header_branch
                %2232 = sbr.rel (%p2229) target = $region124
              $region121: #{fashion_cnn_forward.3} parent=109 // loop_body
                %v2236 = vld [vmem:[%s2234] sm:$0xf]
                %2237 = vst [vmem:[%s2235] sm:$0xf] %v2236
                %s2238 = sadd.s32 1, %s2233
                %p2239 = scmp.ge.s32.totalorder %s2238, %s2221
                %s2240 = scalar_select %p2239, 0, %s2238
                %s2241 = smul.u32 %s2240, 4
                %s2242 = smul.u32 %s2240, 4
                %s2243 = scalar_lea.vmem %s2224, %s2241 [#allocation3]
                %s2244 = scalar_lea.vmem %s2226, %s2242
              $region122: #{fashion_cnn_forward.3} parent=109 // loop_footer
                %s2230 = sadd.s32 %s2228, 1
              $region123: #{fashion_cnn_forward.3} parent=109 // loop_footer_branch
                %2227 = sbr.rel target = $region119
              $region124: #{fashion_cnn_forward.3} parent=109 // loop_exit
                _
            $region110: #{fashion_cnn_forward.3} parent=101 // pred_fallthru
              _
          $region102: #{fashion_cnn_forward.3} parent=97 // pred_fallthru
            _
          %2354 = vnop
        $region98: #{fashion_cnn_forward.3} parent=89 // pred_fallthru
          _
      $region90: #{fashion_cnn_forward.3} parent=5 // pred_fallthru
        _
      %p2355 = scmp.le.s32.totalorder 2, %s9
      // Predicated region
      $region143: #{fashion_cnn_forward.3} parent=5 // pred_check
        %p2356 = pneg %p2355
      $region144: #{fashion_cnn_forward.3} parent=5 // pred_check_branch
        %2358 = sbr.rel (%p2356) target = $region146
      $region145: #{fashion_cnn_forward.3} parent=5 // pred_region
        %s2359 = ssub.s32 %s9, 2
        // Predicated region
        $region147: #{fashion_cnn_forward.3} parent=145 // pred_check
          %p2360 = pneg %p106
        $region148: #{fashion_cnn_forward.3} parent=145 // pred_check_branch
          %2362 = sbr.rel (%p2360) target = $region150
        $region149: #{fashion_cnn_forward.3} parent=145 // pred_region
          %s2363 = sand.u32 %s91, 1
          %s2364 = sand.u32 %s91, 1
          %s2365 = smul.addr %s2364, 128
          %s2366 = scalar_lea.vmem [#allocation3], %s2365
        $region150: #{fashion_cnn_forward.3} parent=145 // pred_fallthru
          _
      $region146: #{fashion_cnn_forward.3} parent=5 // pred_fallthru
        _
    $region6: #{fashion_cnn_forward.3} parent=1 // loop_footer
      %s13 = sadd.s32 1, %s9
    $region7: #{fashion_cnn_forward.3} parent=1 // loop_footer_branch
      %8 = sbr.rel target = $region3
    $region8: #{fashion_cnn_forward.3} parent=1 // loop_exit
      _

// kernel: fashion_cnn_forward.4
$region0: #{fashion_cnn_forward.4}
  #allocation0 [shape = 'u32[]', space=smem, size = 0x4, offset = 0x4, fixed_abs, tag = 'smem constant byte address 0x4 - core index']
  #allocation1 [shape = 'u32[144,128]{1,0:T(1,128)}', space=vmem, size = 0x12000, scoped, tag = 'internal scratch']
  %s0 = inlined_call_operand.vmem [shape: bf16[4,72,288], index: 0, kind: input, shape index: {}]
  %s1 = inlined_call_operand.vmem [shape: bf16[288,64], index: 1, kind: input, shape index: {}]
  %s2 = inlined_call_operand.vmem [shape: f32[1,64], index: 2, kind: input, shape index: {}]
  %s3 = inlined_call_operand.vmem [shape: bf16[72,64], index: 3, kind: output, shape index: {}]
  %s4 = sld [smem:[#allocation0]]
  $region22: #{fashion_cnn_forward.4} parent=0
    _
  %s6 = ssub.s32 1, %s4
  %s7 = scalar_select 0, %s6, %s4
  // Predicated region
  $region2: #{fashion_cnn_forward.4} parent=0 // pred_check
    _
  $region3: #{fashion_cnn_forward.4} parent=0 // pred_check_branch
    %9 = sbr.rel (0) target = $region5
  $region4: #{fashion_cnn_forward.4} parent=0 // pred_region
    _
  $region5: #{fashion_cnn_forward.4} parent=0 // pred_fallthru
    _
  // Predicated region
  $region6: #{fashion_cnn_forward.4} parent=0 // pred_check
    _
  $region7: #{fashion_cnn_forward.4} parent=0 // pred_check_branch
    %11 = sbr.rel (0) target = $region9
  $region8: #{fashion_cnn_forward.4} parent=0 // pred_region
    _
  $region9: #{fashion_cnn_forward.4} parent=0 // pred_fallthru
    _
  // Predicated region
  $region10: #{fashion_cnn_forward.4} parent=0 // pred_check
    _
  $region11: #{fashion_cnn_forward.4} parent=0 // pred_check_branch
    %13 = sbr.rel (0) target = $region13
  $region12: #{fashion_cnn_forward.4} parent=0 // pred_region
    _
  $region13: #{fashion_cnn_forward.4} parent=0 // pred_fallthru
    _
  %v15 = vld [vmem:[%s0] sm:$0xff]
  %v16 = vld [vmem:[%s0 + $0x8] sm:$0xf]
  %v17 = vld [vmem:[%s0 + $0xc] sm:$0xff]
  %v18 = vld [vmem:[%s0 + $0x14] sm:$0xf]
  %v19 = vld [vmem:[%s0 + $0x18] sm:$0xff]
  %v20 = vld [vmem:[%s0 + $0x20] sm:$0xf]
  %v21 = vld [vmem:[%s0 + $0x24] sm:$0xff]
  %v22 = vld [vmem:[%s0 + $0x2c] sm:$0xf]
  %v23 = vld [vmem:[%s0 + $0x30] sm:$0xff]
  %v24 = vld [vmem:[%s0 + $0x38] sm:$0xf]
  %v25 = vld [vmem:[%s0 + $0x3c] sm:$0xff]
  %v26 = vld [vmem:[%s0 + $0x44] sm:$0xf]
  %v27 = vld [vmem:[%s0 + $0x48] sm:$0xff]
  %v28 = vld [vmem:[%s0 + $0x50] sm:$0xf]
  %v29 = vld [vmem:[%s0 + $0x54] sm:$0xff]
  %v30 = vld [vmem:[%s0 + $0x5c] sm:$0xf]
  %v31 = vld [vmem:[%s0 + $0x60] sm:$0xff]
  %v32 = vld [vmem:[%s0 + $0x68] sm:$0xf]
  %v33 = vld [vmem:[%s0 + $0x6c] sm:$0xff]
  %v34 = vld [vmem:[%s0 + $0x74] sm:$0xf]
  %v35 = vld [vmem:[%s0 + $0x78] sm:$0xff]
  %v36 = vld [vmem:[%s0 + $0x80] sm:$0xf]
  %v37 = vld [vmem:[%s0 + $0x84] sm:$0xff]
  %v38 = vld [vmem:[%s0 + $0x8c] sm:$0xf]
  %v39 = vld [vmem:[%s0 + $0x90] sm:$0xff]
  %v40 = vld [vmem:[%s0 + $0x98] sm:$0xf]
  %v41 = vld [vmem:[%s0 + $0x9c] sm:$0xff]
  %v42 = vld [vmem:[%s0 + $0xa4] sm:$0xf]
  %v43 = vld [vmem:[%s0 + $0xa8] sm:$0xff]
  %v44 = vld [vmem:[%s0 + $0xb0] sm:$0xf]
  %v45 = vld [vmem:[%s0 + $0xb4] sm:$0xff]
  %v46 = vld [vmem:[%s0 + $0xbc] sm:$0xf]
  %v47 = vld [vmem:[%s0 + $0xc0] sm:$0xff]
  %v48 = vld [vmem:[%s0 + $0xc8] sm:$0xf]
  %v49 = vld [vmem:[%s0 + $0xcc] sm:$0xff]
  %v50 = vld [vmem:[%s0 + $0xd4] sm:$0xf]
  %v51 = vld [vmem:[%s0 + $0xd8] sm:$0xff]
  %v52 = vld [vmem:[%s0 + $0xe0] sm:$0xf]
  %v53 = vld [vmem:[%s0 + $0xe4] sm:$0xff]
  %v54 = vld [vmem:[%s0 + $0xec] sm:$0xf]
  %v55 = vld [vmem:[%s0 + $0xf0] sm:$0xff]
  %v56 = vld [vmem:[%s0 + $0xf8] sm:$0xf]
  %v57 = vld [vmem:[%s0 + $0xfc] sm:$0xff]
  %v58 = vld [vmem:[%s0 + $0x104] sm:$0xf]
  %v59 = vld [vmem:[%s0 + $0x108] sm:$0xff]
  %v60 = vld [vmem:[%s0 + $0x110] sm:$0xf]
  %v61 = vld [vmem:[%s0 + $0x114] sm:$0xff]
  %v62 = vld [vmem:[%s0 + $0x11c] sm:$0xf]
  %v63 = vld [vmem:[%s0 + $0x120] sm:$0xff]
  %v64 = vld [vmem:[%s0 + $0x128] sm:$0xf]
  %v65 = vld [vmem:[%s0 + $0x12c] sm:$0xff]
  %v66 = vld [vmem:[%s0 + $0x134] sm:$0xf]
  %v67 = vld [vmem:[%s0 + $0x138] sm:$0xff]
  %v68 = vld [vmem:[%s0 + $0x140] sm:$0xf]
  %v69 = vld [vmem:[%s0 + $0x144] sm:$0xff]
  %v70 = vld [vmem:[%s0 + $0x14c] sm:$0xf]
  %v71 = vld [vmem:[%s0 + $0x150] sm:$0xff]
  %v72 = vld [vmem:[%s0 + $0x158] sm:$0xf]
  %v73 = vld [vmem:[%s0 + $0x15c] sm:$0xff]
  %v74 = vld [vmem:[%s0 + $0x164] sm:$0xf]
  %v75 = vld [vmem:[%s0 + $0x168] sm:$0xff]
  %v76 = vld [vmem:[%s0 + $0x170] sm:$0xf]
  %v77 = vld [vmem:[%s0 + $0x174] sm:$0xff]
  %v78 = vld [vmem:[%s0 + $0x17c] sm:$0xf]
  %v79 = vld [vmem:[%s0 + $0x180] sm:$0xff]
  %v80 = vld [vmem:[%s0 + $0x188] sm:$0xf]
  %v81 = vld [vmem:[%s0 + $0x18c] sm:$0xff]
  %v82 = vld [vmem:[%s0 + $0x194] sm:$0xf]
  %v83 = vld [vmem:[%s0 + $0x198] sm:$0xff]
  %v84 = vld [vmem:[%s0 + $0x1a0] sm:$0xf]
  %v85 = vld [vmem:[%s0 + $0x1a4] sm:$0xff]
  %v86 = vld [vmem:[%s0 + $0x1ac] sm:$0xf]
  %v87 = vld [vmem:[%s1] sm:$0xf]
  %v88 = vld [vmem:[%s1 + $0x4] sm:$0xf]
  %v89 = vld [vmem:[%s1 + $0x8] sm:$0xf]
  %v90 = vld [vmem:[%s1 + $0xc] sm:$0xf]
  %v91 = vld [vmem:[%s1 + $0x10] sm:$0xf]
  %v92 = vld [vmem:[%s1 + $0x14] sm:$0xf]
  %v93 = vld [vmem:[%s1 + $0x18] sm:$0xf]
  %v94 = vld [vmem:[%s1 + $0x1c] sm:$0xf]
  %v95 = vld [vmem:[%s1 + $0x20] sm:$0xf]
  %v96 = vld [vmem:[%s1 + $0x24] sm:$0xf]
  %v97 = vld [vmem:[%s1 + $0x28] sm:$0xf]
  %v98 = vld [vmem:[%s1 + $0x2c] sm:$0xf]
  %v99 = vld [vmem:[%s1 + $0x30] sm:$0xf]
  %v100 = vld [vmem:[%s1 + $0x34] sm:$0xf]
  %v101 = vld [vmem:[%s1 + $0x38] sm:$0xf]
  %v102 = vld [vmem:[%s1 + $0x3c] sm:$0xf]
  %v103 = vld [vmem:[%s1 + $0x40] sm:$0xf]
  %v104 = vld [vmem:[%s1 + $0x44] sm:$0xf]
  %v105 = vld [vmem:[%s1 + $0x48] sm:$0xf]
  %v106 = vld [vmem:[%s1 + $0x4c] sm:$0xf]
  %v107 = vld [vmem:[%s1 + $0x50] sm:$0xf]
  %v108 = vld [vmem:[%s1 + $0x54] sm:$0xf]
  %v109 = vld [vmem:[%s1 + $0x58] sm:$0xf]
  %v110 = vld [vmem:[%s1 + $0x5c] sm:$0xf]
  %v111 = vld [vmem:[%s1 + $0x60] sm:$0xf]
  %v112 = vld [vmem:[%s1 + $0x64] sm:$0xf]
  %v113 = vld [vmem:[%s1 + $0x68] sm:$0xf]
  %v114 = vld [vmem:[%s1 + $0x6c] sm:$0xf]
  %v115 = vld [vmem:[%s1 + $0x70] sm:$0xf]
  %v116 = vld [vmem:[%s1 + $0x74] sm:$0xf]
  %v117 = vld [vmem:[%s1 + $0x78] sm:$0xf]
  %v118 = vld [vmem:[%s1 + $0x7c] sm:$0xf]
  %v119 = vld [vmem:[%s1 + $0x80] sm:$0xf]
  %v120 = vld [vmem:[%s1 + $0x84] sm:$0xf]
  %v121 = vld [vmem:[%s1 + $0x88] sm:$0xf]
  %v122 = vld [vmem:[%s1 + $0x8c] sm:$0xf]
  %v195 = vunpack.c.l.b16 %v15
  %v196 = vunpack.c.h.b16 %v15
  %v197 = vunpack.c.l.b16 %v16
  %v198 = vunpack.c.l.b16 %v17
  %v199 = vunpack.c.h.b16 %v17
  %v200 = vunpack.c.l.b16 %v18
  %v201 = vunpack.c.l.b16 %v19
  %v202 = vunpack.c.h.b16 %v19
  %v203 = vunpack.c.l.b16 %v20
  %v204 = vunpack.c.l.b16 %v21
  %v205 = vunpack.c.h.b16 %v21
  %v206 = vunpack.c.l.b16 %v22
  %v207 = vunpack.c.l.b16 %v23
  %v208 = vunpack.c.h.b16 %v23
  %v209 = vunpack.c.l.b16 %v24
  %v210 = vunpack.c.l.b16 %v25
  %v211 = vunpack.c.h.b16 %v25
  %v212 = vunpack.c.l.b16 %v26
  %v213 = vunpack.c.l.b16 %v27
  %v214 = vunpack.c.h.b16 %v27
  %v215 = vunpack.c.l.b16 %v28
  %v216 = vunpack.c.l.b16 %v29
  %v217 = vunpack.c.h.b16 %v29
  %v218 = vunpack.c.l.b16 %v30
  %v219 = vunpack.c.l.b16 %v31
  %v220 = vunpack.c.h.b16 %v31
  %v221 = vunpack.c.l.b16 %v32
  %v222 = vunpack.c.l.b16 %v33
  %v223 = vunpack.c.h.b16 %v33
  %v224 = vunpack.c.l.b16 %v34
  %v225 = vunpack.c.l.b16 %v35
  %v226 = vunpack.c.h.b16 %v35
  %v227 = vunpack.c.l.b16 %v36
  %v228 = vunpack.c.l.b16 %v37
  %v229 = vunpack.c.h.b16 %v37
  %v230 = vunpack.c.l.b16 %v38
  %v231 = vunpack.c.l.b16 %v39
  %v232 = vunpack.c.h.b16 %v39
  %v233 = vunpack.c.l.b16 %v40
  %v234 = vunpack.c.l.b16 %v41
  %v235 = vunpack.c.h.b16 %v41
  %v236 = vunpack.c.l.b16 %v42
  %v237 = vunpack.c.l.b16 %v43
  %v238 = vunpack.c.h.b16 %v43
  %v239 = vunpack.c.l.b16 %v44
  %v240 = vunpack.c.l.b16 %v45
  %v241 = vunpack.c.h.b16 %v45
  %v242 = vunpack.c.l.b16 %v46
  %v243 = vunpack.c.l.b16 %v47
  %v244 = vunpack.c.h.b16 %v47
  %v245 = vunpack.c.l.b16 %v48
  %v246 = vunpack.c.l.b16 %v49
  %v247 = vunpack.c.h.b16 %v49
  %v248 = vunpack.c.l.b16 %v50
  %v249 = vunpack.c.l.b16 %v51
  %v250 = vunpack.c.h.b16 %v51
  %v251 = vunpack.c.l.b16 %v52
  %v252 = vunpack.c.l.b16 %v53
  %v253 = vunpack.c.h.b16 %v53
  %v254 = vunpack.c.l.b16 %v54
  %v255 = vunpack.c.l.b16 %v55
  %v256 = vunpack.c.h.b16 %v55
  %v257 = vunpack.c.l.b16 %v56
  %v258 = vunpack.c.l.b16 %v57
  %v259 = vunpack.c.h.b16 %v57
  %v260 = vunpack.c.l.b16 %v58
  %v261 = vunpack.c.l.b16 %v59
  %v262 = vunpack.c.h.b16 %v59
  %v263 = vunpack.c.l.b16 %v60
  %v264 = vunpack.c.l.b16 %v61
  %v265 = vunpack.c.h.b16 %v61
  %v266 = vunpack.c.l.b16 %v62
  %v267 = vunpack.c.l.b16 %v63
  %v268 = vunpack.c.h.b16 %v63
  %v269 = vunpack.c.l.b16 %v64
  %v270 = vunpack.c.l.b16 %v65
  %v271 = vunpack.c.h.b16 %v65
  %v272 = vunpack.c.l.b16 %v66
  %v273 = vunpack.c.l.b16 %v67
  %v274 = vunpack.c.h.b16 %v67
  %v275 = vunpack.c.l.b16 %v68
  %v276 = vunpack.c.l.b16 %v69
  %v277 = vunpack.c.h.b16 %v69
  %v278 = vunpack.c.l.b16 %v70
  %v279 = vunpack.c.l.b16 %v71
  %v280 = vunpack.c.h.b16 %v71
  %v281 = vunpack.c.l.b16 %v72
  %v282 = vunpack.c.l.b16 %v73
  %v283 = vunpack.c.h.b16 %v73
  %v284 = vunpack.c.l.b16 %v74
  %v285 = vunpack.c.l.b16 %v75
  %v286 = vunpack.c.h.b16 %v75
  %v287 = vunpack.c.l.b16 %v76
  %v288 = vunpack.c.l.b16 %v77
  %v289 = vunpack.c.h.b16 %v77
  %v290 = vunpack.c.l.b16 %v78
  %v291 = vunpack.c.l.b16 %v79
  %v292 = vunpack.c.h.b16 %v79
  %v293 = vunpack.c.l.b16 %v80
  %v294 = vunpack.c.l.b16 %v81
  %v295 = vunpack.c.h.b16 %v81
  %v296 = vunpack.c.l.b16 %v82
  %v297 = vunpack.c.l.b16 %v83
  %v298 = vunpack.c.h.b16 %v83
  %v299 = vunpack.c.l.b16 %v84
  %v300 = vunpack.c.l.b16 %v85
  %v301 = vunpack.c.h.b16 %v85
  %v302 = vunpack.c.l.b16 %v86
  %v303 = vpack.c.b16 %v198, %v195
  %v304 = vpack.c.b16 %v199, %v196
  %v305 = vpack.c.b16 %v200, %v197
  %v306 = vpack.c.b16 %v204, %v201
  %v307 = vpack.c.b16 %v205, %v202
  %v308 = vpack.c.b16 %v206, %v203
  %v309 = vpack.c.b16 %v210, %v207
  %v310 = vpack.c.b16 %v211, %v208
  %v311 = vpack.c.b16 %v212, %v209
  %v312 = vpack.c.b16 %v216, %v213
  %v313 = vpack.c.b16 %v217, %v214
  %v314 = vpack.c.b16 %v218, %v215
  %v315 = vpack.c.b16 %v222, %v219
  %v316 = vpack.c.b16 %v223, %v220
  %v317 = vpack.c.b16 %v224, %v221
  %v318 = vpack.c.b16 %v228, %v225
  %v319 = vpack.c.b16 %v229, %v226
  %v320 = vpack.c.b16 %v230, %v227
  %v321 = vpack.c.b16 %v234, %v231
  %v322 = vpack.c.b16 %v235, %v232
  %v323 = vpack.c.b16 %v236, %v233
  %v324 = vpack.c.b16 %v240, %v237
  %v325 = vpack.c.b16 %v241, %v238
  %v326 = vpack.c.b16 %v242, %v239
  %v327 = vpack.c.b16 %v246, %v243
  %v328 = vpack.c.b16 %v247, %v244
  %v329 = vpack.c.b16 %v248, %v245
  %v330 = vpack.c.b16 %v252, %v249
  %v331 = vpack.c.b16 %v253, %v250
  %v332 = vpack.c.b16 %v254, %v251
  %v333 = vpack.c.b16 %v258, %v255
  %v334 = vpack.c.b16 %v259, %v256
  %v335 = vpack.c.b16 %v260, %v257
  %v336 = vpack.c.b16 %v264, %v261
  %v337 = vpack.c.b16 %v265, %v262
  %v338 = vpack.c.b16 %v266, %v263
  %v339 = vpack.c.b16 %v270, %v267
  %v340 = vpack.c.b16 %v271, %v268
  %v341 = vpack.c.b16 %v272, %v269
  %v342 = vpack.c.b16 %v276, %v273
  %v343 = vpack.c.b16 %v277, %v274
  %v344 = vpack.c.b16 %v278, %v275
  %v345 = vpack.c.b16 %v282, %v279
  %v346 = vpack.c.b16 %v283, %v280
  %v347 = vpack.c.b16 %v284, %v281
  %v348 = vpack.c.b16 %v288, %v285
  %v349 = vpack.c.b16 %v289, %v286
  %v350 = vpack.c.b16 %v290, %v287
  %v351 = vpack.c.b16 %v294, %v291
  %v352 = vpack.c.b16 %v295, %v292
  %v353 = vpack.c.b16 %v296, %v293
  %v354 = vpack.c.b16 %v300, %v297
  %v355 = vpack.c.b16 %v301, %v298
  %v356 = vpack.c.b16 %v302, %v299
  %v429 = vunpack.c.l.b16 %v87
  %v430 = vunpack.c.l.b16 %v88
  %v431 = vunpack.c.l.b16 %v89
  %v432 = vunpack.c.l.b16 %v90
  %v433 = vunpack.c.l.b16 %v91
  %v434 = vunpack.c.l.b16 %v92
  %v435 = vunpack.c.l.b16 %v93
  %v436 = vunpack.c.l.b16 %v94
  %v437 = vunpack.c.l.b16 %v95
  %v438 = vunpack.c.l.b16 %v96
  %v439 = vunpack.c.l.b16 %v97
  %v440 = vunpack.c.l.b16 %v98
  %v441 = vunpack.c.l.b16 %v99
  %v442 = vunpack.c.l.b16 %v100
  %v443 = vunpack.c.l.b16 %v101
  %v444 = vunpack.c.l.b16 %v102
  %v445 = vunpack.c.l.b16 %v103
  %v446 = vunpack.c.l.b16 %v104
  %v447 = vunpack.c.l.b16 %v105
  %v448 = vunpack.c.l.b16 %v106
  %v449 = vunpack.c.l.b16 %v107
  %v450 = vunpack.c.l.b16 %v108
  %v451 = vunpack.c.l.b16 %v109
  %v452 = vunpack.c.l.b16 %v110
  %v453 = vunpack.c.l.b16 %v111
  %v454 = vunpack.c.l.b16 %v112
  %v455 = vunpack.c.l.b16 %v113
  %v456 = vunpack.c.l.b16 %v114
  %v457 = vunpack.c.l.b16 %v115
  %v458 = vunpack.c.l.b16 %v116
  %v459 = vunpack.c.l.b16 %v117
  %v460 = vunpack.c.l.b16 %v118
  %v461 = vunpack.c.l.b16 %v119
  %v462 = vunpack.c.l.b16 %v120
  %v463 = vunpack.c.l.b16 %v121
  %v464 = vunpack.c.l.b16 %v122
  %v465 = vpack.c.b16 %v430, %v429
  %v466 = vpack.c.b16 %v432, %v431
  %v467 = vpack.c.b16 %v434, %v433
  %v468 = vpack.c.b16 %v436, %v435
  %v469 = vpack.c.b16 %v438, %v437
  %v470 = vpack.c.b16 %v440, %v439
  %v471 = vpack.c.b16 %v442, %v441
  %v472 = vpack.c.b16 %v444, %v443
  %v473 = vpack.c.b16 %v446, %v445
  %v474 = vpack.c.b16 %v448, %v447
  %v475 = vpack.c.b16 %v450, %v449
  %v476 = vpack.c.b16 %v452, %v451
  %v477 = vpack.c.b16 %v454, %v453
  %v478 = vpack.c.b16 %v456, %v455
  %v479 = vpack.c.b16 %v458, %v457
  %v480 = vpack.c.b16 %v460, %v459
  %v481 = vpack.c.b16 %v462, %v461
  %v482 = vpack.c.b16 %v464, %v463
  %vm501 = vcmask 261120
  %v503 = vsel %vm501, %v305, 0
  %v506 = vsel %vm501, %v308, 0
  %v509 = vsel %vm501, %v311, 0
  %v512 = vsel %vm501, %v314, 0
  %v515 = vsel %vm501, %v317, 0
  %v518 = vsel %vm501, %v320, 0
  %v521 = vsel %vm501, %v323, 0
  %v524 = vsel %vm501, %v326, 0
  %v527 = vsel %vm501, %v329, 0
  %v530 = vsel %vm501, %v332, 0
  %v533 = vsel %vm501, %v335, 0
  %v536 = vsel %vm501, %v338, 0
  %v539 = vsel %vm501, %v341, 0
  %v542 = vsel %vm501, %v344, 0
  %v545 = vsel %vm501, %v347, 0
  %v548 = vsel %vm501, %v350, 0
  %v551 = vsel %vm501, %v353, 0
  %v554 = vsel %vm501, %v356, 0
  %556 = vmatprep.subr.bf16.mxu0 0
  %557 = vmatpush1.bf16.msra.mxu0 %v465
  %558 = vmatprep.subr.bf16.mxu0 0
  %559 = vmatpush1.bf16.msra.mxu0 %v466
  %560 = vmatprep.subr.bf16.mxu0 0
  %561 = vmatpush1.bf16.msra.mxu0 %v467
  %562 = vmatprep.subr.bf16.mxu0 0
  %563 = vmatpush1.bf16.msra.mxu0 %v468
  %564 = vmatprep.subr.bf16.mxu0 0
  %565 = vmatpush1.bf16.msra.mxu0 %v469
  %566 = vmatprep.subr.bf16.mxu0 0
  %567 = vmatpush1.bf16.msra.mxu0 %v470
  %568 = vmatprep.subr.bf16.mxu0 0
  %569 = vmatpush1.bf16.msra.mxu0 %v471
  %570 = vmatprep.subr.bf16.mxu0 0
  %571 = vmatpush1.bf16.msra.mxu0 %v472
  %572 = vmatprep.subr.bf16.mxu0 0
  %573 = vmatpush1.bf16.msra.mxu0 %v473
  %574 = vmatprep.subr.bf16.mxu0 0
  %575 = vmatpush1.bf16.msra.mxu0 %v474
  %576 = vmatprep.subr.bf16.mxu0 0
  %577 = vmatpush1.bf16.msra.mxu0 %v475
  %578 = vmatprep.subr.bf16.mxu0 0
  %579 = vmatpush1.bf16.msra.mxu0 %v476
  %580 = vmatprep.subr.bf16.mxu0 0
  %581 = vmatpush1.bf16.msra.mxu0 %v477
  %582 = vmatprep.subr.bf16.mxu0 0
  %583 = vmatpush1.bf16.msra.mxu0 %v478
  %584 = vmatprep.subr.bf16.mxu0 0
  %585 = vmatpush1.bf16.msra.mxu0 %v479
  %586 = vmatprep.subr.bf16.mxu0 0
  %587 = vmatpush1.bf16.msra.mxu0 %v480
  %588 = vmatprep.mubr.bf16.mxu0 %v304
  %589 = vmatmul.mubr.bf16.gmra.mrb[0].mxu0 %v303
  %v590 = vpop.f32.mrb[0].mxu0
  %v591 = vadd.f32 0.0, %v590
  %v592 = vpop.f32.mrb[0].mxu0
  %v593 = vpop.f32.mrb[0].mxu0
  %v594 = vadd.f32 0.0, %v593
  %v595 = vpop.f32.mrb[0].mxu0
  %596 = vmatprep.mubr.bf16.mxu0 %v307
  %597 = vmatmul.mubr.bf16.gmra.mrb[0].mxu0 %v306
  %v598 = vpop.f32.mrb[0].mxu0
  %v599 = vadd.f32 0.0, %v598
  %v600 = vpop.f32.mrb[0].mxu0
  %v601 = vpop.f32.mrb[0].mxu0
  %v602 = vadd.f32 0.0, %v601
  %v603 = vpop.f32.mrb[0].mxu0
  %604 = vmatprep.mubr.bf16.mxu0 %v310
  %605 = vmatmul.mubr.bf16.gmra.mrb[0].mxu0 %v309
  %v606 = vpop.f32.mrb[0].mxu0
  %v607 = vadd.f32 0.0, %v606
  %v608 = vpop.f32.mrb[0].mxu0
  %v609 = vpop.f32.mrb[0].mxu0
  %v610 = vadd.f32 0.0, %v609
  %v611 = vpop.f32.mrb[0].mxu0
  %612 = vmatprep.mubr.bf16.mxu0 %v313
  %613 = vmatmul.mubr.bf16.gmra.mrb[0].mxu0 %v312
  %v614 = vpop.f32.mrb[0].mxu0
  %v615 = vadd.f32 0.0, %v614
  %v616 = vpop.f32.mrb[0].mxu0
  %v617 = vpop.f32.mrb[0].mxu0
  %v618 = vadd.f32 0.0, %v617
  %v619 = vpop.f32.mrb[0].mxu0
  %620 = vmatprep.mubr.bf16.mxu0 %v316
  %621 = vmatmul.mubr.bf16.gmra.mrb[0].mxu0 %v315
  %v622 = vpop.f32.mrb[0].mxu0
  %v623 = vadd.f32 0.0, %v622
  %v624 = vpop.f32.mrb[0].mxu0
  %v625 = vpop.f32.mrb[0].mxu0
  %v626 = vadd.f32 0.0, %v625
  %v627 = vpop.f32.mrb[0].mxu0
  %628 = vmatprep.mubr.bf16.mxu0 %v319
  %629 = vmatmul.mubr.bf16.gmra.mrb[0].mxu0 %v318
  %v630 = vpop.f32.mrb[0].mxu0
  %v631 = vadd.f32 0.0, %v630
  %v632 = vpop.f32.mrb[0].mxu0
  %v633 = vpop.f32.mrb[0].mxu0
  %v634 = vadd.f32 0.0, %v633
  %v635 = vpop.f32.mrb[0].mxu0
  %636 = vmatprep.mubr.bf16.mxu0 %v322
  %637 = vmatmul.mubr.bf16.gmra.mrb[0].mxu0 %v321
  %v638 = vpop.f32.mrb[0].mxu0
  %v639 = vadd.f32 0.0, %v638
  %v640 = vpop.f32.mrb[0].mxu0
  %v641 = vpop.f32.mrb[0].mxu0
  %v642 = vadd.f32 0.0, %v641
  %v643 = vpop.f32.mrb[0].mxu0
  %644 = vmatprep.mubr.bf16.mxu0 %v325
  %645 = vmatmul.mubr.bf16.gmra.mrb[0].mxu0 %v324
  %v646 = vpop.f32.mrb[0].mxu0
  %v647 = vadd.f32 0.0, %v646
  %v648 = vpop.f32.mrb[0].mxu0
  %v649 = vpop.f32.mrb[0].mxu0
  %v650 = vadd.f32 0.0, %v649
  %v651 = vpop.f32.mrb[0].mxu0
  %652 = vmatprep.mubr.bf16.mxu0 %v328
  %653 = vmatmul.mubr.bf16.gmra.mrb[0].mxu0 %v327
  %v654 = vpop.f32.mrb[0].mxu0
  %v655 = vadd.f32 0.0, %v654
  %v656 = vpop.f32.mrb[0].mxu0
  %v657 = vpop.f32.mrb[0].mxu0
  %v658 = vadd.f32 0.0, %v657
  %v659 = vpop.f32.mrb[0].mxu0
  %660 = vmatprep.mubr.bf16.mxu0 %v331
  %661 = vmatmul.mubr.bf16.gmra.mrb[0].mxu0 %v330
  %v662 = vpop.f32.mrb[0].mxu0
  %v663 = vadd.f32 0.0, %v662
  %v664 = vpop.f32.mrb[0].mxu0
  %v665 = vpop.f32.mrb[0].mxu0
  %v666 = vadd.f32 0.0, %v665
  %v667 = vpop.f32.mrb[0].mxu0
  %668 = vmatprep.mubr.bf16.mxu0 %v334
  %669 = vmatmul.mubr.bf16.gmra.mrb[0].mxu0 %v333
  %v670 = vpop.f32.mrb[0].mxu0
  %v671 = vadd.f32 0.0, %v670
  %v672 = vpop.f32.mrb[0].mxu0
  %v673 = vpop.f32.mrb[0].mxu0
  %v674 = vadd.f32 0.0, %v673
  %v675 = vpop.f32.mrb[0].mxu0
  %676 = vmatprep.mubr.bf16.mxu0 %v337
  %677 = vmatmul.mubr.bf16.gmra.mrb[0].mxu0 %v336
  %v678 = vpop.f32.mrb[0].mxu0
  %v679 = vadd.f32 0.0, %v678
  %v680 = vpop.f32.mrb[0].mxu0
  %v681 = vpop.f32.mrb[0].mxu0
  %v682 = vadd.f32 0.0, %v681
  %v683 = vpop.f32.mrb[0].mxu0
  %684 = vmatprep.mubr.bf16.mxu0 %v340
  %685 = vmatmul.mubr.bf16.gmra.mrb[0].mxu0 %v339
  %v686 = vpop.f32.mrb[0].mxu0
  %v687 = vadd.f32 0.0, %v686
  %v688 = vpop.f32.mrb[0].mxu0
  %v689 = vpop.f32.mrb[0].mxu0
  %v690 = vadd.f32 0.0, %v689
  %v691 = vpop.f32.mrb[0].mxu0
  %692 = vmatprep.mubr.bf16.mxu0 %v343
  %693 = vmatmul.mubr.bf16.gmra.mrb[0].mxu0 %v342
  %v694 = vpop.f32.mrb[0].mxu0
  %v695 = vadd.f32 0.0, %v694
  %v696 = vpop.f32.mrb[0].mxu0
  %v697 = vpop.f32.mrb[0].mxu0
  %v698 = vadd.f32 0.0, %v697
  %v699 = vpop.f32.mrb[0].mxu0
  %700 = vmatprep.mubr.bf16.mxu0 %v346
  %701 = vmatmul.mubr.bf16.gmra.mrb[0].mxu0 %v345
  %v702 = vpop.f32.mrb[0].mxu0
  %v703 = vadd.f32 0.0, %v702
  %v704 = vpop.f32.mrb[0].mxu0
  %v705 = vpop.f32.mrb[0].mxu0
  %v706 = vadd.f32 0.0, %v705
  %v707 = vpop.f32.mrb[0].mxu0
  %708 = vmatprep.mubr.bf16.mxu0 %v349
  %709 = vmatmul.mubr.bf16.gmra.mrb[0].mxu0 %v348
  %v710 = vpop.f32.mrb[0].mxu0
  %v711 = vadd.f32 0.0, %v710
  %v712 = vpop.f32.mrb[0].mxu0
  %v713 = vpop.f32.mrb[0].mxu0
  %v714 = vadd.f32 0.0, %v713
  %v715 = vpop.f32.mrb[0].mxu0
  %716 = vmatprep.mubr.bf16.mxu0 %v352
  %717 = vmatmul.mubr.bf16.gmra.mrb[0].mxu0 %v351
  %v718 = vpop.f32.mrb[0].mxu0
  %v719 = vadd.f32 0.0, %v718
  %v720 = vpop.f32.mrb[0].mxu0
  %v721 = vpop.f32.mrb[0].mxu0
  %v722 = vadd.f32 0.0, %v721
  %v723 = vpop.f32.mrb[0].mxu0
  %724 = vmatprep.mubr.bf16.mxu0 %v355
  %725 = vmatmul.mubr.bf16.gmra.mrb[0].mxu0 %v354
  %v726 = vpop.f32.mrb[0].mxu0
  %v727 = vadd.f32 0.0, %v726
  %v728 = vpop.f32.mrb[0].mxu0
  %v729 = vpop.f32.mrb[0].mxu0
  %v730 = vadd.f32 0.0, %v729
  %v731 = vpop.f32.mrb[0].mxu0
  %732 = vdwg.mxu0
  %733 = vmatprep.subr.bf16.mxu0 0
  %734 = vmatpush1.bf16.msra.mxu0 %v481
  %735 = vmatprep.subr.bf16.mxu0 0
  %736 = vmatpush1.bf16.msra.mxu0 %v482
  %737 = vmatprep.subr.bf16.mxu0 0
  %738 = vmatpush1.bf16.msra.mxu0 0
  %739 = vmatprep.subr.bf16.mxu0 0
  %740 = vmatpush1.bf16.msra.mxu0 0
  %741 = vmatprep.subr.bf16.mxu0 0
  %742 = vmatpush1.bf16.msra.mxu0 0
  %743 = vmatprep.subr.bf16.mxu0 0
  %744 = vmatpush1.bf16.msra.mxu0 0
  %745 = vmatprep.subr.bf16.mxu0 0
  %746 = vmatpush1.bf16.msra.mxu0 0
  %747 = vmatprep.subr.bf16.mxu0 0
  %748 = vmatpush1.bf16.msra.mxu0 0
  %749 = vmatprep.subr.bf16.mxu0 0
  %750 = vmatpush1.bf16.msra.mxu0 0
  %751 = vmatprep.subr.bf16.mxu0 0
  %752 = vmatpush1.bf16.msra.mxu0 0
  %753 = vmatprep.subr.bf16.mxu0 0
  %754 = vmatpush1.bf16.msra.mxu0 0
  %755 = vmatprep.subr.bf16.mxu0 0
  %756 = vmatpush1.bf16.msra.mxu0 0
  %757 = vmatprep.subr.bf16.mxu0 0
  %758 = vmatpush1.bf16.msra.mxu0 0
  %759 = vmatprep.subr.bf16.mxu0 0
  %760 = vmatpush1.bf16.msra.mxu0 0
  %761 = vmatprep.subr.bf16.mxu0 0
  %762 = vmatpush1.bf16.msra.mxu0 0
  %763 = vmatprep.subr.bf16.mxu0 0
  %764 = vmatpush1.bf16.msra.mxu0 0
  %765 = vmatprep.mubr.bf16.mxu0 0
  %766 = vmatmul.mubr.bf16.gmra.mrb[0].mxu0 %v503
  %v767 = vpop.f32.mrb[0].mxu0
  %v768 = vadd.f32 %v591, %v767
  %v769 = vpop.f32.mrb[0].mxu0
  %v770 = vpop.f32.mrb[0].mxu0
  %v771 = vadd.f32 %v594, %v770
  %v772 = vpop.f32.mrb[0].mxu0
  %773 = vmatprep.mubr.bf16.mxu0 0
  %774 = vmatmul.mubr.bf16.gmra.mrb[0].mxu0 %v506
  %v775 = vpop.f32.mrb[0].mxu0
  %v776 = vadd.f32 %v599, %v775
  %v777 = vpop.f32.mrb[0].mxu0
  %v778 = vpop.f32.mrb[0].mxu0
  %v779 = vadd.f32 %v602, %v778
  %v780 = vpop.f32.mrb[0].mxu0
  %781 = vmatprep.mubr.bf16.mxu0 0
  %782 = vmatmul.mubr.bf16.gmra.mrb[0].mxu0 %v509
  %v783 = vpop.f32.mrb[0].mxu0
  %v784 = vadd.f32 %v607, %v783
  %v785 = vpop.f32.mrb[0].mxu0
  %v786 = vpop.f32.mrb[0].mxu0
  %v787 = vadd.f32 %v610, %v786
  %v788 = vpop.f32.mrb[0].mxu0
  %789 = vmatprep.mubr.bf16.mxu0 0
  %790 = vmatmul.mubr.bf16.gmra.mrb[0].mxu0 %v512
  %v791 = vpop.f32.mrb[0].mxu0
  %v792 = vadd.f32 %v615, %v791
  %v793 = vpop.f32.mrb[0].mxu0
  %v794 = vpop.f32.mrb[0].mxu0
  %v795 = vadd.f32 %v618, %v794
  %v796 = vpop.f32.mrb[0].mxu0
  %797 = vmatprep.mubr.bf16.mxu0 0
  %798 = vmatmul.mubr.bf16.gmra.mrb[0].mxu0 %v515
  %v799 = vpop.f32.mrb[0].mxu0
  %v800 = vadd.f32 %v623, %v799
  %v801 = vpop.f32.mrb[0].mxu0
  %v802 = vpop.f32.mrb[0].mxu0
  %v803 = vadd.f32 %v626, %v802
  %v804 = vpop.f32.mrb[0].mxu0
  %805 = vmatprep.mubr.bf16.mxu0 0
  %806 = vmatmul.mubr.bf16.gmra.mrb[0].mxu0 %v518
  %v807 = vpop.f32.mrb[0].mxu0
  %v808 = vadd.f32 %v631, %v807
  %v809 = vpop.f32.mrb[0].mxu0
  %v810 = vpop.f32.mrb[0].mxu0
  %v811 = vadd.f32 %v634, %v810
  %v812 = vpop.f32.mrb[0].mxu0
  %813 = vmatprep.mubr.bf16.mxu0 0
  %814 = vmatmul.mubr.bf16.gmra.mrb[0].mxu0 %v521
  %v815 = vpop.f32.mrb[0].mxu0
  %v816 = vadd.f32 %v639, %v815
  %v817 = vpop.f32.mrb[0].mxu0
  %v818 = vpop.f32.mrb[0].mxu0
  %v819 = vadd.f32 %v642, %v818
  %v820 = vpop.f32.mrb[0].mxu0
  %821 = vmatprep.mubr.bf16.mxu0 0
  %822 = vmatmul.mubr.bf16.gmra.mrb[0].mxu0 %v524
  %v823 = vpop.f32.mrb[0].mxu0
  %v824 = vadd.f32 %v647, %v823
  %v825 = vpop.f32.mrb[0].mxu0
  %v826 = vpop.f32.mrb[0].mxu0
  %v827 = vadd.f32 %v650, %v826
  %v828 = vpop.f32.mrb[0].mxu0
  %829 = vmatprep.mubr.bf16.mxu0 0
  %830 = vmatmul.mubr.bf16.gmra.mrb[0].mxu0 %v527
  %v831 = vpop.f32.mrb[0].mxu0
  %v832 = vadd.f32 %v655, %v831
  %v833 = vpop.f32.mrb[0].mxu0
  %v834 = vpop.f32.mrb[0].mxu0
  %v835 = vadd.f32 %v658, %v834
  %v836 = vpop.f32.mrb[0].mxu0
  %837 = vmatprep.mubr.bf16.mxu0 0
  %838 = vmatmul.mubr.bf16.gmra.mrb[0].mxu0 %v530
  %v839 = vpop.f32.mrb[0].mxu0
  %v840 = vadd.f32 %v663, %v839
  %v841 = vpop.f32.mrb[0].mxu0
  %v842 = vpop.f32.mrb[0].mxu0
  %v843 = vadd.f32 %v666, %v842
  %v844 = vpop.f32.mrb[0].mxu0
  %845 = vmatprep.mubr.bf16.mxu0 0
  %846 = vmatmul.mubr.bf16.gmra.mrb[0].mxu0 %v533
  %v847 = vpop.f32.mrb[0].mxu0
  %v848 = vadd.f32 %v671, %v847
  %v849 = vpop.f32.mrb[0].mxu0
  %v850 = vpop.f32.mrb[0].mxu0
  %v851 = vadd.f32 %v674, %v850
  %v852 = vpop.f32.mrb[0].mxu0
  %853 = vmatprep.mubr.bf16.mxu0 0
  %854 = vmatmul.mubr.bf16.gmra.mrb[0].mxu0 %v536
  %v855 = vpop.f32.mrb[0].mxu0
  %v856 = vadd.f32 %v679, %v855
  %v857 = vpop.f32.mrb[0].mxu0
  %v858 = vpop.f32.mrb[0].mxu0
  %v859 = vadd.f32 %v682, %v858
  %v860 = vpop.f32.mrb[0].mxu0
  %861 = vmatprep.mubr.bf16.mxu0 0
  %862 = vmatmul.mubr.bf16.gmra.mrb[0].mxu0 %v539
  %v863 = vpop.f32.mrb[0].mxu0
  %v864 = vadd.f32 %v687, %v863
  %v865 = vpop.f32.mrb[0].mxu0
  %v866 = vpop.f32.mrb[0].mxu0
  %v867 = vadd.f32 %v690, %v866
  %v868 = vpop.f32.mrb[0].mxu0
  %869 = vmatprep.mubr.bf16.mxu0 0
  %870 = vmatmul.mubr.bf16.gmra.mrb[0].mxu0 %v542
  %v871 = vpop.f32.mrb[0].mxu0
  %v872 = vadd.f32 %v695, %v871
  %v873 = vpop.f32.mrb[0].mxu0
  %v874 = vpop.f32.mrb[0].mxu0
  %v875 = vadd.f32 %v698, %v874
  %v876 = vpop.f32.mrb[0].mxu0
  %877 = vmatprep.mubr.bf16.mxu0 0
  %878 = vmatmul.mubr.bf16.gmra.mrb[0].mxu0 %v545
  %v879 = vpop.f32.mrb[0].mxu0
  %v880 = vadd.f32 %v703, %v879
  %v881 = vpop.f32.mrb[0].mxu0
  %v882 = vpop.f32.mrb[0].mxu0
  %v883 = vadd.f32 %v706, %v882
  %v884 = vpop.f32.mrb[0].mxu0
  %885 = vmatprep.mubr.bf16.mxu0 0
  %886 = vmatmul.mubr.bf16.gmra.mrb[0].mxu0 %v548
  %v887 = vpop.f32.mrb[0].mxu0
  %v888 = vadd.f32 %v711, %v887
  %v889 = vpop.f32.mrb[0].mxu0
  %v890 = vpop.f32.mrb[0].mxu0
  %v891 = vadd.f32 %v714, %v890
  %v892 = vpop.f32.mrb[0].mxu0
  %893 = vmatprep.mubr.bf16.mxu0 0
  %894 = vmatmul.mubr.bf16.gmra.mrb[0].mxu0 %v551
  %v895 = vpop.f32.mrb[0].mxu0
  %v896 = vadd.f32 %v719, %v895
  %v897 = vpop.f32.mrb[0].mxu0
  %v898 = vpop.f32.mrb[0].mxu0
  %v899 = vadd.f32 %v722, %v898
  %v900 = vpop.f32.mrb[0].mxu0
  %901 = vmatprep.mubr.bf16.mxu0 0
  %902 = vmatmul.mubr.bf16.gmra.mrb[0].mxu0 %v554
  %v903 = vpop.f32.mrb[0].mxu0
  %v904 = vadd.f32 %v727, %v903
  %v905 = vpop.f32.mrb[0].mxu0
  %v906 = vpop.f32.mrb[0].mxu0
  %v907 = vadd.f32 %v730, %v906
  %v908 = vpop.f32.mrb[0].mxu0
  %909 = vdwg.mxu0
  %v910 = vmax.f32 %v768, %v803
  %v911 = vmax.f32 %v771, %v808
  %v912 = vmax.f32 %v776, %v811
  %v913 = vmax.f32 %v779, %v816
  %v914 = vmax.f32 %v784, %v819
  %v915 = vmax.f32 %v787, %v824
  %v916 = vmax.f32 %v792, %v827
  %v917 = vmax.f32 %v795, %v832
  %v918 = vmax.f32 %v800, %v835
  %v919 = vmax.f32 %v840, %v875
  %v920 = vmax.f32 %v843, %v880
  %v921 = vmax.f32 %v848, %v883
  %v922 = vmax.f32 %v851, %v888
  %v923 = vmax.f32 %v856, %v891
  %v924 = vmax.f32 %v859, %v896
  %v925 = vmax.f32 %v864, %v899
  %v926 = vmax.f32 %v867, %v904
  %v927 = vmax.f32 %v872, %v907
  %v928 = vmax.f32 %v910, %v919
  %v929 = vmax.f32 %v911, %v920
  %v930 = vmax.f32 %v912, %v921
  %v931 = vmax.f32 %v913, %v922
  %v932 = vmax.f32 %v914, %v923
  %v933 = vmax.f32 %v915, %v924
  %v934 = vmax.f32 %v916, %v925
  %v935 = vmax.f32 %v917, %v926
  %v936 = vmax.f32 %v918, %v927
  %v937 = vld [vmem:[%s2] sm:$0x1]
  %v939 = vlaneseq
  %v940 = vshrl.u32 %v939, 7
  %v941 = vsub.s32 0, %v940
  %v942 = vrot.slane %v937, %v941
  %v944 = vadd.f32 %v928, %v942
  %v945 = vadd.f32 %v929, %v942
  %v946 = vadd.f32 %v930, %v942
  %v947 = vadd.f32 %v931, %v942
  %v948 = vadd.f32 %v932, %v942
  %v949 = vadd.f32 %v933, %v942
  %v950 = vadd.f32 %v934, %v942
  %v951 = vadd.f32 %v935, %v942
  %v952 = vadd.f32 %v936, %v942
  %v953 = vmax.f32 %v944, 0.0
  %v954 = vmax.f32 %v945, 0.0
  %v955 = vmax.f32 %v946, 0.0
  %v956 = vmax.f32 %v947, 0.0
  %v957 = vmax.f32 %v948, 0.0
  %v958 = vmax.f32 %v949, 0.0
  %v959 = vmax.f32 %v950, 0.0
  %v960 = vmax.f32 %v951, 0.0
  %v961 = vmax.f32 %v952, 0.0
  %v962 = vpack.c.bf16 %v954, %v953
  %v963 = vpack.c.bf16 %v956, %v955
  %v964 = vpack.c.bf16 %v958, %v957
  %v965 = vpack.c.bf16 %v960, %v959
  %v966 = vpack.c.bf16 %v961, %v961
  %v972 = vunpack.c.l.b16 %v962
  %v973 = vunpack.c.h.b16 %v962
  %v974 = vunpack.c.l.b16 %v963
  %v975 = vunpack.c.h.b16 %v963
  %v976 = vunpack.c.l.b16 %v964
  %v977 = vunpack.c.h.b16 %v964
  %v978 = vunpack.c.l.b16 %v965
  %v979 = vunpack.c.h.b16 %v965
  %v980 = vunpack.c.l.b16 %v966
  %v981 = vpack.c.b16 %v972, %v972
  %v982 = vpack.c.b16 %v973, %v973
  %v983 = vpack.c.b16 %v974, %v974
  %v984 = vpack.c.b16 %v975, %v975
  %v985 = vpack.c.b16 %v976, %v976
  %v986 = vpack.c.b16 %v977, %v977
  %v987 = vpack.c.b16 %v978, %v978
  %v988 = vpack.c.b16 %v979, %v979
  %v989 = vpack.c.b16 %v980, %v980
  %vm999 = vcmask 519168
  %1000 = vst.msk [vmem:[%s3] sm:$0xf] %vm999, %v981
  %1001 = vst.msk [vmem:[%s3 + $0x4] sm:$0xf] %vm999, %v982
  %1002 = vst.msk [vmem:[%s3 + $0x8] sm:$0xf] %vm999, %v983
  %1003 = vst.msk [vmem:[%s3 + $0xc] sm:$0xf] %vm999, %v984
  %1004 = vst.msk [vmem:[%s3 + $0x10] sm:$0xf] %vm999, %v985
  %1005 = vst.msk [vmem:[%s3 + $0x14] sm:$0xf] %vm999, %v986
  %1006 = vst.msk [vmem:[%s3 + $0x18] sm:$0xf] %vm999, %v987
  %1007 = vst.msk [vmem:[%s3 + $0x1c] sm:$0xf] %vm999, %v988
  %1008 = vst.msk [vmem:[%s3 + $0x20] sm:$0xf] %vm999, %v989
  // Predicated region
  $region14: #{fashion_cnn_forward.4} parent=0 // pred_check
    _
  $region15: #{fashion_cnn_forward.4} parent=0 // pred_check_branch
    %1010 = sbr.rel (0) target = $region17
  $region16: #{fashion_cnn_forward.4} parent=0 // pred_region
    _
  $region17: #{fashion_cnn_forward.4} parent=0 // pred_fallthru
    _
  // Predicated region
  $region18: #{fashion_cnn_forward.4} parent=0 // pred_check
    _
  $region19: #{fashion_cnn_forward.4} parent=0 // pred_check_branch
    %1012 = sbr.rel (0) target = $region21
  $region20: #{fashion_cnn_forward.4} parent=0 // pred_region
    _
  $region21: #{fashion_cnn_forward.4} parent=0 // pred_fallthru
    _

// kernel: fashion_cnn_forward.5
$region0: #{fashion_cnn_forward.5}
  #allocation0 [shape = 'u32[]', space=smem, size = 0x4, offset = 0x4, fixed_abs, tag = 'smem constant byte address 0x4 - core index']
  #allocation1 [shape = 'u32[144,128]{1,0:T(1,128)}', space=vmem, size = 0x12000, scoped, tag = 'internal scratch']
  %s0 = inlined_call_operand.vmem [shape: bf16[2,2304], index: 0, kind: input, shape index: {}]
  %s1 = inlined_call_operand.vmem [shape: bf16[2304,600], index: 1, kind: input, shape index: {}]
  %s2 = inlined_call_operand.vmem [shape: f32[1,600], index: 2, kind: input, shape index: {}]
  %s3 = inlined_call_operand.vmem [shape: bf16[600,120], index: 3, kind: input, shape index: {}]
  %s4 = inlined_call_operand.vmem [shape: f32[1,120], index: 4, kind: input, shape index: {}]
  %s5 = inlined_call_operand.vmem [shape: bf16[120,10], index: 5, kind: input, shape index: {}]
  %s6 = inlined_call_operand.vmem [shape: f32[1,10], index: 6, kind: input, shape index: {}]
  %s7 = inlined_call_operand.hbm [shape: f32[2,10], index: 7, kind: output, shape index: {}]
  %s8 = sld [smem:[#allocation0]]
  $region38: #{fashion_cnn_forward.5} parent=0
    _
  %s10 = ssub.s32 1, %s8
  %s11 = scalar_select 0, %s10, %s8
  $region1: #{fashion_cnn_forward.5} parent=0
    #allocation2 [shape = 'u8[4096]{0}', space=vmem, size = 0x1000, scoped, tag = 'output window, operand 0, single buffered']
    #allocation3 [shape = 's32[1]{0}', space=sflag, size = 0x4, scoped, tag = 'scoped memory for fashion_cnn_forward.5']
    %12 = vsyncpa [#allocation3], 0
    // Predicated region
    $region2: #{fashion_cnn_forward.5} parent=1 // pred_check
      _
    $region3: #{fashion_cnn_forward.5} parent=1 // pred_check_branch
      %14 = sbr.rel (0) target = $region5
    $region4: #{fashion_cnn_forward.5} parent=1 // pred_region
      _
    $region5: #{fashion_cnn_forward.5} parent=1 // pred_fallthru
      _
    // Predicated region
    $region6: #{fashion_cnn_forward.5} parent=1 // pred_check
      _
    $region7: #{fashion_cnn_forward.5} parent=1 // pred_check_branch
      %16 = sbr.rel (0) target = $region9
    $region8: #{fashion_cnn_forward.5} parent=1 // pred_region
      _
    $region9: #{fashion_cnn_forward.5} parent=1 // pred_fallthru
      _
    // Predicated region
    $region10: #{fashion_cnn_forward.5} parent=1 // pred_check
      _
    $region11: #{fashion_cnn_forward.5} parent=1 // pred_check_branch
      %18 = sbr.rel (0) target = $region13
    $region12: #{fashion_cnn_forward.5} parent=1 // pred_region
      _
    $region13: #{fashion_cnn_forward.5} parent=1 // pred_fallthru
      _
    // Predicated region
    $region14: #{fashion_cnn_forward.5} parent=1 // pred_check
      _
    $region15: #{fashion_cnn_forward.5} parent=1 // pred_check_branch
      %20 = sbr.rel (0) target = $region17
    $region16: #{fashion_cnn_forward.5} parent=1 // pred_region
      _
    $region17: #{fashion_cnn_forward.5} parent=1 // pred_fallthru
      _
    // Predicated region
    $region18: #{fashion_cnn_forward.5} parent=1 // pred_check
      _
    $region19: #{fashion_cnn_forward.5} parent=1 // pred_check_branch
      %22 = sbr.rel (0) target = $region21
    $region20: #{fashion_cnn_forward.5} parent=1 // pred_region
      _
    $region21: #{fashion_cnn_forward.5} parent=1 // pred_fallthru
      _
    // Predicated region
    $region22: #{fashion_cnn_forward.5} parent=1 // pred_check
      _
    $region23: #{fashion_cnn_forward.5} parent=1 // pred_check_branch
      %24 = sbr.rel (0) target = $region25
    $region24: #{fashion_cnn_forward.5} parent=1 // pred_region
      _
    $region25: #{fashion_cnn_forward.5} parent=1 // pred_fallthru
      _
    // Predicated region
    $region26: #{fashion_cnn_forward.5} parent=1 // pred_check
      _
    $region27: #{fashion_cnn_forward.5} parent=1 // pred_check_branch
      %26 = sbr.rel (0) target = $region29
    $region28: #{fashion_cnn_forward.5} parent=1 // pred_region
      _
    $region29: #{fashion_cnn_forward.5} parent=1 // pred_fallthru
      _
    %v28 = vld [vmem:[%s0] sm:$0xff]
    %v29 = vld [vmem:[%s0 + $0x8] sm:$0xff]
    %v30 = vld [vmem:[%s0 + $0x10] sm:$0x3]
    %v31 = vld [vmem:[%s0 + $0x12] sm:$0xff]
    %v32 = vld [vmem:[%s0 + $0x1a] sm:$0xff]
    %v33 = vld [vmem:[%s0 + $0x22] sm:$0x3]
    %v34 = vld [vmem:[%s0 + $0x24] sm:$0xff]
    %v35 = vld [vmem:[%s0 + $0x2c] sm:$0xff]
    %v36 = vld [vmem:[%s0 + $0x34] sm:$0x3]
    %v37 = vld [vmem:[%s0 + $0x36] sm:$0xff]
    %v38 = vld [vmem:[%s0 + $0x3e] sm:$0xff]
    %v39 = vld [vmem:[%s0 + $0x46] sm:$0x3]
    %v40 = vld [vmem:[%s1] sm:$0xff]
    %v41 = vld [vmem:[%s1 + $0x8] sm:$0xff]
    %v42 = vld [vmem:[%s1 + $0x10] sm:$0xf]
    %v43 = vld [vmem:[%s1 + $0x14] sm:$0xff]
    %v44 = vld [vmem:[%s1 + $0x1c] sm:$0xff]
    %v45 = vld [vmem:[%s1 + $0x24] sm:$0xf]
    %v46 = vld [vmem:[%s1 + $0x28] sm:$0xff]
    %v47 = vld [vmem:[%s1 + $0x30] sm:$0xff]
    %v48 = vld [vmem:[%s1 + $0x38] sm:$0xf]
    %v49 = vld [vmem:[%s1 + $0x3c] sm:$0xff]
    %v50 = vld [vmem:[%s1 + $0x44] sm:$0xff]
    %v51 = vld [vmem:[%s1 + $0x4c] sm:$0xf]
    %v52 = vld [vmem:[%s1 + $0x50] sm:$0xff]
    %v53 = vld [vmem:[%s1 + $0x58] sm:$0xff]
    %v54 = vld [vmem:[%s1 + $0x60] sm:$0xf]
    %v55 = vld [vmem:[%s1 + $0x64] sm:$0xff]
    %v56 = vld [vmem:[%s1 + $0x6c] sm:$0xff]
    %v57 = vld [vmem:[%s1 + $0x74] sm:$0xf]
    %v58 = vld [vmem:[%s1 + $0x78] sm:$0xff]
    %v59 = vld [vmem:[%s1 + $0x80] sm:$0xff]
    %v60 = vld [vmem:[%s1 + $0x88] sm:$0xf]
    %v61 = vld [vmem:[%s1 + $0x8c] sm:$0xff]
    %v62 = vld [vmem:[%s1 + $0x94] sm:$0xff]
    %v63 = vld [vmem:[%s1 + $0x9c] sm:$0xf]
    %v64 = vld [vmem:[%s1 + $0xa0] sm:$0xff]
    %v65 = vld [vmem:[%s1 + $0xa8] sm:$0xff]
    %v66 = vld [vmem:[%s1 + $0xb0] sm:$0xf]
    %v67 = vld [vmem:[%s1 + $0xb4] sm:$0xff]
    %v68 = vld [vmem:[%s1 + $0xbc] sm:$0xff]
    %v69 = vld [vmem:[%s1 + $0xc4] sm:$0xf]
    %v70 = vld [vmem:[%s1 + $0xc8] sm:$0xff]
    %v71 = vld [vmem:[%s1 + $0xd0] sm:$0xff]
    %v72 = vld [vmem:[%s1 + $0xd8] sm:$0xf]
    %v73 = vld [vmem:[%s1 + $0xdc] sm:$0xff]
    %v74 = vld [vmem:[%s1 + $0xe4] sm:$0xff]
    %v75 = vld [vmem:[%s1 + $0xec] sm:$0xf]
    %v76 = vld [vmem:[%s1 + $0xf0] sm:$0xff]
    %v77 = vld [vmem:[%s1 + $0xf8] sm:$0xff]
    %v78 = vld [vmem:[%s1 + $0x100] sm:$0xf]
    %v79 = vld [vmem:[%s1 + $0x104] sm:$0xff]
    %v80 = vld [vmem:[%s1 + $0x10c] sm:$0xff]
    %v81 = vld [vmem:[%s1 + $0x114] sm:$0xf]
    %v82 = vld [vmem:[%s1 + $0x118] sm:$0xff]
    %v83 = vld [vmem:[%s1 + $0x120] sm:$0xff]
    %v84 = vld [vmem:[%s1 + $0x128] sm:$0xf]
    %v85 = vld [vmem:[%s1 + $0x12c] sm:$0xff]
    %v86 = vld [vmem:[%s1 + $0x134] sm:$0xff]
    %v87 = vld [vmem:[%s1 + $0x13c] sm:$0xf]
    %v88 = vld [vmem:[%s1 + $0x140] sm:$0xff]
    %v89 = vld [vmem:[%s1 + $0x148] sm:$0xff]
    %v90 = vld [vmem:[%s1 + $0x150] sm:$0xf]
    %v91 = vld [vmem:[%s1 + $0x154] sm:$0xff]
    %v92 = vld [vmem:[%s1 + $0x15c] sm:$0xff]
    %v93 = vld [vmem:[%s1 + $0x164] sm:$0xf]
    %v94 = vld [vmem:[%s1 + $0x168] sm:$0xff]
    %v95 = vld [vmem:[%s1 + $0x170] sm:$0xff]
    %v96 = vld [vmem:[%s1 + $0x178] sm:$0xf]
    %v97 = vld [vmem:[%s1 + $0x17c] sm:$0xff]
    %v98 = vld [vmem:[%s1 + $0x184] sm:$0xff]
    %v99 = vld [vmem:[%s1 + $0x18c] sm:$0xf]
    %v100 = vld [vmem:[%s1 + $0x190] sm:$0xff]
    %v101 = vld [vmem:[%s1 + $0x198] sm:$0xff]
    %v102 = vld [vmem:[%s1 + $0x1a0] sm:$0xf]
    %v103 = vld [vmem:[%s1 + $0x1a4] sm:$0xff]
    %v104 = vld [vmem:[%s1 + $0x1ac] sm:$0xff]
    %v105 = vld [vmem:[%s1 + $0x1b4] sm:$0xf]
    %v106 = vld [vmem:[%s1 + $0x1b8] sm:$0xff]
    %v107 = vld [vmem:[%s1 + $0x1c0] sm:$0xff]
    %v108 = vld [vmem:[%s1 + $0x1c8] sm:$0xf]
    %v109 = vld [vmem:[%s1 + $0x1cc] sm:$0xff]
    %v110 = vld [vmem:[%s1 + $0x1d4] sm:$0xff]
    %v111 = vld [vmem:[%s1 + $0x1dc] sm:$0xf]
    %v112 = vld [vmem:[%s1 + $0x1e0] sm:$0xff]
    %v113 = vld [vmem:[%s1 + $0x1e8] sm:$0xff]
    %v114 = vld [vmem:[%s1 + $0x1f0] sm:$0xf]
    %v115 = vld [vmem:[%s1 + $0x1f4] sm:$0xff]
    %v116 = vld [vmem:[%s1 + $0x1fc] sm:$0xff]
    %v117 = vld [vmem:[%s1 + $0x204] sm:$0xf]
    %v118 = vld [vmem:[%s1 + $0x208] sm:$0xff]
    %v119 = vld [vmem:[%s1 + $0x210] sm:$0xff]
    %v120 = vld [vmem:[%s1 + $0x218] sm:$0xf]
    %v121 = vld [vmem:[%s1 + $0x21c] sm:$0xff]
    %v122 = vld [vmem:[%s1 + $0x224] sm:$0xff]
    %v123 = vld [vmem:[%s1 + $0x22c] sm:$0xf]
    %v124 = vld [vmem:[%s1 + $0x230] sm:$0xff]
    %v125 = vld [vmem:[%s1 + $0x238] sm:$0xff]
    %v126 = vld [vmem:[%s1 + $0x240] sm:$0xf]
    %v127 = vld [vmem:[%s1 + $0x244] sm:$0xff]
    %v128 = vld [vmem:[%s1 + $0x24c] sm:$0xff]
    %v129 = vld [vmem:[%s1 + $0x254] sm:$0xf]
    %v130 = vld [vmem:[%s1 + $0x258] sm:$0xff]
    %v131 = vld [vmem:[%s1 + $0x260] sm:$0xff]
    %v132 = vld [vmem:[%s1 + $0x268] sm:$0xf]
    %v133 = vld [vmem:[%s1 + $0x26c] sm:$0xff]
    %v134 = vld [vmem:[%s1 + $0x274] sm:$0xff]
    %v135 = vld [vmem:[%s1 + $0x27c] sm:$0xf]
    %v136 = vld [vmem:[%s1 + $0x280] sm:$0xff]
    %v137 = vld [vmem:[%s1 + $0x288] sm:$0xff]
    %v138 = vld [vmem:[%s1 + $0x290] sm:$0xf]
    %v139 = vld [vmem:[%s1 + $0x294] sm:$0xff]
    %v140 = vld [vmem:[%s1 + $0x29c] sm:$0xff]
    %v141 = vld [vmem:[%s1 + $0x2a4] sm:$0xf]
    %v142 = vld [vmem:[%s1 + $0x2a8] sm:$0xff]
    %v143 = vld [vmem:[%s1 + $0x2b0] sm:$0xff]
    %v144 = vld [vmem:[%s1 + $0x2b8] sm:$0xf]
    %v145 = vld [vmem:[%s1 + $0x2bc] sm:$0xff]
    %v146 = vld [vmem:[%s1 + $0x2c4] sm:$0xff]
    %v147 = vld [vmem:[%s1 + $0x2cc] sm:$0xf]
    %v148 = vld [vmem:[%s1 + $0x2d0] sm:$0xff]
    %v149 = vld [vmem:[%s1 + $0x2d8] sm:$0xff]
    %v150 = vld [vmem:[%s1 + $0x2e0] sm:$0xf]
    %v151 = vld [vmem:[%s1 + $0x2e4] sm:$0xff]
    %v152 = vld [vmem:[%s1 + $0x2ec] sm:$0xff]
    %v153 = vld [vmem:[%s1 + $0x2f4] sm:$0xf]
    %v154 = vld [vmem:[%s1 + $0x2f8] sm:$0xff]
    %v155 = vld [vmem:[%s1 + $0x300] sm:$0xff]
    %v156 = vld [vmem:[%s1 + $0x308] sm:$0xf]
    %v157 = vld [vmem:[%s1 + $0x30c] sm:$0xff]
    %v158 = vld [vmem:[%s1 + $0x314] sm:$0xff]
    %v159 = vld [vmem:[%s1 + $0x31c] sm:$0xf]
    %v160 = vld [vmem:[%s1 + $0x320] sm:$0xff]
    %v161 = vld [vmem:[%s1 + $0x328] sm:$0xff]
    %v162 = vld [vmem:[%s1 + $0x330] sm:$0xf]
    %v163 = vld [vmem:[%s1 + $0x334] sm:$0xff]
    %v164 = vld [vmem:[%s1 + $0x33c] sm:$0xff]
    %v165 = vld [vmem:[%s1 + $0x344] sm:$0xf]
    %v166 = vld [vmem:[%s1 + $0x348] sm:$0xff]
    %v167 = vld [vmem:[%s1 + $0x350] sm:$0xff]
    %v168 = vld [vmem:[%s1 + $0x358] sm:$0xf]
    %v169 = vld [vmem:[%s1 + $0x35c] sm:$0xff]
    %v170 = vld [vmem:[%s1 + $0x364] sm:$0xff]
    %v171 = vld [vmem:[%s1 + $0x36c] sm:$0xf]
    %v172 = vld [vmem:[%s1 + $0x370] sm:$0xff]
    %v173 = vld [vmem:[%s1 + $0x378] sm:$0xff]
    %v174 = vld [vmem:[%s1 + $0x380] sm:$0xf]
    %v175 = vld [vmem:[%s1 + $0x384] sm:$0xff]
    %v176 = vld [vmem:[%s1 + $0x38c] sm:$0xff]
    %v177 = vld [vmem:[%s1 + $0x394] sm:$0xf]
    %v178 = vld [vmem:[%s1 + $0x398] sm:$0xff]
    %v179 = vld [vmem:[%s1 + $0x3a0] sm:$0xff]
    %v180 = vld [vmem:[%s1 + $0x3a8] sm:$0xf]
    %v181 = vld [vmem:[%s1 + $0x3ac] sm:$0xff]
    %v182 = vld [vmem:[%s1 + $0x3b4] sm:$0xff]
    %v183 = vld [vmem:[%s1 + $0x3bc] sm:$0xf]
    %v184 = vld [vmem:[%s1 + $0x3c0] sm:$0xff]
    %v185 = vld [vmem:[%s1 + $0x3c8] sm:$0xff]
    %v186 = vld [vmem:[%s1 + $0x3d0] sm:$0xf]
    %v187 = vld [vmem:[%s1 + $0x3d4] sm:$0xff]
    %v188 = vld [vmem:[%s1 + $0x3dc] sm:$0xff]
    %v189 = vld [vmem:[%s1 + $0x3e4] sm:$0xf]
    %v190 = vld [vmem:[%s1 + $0x3e8] sm:$0xff]
    %v191 = vld [vmem:[%s1 + $0x3f0] sm:$0xff]
    %v192 = vld [vmem:[%s1 + $0x3f8] sm:$0xf]
    %v193 = vld [vmem:[%s1 + $0x3fc] sm:$0xff]
    %v194 = vld [vmem:[%s1 + $0x404] sm:$0xff]
    %v195 = vld [vmem:[%s1 + $0x40c] sm:$0xf]
    %v196 = vld [vmem:[%s1 + $0x410] sm:$0xff]
    %v197 = vld [vmem:[%s1 + $0x418] sm:$0xff]
    %v198 = vld [vmem:[%s1 + $0x420] sm:$0xf]
    %v199 = vld [vmem:[%s1 + $0x424] sm:$0xff]
    %v200 = vld [vmem:[%s1 + $0x42c] sm:$0xff]
    %v201 = vld [vmem:[%s1 + $0x434] sm:$0xf]
    %v202 = vld [vmem:[%s1 + $0x438] sm:$0xff]
    %v203 = vld [vmem:[%s1 + $0x440] sm:$0xff]
    %v204 = vld [vmem:[%s1 + $0x448] sm:$0xf]
    %v205 = vld [vmem:[%s1 + $0x44c] sm:$0xff]
    %v206 = vld [vmem:[%s1 + $0x454] sm:$0xff]
    %v207 = vld [vmem:[%s1 + $0x45c] sm:$0xf]
    %v208 = vld [vmem:[%s1 + $0x460] sm:$0xff]
    %v209 = vld [vmem:[%s1 + $0x468] sm:$0xff]
    %v210 = vld [vmem:[%s1 + $0x470] sm:$0xf]
    %v211 = vld [vmem:[%s1 + $0x474] sm:$0xff]
    %v212 = vld [vmem:[%s1 + $0x47c] sm:$0xff]
    %v213 = vld [vmem:[%s1 + $0x484] sm:$0xf]
    %v214 = vld [vmem:[%s1 + $0x488] sm:$0xff]
    %v215 = vld [vmem:[%s1 + $0x490] sm:$0xff]
    %v216 = vld [vmem:[%s1 + $0x498] sm:$0xf]
    %v217 = vld [vmem:[%s1 + $0x49c] sm:$0xff]
    %v218 = vld [vmem:[%s1 + $0x4a4] sm:$0xff]
    %v219 = vld [vmem:[%s1 + $0x4ac] sm:$0xf]
    %v220 = vld [vmem:[%s1 + $0x4b0] sm:$0xff]
    %v221 = vld [vmem:[%s1 + $0x4b8] sm:$0xff]
    %v222 = vld [vmem:[%s1 + $0x4c0] sm:$0xf]
    %v223 = vld [vmem:[%s1 + $0x4c4] sm:$0xff]
    %v224 = vld [vmem:[%s1 + $0x4cc] sm:$0xff]
    %v225 = vld [vmem:[%s1 + $0x4d4] sm:$0xf]
    %v226 = vld [vmem:[%s1 + $0x4d8] sm:$0xff]
    %v227 = vld [vmem:[%s1 + $0x4e0] sm:$0xff]
    %v228 = vld [vmem:[%s1 + $0x4e8] sm:$0xf]
    %v229 = vld [vmem:[%s1 + $0x4ec] sm:$0xff]
    %v230 = vld [vmem:[%s1 + $0x4f4] sm:$0xff]
    %v231 = vld [vmem:[%s1 + $0x4fc] sm:$0xf]
    %v232 = vld [vmem:[%s1 + $0x500] sm:$0xff]
    %v233 = vld [vmem:[%s1 + $0x508] sm:$0xff]
    %v234 = vld [vmem:[%s1 + $0x510] sm:$0xf]
    %v235 = vld [vmem:[%s1 + $0x514] sm:$0xff]
    %v236 = vld [vmem:[%s1 + $0x51c] sm:$0xff]
    %v237 = vld [vmem:[%s1 + $0x524] sm:$0xf]
    %v238 = vld [vmem:[%s1 + $0x528] sm:$0xff]
    %v239 = vld [vmem:[%s1 + $0x530] sm:$0xff]
    %v240 = vld [vmem:[%s1 + $0x538] sm:$0xf]
    %v241 = vld [vmem:[%s1 + $0x53c] sm:$0xff]
    %v242 = vld [vmem:[%s1 + $0x544] sm:$0xff]
    %v243 = vld [vmem:[%s1 + $0x54c] sm:$0xf]
    %v244 = vld [vmem:[%s1 + $0x550] sm:$0xff]
    %v245 = vld [vmem:[%s1 + $0x558] sm:$0xff]
    %v246 = vld [vmem:[%s1 + $0x560] sm:$0xf]
    %v247 = vld [vmem:[%s1 + $0x564] sm:$0xff]
    %v248 = vld [vmem:[%s1 + $0x56c] sm:$0xff]
    %v249 = vld [vmem:[%s1 + $0x574] sm:$0xf]
    %v250 = vld [vmem:[%s1 + $0x578] sm:$0xff]
    %v251 = vld [vmem:[%s1 + $0x580] sm:$0xff]
    %v252 = vld [vmem:[%s1 + $0x588] sm:$0xf]
    %v253 = vld [vmem:[%s1 + $0x58c] sm:$0xff]
    %v254 = vld [vmem:[%s1 + $0x594] sm:$0xff]
    %v255 = vld [vmem:[%s1 + $0x59c] sm:$0xf]
    %v256 = vld [vmem:[%s1 + $0x5a0] sm:$0xff]
    %v257 = vld [vmem:[%s1 + $0x5a8] sm:$0xff]
    %v258 = vld [vmem:[%s1 + $0x5b0] sm:$0xf]
    %v259 = vld [vmem:[%s1 + $0x5b4] sm:$0xff]
    %v260 = vld [vmem:[%s1 + $0x5bc] sm:$0xff]
    %v261 = vld [vmem:[%s1 + $0x5c4] sm:$0xf]
    %v262 = vld [vmem:[%s1 + $0x5c8] sm:$0xff]
    %v263 = vld [vmem:[%s1 + $0x5d0] sm:$0xff]
    %v264 = vld [vmem:[%s1 + $0x5d8] sm:$0xf]
    %v265 = vld [vmem:[%s1 + $0x5dc] sm:$0xff]
    %v266 = vld [vmem:[%s1 + $0x5e4] sm:$0xff]
    %v267 = vld [vmem:[%s1 + $0x5ec] sm:$0xf]
    %v268 = vld [vmem:[%s1 + $0x5f0] sm:$0xff]
    %v269 = vld [vmem:[%s1 + $0x5f8] sm:$0xff]
    %v270 = vld [vmem:[%s1 + $0x600] sm:$0xf]
    %v271 = vld [vmem:[%s1 + $0x604] sm:$0xff]
    %v272 = vld [vmem:[%s1 + $0x60c] sm:$0xff]
    %v273 = vld [vmem:[%s1 + $0x614] sm:$0xf]
    %v274 = vld [vmem:[%s1 + $0x618] sm:$0xff]
    %v275 = vld [vmem:[%s1 + $0x620] sm:$0xff]
    %v276 = vld [vmem:[%s1 + $0x628] sm:$0xf]
    %v277 = vld [vmem:[%s1 + $0x62c] sm:$0xff]
    %v278 = vld [vmem:[%s1 + $0x634] sm:$0xff]
    %v279 = vld [vmem:[%s1 + $0x63c] sm:$0xf]
    %v280 = vld [vmem:[%s1 + $0x640] sm:$0xff]
    %v281 = vld [vmem:[%s1 + $0x648] sm:$0xff]
    %v282 = vld [vmem:[%s1 + $0x650] sm:$0xf]
    %v283 = vld [vmem:[%s1 + $0x654] sm:$0xff]
    %v284 = vld [vmem:[%s1 + $0x65c] sm:$0xff]
    %v285 = vld [vmem:[%s1 + $0x664] sm:$0xf]
    %v286 = vld [vmem:[%s1 + $0x668] sm:$0xff]
    %v287 = vld [vmem:[%s1 + $0x670] sm:$0xff]
    %v288 = vld [vmem:[%s1 + $0x678] sm:$0xf]
    %v289 = vld [vmem:[%s1 + $0x67c] sm:$0xff]
    %v290 = vld [vmem:[%s1 + $0x684] sm:$0xff]
    %v291 = vld [vmem:[%s1 + $0x68c] sm:$0xf]
    %v292 = vld [vmem:[%s1 + $0x690] sm:$0xff]
    %v293 = vld [vmem:[%s1 + $0x698] sm:$0xff]
    %v294 = vld [vmem:[%s1 + $0x6a0] sm:$0xf]
    %v295 = vld [vmem:[%s1 + $0x6a4] sm:$0xff]
    %v296 = vld [vmem:[%s1 + $0x6ac] sm:$0xff]
    %v297 = vld [vmem:[%s1 + $0x6b4] sm:$0xf]
    %v298 = vld [vmem:[%s1 + $0x6b8] sm:$0xff]
    %v299 = vld [vmem:[%s1 + $0x6c0] sm:$0xff]
    %v300 = vld [vmem:[%s1 + $0x6c8] sm:$0xf]
    %v301 = vld [vmem:[%s1 + $0x6cc] sm:$0xff]
    %v302 = vld [vmem:[%s1 + $0x6d4] sm:$0xff]
    %v303 = vld [vmem:[%s1 + $0x6dc] sm:$0xf]
    %v304 = vld [vmem:[%s1 + $0x6e0] sm:$0xff]
    %v305 = vld [vmem:[%s1 + $0x6e8] sm:$0xff]
    %v306 = vld [vmem:[%s1 + $0x6f0] sm:$0xf]
    %v307 = vld [vmem:[%s1 + $0x6f4] sm:$0xff]
    %v308 = vld [vmem:[%s1 + $0x6fc] sm:$0xff]
    %v309 = vld [vmem:[%s1 + $0x704] sm:$0xf]
    %v310 = vld [vmem:[%s1 + $0x708] sm:$0xff]
    %v311 = vld [vmem:[%s1 + $0x710] sm:$0xff]
    %v312 = vld [vmem:[%s1 + $0x718] sm:$0xf]
    %v313 = vld [vmem:[%s1 + $0x71c] sm:$0xff]
    %v314 = vld [vmem:[%s1 + $0x724] sm:$0xff]
    %v315 = vld [vmem:[%s1 + $0x72c] sm:$0xf]
    %v316 = vld [vmem:[%s1 + $0x730] sm:$0xff]
    %v317 = vld [vmem:[%s1 + $0x738] sm:$0xff]
    %v318 = vld [vmem:[%s1 + $0x740] sm:$0xf]
    %v319 = vld [vmem:[%s1 + $0x744] sm:$0xff]
    %v320 = vld [vmem:[%s1 + $0x74c] sm:$0xff]
    %v321 = vld [vmem:[%s1 + $0x754] sm:$0xf]
    %v322 = vld [vmem:[%s1 + $0x758] sm:$0xff]
    %v323 = vld [vmem:[%s1 + $0x760] sm:$0xff]
    %v324 = vld [vmem:[%s1 + $0x768] sm:$0xf]
    %v325 = vld [vmem:[%s1 + $0x76c] sm:$0xff]
    %v326 = vld [vmem:[%s1 + $0x774] sm:$0xff]
    %v327 = vld [vmem:[%s1 + $0x77c] sm:$0xf]
    %v328 = vld [vmem:[%s1 + $0x780] sm:$0xff]
    %v329 = vld [vmem:[%s1 + $0x788] sm:$0xff]
    %v330 = vld [vmem:[%s1 + $0x790] sm:$0xf]
    %v331 = vld [vmem:[%s1 + $0x794] sm:$0xff]
    %v332 = vld [vmem:[%s1 + $0x79c] sm:$0xff]
    %v333 = vld [vmem:[%s1 + $0x7a4] sm:$0xf]
    %v334 = vld [vmem:[%s1 + $0x7a8] sm:$0xff]
    %v335 = vld [vmem:[%s1 + $0x7b0] sm:$0xff]
    %v336 = vld [vmem:[%s1 + $0x7b8] sm:$0xf]
    %v337 = vld [vmem:[%s1 + $0x7bc] sm:$0xff]
    %v338 = vld [vmem:[%s1 + $0x7c4] sm:$0xff]
    %v339 = vld [vmem:[%s1 + $0x7cc] sm:$0xf]
    %v340 = vld [vmem:[%s1 + $0x7d0] sm:$0xff]
    %v341 = vld [vmem:[%s1 + $0x7d8] sm:$0xff]
    %v342 = vld [vmem:[%s1 + $0x7e0] sm:$0xf]
    %v343 = vld [vmem:[%s1 + $0x7e4] sm:$0xff]
    %v344 = vld [vmem:[%s1 + $0x7ec] sm:$0xff]
    %v345 = vld [vmem:[%s1 + $0x7f4] sm:$0xf]
    %v346 = vld [vmem:[%s1 + $0x7f8] sm:$0xff]
    %v347 = vld [vmem:[%s1 + $0x800] sm:$0xff]
    %v348 = vld [vmem:[%s1 + $0x808] sm:$0xf]
    %v349 = vld [vmem:[%s1 + $0x80c] sm:$0xff]
    %v350 = vld [vmem:[%s1 + $0x814] sm:$0xff]
    %v351 = vld [vmem:[%s1 + $0x81c] sm:$0xf]
    %v352 = vld [vmem:[%s1 + $0x820] sm:$0xff]
    %v353 = vld [vmem:[%s1 + $0x828] sm:$0xff]
    %v354 = vld [vmem:[%s1 + $0x830] sm:$0xf]
    %v355 = vld [vmem:[%s1 + $0x834] sm:$0xff]
    %v356 = vld [vmem:[%s1 + $0x83c] sm:$0xff]
    %v357 = vld [vmem:[%s1 + $0x844] sm:$0xf]
    %v358 = vld [vmem:[%s1 + $0x848] sm:$0xff]
    %v359 = vld [vmem:[%s1 + $0x850] sm:$0xff]
    %v360 = vld [vmem:[%s1 + $0x858] sm:$0xf]
    %v361 = vld [vmem:[%s1 + $0x85c] sm:$0xff]
    %v362 = vld [vmem:[%s1 + $0x864] sm:$0xff]
    %v363 = vld [vmem:[%s1 + $0x86c] sm:$0xf]
    %v364 = vld [vmem:[%s1 + $0x870] sm:$0xff]
    %v365 = vld [vmem:[%s1 + $0x878] sm:$0xff]
    %v366 = vld [vmem:[%s1 + $0x880] sm:$0xf]
    %v367 = vld [vmem:[%s1 + $0x884] sm:$0xff]
    %v368 = vld [vmem:[%s1 + $0x88c] sm:$0xff]
    %v369 = vld [vmem:[%s1 + $0x894] sm:$0xf]
    %v370 = vld [vmem:[%s1 + $0x898] sm:$0xff]
    %v371 = vld [vmem:[%s1 + $0x8a0] sm:$0xff]
    %v372 = vld [vmem:[%s1 + $0x8a8] sm:$0xf]
    %v373 = vld [vmem:[%s1 + $0x8ac] sm:$0xff]
    %v374 = vld [vmem:[%s1 + $0x8b4] sm:$0xff]
    %v375 = vld [vmem:[%s1 + $0x8bc] sm:$0xf]
    %v376 = vld [vmem:[%s1 + $0x8c0] sm:$0xff]
    %v377 = vld [vmem:[%s1 + $0x8c8] sm:$0xff]
    %v378 = vld [vmem:[%s1 + $0x8d0] sm:$0xf]
    %v379 = vld [vmem:[%s1 + $0x8d4] sm:$0xff]
    %v380 = vld [vmem:[%s1 + $0x8dc] sm:$0xff]
    %v381 = vld [vmem:[%s1 + $0x8e4] sm:$0xf]
    %v382 = vld [vmem:[%s1 + $0x8e8] sm:$0xff]
    %v383 = vld [vmem:[%s1 + $0x8f0] sm:$0xff]
    %v384 = vld [vmem:[%s1 + $0x8f8] sm:$0xf]
    %v385 = vld [vmem:[%s1 + $0x8fc] sm:$0xff]
    %v386 = vld [vmem:[%s1 + $0x904] sm:$0xff]
    %v387 = vld [vmem:[%s1 + $0x90c] sm:$0xf]
    %v388 = vld [vmem:[%s1 + $0x910] sm:$0xff]
    %v389 = vld [vmem:[%s1 + $0x918] sm:$0xff]
    %v390 = vld [vmem:[%s1 + $0x920] sm:$0xf]
    %v391 = vld [vmem:[%s1 + $0x924] sm:$0xff]
    %v392 = vld [vmem:[%s1 + $0x92c] sm:$0xff]
    %v393 = vld [vmem:[%s1 + $0x934] sm:$0xf]
    %v394 = vld [vmem:[%s1 + $0x938] sm:$0xff]
    %v395 = vld [vmem:[%s1 + $0x940] sm:$0xff]
    %v396 = vld [vmem:[%s1 + $0x948] sm:$0xf]
    %v397 = vld [vmem:[%s1 + $0x94c] sm:$0xff]
    %v398 = vld [vmem:[%s1 + $0x954] sm:$0xff]
    %v399 = vld [vmem:[%s1 + $0x95c] sm:$0xf]
    %v400 = vld [vmem:[%s1 + $0x960] sm:$0xff]
    %v401 = vld [vmem:[%s1 + $0x968] sm:$0xff]
    %v402 = vld [vmem:[%s1 + $0x970] sm:$0xf]
    %v403 = vld [vmem:[%s1 + $0x974] sm:$0xff]
    %v404 = vld [vmem:[%s1 + $0x97c] sm:$0xff]
    %v405 = vld [vmem:[%s1 + $0x984] sm:$0xf]
    %v406 = vld [vmem:[%s1 + $0x988] sm:$0xff]
    %v407 = vld [vmem:[%s1 + $0x990] sm:$0xff]
    %v408 = vld [vmem:[%s1 + $0x998] sm:$0xf]
    %v409 = vld [vmem:[%s1 + $0x99c] sm:$0xff]
    %v410 = vld [vmem:[%s1 + $0x9a4] sm:$0xff]
    %v411 = vld [vmem:[%s1 + $0x9ac] sm:$0xf]
    %v412 = vld [vmem:[%s1 + $0x9b0] sm:$0xff]
    %v413 = vld [vmem:[%s1 + $0x9b8] sm:$0xff]
    %v414 = vld [vmem:[%s1 + $0x9c0] sm:$0xf]
    %v415 = vld [vmem:[%s1 + $0x9c4] sm:$0xff]
    %v416 = vld [vmem:[%s1 + $0x9cc] sm:$0xff]
    %v417 = vld [vmem:[%s1 + $0x9d4] sm:$0xf]
    %v418 = vld [vmem:[%s1 + $0x9d8] sm:$0xff]
    %v419 = vld [vmem:[%s1 + $0x9e0] sm:$0xff]
    %v420 = vld [vmem:[%s1 + $0x9e8] sm:$0xf]
    %v421 = vld [vmem:[%s1 + $0x9ec] sm:$0xff]
    %v422 = vld [vmem:[%s1 + $0x9f4] sm:$0xff]
    %v423 = vld [vmem:[%s1 + $0x9fc] sm:$0xf]
    %v424 = vld [vmem:[%s1 + $0xa00] sm:$0xff]
    %v425 = vld [vmem:[%s1 + $0xa08] sm:$0xff]
    %v426 = vld [vmem:[%s1 + $0xa10] sm:$0xf]
    %v427 = vld [vmem:[%s1 + $0xa14] sm:$0xff]
    %v428 = vld [vmem:[%s1 + $0xa1c] sm:$0xff]
    %v429 = vld [vmem:[%s1 + $0xa24] sm:$0xf]
    %v430 = vld [vmem:[%s1 + $0xa28] sm:$0xff]
    %v431 = vld [vmem:[%s1 + $0xa30] sm:$0xff]
    %v432 = vld [vmem:[%s1 + $0xa38] sm:$0xf]
    %v433 = vld [vmem:[%s1 + $0xa3c] sm:$0xff]
    %v434 = vld [vmem:[%s1 + $0xa44] sm:$0xff]
    %v435 = vld [vmem:[%s1 + $0xa4c] sm:$0xf]
    %v436 = vld [vmem:[%s1 + $0xa50] sm:$0xff]
    %v437 = vld [vmem:[%s1 + $0xa58] sm:$0xff]
    %v438 = vld [vmem:[%s1 + $0xa60] sm:$0xf]
    %v439 = vld [vmem:[%s1 + $0xa64] sm:$0xff]
    %v440 = vld [vmem:[%s1 + $0xa6c] sm:$0xff]
    %v441 = vld [vmem:[%s1 + $0xa74] sm:$0xf]
    %v442 = vld [vmem:[%s1 + $0xa78] sm:$0xff]
    %v443 = vld [vmem:[%s1 + $0xa80] sm:$0xff]
    %v444 = vld [vmem:[%s1 + $0xa88] sm:$0xf]
    %v445 = vld [vmem:[%s1 + $0xa8c] sm:$0xff]
    %v446 = vld [vmem:[%s1 + $0xa94] sm:$0xff]
    %v447 = vld [vmem:[%s1 + $0xa9c] sm:$0xf]
    %v448 = vld [vmem:[%s1 + $0xaa0] sm:$0xff]
    %v449 = vld [vmem:[%s1 + $0xaa8] sm:$0xff]
    %v450 = vld [vmem:[%s1 + $0xab0] sm:$0xf]
    %v451 = vld [vmem:[%s1 + $0xab4] sm:$0xff]
    %v452 = vld [vmem:[%s1 + $0xabc] sm:$0xff]
    %v453 = vld [vmem:[%s1 + $0xac4] sm:$0xf]
    %v454 = vld [vmem:[%s1 + $0xac8] sm:$0xff]
    %v455 = vld [vmem:[%s1 + $0xad0] sm:$0xff]
    %v456 = vld [vmem:[%s1 + $0xad8] sm:$0xf]
    %v457 = vld [vmem:[%s1 + $0xadc] sm:$0xff]
    %v458 = vld [vmem:[%s1 + $0xae4] sm:$0xff]
    %v459 = vld [vmem:[%s1 + $0xaec] sm:$0xf]
    %v460 = vld [vmem:[%s1 + $0xaf0] sm:$0xff]
    %v461 = vld [vmem:[%s1 + $0xaf8] sm:$0xff]
    %v462 = vld [vmem:[%s1 + $0xb00] sm:$0xf]
    %v463 = vld [vmem:[%s1 + $0xb04] sm:$0xff]
    %v464 = vld [vmem:[%s1 + $0xb0c] sm:$0xff]
    %v465 = vld [vmem:[%s1 + $0xb14] sm:$0xf]
    %v466 = vld [vmem:[%s1 + $0xb18] sm:$0xff]
    %v467 = vld [vmem:[%s1 + $0xb20] sm:$0xff]
    %v468 = vld [vmem:[%s1 + $0xb28] sm:$0xf]
    %v469 = vld [vmem:[%s1 + $0xb2c] sm:$0xff]
    %v470 = vld [vmem:[%s1 + $0xb34] sm:$0xff]
    %v471 = vld [vmem:[%s1 + $0xb3c] sm:$0xf]
    %v472 = vld [vmem:[%s1 + $0xb40] sm:$0xff]
    %v473 = vld [vmem:[%s1 + $0xb48] sm:$0xff]
    %v474 = vld [vmem:[%s1 + $0xb50] sm:$0xf]
    %v475 = vld [vmem:[%s1 + $0xb54] sm:$0xff]
    %v476 = vld [vmem:[%s1 + $0xb5c] sm:$0xff]
    %v477 = vld [vmem:[%s1 + $0xb64] sm:$0xf]
    %v478 = vld [vmem:[%s1 + $0xb68] sm:$0xff]
    %v479 = vld [vmem:[%s1 + $0xb70] sm:$0xff]
    %v480 = vld [vmem:[%s1 + $0xb78] sm:$0xf]
    %v481 = vld [vmem:[%s1 + $0xb7c] sm:$0xff]
    %v482 = vld [vmem:[%s1 + $0xb84] sm:$0xff]
    %v483 = vld [vmem:[%s1 + $0xb8c] sm:$0xf]
    %v484 = vld [vmem:[%s1 + $0xb90] sm:$0xff]
    %v485 = vld [vmem:[%s1 + $0xb98] sm:$0xff]
    %v486 = vld [vmem:[%s1 + $0xba0] sm:$0xf]
    %v487 = vld [vmem:[%s1 + $0xba4] sm:$0xff]
    %v488 = vld [vmem:[%s1 + $0xbac] sm:$0xff]
    %v489 = vld [vmem:[%s1 + $0xbb4] sm:$0xf]
    %v490 = vld [vmem:[%s1 + $0xbb8] sm:$0xff]
    %v491 = vld [vmem:[%s1 + $0xbc0] sm:$0xff]
    %v492 = vld [vmem:[%s1 + $0xbc8] sm:$0xf]
    %v493 = vld [vmem:[%s1 + $0xbcc] sm:$0xff]
    %v494 = vld [vmem:[%s1 + $0xbd4] sm:$0xff]
    %v495 = vld [vmem:[%s1 + $0xbdc] sm:$0xf]
    %v496 = vld [vmem:[%s1 + $0xbe0] sm:$0xff]
    %v497 = vld [vmem:[%s1 + $0xbe8] sm:$0xff]
    %v498 = vld [vmem:[%s1 + $0xbf0] sm:$0xf]
    %v499 = vld [vmem:[%s1 + $0xbf4] sm:$0xff]
    %v500 = vld [vmem:[%s1 + $0xbfc] sm:$0xff]
    %v501 = vld [vmem:[%s1 + $0xc04] sm:$0xf]
    %v502 = vld [vmem:[%s1 + $0xc08] sm:$0xff]
    %v503 = vld [vmem:[%s1 + $0xc10] sm:$0xff]
    %v504 = vld [vmem:[%s1 + $0xc18] sm:$0xf]
    %v505 = vld [vmem:[%s1 + $0xc1c] sm:$0xff]
    %v506 = vld [vmem:[%s1 + $0xc24] sm:$0xff]
    %v507 = vld [vmem:[%s1 + $0xc2c] sm:$0xf]
    %v508 = vld [vmem:[%s1 + $0xc30] sm:$0xff]
    %v509 = vld [vmem:[%s1 + $0xc38] sm:$0xff]
    %v510 = vld [vmem:[%s1 + $0xc40] sm:$0xf]
    %v511 = vld [vmem:[%s1 + $0xc44] sm:$0xff]
    %v512 = vld [vmem:[%s1 + $0xc4c] sm:$0xff]
    %v513 = vld [vmem:[%s1 + $0xc54] sm:$0xf]
    %v514 = vld [vmem:[%s1 + $0xc58] sm:$0xff]
    %v515 = vld [vmem:[%s1 + $0xc60] sm:$0xff]
    %v516 = vld [vmem:[%s1 + $0xc68] sm:$0xf]
    %v517 = vld [vmem:[%s1 + $0xc6c] sm:$0xff]
    %v518 = vld [vmem:[%s1 + $0xc74] sm:$0xff]
    %v519 = vld [vmem:[%s1 + $0xc7c] sm:$0xf]
    %v520 = vld [vmem:[%s1 + $0xc80] sm:$0xff]
    %v521 = vld [vmem:[%s1 + $0xc88] sm:$0xff]
    %v522 = vld [vmem:[%s1 + $0xc90] sm:$0xf]
    %v523 = vld [vmem:[%s1 + $0xc94] sm:$0xff]
    %v524 = vld [vmem:[%s1 + $0xc9c] sm:$0xff]
    %v525 = vld [vmem:[%s1 + $0xca4] sm:$0xf]
    %v526 = vld [vmem:[%s1 + $0xca8] sm:$0xff]
    %v527 = vld [vmem:[%s1 + $0xcb0] sm:$0xff]
    %v528 = vld [vmem:[%s1 + $0xcb8] sm:$0xf]
    %v529 = vld [vmem:[%s1 + $0xcbc] sm:$0xff]
    %v530 = vld [vmem:[%s1 + $0xcc4] sm:$0xff]
    %v531 = vld [vmem:[%s1 + $0xccc] sm:$0xf]
    %v532 = vld [vmem:[%s1 + $0xcd0] sm:$0xff]
    %v533 = vld [vmem:[%s1 + $0xcd8] sm:$0xff]
    %v534 = vld [vmem:[%s1 + $0xce0] sm:$0xf]
    %v535 = vld [vmem:[%s1 + $0xce4] sm:$0xff]
    %v536 = vld [vmem:[%s1 + $0xcec] sm:$0xff]
    %v537 = vld [vmem:[%s1 + $0xcf4] sm:$0xf]
    %v538 = vld [vmem:[%s1 + $0xcf8] sm:$0xff]
    %v539 = vld [vmem:[%s1 + $0xd00] sm:$0xff]
    %v540 = vld [vmem:[%s1 + $0xd08] sm:$0xf]
    %v541 = vld [vmem:[%s1 + $0xd0c] sm:$0xff]
    %v542 = vld [vmem:[%s1 + $0xd14] sm:$0xff]
    %v543 = vld [vmem:[%s1 + $0xd1c] sm:$0xf]
    %v544 = vld [vmem:[%s1 + $0xd20] sm:$0xff]
    %v545 = vld [vmem:[%s1 + $0xd28] sm:$0xff]
    %v546 = vld [vmem:[%s1 + $0xd30] sm:$0xf]
    %v547 = vld [vmem:[%s1 + $0xd34] sm:$0xff]
    %v548 = vld [vmem:[%s1 + $0xd3c] sm:$0xff]
    %v549 = vld [vmem:[%s1 + $0xd44] sm:$0xf]
    %v550 = vld [vmem:[%s1 + $0xd48] sm:$0xff]
    %v551 = vld [vmem:[%s1 + $0xd50] sm:$0xff]
    %v552 = vld [vmem:[%s1 + $0xd58] sm:$0xf]
    %v553 = vld [vmem:[%s1 + $0xd5c] sm:$0xff]
    %v554 = vld [vmem:[%s1 + $0xd64] sm:$0xff]
    %v555 = vld [vmem:[%s1 + $0xd6c] sm:$0xf]
    %v556 = vld [vmem:[%s1 + $0xd70] sm:$0xff]
    %v557 = vld [vmem:[%s1 + $0xd78] sm:$0xff]
    %v558 = vld [vmem:[%s1 + $0xd80] sm:$0xf]
    %v559 = vld [vmem:[%s1 + $0xd84] sm:$0xff]
    %v560 = vld [vmem:[%s1 + $0xd8c] sm:$0xff]
    %v561 = vld [vmem:[%s1 + $0xd94] sm:$0xf]
    %v562 = vld [vmem:[%s1 + $0xd98] sm:$0xff]
    %v563 = vld [vmem:[%s1 + $0xda0] sm:$0xff]
    %v564 = vld [vmem:[%s1 + $0xda8] sm:$0xf]
    %v565 = vld [vmem:[%s1 + $0xdac] sm:$0xff]
    %v566 = vld [vmem:[%s1 + $0xdb4] sm:$0xff]
    %v567 = vld [vmem:[%s1 + $0xdbc] sm:$0xf]
    %v568 = vld [vmem:[%s1 + $0xdc0] sm:$0xff]
    %v569 = vld [vmem:[%s1 + $0xdc8] sm:$0xff]
    %v570 = vld [vmem:[%s1 + $0xdd0] sm:$0xf]
    %v571 = vld [vmem:[%s1 + $0xdd4] sm:$0xff]
    %v572 = vld [vmem:[%s1 + $0xddc] sm:$0xff]
    %v573 = vld [vmem:[%s1 + $0xde4] sm:$0xf]
    %v574 = vld [vmem:[%s1 + $0xde8] sm:$0xff]
    %v575 = vld [vmem:[%s1 + $0xdf0] sm:$0xff]
    %v576 = vld [vmem:[%s1 + $0xdf8] sm:$0xf]
    %v577 = vld [vmem:[%s1 + $0xdfc] sm:$0xff]
    %v578 = vld [vmem:[%s1 + $0xe04] sm:$0xff]
    %v579 = vld [vmem:[%s1 + $0xe0c] sm:$0xf]
    %v580 = vld [vmem:[%s1 + $0xe10] sm:$0xff]
    %v581 = vld [vmem:[%s1 + $0xe18] sm:$0xff]
    %v582 = vld [vmem:[%s1 + $0xe20] sm:$0xf]
    %v583 = vld [vmem:[%s1 + $0xe24] sm:$0xff]
    %v584 = vld [vmem:[%s1 + $0xe2c] sm:$0xff]
    %v585 = vld [vmem:[%s1 + $0xe34] sm:$0xf]
    %v586 = vld [vmem:[%s1 + $0xe38] sm:$0xff]
    %v587 = vld [vmem:[%s1 + $0xe40] sm:$0xff]
    %v588 = vld [vmem:[%s1 + $0xe48] sm:$0xf]
    %v589 = vld [vmem:[%s1 + $0xe4c] sm:$0xff]
    %v590 = vld [vmem:[%s1 + $0xe54] sm:$0xff]
    %v591 = vld [vmem:[%s1 + $0xe5c] sm:$0xf]
    %v592 = vld [vmem:[%s1 + $0xe60] sm:$0xff]
    %v593 = vld [vmem:[%s1 + $0xe68] sm:$0xff]
    %v594 = vld [vmem:[%s1 + $0xe70] sm:$0xf]
    %v595 = vld [vmem:[%s1 + $0xe74] sm:$0xff]
    %v596 = vld [vmem:[%s1 + $0xe7c] sm:$0xff]
    %v597 = vld [vmem:[%s1 + $0xe84] sm:$0xf]
    %v598 = vld [vmem:[%s1 + $0xe88] sm:$0xff]
    %v599 = vld [vmem:[%s1 + $0xe90] sm:$0xff]
    %v600 = vld [vmem:[%s1 + $0xe98] sm:$0xf]
    %v601 = vld [vmem:[%s1 + $0xe9c] sm:$0xff]
    %v602 = vld [vmem:[%s1 + $0xea4] sm:$0xff]
    %v603 = vld [vmem:[%s1 + $0xeac] sm:$0xf]
    %v604 = vld [vmem:[%s1 + $0xeb0] sm:$0xff]
    %v605 = vld [vmem:[%s1 + $0xeb8] sm:$0xff]
    %v606 = vld [vmem:[%s1 + $0xec0] sm:$0xf]
    %v607 = vld [vmem:[%s1 + $0xec4] sm:$0xff]
    %v608 = vld [vmem:[%s1 + $0xecc] sm:$0xff]
    %v609 = vld [vmem:[%s1 + $0xed4] sm:$0xf]
    %v610 = vld [vmem:[%s1 + $0xed8] sm:$0xff]
    %v611 = vld [vmem:[%s1 + $0xee0] sm:$0xff]
    %v612 = vld [vmem:[%s1 + $0xee8] sm:$0xf]
    %v613 = vld [vmem:[%s1 + $0xeec] sm:$0xff]
    %v614 = vld [vmem:[%s1 + $0xef4] sm:$0xff]
    %v615 = vld [vmem:[%s1 + $0xefc] sm:$0xf]
    %v616 = vld [vmem:[%s1 + $0xf00] sm:$0xff]
    %v617 = vld [vmem:[%s1 + $0xf08] sm:$0xff]
    %v618 = vld [vmem:[%s1 + $0xf10] sm:$0xf]
    %v619 = vld [vmem:[%s1 + $0xf14] sm:$0xff]
    %v620 = vld [vmem:[%s1 + $0xf1c] sm:$0xff]
    %v621 = vld [vmem:[%s1 + $0xf24] sm:$0xf]
    %v622 = vld [vmem:[%s1 + $0xf28] sm:$0xff]
    %v623 = vld [vmem:[%s1 + $0xf30] sm:$0xff]
    %v624 = vld [vmem:[%s1 + $0xf38] sm:$0xf]
    %v625 = vld [vmem:[%s1 + $0xf3c] sm:$0xff]
    %v626 = vld [vmem:[%s1 + $0xf44] sm:$0xff]
    %v627 = vld [vmem:[%s1 + $0xf4c] sm:$0xf]
    %v628 = vld [vmem:[%s1 + $0xf50] sm:$0xff]
    %v629 = vld [vmem:[%s1 + $0xf58] sm:$0xff]
    %v630 = vld [vmem:[%s1 + $0xf60] sm:$0xf]
    %v631 = vld [vmem:[%s1 + $0xf64] sm:$0xff]
    %v632 = vld [vmem:[%s1 + $0xf6c] sm:$0xff]
    %v633 = vld [vmem:[%s1 + $0xf74] sm:$0xf]
    %v634 = vld [vmem:[%s1 + $0xf78] sm:$0xff]
    %v635 = vld [vmem:[%s1 + $0xf80] sm:$0xff]
    %v636 = vld [vmem:[%s1 + $0xf88] sm:$0xf]
    %v637 = vld [vmem:[%s1 + $0xf8c] sm:$0xff]
    %v638 = vld [vmem:[%s1 + $0xf94] sm:$0xff]
    %v639 = vld [vmem:[%s1 + $0xf9c] sm:$0xf]
    %v640 = vld [vmem:[%s1 + $0xfa0] sm:$0xff]
    %v641 = vld [vmem:[%s1 + $0xfa8] sm:$0xff]
    %v642 = vld [vmem:[%s1 + $0xfb0] sm:$0xf]
    %v643 = vld [vmem:[%s1 + $0xfb4] sm:$0xff]
    %v644 = vld [vmem:[%s1 + $0xfbc] sm:$0xff]
    %v645 = vld [vmem:[%s1 + $0xfc4] sm:$0xf]
    %v646 = vld [vmem:[%s1 + $0xfc8] sm:$0xff]
    %v647 = vld [vmem:[%s1 + $0xfd0] sm:$0xff]
    %v648 = vld [vmem:[%s1 + $0xfd8] sm:$0xf]
    %v649 = vld [vmem:[%s1 + $0xfdc] sm:$0xff]
    %v650 = vld [vmem:[%s1 + $0xfe4] sm:$0xff]
    %v651 = vld [vmem:[%s1 + $0xfec] sm:$0xf]
    %v652 = vld [vmem:[%s1 + $0xff0] sm:$0xff]
    %v653 = vld [vmem:[%s1 + $0xff8] sm:$0xff]
    %v654 = vld [vmem:[%s1 + $0x1000] sm:$0xf]
    %v655 = vld [vmem:[%s1 + $0x1004] sm:$0xff]
    %v656 = vld [vmem:[%s1 + $0x100c] sm:$0xff]
    %v657 = vld [vmem:[%s1 + $0x1014] sm:$0xf]
    %v658 = vld [vmem:[%s1 + $0x1018] sm:$0xff]
    %v659 = vld [vmem:[%s1 + $0x1020] sm:$0xff]
    %v660 = vld [vmem:[%s1 + $0x1028] sm:$0xf]
    %v661 = vld [vmem:[%s1 + $0x102c] sm:$0xff]
    %v662 = vld [vmem:[%s1 + $0x1034] sm:$0xff]
    %v663 = vld [vmem:[%s1 + $0x103c] sm:$0xf]
    %v664 = vld [vmem:[%s1 + $0x1040] sm:$0xff]
    %v665 = vld [vmem:[%s1 + $0x1048] sm:$0xff]
    %v666 = vld [vmem:[%s1 + $0x1050] sm:$0xf]
    %v667 = vld [vmem:[%s1 + $0x1054] sm:$0xff]
    %v668 = vld [vmem:[%s1 + $0x105c] sm:$0xff]
    %v669 = vld [vmem:[%s1 + $0x1064] sm:$0xf]
    %v670 = vld [vmem:[%s1 + $0x1068] sm:$0xff]
    %v671 = vld [vmem:[%s1 + $0x1070] sm:$0xff]
    %v672 = vld [vmem:[%s1 + $0x1078] sm:$0xf]
    %v673 = vld [vmem:[%s1 + $0x107c] sm:$0xff]
    %v674 = vld [vmem:[%s1 + $0x1084] sm:$0xff]
    %v675 = vld [vmem:[%s1 + $0x108c] sm:$0xf]
    %v676 = vld [vmem:[%s1 + $0x1090] sm:$0xff]
    %v677 = vld [vmem:[%s1 + $0x1098] sm:$0xff]
    %v678 = vld [vmem:[%s1 + $0x10a0] sm:$0xf]
    %v679 = vld [vmem:[%s1 + $0x10a4] sm:$0xff]
    %v680 = vld [vmem:[%s1 + $0x10ac] sm:$0xff]
    %v681 = vld [vmem:[%s1 + $0x10b4] sm:$0xf]
    %v682 = vld [vmem:[%s1 + $0x10b8] sm:$0xff]
    %v683 = vld [vmem:[%s1 + $0x10c0] sm:$0xff]
    %v684 = vld [vmem:[%s1 + $0x10c8] sm:$0xf]
    %v685 = vld [vmem:[%s1 + $0x10cc] sm:$0xff]
    %v686 = vld [vmem:[%s1 + $0x10d4] sm:$0xff]
    %v687 = vld [vmem:[%s1 + $0x10dc] sm:$0xf]
    %v688 = vld [vmem:[%s1 + $0x10e0] sm:$0xff]
    %v689 = vld [vmem:[%s1 + $0x10e8] sm:$0xff]
    %v690 = vld [vmem:[%s1 + $0x10f0] sm:$0xf]
    %v691 = vld [vmem:[%s1 + $0x10f4] sm:$0xff]
    %v692 = vld [vmem:[%s1 + $0x10fc] sm:$0xff]
    %v693 = vld [vmem:[%s1 + $0x1104] sm:$0xf]
    %v694 = vld [vmem:[%s1 + $0x1108] sm:$0xff]
    %v695 = vld [vmem:[%s1 + $0x1110] sm:$0xff]
    %v696 = vld [vmem:[%s1 + $0x1118] sm:$0xf]
    %v697 = vld [vmem:[%s1 + $0x111c] sm:$0xff]
    %v698 = vld [vmem:[%s1 + $0x1124] sm:$0xff]
    %v699 = vld [vmem:[%s1 + $0x112c] sm:$0xf]
    %v700 = vld [vmem:[%s1 + $0x1130] sm:$0xff]
    %v701 = vld [vmem:[%s1 + $0x1138] sm:$0xff]
    %v702 = vld [vmem:[%s1 + $0x1140] sm:$0xf]
    %v703 = vld [vmem:[%s1 + $0x1144] sm:$0xff]
    %v704 = vld [vmem:[%s1 + $0x114c] sm:$0xff]
    %v705 = vld [vmem:[%s1 + $0x1154] sm:$0xf]
    %v706 = vld [vmem:[%s1 + $0x1158] sm:$0xff]
    %v707 = vld [vmem:[%s1 + $0x1160] sm:$0xff]
    %v708 = vld [vmem:[%s1 + $0x1168] sm:$0xf]
    %v709 = vld [vmem:[%s1 + $0x116c] sm:$0xff]
    %v710 = vld [vmem:[%s1 + $0x1174] sm:$0xff]
    %v711 = vld [vmem:[%s1 + $0x117c] sm:$0xf]
    %v712 = vld [vmem:[%s1 + $0x1180] sm:$0xff]
    %v713 = vld [vmem:[%s1 + $0x1188] sm:$0xff]
    %v714 = vld [vmem:[%s1 + $0x1190] sm:$0xf]
    %v715 = vld [vmem:[%s1 + $0x1194] sm:$0xff]
    %v716 = vld [vmem:[%s1 + $0x119c] sm:$0xff]
    %v717 = vld [vmem:[%s1 + $0x11a4] sm:$0xf]
    %v718 = vld [vmem:[%s1 + $0x11a8] sm:$0xff]
    %v719 = vld [vmem:[%s1 + $0x11b0] sm:$0xff]
    %v720 = vld [vmem:[%s1 + $0x11b8] sm:$0xf]
    %v721 = vld [vmem:[%s1 + $0x11bc] sm:$0xff]
    %v722 = vld [vmem:[%s1 + $0x11c4] sm:$0xff]
    %v723 = vld [vmem:[%s1 + $0x11cc] sm:$0xf]
    %v724 = vld [vmem:[%s1 + $0x11d0] sm:$0xff]
    %v725 = vld [vmem:[%s1 + $0x11d8] sm:$0xff]
    %v726 = vld [vmem:[%s1 + $0x11e0] sm:$0xf]
    %v727 = vld [vmem:[%s1 + $0x11e4] sm:$0xff]
    %v728 = vld [vmem:[%s1 + $0x11ec] sm:$0xff]
    %v729 = vld [vmem:[%s1 + $0x11f4] sm:$0xf]
    %v730 = vld [vmem:[%s1 + $0x11f8] sm:$0xff]
    %v731 = vld [vmem:[%s1 + $0x1200] sm:$0xff]
    %v732 = vld [vmem:[%s1 + $0x1208] sm:$0xf]
    %v733 = vld [vmem:[%s1 + $0x120c] sm:$0xff]
    %v734 = vld [vmem:[%s1 + $0x1214] sm:$0xff]
    %v735 = vld [vmem:[%s1 + $0x121c] sm:$0xf]
    %v736 = vld [vmem:[%s1 + $0x1220] sm:$0xff]
    %v737 = vld [vmem:[%s1 + $0x1228] sm:$0xff]
    %v738 = vld [vmem:[%s1 + $0x1230] sm:$0xf]
    %v739 = vld [vmem:[%s1 + $0x1234] sm:$0xff]
    %v740 = vld [vmem:[%s1 + $0x123c] sm:$0xff]
    %v741 = vld [vmem:[%s1 + $0x1244] sm:$0xf]
    %v742 = vld [vmem:[%s1 + $0x1248] sm:$0xff]
    %v743 = vld [vmem:[%s1 + $0x1250] sm:$0xff]
    %v744 = vld [vmem:[%s1 + $0x1258] sm:$0xf]
    %v745 = vld [vmem:[%s1 + $0x125c] sm:$0xff]
    %v746 = vld [vmem:[%s1 + $0x1264] sm:$0xff]
    %v747 = vld [vmem:[%s1 + $0x126c] sm:$0xf]
    %v748 = vld [vmem:[%s1 + $0x1270] sm:$0xff]
    %v749 = vld [vmem:[%s1 + $0x1278] sm:$0xff]
    %v750 = vld [vmem:[%s1 + $0x1280] sm:$0xf]
    %v751 = vld [vmem:[%s1 + $0x1284] sm:$0xff]
    %v752 = vld [vmem:[%s1 + $0x128c] sm:$0xff]
    %v753 = vld [vmem:[%s1 + $0x1294] sm:$0xf]
    %v754 = vld [vmem:[%s1 + $0x1298] sm:$0xff]
    %v755 = vld [vmem:[%s1 + $0x12a0] sm:$0xff]
    %v756 = vld [vmem:[%s1 + $0x12a8] sm:$0xf]
    %v757 = vld [vmem:[%s1 + $0x12ac] sm:$0xff]
    %v758 = vld [vmem:[%s1 + $0x12b4] sm:$0xff]
    %v759 = vld [vmem:[%s1 + $0x12bc] sm:$0xf]
    %v760 = vld [vmem:[%s1 + $0x12c0] sm:$0xff]
    %v761 = vld [vmem:[%s1 + $0x12c8] sm:$0xff]
    %v762 = vld [vmem:[%s1 + $0x12d0] sm:$0xf]
    %v763 = vld [vmem:[%s1 + $0x12d4] sm:$0xff]
    %v764 = vld [vmem:[%s1 + $0x12dc] sm:$0xff]
    %v765 = vld [vmem:[%s1 + $0x12e4] sm:$0xf]
    %v766 = vld [vmem:[%s1 + $0x12e8] sm:$0xff]
    %v767 = vld [vmem:[%s1 + $0x12f0] sm:$0xff]
    %v768 = vld [vmem:[%s1 + $0x12f8] sm:$0xf]
    %v769 = vld [vmem:[%s1 + $0x12fc] sm:$0xff]
    %v770 = vld [vmem:[%s1 + $0x1304] sm:$0xff]
    %v771 = vld [vmem:[%s1 + $0x130c] sm:$0xf]
    %v772 = vld [vmem:[%s1 + $0x1310] sm:$0xff]
    %v773 = vld [vmem:[%s1 + $0x1318] sm:$0xff]
    %v774 = vld [vmem:[%s1 + $0x1320] sm:$0xf]
    %v775 = vld [vmem:[%s1 + $0x1324] sm:$0xff]
    %v776 = vld [vmem:[%s1 + $0x132c] sm:$0xff]
    %v777 = vld [vmem:[%s1 + $0x1334] sm:$0xf]
    %v778 = vld [vmem:[%s1 + $0x1338] sm:$0xff]
    %v779 = vld [vmem:[%s1 + $0x1340] sm:$0xff]
    %v780 = vld [vmem:[%s1 + $0x1348] sm:$0xf]
    %v781 = vld [vmem:[%s1 + $0x134c] sm:$0xff]
    %v782 = vld [vmem:[%s1 + $0x1354] sm:$0xff]
    %v783 = vld [vmem:[%s1 + $0x135c] sm:$0xf]
    %v784 = vld [vmem:[%s1 + $0x1360] sm:$0xff]
    %v785 = vld [vmem:[%s1 + $0x1368] sm:$0xff]
    %v786 = vld [vmem:[%s1 + $0x1370] sm:$0xf]
    %v787 = vld [vmem:[%s1 + $0x1374] sm:$0xff]
    %v788 = vld [vmem:[%s1 + $0x137c] sm:$0xff]
    %v789 = vld [vmem:[%s1 + $0x1384] sm:$0xf]
    %v790 = vld [vmem:[%s1 + $0x1388] sm:$0xff]
    %v791 = vld [vmem:[%s1 + $0x1390] sm:$0xff]
    %v792 = vld [vmem:[%s1 + $0x1398] sm:$0xf]
    %v793 = vld [vmem:[%s1 + $0x139c] sm:$0xff]
    %v794 = vld [vmem:[%s1 + $0x13a4] sm:$0xff]
    %v795 = vld [vmem:[%s1 + $0x13ac] sm:$0xf]
    %v796 = vld [vmem:[%s1 + $0x13b0] sm:$0xff]
    %v797 = vld [vmem:[%s1 + $0x13b8] sm:$0xff]
    %v798 = vld [vmem:[%s1 + $0x13c0] sm:$0xf]
    %v799 = vld [vmem:[%s1 + $0x13c4] sm:$0xff]
    %v800 = vld [vmem:[%s1 + $0x13cc] sm:$0xff]
    %v801 = vld [vmem:[%s1 + $0x13d4] sm:$0xf]
    %v802 = vld [vmem:[%s1 + $0x13d8] sm:$0xff]
    %v803 = vld [vmem:[%s1 + $0x13e0] sm:$0xff]
    %v804 = vld [vmem:[%s1 + $0x13e8] sm:$0xf]
    %v805 = vld [vmem:[%s1 + $0x13ec] sm:$0xff]
    %v806 = vld [vmem:[%s1 + $0x13f4] sm:$0xff]
    %v807 = vld [vmem:[%s1 + $0x13fc] sm:$0xf]
    %v808 = vld [vmem:[%s1 + $0x1400] sm:$0xff]
    %v809 = vld [vmem:[%s1 + $0x1408] sm:$0xff]
    %v810 = vld [vmem:[%s1 + $0x1410] sm:$0xf]
    %v811 = vld [vmem:[%s1 + $0x1414] sm:$0xff]
    %v812 = vld [vmem:[%s1 + $0x141c] sm:$0xff]
    %v813 = vld [vmem:[%s1 + $0x1424] sm:$0xf]
    %v814 = vld [vmem:[%s1 + $0x1428] sm:$0xff]
    %v815 = vld [vmem:[%s1 + $0x1430] sm:$0xff]
    %v816 = vld [vmem:[%s1 + $0x1438] sm:$0xf]
    %v817 = vld [vmem:[%s1 + $0x143c] sm:$0xff]
    %v818 = vld [vmem:[%s1 + $0x1444] sm:$0xff]
    %v819 = vld [vmem:[%s1 + $0x144c] sm:$0xf]
    %v820 = vld [vmem:[%s1 + $0x1450] sm:$0xff]
    %v821 = vld [vmem:[%s1 + $0x1458] sm:$0xff]
    %v822 = vld [vmem:[%s1 + $0x1460] sm:$0xf]
    %v823 = vld [vmem:[%s1 + $0x1464] sm:$0xff]
    %v824 = vld [vmem:[%s1 + $0x146c] sm:$0xff]
    %v825 = vld [vmem:[%s1 + $0x1474] sm:$0xf]
    %v826 = vld [vmem:[%s1 + $0x1478] sm:$0xff]
    %v827 = vld [vmem:[%s1 + $0x1480] sm:$0xff]
    %v828 = vld [vmem:[%s1 + $0x1488] sm:$0xf]
    %v829 = vld [vmem:[%s1 + $0x148c] sm:$0xff]
    %v830 = vld [vmem:[%s1 + $0x1494] sm:$0xff]
    %v831 = vld [vmem:[%s1 + $0x149c] sm:$0xf]
    %v832 = vld [vmem:[%s1 + $0x14a0] sm:$0xff]
    %v833 = vld [vmem:[%s1 + $0x14a8] sm:$0xff]
    %v834 = vld [vmem:[%s1 + $0x14b0] sm:$0xf]
    %v835 = vld [vmem:[%s1 + $0x14b4] sm:$0xff]
    %v836 = vld [vmem:[%s1 + $0x14bc] sm:$0xff]
    %v837 = vld [vmem:[%s1 + $0x14c4] sm:$0xf]
    %v838 = vld [vmem:[%s1 + $0x14c8] sm:$0xff]
    %v839 = vld [vmem:[%s1 + $0x14d0] sm:$0xff]
    %v840 = vld [vmem:[%s1 + $0x14d8] sm:$0xf]
    %v841 = vld [vmem:[%s1 + $0x14dc] sm:$0xff]
    %v842 = vld [vmem:[%s1 + $0x14e4] sm:$0xff]
    %v843 = vld [vmem:[%s1 + $0x14ec] sm:$0xf]
    %v844 = vld [vmem:[%s1 + $0x14f0] sm:$0xff]
    %v845 = vld [vmem:[%s1 + $0x14f8] sm:$0xff]
    %v846 = vld [vmem:[%s1 + $0x1500] sm:$0xf]
    %v847 = vld [vmem:[%s1 + $0x1504] sm:$0xff]
    %v848 = vld [vmem:[%s1 + $0x150c] sm:$0xff]
    %v849 = vld [vmem:[%s1 + $0x1514] sm:$0xf]
    %v850 = vld [vmem:[%s1 + $0x1518] sm:$0xff]
    %v851 = vld [vmem:[%s1 + $0x1520] sm:$0xff]
    %v852 = vld [vmem:[%s1 + $0x1528] sm:$0xf]
    %v853 = vld [vmem:[%s1 + $0x152c] sm:$0xff]
    %v854 = vld [vmem:[%s1 + $0x1534] sm:$0xff]
    %v855 = vld [vmem:[%s1 + $0x153c] sm:$0xf]
    %v856 = vld [vmem:[%s1 + $0x1540] sm:$0xff]
    %v857 = vld [vmem:[%s1 + $0x1548] sm:$0xff]
    %v858 = vld [vmem:[%s1 + $0x1550] sm:$0xf]
    %v859 = vld [vmem:[%s1 + $0x1554] sm:$0xff]
    %v860 = vld [vmem:[%s1 + $0x155c] sm:$0xff]
    %v861 = vld [vmem:[%s1 + $0x1564] sm:$0xf]
    %v862 = vld [vmem:[%s1 + $0x1568] sm:$0xff]
    %v863 = vld [vmem:[%s1 + $0x1570] sm:$0xff]
    %v864 = vld [vmem:[%s1 + $0x1578] sm:$0xf]
    %v865 = vld [vmem:[%s1 + $0x157c] sm:$0xff]
    %v866 = vld [vmem:[%s1 + $0x1584] sm:$0xff]
    %v867 = vld [vmem:[%s1 + $0x158c] sm:$0xf]
    %v868 = vld [vmem:[%s1 + $0x1590] sm:$0xff]
    %v869 = vld [vmem:[%s1 + $0x1598] sm:$0xff]
    %v870 = vld [vmem:[%s1 + $0x15a0] sm:$0xf]
    %v871 = vld [vmem:[%s1 + $0x15a4] sm:$0xff]
    %v872 = vld [vmem:[%s1 + $0x15ac] sm:$0xff]
    %v873 = vld [vmem:[%s1 + $0x15b4] sm:$0xf]
    %v874 = vld [vmem:[%s1 + $0x15b8] sm:$0xff]
    %v875 = vld [vmem:[%s1 + $0x15c0] sm:$0xff]
    %v876 = vld [vmem:[%s1 + $0x15c8] sm:$0xf]
    %v877 = vld [vmem:[%s1 + $0x15cc] sm:$0xff]
    %v878 = vld [vmem:[%s1 + $0x15d4] sm:$0xff]
    %v879 = vld [vmem:[%s1 + $0x15dc] sm:$0xf]
    %v880 = vld [vmem:[%s1 + $0x15e0] sm:$0xff]
    %v881 = vld [vmem:[%s1 + $0x15e8] sm:$0xff]
    %v882 = vld [vmem:[%s1 + $0x15f0] sm:$0xf]
    %v883 = vld [vmem:[%s1 + $0x15f4] sm:$0xff]
    %v884 = vld [vmem:[%s1 + $0x15fc] sm:$0xff]
    %v885 = vld [vmem:[%s1 + $0x1604] sm:$0xf]
    %v886 = vld [vmem:[%s1 + $0x1608] sm:$0xff]
    %v887 = vld [vmem:[%s1 + $0x1610] sm:$0xff]
    %v888 = vld [vmem:[%s1 + $0x1618] sm:$0xf]
    %v889 = vld [vmem:[%s1 + $0x161c] sm:$0xff]
    %v890 = vld [vmem:[%s1 + $0x1624] sm:$0xff]
    %v891 = vld [vmem:[%s1 + $0x162c] sm:$0xf]
    %v892 = vld [vmem:[%s1 + $0x1630] sm:$0xff]
    %v893 = vld [vmem:[%s1 + $0x1638] sm:$0xff]
    %v894 = vld [vmem:[%s1 + $0x1640] sm:$0xf]
    %v895 = vld [vmem:[%s1 + $0x1644] sm:$0xff]
    %v896 = vld [vmem:[%s1 + $0x164c] sm:$0xff]
    %v897 = vld [vmem:[%s1 + $0x1654] sm:$0xf]
    %v898 = vld [vmem:[%s1 + $0x1658] sm:$0xff]
    %v899 = vld [vmem:[%s1 + $0x1660] sm:$0xff]
    %v900 = vld [vmem:[%s1 + $0x1668] sm:$0xf]
    %v901 = vld [vmem:[%s1 + $0x166c] sm:$0xff]
    %v902 = vld [vmem:[%s1 + $0x1674] sm:$0xff]
    %v903 = vld [vmem:[%s1 + $0x167c] sm:$0xf]
    %v904 = vld [vmem:[%s2] sm:$0x1f]
    %v906 = vlaneseq
    %v907 = vshrl.u32 %v906, 7
    %v908 = vsub.s32 0, %v907
    %v909 = vrot.slane %v904, %v908
    %v910 = vlaneseq
    %v911 = vshrl.u32 %v910, 7
    %v912 = vsub.s32 1, %v911
    %v913 = vrot.slane %v904, %v912
    %v914 = vlaneseq
    %v915 = vshrl.u32 %v914, 7
    %v916 = vsub.s32 2, %v915
    %v917 = vrot.slane %v904, %v916
    %v918 = vlaneseq
    %v919 = vshrl.u32 %v918, 7
    %v920 = vsub.s32 3, %v919
    %v921 = vrot.slane %v904, %v920
    %v922 = vlaneseq
    %v923 = vshrl.u32 %v922, 7
    %v924 = vsub.s32 4, %v923
    %v925 = vrot.slane %v904, %v924
    %v943 = vcombine.low %v28, %v31
    %v944 = vcombine.high %v28, %v31
    %v945 = vcombine.low %v34, %v37
    %v946 = vcombine.high %v34, %v37
    %v948 = vunpack.c.l.s4 1966171168
    %v949 = vunpack.c.0.s8 %v948
    %v950 = vlaneseq
    %v951 = vshrl.u32 %v950, 7
    %v952 = vsub.s32 %v949, %v951
    %v953 = vrot.slane %v943, %v952
    %v955 = vunpack.c.l.s4 1966171168
    %v956 = vunpack.c.0.s8 %v955
    %v957 = vlaneseq
    %v958 = vshrl.u32 %v957, 7
    %v959 = vsub.s32 %v956, %v958
    %v960 = vrot.slane %v944, %v959
    %v962 = vunpack.c.l.s4 1966171168
    %v963 = vunpack.c.0.s8 %v962
    %v964 = vlaneseq
    %v965 = vshrl.u32 %v964, 7
    %v966 = vsub.s32 %v963, %v965
    %v967 = vrot.slane %v945, %v966
    %v969 = vunpack.c.l.s4 1966171168
    %v970 = vunpack.c.0.s8 %v969
    %v971 = vlaneseq
    %v972 = vshrl.u32 %v971, 7
    %v973 = vsub.s32 %v970, %v972
    %v974 = vrot.slane %v946, %v973
    %v975 = vcombine.low %v953, %v967
    %v976 = vcombine.high %v953, %v967
    %v977 = vcombine.low %v960, %v974
    %v978 = vcombine.high %v960, %v974
    %v980 = vunpack.c.l.s4 1966171168
    %v981 = vunpack.c.0.s8 %v980
    %v982 = vlaneseq
    %v983 = vshrl.u32 %v982, 7
    %v984 = vsub.s32 %v981, %v983
    %v985 = vrot.slane %v975, %v984
    %v987 = vunpack.c.l.s4 1966171168
    %v988 = vunpack.c.0.s8 %v987
    %v989 = vlaneseq
    %v990 = vshrl.u32 %v989, 7
    %v991 = vsub.s32 %v988, %v990
    %v992 = vrot.slane %v977, %v991
    %v994 = vunpack.c.l.s4 1966171168
    %v995 = vunpack.c.0.s8 %v994
    %v996 = vlaneseq
    %v997 = vshrl.u32 %v996, 7
    %v998 = vsub.s32 %v995, %v997
    %v999 = vrot.slane %v976, %v998
    %v1001 = vunpack.c.l.s4 1966171168
    %v1002 = vunpack.c.0.s8 %v1001
    %v1003 = vlaneseq
    %v1004 = vshrl.u32 %v1003, 7
    %v1005 = vsub.s32 %v1002, %v1004
    %v1006 = vrot.slane %v978, %v1005
    %v1007 = vcombine.high %v985, %v985
    %v1008 = vcombine.high %v992, %v992
    %v1009 = vcombine.high %v999, %v999
    %v1010 = vcombine.high %v1006, %v1006
    %v1011 = vcombine.low %v29, %v32
    %v1012 = vcombine.high %v29, %v32
    %v1013 = vcombine.low %v35, %v38
    %v1014 = vcombine.high %v35, %v38
    %v1016 = vunpack.c.l.s4 1966171168
    %v1017 = vunpack.c.0.s8 %v1016
    %v1018 = vlaneseq
    %v1019 = vshrl.u32 %v1018, 7
    %v1020 = vsub.s32 %v1017, %v1019
    %v1021 = vrot.slane %v1011, %v1020
    %v1023 = vunpack.c.l.s4 1966171168
    %v1024 = vunpack.c.0.s8 %v1023
    %v1025 = vlaneseq
    %v1026 = vshrl.u32 %v1025, 7
    %v1027 = vsub.s32 %v1024, %v1026
    %v1028 = vrot.slane %v1012, %v1027
    %v1030 = vunpack.c.l.s4 1966171168
    %v1031 = vunpack.c.0.s8 %v1030
    %v1032 = vlaneseq
    %v1033 = vshrl.u32 %v1032, 7
    %v1034 = vsub.s32 %v1031, %v1033
    %v1035 = vrot.slane %v1013, %v1034
    %v1037 = vunpack.c.l.s4 1966171168
    %v1038 = vunpack.c.0.s8 %v1037
    %v1039 = vlaneseq
    %v1040 = vshrl.u32 %v1039, 7
    %v1041 = vsub.s32 %v1038, %v1040
    %v1042 = vrot.slane %v1014, %v1041
    %v1043 = vcombine.low %v1021, %v1035
    %v1044 = vcombine.high %v1021, %v1035
    %v1045 = vcombine.low %v1028, %v1042
    %v1046 = vcombine.high %v1028, %v1042
    %v1048 = vunpack.c.l.s4 1966171168
    %v1049 = vunpack.c.0.s8 %v1048
    %v1050 = vlaneseq
    %v1051 = vshrl.u32 %v1050, 7
    %v1052 = vsub.s32 %v1049, %v1051
    %v1053 = vrot.slane %v1043, %v1052
    %v1055 = vunpack.c.l.s4 1966171168
    %v1056 = vunpack.c.0.s8 %v1055
    %v1057 = vlaneseq
    %v1058 = vshrl.u32 %v1057, 7
    %v1059 = vsub.s32 %v1056, %v1058
    %v1060 = vrot.slane %v1045, %v1059
    %v1062 = vunpack.c.l.s4 1966171168
    %v1063 = vunpack.c.0.s8 %v1062
    %v1064 = vlaneseq
    %v1065 = vshrl.u32 %v1064, 7
    %v1066 = vsub.s32 %v1063, %v1065
    %v1067 = vrot.slane %v1044, %v1066
    %v1069 = vunpack.c.l.s4 1966171168
    %v1070 = vunpack.c.0.s8 %v1069
    %v1071 = vlaneseq
    %v1072 = vshrl.u32 %v1071, 7
    %v1073 = vsub.s32 %v1070, %v1072
    %v1074 = vrot.slane %v1046, %v1073
    %v1075 = vcombine.high %v1053, %v1053
    %v1076 = vcombine.high %v1060, %v1060
    %v1077 = vcombine.high %v1067, %v1067
    %v1078 = vcombine.high %v1074, %v1074
    %v1079 = vcombine.low %v30, %v33
    %v1080 = vcombine.low %v36, %v39
    %v1082 = vunpack.c.l.s4 1966171168
    %v1083 = vunpack.c.0.s8 %v1082
    %v1084 = vlaneseq
    %v1085 = vshrl.u32 %v1084, 7
    %v1086 = vsub.s32 %v1083, %v1085
    %v1087 = vrot.slane %v1079, %v1086
    %v1089 = vunpack.c.l.s4 1966171168
    %v1090 = vunpack.c.0.s8 %v1089
    %v1091 = vlaneseq
    %v1092 = vshrl.u32 %v1091, 7
    %v1093 = vsub.s32 %v1090, %v1092
    %v1094 = vrot.slane %v1080, %v1093
    %v1095 = vcombine.low %v1087, %v1094
    %v1096 = vcombine.high %v1087, %v1094
    %v1098 = vunpack.c.l.s4 1966171168
    %v1099 = vunpack.c.0.s8 %v1098
    %v1100 = vlaneseq
    %v1101 = vshrl.u32 %v1100, 7
    %v1102 = vsub.s32 %v1099, %v1101
    %v1103 = vrot.slane %v1095, %v1102
    %v1105 = vunpack.c.l.s4 1966171168
    %v1106 = vunpack.c.0.s8 %v1105
    %v1107 = vlaneseq
    %v1108 = vshrl.u32 %v1107, 7
    %v1109 = vsub.s32 %v1106, %v1108
    %v1110 = vrot.slane %v1096, %v1109
    %v1993 = vunpack.c.l.b16 %v40
    %v1994 = vunpack.c.h.b16 %v40
    %v1995 = vunpack.c.l.b16 %v41
    %v1996 = vunpack.c.h.b16 %v41
    %v1997 = vunpack.c.l.b16 %v42
    %v1998 = vunpack.c.l.b16 %v43
    %v1999 = vunpack.c.h.b16 %v43
    %v2000 = vunpack.c.l.b16 %v44
    %v2001 = vunpack.c.h.b16 %v44
    %v2002 = vunpack.c.l.b16 %v45
    %v2003 = vunpack.c.l.b16 %v46
    %v2004 = vunpack.c.h.b16 %v46
    %v2005 = vunpack.c.l.b16 %v47
    %v2006 = vunpack.c.h.b16 %v47
    %v2007 = vunpack.c.l.b16 %v48
    %v2008 = vunpack.c.l.b16 %v49
    %v2009 = vunpack.c.h.b16 %v49
    %v2010 = vunpack.c.l.b16 %v50
    %v2011 = vunpack.c.h.b16 %v50
    %v2012 = vunpack.c.l.b16 %v51
    %v2013 = vunpack.c.l.b16 %v52
    %v2014 = vunpack.c.h.b16 %v52
    %v2015 = vunpack.c.l.b16 %v53
    %v2016 = vunpack.c.h.b16 %v53
    %v2017 = vunpack.c.l.b16 %v54
    %v2018 = vunpack.c.l.b16 %v55
    %v2019 = vunpack.c.h.b16 %v55
    %v2020 = vunpack.c.l.b16 %v56
    %v2021 = vunpack.c.h.b16 %v56
    %v2022 = vunpack.c.l.b16 %v57
    %v2023 = vunpack.c.l.b16 %v58
    %v2024 = vunpack.c.h.b16 %v58
    %v2025 = vunpack.c.l.b16 %v59
    %v2026 = vunpack.c.h.b16 %v59
    %v2027 = vunpack.c.l.b16 %v60
    %v2028 = vunpack.c.l.b16 %v61
    %v2029 = vunpack.c.h.b16 %v61
    %v2030 = vunpack.c.l.b16 %v62
    %v2031 = vunpack.c.h.b16 %v62
    %v2032 = vunpack.c.l.b16 %v63
    %v2033 = vunpack.c.l.b16 %v64
    %v2034 = vunpack.c.h.b16 %v64
    %v2035 = vunpack.c.l.b16 %v65
    %v2036 = vunpack.c.h.b16 %v65
    %v2037 = vunpack.c.l.b16 %v66
    %v2038 = vunpack.c.l.b16 %v67
    %v2039 = vunpack.c.h.b16 %v67
    %v2040 = vunpack.c.l.b16 %v68
    %v2041 = vunpack.c.h.b16 %v68
    %v2042 = vunpack.c.l.b16 %v69
    %v2043 = vunpack.c.l.b16 %v70
    %v2044 = vunpack.c.h.b16 %v70
    %v2045 = vunpack.c.l.b16 %v71
    %v2046 = vunpack.c.h.b16 %v71
    %v2047 = vunpack.c.l.b16 %v72
    %v2048 = vunpack.c.l.b16 %v73
    %v2049 = vunpack.c.h.b16 %v73
    %v2050 = vunpack.c.l.b16 %v74
    %v2051 = vunpack.c.h.b16 %v74
    %v2052 = vunpack.c.l.b16 %v75
    %v2053 = vunpack.c.l.b16 %v76
    %v2054 = vunpack.c.h.b16 %v76
    %v2055 = vunpack.c.l.b16 %v77
    %v2056 = vunpack.c.h.b16 %v77
    %v2057 = vunpack.c.l.b16 %v78
    %v2058 = vunpack.c.l.b16 %v79
    %v2059 = vunpack.c.h.b16 %v79
    %v2060 = vunpack.c.l.b16 %v80
    %v2061 = vunpack.c.h.b16 %v80
    %v2062 = vunpack.c.l.b16 %v81
    %v2063 = vunpack.c.l.b16 %v82
    %v2064 = vunpack.c.h.b16 %v82
    %v2065 = vunpack.c.l.b16 %v83
    %v2066 = vunpack.c.h.b16 %v83
    %v2067 = vunpack.c.l.b16 %v84
    %v2068 = vunpack.c.l.b16 %v85
    %v2069 = vunpack.c.h.b16 %v85
    %v2070 = vunpack.c.l.b16 %v86
    %v2071 = vunpack.c.h.b16 %v86
    %v2072 = vunpack.c.l.b16 %v87
    %v2073 = vunpack.c.l.b16 %v88
    %v2074 = vunpack.c.h.b16 %v88
    %v2075 = vunpack.c.l.b16 %v89
    %v2076 = vunpack.c.h.b16 %v89
    %v2077 = vunpack.c.l.b16 %v90
    %v2078 = vunpack.c.l.b16 %v91
    %v2079 = vunpack.c.h.b16 %v91
    %v2080 = vunpack.c.l.b16 %v92
    %v2081 = vunpack.c.h.b16 %v92
    %v2082 = vunpack.c.l.b16 %v93
    %v2083 = vunpack.c.l.b16 %v94
    %v2084 = vunpack.c.h.b16 %v94
    %v2085 = vunpack.c.l.b16 %v95
    %v2086 = vunpack.c.h.b16 %v95
    %v2087 = vunpack.c.l.b16 %v96
    %v2088 = vunpack.c.l.b16 %v97
    %v2089 = vunpack.c.h.b16 %v97
    %v2090 = vunpack.c.l.b16 %v98
    %v2091 = vunpack.c.h.b16 %v98
    %v2092 = vunpack.c.l.b16 %v99
    %v2093 = vunpack.c.l.b16 %v100
    %v2094 = vunpack.c.h.b16 %v100
    %v2095 = vunpack.c.l.b16 %v101
    %v2096 = vunpack.c.h.b16 %v101
    %v2097 = vunpack.c.l.b16 %v102
    %v2098 = vunpack.c.l.b16 %v103
    %v2099 = vunpack.c.h.b16 %v103
    %v2100 = vunpack.c.l.b16 %v104
    %v2101 = vunpack.c.h.b16 %v104
    %v2102 = vunpack.c.l.b16 %v105
    %v2103 = vunpack.c.l.b16 %v106
    %v2104 = vunpack.c.h.b16 %v106
    %v2105 = vunpack.c.l.b16 %v107
    %v2106 = vunpack.c.h.b16 %v107
    %v2107 = vunpack.c.l.b16 %v108
    %v2108 = vunpack.c.l.b16 %v109
    %v2109 = vunpack.c.h.b16 %v109
    %v2110 = vunpack.c.l.b16 %v110
    %v2111 = vunpack.c.h.b16 %v110
    %v2112 = vunpack.c.l.b16 %v111
    %v2113 = vunpack.c.l.b16 %v112
    %v2114 = vunpack.c.h.b16 %v112
    %v2115 = vunpack.c.l.b16 %v113
    %v2116 = vunpack.c.h.b16 %v113
    %v2117 = vunpack.c.l.b16 %v114
    %v2118 = vunpack.c.l.b16 %v115
    %v2119 = vunpack.c.h.b16 %v115
    %v2120 = vunpack.c.l.b16 %v116
    %v2121 = vunpack.c.h.b16 %v116
    %v2122 = vunpack.c.l.b16 %v117
    %v2123 = vunpack.c.l.b16 %v118
    %v2124 = vunpack.c.h.b16 %v118
    %v2125 = vunpack.c.l.b16 %v119
    %v2126 = vunpack.c.h.b16 %v119
    %v2127 = vunpack.c.l.b16 %v120
    %v2128 = vunpack.c.l.b16 %v121
    %v2129 = vunpack.c.h.b16 %v121
    %v2130 = vunpack.c.l.b16 %v122
    %v2131 = vunpack.c.h.b16 %v122
    %v2132 = vunpack.c.l.b16 %v123
    %v2133 = vunpack.c.l.b16 %v124
    %v2134 = vunpack.c.h.b16 %v124
    %v2135 = vunpack.c.l.b16 %v125
    %v2136 = vunpack.c.h.b16 %v125
    %v2137 = vunpack.c.l.b16 %v126
    %v2138 = vunpack.c.l.b16 %v127
    %v2139 = vunpack.c.h.b16 %v127
    %v2140 = vunpack.c.l.b16 %v128
    %v2141 = vunpack.c.h.b16 %v128
    %v2142 = vunpack.c.l.b16 %v129
    %v2143 = vunpack.c.l.b16 %v130
    %v2144 = vunpack.c.h.b16 %v130
    %v2145 = vunpack.c.l.b16 %v131
    %v2146 = vunpack.c.h.b16 %v131
    %v2147 = vunpack.c.l.b16 %v132
    %v2148 = vunpack.c.l.b16 %v133
    %v2149 = vunpack.c.h.b16 %v133
    %v2150 = vunpack.c.l.b16 %v134
    %v2151 = vunpack.c.h.b16 %v134
    %v2152 = vunpack.c.l.b16 %v135
    %v2153 = vunpack.c.l.b16 %v136
    %v2154 = vunpack.c.h.b16 %v136
    %v2155 = vunpack.c.l.b16 %v137
    %v2156 = vunpack.c.h.b16 %v137
    %v2157 = vunpack.c.l.b16 %v138
    %v2158 = vunpack.c.l.b16 %v139
    %v2159 = vunpack.c.h.b16 %v139
    %v2160 = vunpack.c.l.b16 %v140
    %v2161 = vunpack.c.h.b16 %v140
    %v2162 = vunpack.c.l.b16 %v141
    %v2163 = vunpack.c.l.b16 %v142
    %v2164 = vunpack.c.h.b16 %v142
    %v2165 = vunpack.c.l.b16 %v143
    %v2166 = vunpack.c.h.b16 %v143
    %v2167 = vunpack.c.l.b16 %v144
    %v2168 = vunpack.c.l.b16 %v145
    %v2169 = vunpack.c.h.b16 %v145
    %v2170 = vunpack.c.l.b16 %v146
    %v2171 = vunpack.c.h.b16 %v146
    %v2172 = vunpack.c.l.b16 %v147
    %v2173 = vunpack.c.l.b16 %v148
    %v2174 = vunpack.c.h.b16 %v148
    %v2175 = vunpack.c.l.b16 %v149
    %v2176 = vunpack.c.h.b16 %v149
    %v2177 = vunpack.c.l.b16 %v150
    %v2178 = vunpack.c.l.b16 %v151
    %v2179 = vunpack.c.h.b16 %v151
    %v2180 = vunpack.c.l.b16 %v152
    %v2181 = vunpack.c.h.b16 %v152
    %v2182 = vunpack.c.l.b16 %v153
    %v2183 = vunpack.c.l.b16 %v154
    %v2184 = vunpack.c.h.b16 %v154
    %v2185 = vunpack.c.l.b16 %v155
    %v2186 = vunpack.c.h.b16 %v155
    %v2187 = vunpack.c.l.b16 %v156
    %v2188 = vunpack.c.l.b16 %v157
    %v2189 = vunpack.c.h.b16 %v157
    %v2190 = vunpack.c.l.b16 %v158
    %v2191 = vunpack.c.h.b16 %v158
    %v2192 = vunpack.c.l.b16 %v159
    %v2193 = vunpack.c.l.b16 %v160
    %v2194 = vunpack.c.h.b16 %v160
    %v2195 = vunpack.c.l.b16 %v161
    %v2196 = vunpack.c.h.b16 %v161
    %v2197 = vunpack.c.l.b16 %v162
    %v2198 = vunpack.c.l.b16 %v163
    %v2199 = vunpack.c.h.b16 %v163
    %v2200 = vunpack.c.l.b16 %v164
    %v2201 = vunpack.c.h.b16 %v164
    %v2202 = vunpack.c.l.b16 %v165
    %v2203 = vunpack.c.l.b16 %v166
    %v2204 = vunpack.c.h.b16 %v166
    %v2205 = vunpack.c.l.b16 %v167
    %v2206 = vunpack.c.h.b16 %v167
    %v2207 = vunpack.c.l.b16 %v168
    %v2208 = vunpack.c.l.b16 %v169
    %v2209 = vunpack.c.h.b16 %v169
    %v2210 = vunpack.c.l.b16 %v170
    %v2211 = vunpack.c.h.b16 %v170
    %v2212 = vunpack.c.l.b16 %v171
    %v2213 = vunpack.c.l.b16 %v172
    %v2214 = vunpack.c.h.b16 %v172
    %v2215 = vunpack.c.l.b16 %v173
    %v2216 = vunpack.c.h.b16 %v173
    %v2217 = vunpack.c.l.b16 %v174
    %v2218 = vunpack.c.l.b16 %v175
    %v2219 = vunpack.c.h.b16 %v175
    %v2220 = vunpack.c.l.b16 %v176
    %v2221 = vunpack.c.h.b16 %v176
    %v2222 = vunpack.c.l.b16 %v177
    %v2223 = vunpack.c.l.b16 %v178
    %v2224 = vunpack.c.h.b16 %v178
    %v2225 = vunpack.c.l.b16 %v179
    %v2226 = vunpack.c.h.b16 %v179
    %v2227 = vunpack.c.l.b16 %v180
    %v2228 = vunpack.c.l.b16 %v181
    %v2229 = vunpack.c.h.b16 %v181
    %v2230 = vunpack.c.l.b16 %v182
    %v2231 = vunpack.c.h.b16 %v182
    %v2232 = vunpack.c.l.b16 %v183
    %v2233 = vunpack.c.l.b16 %v184
    %v2234 = vunpack.c.h.b16 %v184
    %v2235 = vunpack.c.l.b16 %v185
    %v2236 = vunpack.c.h.b16 %v185
    %v2237 = vunpack.c.l.b16 %v186
    %v2238 = vunpack.c.l.b16 %v187
    %v2239 = vunpack.c.h.b16 %v187
    %v2240 = vunpack.c.l.b16 %v188
    %v2241 = vunpack.c.h.b16 %v188
    %v2242 = vunpack.c.l.b16 %v189
    %v2243 = vunpack.c.l.b16 %v190
    %v2244 = vunpack.c.h.b16 %v190
    %v2245 = vunpack.c.l.b16 %v191
    %v2246 = vunpack.c.h.b16 %v191
    %v2247 = vunpack.c.l.b16 %v192
    %v2248 = vunpack.c.l.b16 %v193
    %v2249 = vunpack.c.h.b16 %v193
    %v2250 = vunpack.c.l.b16 %v194
    %v2251 = vunpack.c.h.b16 %v194
    %v2252 = vunpack.c.l.b16 %v195
    %v2253 = vunpack.c.l.b16 %v196
    %v2254 = vunpack.c.h.b16 %v196
    %v2255 = vunpack.c.l.b16 %v197
    %v2256 = vunpack.c.h.b16 %v197
    %v2257 = vunpack.c.l.b16 %v198
    %v2258 = vunpack.c.l.b16 %v199
    %v2259 = vunpack.c.h.b16 %v199
    %v2260 = vunpack.c.l.b16 %v200
    %v2261 = vunpack.c.h.b16 %v200
    %v2262 = vunpack.c.l.b16 %v201
    %v2263 = vunpack.c.l.b16 %v202
    %v2264 = vunpack.c.h.b16 %v202
    %v2265 = vunpack.c.l.b16 %v203
    %v2266 = vunpack.c.h.b16 %v203
    %v2267 = vunpack.c.l.b16 %v204
    %v2268 = vunpack.c.l.b16 %v205
    %v2269 = vunpack.c.h.b16 %v205
    %v2270 = vunpack.c.l.b16 %v206
    %v2271 = vunpack.c.h.b16 %v206
    %v2272 = vunpack.c.l.b16 %v207
    %v2273 = vunpack.c.l.b16 %v208
    %v2274 = vunpack.c.h.b16 %v208
    %v2275 = vunpack.c.l.b16 %v209
    %v2276 = vunpack.c.h.b16 %v209
    %v2277 = vunpack.c.l.b16 %v210
    %v2278 = vunpack.c.l.b16 %v211
    %v2279 = vunpack.c.h.b16 %v211
    %v2280 = vunpack.c.l.b16 %v212
    %v2281 = vunpack.c.h.b16 %v212
    %v2282 = vunpack.c.l.b16 %v213
    %v2283 = vunpack.c.l.b16 %v214
    %v2284 = vunpack.c.h.b16 %v214
    %v2285 = vunpack.c.l.b16 %v215
    %v2286 = vunpack.c.h.b16 %v215
    %v2287 = vunpack.c.l.b16 %v216
    %v2288 = vunpack.c.l.b16 %v217
    %v2289 = vunpack.c.h.b16 %v217
    %v2290 = vunpack.c.l.b16 %v218
    %v2291 = vunpack.c.h.b16 %v218
    %v2292 = vunpack.c.l.b16 %v219
    %v2293 = vunpack.c.l.b16 %v220
    %v2294 = vunpack.c.h.b16 %v220
    %v2295 = vunpack.c.l.b16 %v221
    %v2296 = vunpack.c.h.b16 %v221
    %v2297 = vunpack.c.l.b16 %v222
    %v2298 = vunpack.c.l.b16 %v223
    %v2299 = vunpack.c.h.b16 %v223
    %v2300 = vunpack.c.l.b16 %v224
    %v2301 = vunpack.c.h.b16 %v224
    %v2302 = vunpack.c.l.b16 %v225
    %v2303 = vunpack.c.l.b16 %v226
    %v2304 = vunpack.c.h.b16 %v226
    %v2305 = vunpack.c.l.b16 %v227
    %v2306 = vunpack.c.h.b16 %v227
    %v2307 = vunpack.c.l.b16 %v228
    %v2308 = vunpack.c.l.b16 %v229
    %v2309 = vunpack.c.h.b16 %v229
    %v2310 = vunpack.c.l.b16 %v230
    %v2311 = vunpack.c.h.b16 %v230
    %v2312 = vunpack.c.l.b16 %v231
    %v2313 = vunpack.c.l.b16 %v232
    %v2314 = vunpack.c.h.b16 %v232
    %v2315 = vunpack.c.l.b16 %v233
    %v2316 = vunpack.c.h.b16 %v233
    %v2317 = vunpack.c.l.b16 %v234
    %v2318 = vunpack.c.l.b16 %v235
    %v2319 = vunpack.c.h.b16 %v235
    %v2320 = vunpack.c.l.b16 %v236
    %v2321 = vunpack.c.h.b16 %v236
    %v2322 = vunpack.c.l.b16 %v237
    %v2323 = vunpack.c.l.b16 %v238
    %v2324 = vunpack.c.h.b16 %v238
    %v2325 = vunpack.c.l.b16 %v239
    %v2326 = vunpack.c.h.b16 %v239
    %v2327 = vunpack.c.l.b16 %v240
    %v2328 = vunpack.c.l.b16 %v241
    %v2329 = vunpack.c.h.b16 %v241
    %v2330 = vunpack.c.l.b16 %v242
    %v2331 = vunpack.c.h.b16 %v242
    %v2332 = vunpack.c.l.b16 %v243
    %v2333 = vunpack.c.l.b16 %v244
    %v2334 = vunpack.c.h.b16 %v244
    %v2335 = vunpack.c.l.b16 %v245
    %v2336 = vunpack.c.h.b16 %v245
    %v2337 = vunpack.c.l.b16 %v246
    %v2338 = vunpack.c.l.b16 %v247
    %v2339 = vunpack.c.h.b16 %v247
    %v2340 = vunpack.c.l.b16 %v248
    %v2341 = vunpack.c.h.b16 %v248
    %v2342 = vunpack.c.l.b16 %v249
    %v2343 = vunpack.c.l.b16 %v250
    %v2344 = vunpack.c.h.b16 %v250
    %v2345 = vunpack.c.l.b16 %v251
    %v2346 = vunpack.c.h.b16 %v251
    %v2347 = vunpack.c.l.b16 %v252
    %v2348 = vunpack.c.l.b16 %v253
    %v2349 = vunpack.c.h.b16 %v253
    %v2350 = vunpack.c.l.b16 %v254
    %v2351 = vunpack.c.h.b16 %v254
    %v2352 = vunpack.c.l.b16 %v255
    %v2353 = vunpack.c.l.b16 %v256
    %v2354 = vunpack.c.h.b16 %v256
    %v2355 = vunpack.c.l.b16 %v257
    %v2356 = vunpack.c.h.b16 %v257
    %v2357 = vunpack.c.l.b16 %v258
    %v2358 = vunpack.c.l.b16 %v259
    %v2359 = vunpack.c.h.b16 %v259
    %v2360 = vunpack.c.l.b16 %v260
    %v2361 = vunpack.c.h.b16 %v260
    %v2362 = vunpack.c.l.b16 %v261
    %v2363 = vunpack.c.l.b16 %v262
    %v2364 = vunpack.c.h.b16 %v262
    %v2365 = vunpack.c.l.b16 %v263
    %v2366 = vunpack.c.h.b16 %v263
    %v2367 = vunpack.c.l.b16 %v264
    %v2368 = vunpack.c.l.b16 %v265
    %v2369 = vunpack.c.h.b16 %v265
    %v2370 = vunpack.c.l.b16 %v266
    %v2371 = vunpack.c.h.b16 %v266
    %v2372 = vunpack.c.l.b16 %v267
    %v2373 = vunpack.c.l.b16 %v268
    %v2374 = vunpack.c.h.b16 %v268
    %v2375 = vunpack.c.l.b16 %v269
    %v2376 = vunpack.c.h.b16 %v269
    %v2377 = vunpack.c.l.b16 %v270
    %v2378 = vunpack.c.l.b16 %v271
    %v2379 = vunpack.c.h.b16 %v271
    %v2380 = vunpack.c.l.b16 %v272
    %v2381 = vunpack.c.h.b16 %v272
    %v2382 = vunpack.c.l.b16 %v273
    %v2383 = vunpack.c.l.b16 %v274
    %v2384 = vunpack.c.h.b16 %v274
    %v2385 = vunpack.c.l.b16 %v275
    %v2386 = vunpack.c.h.b16 %v275
    %v2387 = vunpack.c.l.b16 %v276
    %v2388 = vunpack.c.l.b16 %v277
    %v2389 = vunpack.c.h.b16 %v277
    %v2390 = vunpack.c.l.b16 %v278
    %v2391 = vunpack.c.h.b16 %v278
    %v2392 = vunpack.c.l.b16 %v279
    %v2393 = vunpack.c.l.b16 %v280
    %v2394 = vunpack.c.h.b16 %v280
    %v2395 = vunpack.c.l.b16 %v281
    %v2396 = vunpack.c.h.b16 %v281
    %v2397 = vunpack.c.l.b16 %v282
    %v2398 = vunpack.c.l.b16 %v283
    %v2399 = vunpack.c.h.b16 %v283
    %v2400 = vunpack.c.l.b16 %v284
    %v2401 = vunpack.c.h.b16 %v284
    %v2402 = vunpack.c.l.b16 %v285
    %v2403 = vunpack.c.l.b16 %v286
    %v2404 = vunpack.c.h.b16 %v286
    %v2405 = vunpack.c.l.b16 %v287
    %v2406 = vunpack.c.h.b16 %v287
    %v2407 = vunpack.c.l.b16 %v288
    %v2408 = vunpack.c.l.b16 %v289
    %v2409 = vunpack.c.h.b16 %v289
    %v2410 = vunpack.c.l.b16 %v290
    %v2411 = vunpack.c.h.b16 %v290
    %v2412 = vunpack.c.l.b16 %v291
    %v2413 = vunpack.c.l.b16 %v292
    %v2414 = vunpack.c.h.b16 %v292
    %v2415 = vunpack.c.l.b16 %v293
    %v2416 = vunpack.c.h.b16 %v293
    %v2417 = vunpack.c.l.b16 %v294
    %v2418 = vunpack.c.l.b16 %v295
    %v2419 = vunpack.c.h.b16 %v295
    %v2420 = vunpack.c.l.b16 %v296
    %v2421 = vunpack.c.h.b16 %v296
    %v2422 = vunpack.c.l.b16 %v297
    %v2423 = vunpack.c.l.b16 %v298
    %v2424 = vunpack.c.h.b16 %v298
    %v2425 = vunpack.c.l.b16 %v299
    %v2426 = vunpack.c.h.b16 %v299
    %v2427 = vunpack.c.l.b16 %v300
    %v2428 = vunpack.c.l.b16 %v301
    %v2429 = vunpack.c.h.b16 %v301
    %v2430 = vunpack.c.l.b16 %v302
    %v2431 = vunpack.c.h.b16 %v302
    %v2432 = vunpack.c.l.b16 %v303
    %v2433 = vunpack.c.l.b16 %v304
    %v2434 = vunpack.c.h.b16 %v304
    %v2435 = vunpack.c.l.b16 %v305
    %v2436 = vunpack.c.h.b16 %v305
    %v2437 = vunpack.c.l.b16 %v306
    %v2438 = vunpack.c.l.b16 %v307
    %v2439 = vunpack.c.h.b16 %v307
    %v2440 = vunpack.c.l.b16 %v308
    %v2441 = vunpack.c.h.b16 %v308
    %v2442 = vunpack.c.l.b16 %v309
    %v2443 = vunpack.c.l.b16 %v310
    %v2444 = vunpack.c.h.b16 %v310
    %v2445 = vunpack.c.l.b16 %v311
    %v2446 = vunpack.c.h.b16 %v311
    %v2447 = vunpack.c.l.b16 %v312
    %v2448 = vunpack.c.l.b16 %v313
    %v2449 = vunpack.c.h.b16 %v313
    %v2450 = vunpack.c.l.b16 %v314
    %v2451 = vunpack.c.h.b16 %v314
    %v2452 = vunpack.c.l.b16 %v315
    %v2453 = vunpack.c.l.b16 %v316
    %v2454 = vunpack.c.h.b16 %v316
    %v2455 = vunpack.c.l.b16 %v317
    %v2456 = vunpack.c.h.b16 %v317
    %v2457 = vunpack.c.l.b16 %v318
    %v2458 = vunpack.c.l.b16 %v319
    %v2459 = vunpack.c.h.b16 %v319
    %v2460 = vunpack.c.l.b16 %v320
    %v2461 = vunpack.c.h.b16 %v320
    %v2462 = vunpack.c.l.b16 %v321
    %v2463 = vunpack.c.l.b16 %v322
    %v2464 = vunpack.c.h.b16 %v322
    %v2465 = vunpack.c.l.b16 %v323
    %v2466 = vunpack.c.h.b16 %v323
    %v2467 = vunpack.c.l.b16 %v324
    %v2468 = vunpack.c.l.b16 %v325
    %v2469 = vunpack.c.h.b16 %v325
    %v2470 = vunpack.c.l.b16 %v326
    %v2471 = vunpack.c.h.b16 %v326
    %v2472 = vunpack.c.l.b16 %v327
    %v2473 = vunpack.c.l.b16 %v328
    %v2474 = vunpack.c.h.b16 %v328
    %v2475 = vunpack.c.l.b16 %v329
    %v2476 = vunpack.c.h.b16 %v329
    %v2477 = vunpack.c.l.b16 %v330
    %v2478 = vunpack.c.l.b16 %v331
    %v2479 = vunpack.c.h.b16 %v331
    %v2480 = vunpack.c.l.b16 %v332
    %v2481 = vunpack.c.h.b16 %v332
    %v2482 = vunpack.c.l.b16 %v333
    %v2483 = vunpack.c.l.b16 %v334
    %v2484 = vunpack.c.h.b16 %v334
    %v2485 = vunpack.c.l.b16 %v335
    %v2486 = vunpack.c.h.b16 %v335
    %v2487 = vunpack.c.l.b16 %v336
    %v2488 = vunpack.c.l.b16 %v337
    %v2489 = vunpack.c.h.b16 %v337
    %v2490 = vunpack.c.l.b16 %v338
    %v2491 = vunpack.c.h.b16 %v338
    %v2492 = vunpack.c.l.b16 %v339
    %v2493 = vunpack.c.l.b16 %v340
    %v2494 = vunpack.c.h.b16 %v340
    %v2495 = vunpack.c.l.b16 %v341
    %v2496 = vunpack.c.h.b16 %v341
    %v2497 = vunpack.c.l.b16 %v342
    %v2498 = vunpack.c.l.b16 %v343
    %v2499 = vunpack.c.h.b16 %v343
    %v2500 = vunpack.c.l.b16 %v344
    %v2501 = vunpack.c.h.b16 %v344
    %v2502 = vunpack.c.l.b16 %v345
    %v2503 = vunpack.c.l.b16 %v346
    %v2504 = vunpack.c.h.b16 %v346
    %v2505 = vunpack.c.l.b16 %v347
    %v2506 = vunpack.c.h.b16 %v347
    %v2507 = vunpack.c.l.b16 %v348
    %v2508 = vunpack.c.l.b16 %v349
    %v2509 = vunpack.c.h.b16 %v349
    %v2510 = vunpack.c.l.b16 %v350
    %v2511 = vunpack.c.h.b16 %v350
    %v2512 = vunpack.c.l.b16 %v351
    %v2513 = vunpack.c.l.b16 %v352
    %v2514 = vunpack.c.h.b16 %v352
    %v2515 = vunpack.c.l.b16 %v353
    %v2516 = vunpack.c.h.b16 %v353
    %v2517 = vunpack.c.l.b16 %v354
    %v2518 = vunpack.c.l.b16 %v355
    %v2519 = vunpack.c.h.b16 %v355
    %v2520 = vunpack.c.l.b16 %v356
    %v2521 = vunpack.c.h.b16 %v356
    %v2522 = vunpack.c.l.b16 %v357
    %v2523 = vunpack.c.l.b16 %v358
    %v2524 = vunpack.c.h.b16 %v358
    %v2525 = vunpack.c.l.b16 %v359
    %v2526 = vunpack.c.h.b16 %v359
    %v2527 = vunpack.c.l.b16 %v360
    %v2528 = vunpack.c.l.b16 %v361
    %v2529 = vunpack.c.h.b16 %v361
    %v2530 = vunpack.c.l.b16 %v362
    %v2531 = vunpack.c.h.b16 %v362
    %v2532 = vunpack.c.l.b16 %v363
    %v2533 = vunpack.c.l.b16 %v364
    %v2534 = vunpack.c.h.b16 %v364
    %v2535 = vunpack.c.l.b16 %v365
    %v2536 = vunpack.c.h.b16 %v365
    %v2537 = vunpack.c.l.b16 %v366
    %v2538 = vunpack.c.l.b16 %v367
    %v2539 = vunpack.c.h.b16 %v367
    %v2540 = vunpack.c.l.b16 %v368
    %v2541 = vunpack.c.h.b16 %v368
    %v2542 = vunpack.c.l.b16 %v369
    %v2543 = vunpack.c.l.b16 %v370
    %v2544 = vunpack.c.h.b16 %v370
    %v2545 = vunpack.c.l.b16 %v371
    %v2546 = vunpack.c.h.b16 %v371
    %v2547 = vunpack.c.l.b16 %v372
    %v2548 = vunpack.c.l.b16 %v373
    %v2549 = vunpack.c.h.b16 %v373
    %v2550 = vunpack.c.l.b16 %v374
    %v2551 = vunpack.c.h.b16 %v374
    %v2552 = vunpack.c.l.b16 %v375
    %v2553 = vunpack.c.l.b16 %v376
    %v2554 = vunpack.c.h.b16 %v376
    %v2555 = vunpack.c.l.b16 %v377
    %v2556 = vunpack.c.h.b16 %v377
    %v2557 = vunpack.c.l.b16 %v378
    %v2558 = vunpack.c.l.b16 %v379
    %v2559 = vunpack.c.h.b16 %v379
    %v2560 = vunpack.c.l.b16 %v380
    %v2561 = vunpack.c.h.b16 %v380
    %v2562 = vunpack.c.l.b16 %v381
    %v2563 = vunpack.c.l.b16 %v382
    %v2564 = vunpack.c.h.b16 %v382
    %v2565 = vunpack.c.l.b16 %v383
    %v2566 = vunpack.c.h.b16 %v383
    %v2567 = vunpack.c.l.b16 %v384
    %v2568 = vunpack.c.l.b16 %v385
    %v2569 = vunpack.c.h.b16 %v385
    %v2570 = vunpack.c.l.b16 %v386
    %v2571 = vunpack.c.h.b16 %v386
    %v2572 = vunpack.c.l.b16 %v387
    %v2573 = vunpack.c.l.b16 %v388
    %v2574 = vunpack.c.h.b16 %v388
    %v2575 = vunpack.c.l.b16 %v389
    %v2576 = vunpack.c.h.b16 %v389
    %v2577 = vunpack.c.l.b16 %v390
    %v2578 = vunpack.c.l.b16 %v391
    %v2579 = vunpack.c.h.b16 %v391
    %v2580 = vunpack.c.l.b16 %v392
    %v2581 = vunpack.c.h.b16 %v392
    %v2582 = vunpack.c.l.b16 %v393
    %v2583 = vunpack.c.l.b16 %v394
    %v2584 = vunpack.c.h.b16 %v394
    %v2585 = vunpack.c.l.b16 %v395
    %v2586 = vunpack.c.h.b16 %v395
    %v2587 = vunpack.c.l.b16 %v396
    %v2588 = vunpack.c.l.b16 %v397
    %v2589 = vunpack.c.h.b16 %v397
    %v2590 = vunpack.c.l.b16 %v398
    %v2591 = vunpack.c.h.b16 %v398
    %v2592 = vunpack.c.l.b16 %v399
    %v2593 = vunpack.c.l.b16 %v400
    %v2594 = vunpack.c.h.b16 %v400
    %v2595 = vunpack.c.l.b16 %v401
    %v2596 = vunpack.c.h.b16 %v401
    %v2597 = vunpack.c.l.b16 %v402
    %v2598 = vunpack.c.l.b16 %v403
    %v2599 = vunpack.c.h.b16 %v403
    %v2600 = vunpack.c.l.b16 %v404
    %v2601 = vunpack.c.h.b16 %v404
    %v2602 = vunpack.c.l.b16 %v405
    %v2603 = vunpack.c.l.b16 %v406
    %v2604 = vunpack.c.h.b16 %v406
    %v2605 = vunpack.c.l.b16 %v407
    %v2606 = vunpack.c.h.b16 %v407
    %v2607 = vunpack.c.l.b16 %v408
    %v2608 = vunpack.c.l.b16 %v409
    %v2609 = vunpack.c.h.b16 %v409
    %v2610 = vunpack.c.l.b16 %v410
    %v2611 = vunpack.c.h.b16 %v410
    %v2612 = vunpack.c.l.b16 %v411
    %v2613 = vunpack.c.l.b16 %v412
    %v2614 = vunpack.c.h.b16 %v412
    %v2615 = vunpack.c.l.b16 %v413
    %v2616 = vunpack.c.h.b16 %v413
    %v2617 = vunpack.c.l.b16 %v414
    %v2618 = vunpack.c.l.b16 %v415
    %v2619 = vunpack.c.h.b16 %v415
    %v2620 = vunpack.c.l.b16 %v416
    %v2621 = vunpack.c.h.b16 %v416
    %v2622 = vunpack.c.l.b16 %v417
    %v2623 = vunpack.c.l.b16 %v418
    %v2624 = vunpack.c.h.b16 %v418
    %v2625 = vunpack.c.l.b16 %v419
    %v2626 = vunpack.c.h.b16 %v419
    %v2627 = vunpack.c.l.b16 %v420
    %v2628 = vunpack.c.l.b16 %v421
    %v2629 = vunpack.c.h.b16 %v421
    %v2630 = vunpack.c.l.b16 %v422
    %v2631 = vunpack.c.h.b16 %v422
    %v2632 = vunpack.c.l.b16 %v423
    %v2633 = vunpack.c.l.b16 %v424
    %v2634 = vunpack.c.h.b16 %v424
    %v2635 = vunpack.c.l.b16 %v425
    %v2636 = vunpack.c.h.b16 %v425
    %v2637 = vunpack.c.l.b16 %v426
    %v2638 = vunpack.c.l.b16 %v427
    %v2639 = vunpack.c.h.b16 %v427
    %v2640 = vunpack.c.l.b16 %v428
    %v2641 = vunpack.c.h.b16 %v428
    %v2642 = vunpack.c.l.b16 %v429
    %v2643 = vunpack.c.l.b16 %v430
    %v2644 = vunpack.c.h.b16 %v430
    %v2645 = vunpack.c.l.b16 %v431
    %v2646 = vunpack.c.h.b16 %v431
    %v2647 = vunpack.c.l.b16 %v432
    %v2648 = vunpack.c.l.b16 %v433
    %v2649 = vunpack.c.h.b16 %v433
    %v2650 = vunpack.c.l.b16 %v434
    %v2651 = vunpack.c.h.b16 %v434
    %v2652 = vunpack.c.l.b16 %v435
    %v2653 = vunpack.c.l.b16 %v436
    %v2654 = vunpack.c.h.b16 %v436
    %v2655 = vunpack.c.l.b16 %v437
    %v2656 = vunpack.c.h.b16 %v437
    %v2657 = vunpack.c.l.b16 %v438
    %v2658 = vunpack.c.l.b16 %v439
    %v2659 = vunpack.c.h.b16 %v439
    %v2660 = vunpack.c.l.b16 %v440
    %v2661 = vunpack.c.h.b16 %v440
    %v2662 = vunpack.c.l.b16 %v441
    %v2663 = vunpack.c.l.b16 %v442
    %v2664 = vunpack.c.h.b16 %v442
    %v2665 = vunpack.c.l.b16 %v443
    %v2666 = vunpack.c.h.b16 %v443
    %v2667 = vunpack.c.l.b16 %v444
    %v2668 = vunpack.c.l.b16 %v445
    %v2669 = vunpack.c.h.b16 %v445
    %v2670 = vunpack.c.l.b16 %v446
    %v2671 = vunpack.c.h.b16 %v446
    %v2672 = vunpack.c.l.b16 %v447
    %v2673 = vunpack.c.l.b16 %v448
    %v2674 = vunpack.c.h.b16 %v448
    %v2675 = vunpack.c.l.b16 %v449
    %v2676 = vunpack.c.h.b16 %v449
    %v2677 = vunpack.c.l.b16 %v450
    %v2678 = vunpack.c.l.b16 %v451
    %v2679 = vunpack.c.h.b16 %v451
    %v2680 = vunpack.c.l.b16 %v452
    %v2681 = vunpack.c.h.b16 %v452
    %v2682 = vunpack.c.l.b16 %v453
    %v2683 = vunpack.c.l.b16 %v454
    %v2684 = vunpack.c.h.b16 %v454
    %v2685 = vunpack.c.l.b16 %v455
    %v2686 = vunpack.c.h.b16 %v455
    %v2687 = vunpack.c.l.b16 %v456
    %v2688 = vunpack.c.l.b16 %v457
    %v2689 = vunpack.c.h.b16 %v457
    %v2690 = vunpack.c.l.b16 %v458
    %v2691 = vunpack.c.h.b16 %v458
    %v2692 = vunpack.c.l.b16 %v459
    %v2693 = vunpack.c.l.b16 %v460
    %v2694 = vunpack.c.h.b16 %v460
    %v2695 = vunpack.c.l.b16 %v461
    %v2696 = vunpack.c.h.b16 %v461
    %v2697 = vunpack.c.l.b16 %v462
    %v2698 = vunpack.c.l.b16 %v463
    %v2699 = vunpack.c.h.b16 %v463
    %v2700 = vunpack.c.l.b16 %v464
    %v2701 = vunpack.c.h.b16 %v464
    %v2702 = vunpack.c.l.b16 %v465
    %v2703 = vunpack.c.l.b16 %v466
    %v2704 = vunpack.c.h.b16 %v466
    %v2705 = vunpack.c.l.b16 %v467
    %v2706 = vunpack.c.h.b16 %v467
    %v2707 = vunpack.c.l.b16 %v468
    %v2708 = vunpack.c.l.b16 %v469
    %v2709 = vunpack.c.h.b16 %v469
    %v2710 = vunpack.c.l.b16 %v470
    %v2711 = vunpack.c.h.b16 %v470
    %v2712 = vunpack.c.l.b16 %v471
    %v2713 = vunpack.c.l.b16 %v472
    %v2714 = vunpack.c.h.b16 %v472
    %v2715 = vunpack.c.l.b16 %v473
    %v2716 = vunpack.c.h.b16 %v473
    %v2717 = vunpack.c.l.b16 %v474
    %v2718 = vunpack.c.l.b16 %v475
    %v2719 = vunpack.c.h.b16 %v475
    %v2720 = vunpack.c.l.b16 %v476
    %v2721 = vunpack.c.h.b16 %v476
    %v2722 = vunpack.c.l.b16 %v477
    %v2723 = vunpack.c.l.b16 %v478
    %v2724 = vunpack.c.h.b16 %v478
    %v2725 = vunpack.c.l.b16 %v479
    %v2726 = vunpack.c.h.b16 %v479
    %v2727 = vunpack.c.l.b16 %v480
    %v2728 = vunpack.c.l.b16 %v481
    %v2729 = vunpack.c.h.b16 %v481
    %v2730 = vunpack.c.l.b16 %v482
    %v2731 = vunpack.c.h.b16 %v482
    %v2732 = vunpack.c.l.b16 %v483
    %v2733 = vunpack.c.l.b16 %v484
    %v2734 = vunpack.c.h.b16 %v484
    %v2735 = vunpack.c.l.b16 %v485
    %v2736 = vunpack.c.h.b16 %v485
    %v2737 = vunpack.c.l.b16 %v486
    %v2738 = vunpack.c.l.b16 %v487
    %v2739 = vunpack.c.h.b16 %v487
    %v2740 = vunpack.c.l.b16 %v488
    %v2741 = vunpack.c.h.b16 %v488
    %v2742 = vunpack.c.l.b16 %v489
    %v2743 = vunpack.c.l.b16 %v490
    %v2744 = vunpack.c.h.b16 %v490
    %v2745 = vunpack.c.l.b16 %v491
    %v2746 = vunpack.c.h.b16 %v491
    %v2747 = vunpack.c.l.b16 %v492
    %v2748 = vunpack.c.l.b16 %v493
    %v2749 = vunpack.c.h.b16 %v493
    %v2750 = vunpack.c.l.b16 %v494
    %v2751 = vunpack.c.h.b16 %v494
    %v2752 = vunpack.c.l.b16 %v495
    %v2753 = vunpack.c.l.b16 %v496
    %v2754 = vunpack.c.h.b16 %v496
    %v2755 = vunpack.c.l.b16 %v497
    %v2756 = vunpack.c.h.b16 %v497
    %v2757 = vunpack.c.l.b16 %v498
    %v2758 = vunpack.c.l.b16 %v499
    %v2759 = vunpack.c.h.b16 %v499
    %v2760 = vunpack.c.l.b16 %v500
    %v2761 = vunpack.c.h.b16 %v500
    %v2762 = vunpack.c.l.b16 %v501
    %v2763 = vunpack.c.l.b16 %v502
    %v2764 = vunpack.c.h.b16 %v502
    %v2765 = vunpack.c.l.b16 %v503
    %v2766 = vunpack.c.h.b16 %v503
    %v2767 = vunpack.c.l.b16 %v504
    %v2768 = vunpack.c.l.b16 %v505
    %v2769 = vunpack.c.h.b16 %v505
    %v2770 = vunpack.c.l.b16 %v506
    %v2771 = vunpack.c.h.b16 %v506
    %v2772 = vunpack.c.l.b16 %v507
    %v2773 = vunpack.c.l.b16 %v508
    %v2774 = vunpack.c.h.b16 %v508
    %v2775 = vunpack.c.l.b16 %v509
    %v2776 = vunpack.c.h.b16 %v509
    %v2777 = vunpack.c.l.b16 %v510
    %v2778 = vunpack.c.l.b16 %v511
    %v2779 = vunpack.c.h.b16 %v511
    %v2780 = vunpack.c.l.b16 %v512
    %v2781 = vunpack.c.h.b16 %v512
    %v2782 = vunpack.c.l.b16 %v513
    %v2783 = vunpack.c.l.b16 %v514
    %v2784 = vunpack.c.h.b16 %v514
    %v2785 = vunpack.c.l.b16 %v515
    %v2786 = vunpack.c.h.b16 %v515
    %v2787 = vunpack.c.l.b16 %v516
    %v2788 = vunpack.c.l.b16 %v517
    %v2789 = vunpack.c.h.b16 %v517
    %v2790 = vunpack.c.l.b16 %v518
    %v2791 = vunpack.c.h.b16 %v518
    %v2792 = vunpack.c.l.b16 %v519
    %v2793 = vunpack.c.l.b16 %v520
    %v2794 = vunpack.c.h.b16 %v520
    %v2795 = vunpack.c.l.b16 %v521
    %v2796 = vunpack.c.h.b16 %v521
    %v2797 = vunpack.c.l.b16 %v522
    %v2798 = vunpack.c.l.b16 %v523
    %v2799 = vunpack.c.h.b16 %v523
    %v2800 = vunpack.c.l.b16 %v524
    %v2801 = vunpack.c.h.b16 %v524
    %v2802 = vunpack.c.l.b16 %v525
    %v2803 = vunpack.c.l.b16 %v526
    %v2804 = vunpack.c.h.b16 %v526
    %v2805 = vunpack.c.l.b16 %v527
    %v2806 = vunpack.c.h.b16 %v527
    %v2807 = vunpack.c.l.b16 %v528
    %v2808 = vunpack.c.l.b16 %v529
    %v2809 = vunpack.c.h.b16 %v529
    %v2810 = vunpack.c.l.b16 %v530
    %v2811 = vunpack.c.h.b16 %v530
    %v2812 = vunpack.c.l.b16 %v531
    %v2813 = vunpack.c.l.b16 %v532
    %v2814 = vunpack.c.h.b16 %v532
    %v2815 = vunpack.c.l.b16 %v533
    %v2816 = vunpack.c.h.b16 %v533
    %v2817 = vunpack.c.l.b16 %v534
    %v2818 = vunpack.c.l.b16 %v535
    %v2819 = vunpack.c.h.b16 %v535
    %v2820 = vunpack.c.l.b16 %v536
    %v2821 = vunpack.c.h.b16 %v536
    %v2822 = vunpack.c.l.b16 %v537
    %v2823 = vunpack.c.l.b16 %v538
    %v2824 = vunpack.c.h.b16 %v538
    %v2825 = vunpack.c.l.b16 %v539
    %v2826 = vunpack.c.h.b16 %v539
    %v2827 = vunpack.c.l.b16 %v540
    %v2828 = vunpack.c.l.b16 %v541
    %v2829 = vunpack.c.h.b16 %v541
    %v2830 = vunpack.c.l.b16 %v542
    %v2831 = vunpack.c.h.b16 %v542
    %v2832 = vunpack.c.l.b16 %v543
    %v2833 = vunpack.c.l.b16 %v544
    %v2834 = vunpack.c.h.b16 %v544
    %v2835 = vunpack.c.l.b16 %v545
    %v2836 = vunpack.c.h.b16 %v545
    %v2837 = vunpack.c.l.b16 %v546
    %v2838 = vunpack.c.l.b16 %v547
    %v2839 = vunpack.c.h.b16 %v547
    %v2840 = vunpack.c.l.b16 %v548
    %v2841 = vunpack.c.h.b16 %v548
    %v2842 = vunpack.c.l.b16 %v549
    %v2843 = vunpack.c.l.b16 %v550
    %v2844 = vunpack.c.h.b16 %v550
    %v2845 = vunpack.c.l.b16 %v551
    %v2846 = vunpack.c.h.b16 %v551
    %v2847 = vunpack.c.l.b16 %v552
    %v2848 = vunpack.c.l.b16 %v553
    %v2849 = vunpack.c.h.b16 %v553
    %v2850 = vunpack.c.l.b16 %v554
    %v2851 = vunpack.c.h.b16 %v554
    %v2852 = vunpack.c.l.b16 %v555
    %v2853 = vunpack.c.l.b16 %v556
    %v2854 = vunpack.c.h.b16 %v556
    %v2855 = vunpack.c.l.b16 %v557
    %v2856 = vunpack.c.h.b16 %v557
    %v2857 = vunpack.c.l.b16 %v558
    %v2858 = vunpack.c.l.b16 %v559
    %v2859 = vunpack.c.h.b16 %v559
    %v2860 = vunpack.c.l.b16 %v560
    %v2861 = vunpack.c.h.b16 %v560
    %v2862 = vunpack.c.l.b16 %v561
    %v2863 = vunpack.c.l.b16 %v562
    %v2864 = vunpack.c.h.b16 %v562
    %v2865 = vunpack.c.l.b16 %v563
    %v2866 = vunpack.c.h.b16 %v563
    %v2867 = vunpack.c.l.b16 %v564
    %v2868 = vunpack.c.l.b16 %v565
    %v2869 = vunpack.c.h.b16 %v565
    %v2870 = vunpack.c.l.b16 %v566
    %v2871 = vunpack.c.h.b16 %v566
    %v2872 = vunpack.c.l.b16 %v567
    %v2873 = vunpack.c.l.b16 %v568
    %v2874 = vunpack.c.h.b16 %v568
    %v2875 = vunpack.c.l.b16 %v569
    %v2876 = vunpack.c.h.b16 %v569
    %v2877 = vunpack.c.l.b16 %v570
    %v2878 = vunpack.c.l.b16 %v571
    %v2879 = vunpack.c.h.b16 %v571
    %v2880 = vunpack.c.l.b16 %v572
    %v2881 = vunpack.c.h.b16 %v572
    %v2882 = vunpack.c.l.b16 %v573
    %v2883 = vunpack.c.l.b16 %v574
    %v2884 = vunpack.c.h.b16 %v574
    %v2885 = vunpack.c.l.b16 %v575
    %v2886 = vunpack.c.h.b16 %v575
    %v2887 = vunpack.c.l.b16 %v576
    %v2888 = vunpack.c.l.b16 %v577
    %v2889 = vunpack.c.h.b16 %v577
    %v2890 = vunpack.c.l.b16 %v578
    %v2891 = vunpack.c.h.b16 %v578
    %v2892 = vunpack.c.l.b16 %v579
    %v2893 = vunpack.c.l.b16 %v580
    %v2894 = vunpack.c.h.b16 %v580
    %v2895 = vunpack.c.l.b16 %v581
    %v2896 = vunpack.c.h.b16 %v581
    %v2897 = vunpack.c.l.b16 %v582
    %v2898 = vunpack.c.l.b16 %v583
    %v2899 = vunpack.c.h.b16 %v583
    %v2900 = vunpack.c.l.b16 %v584
    %v2901 = vunpack.c.h.b16 %v584
    %v2902 = vunpack.c.l.b16 %v585
    %v2903 = vunpack.c.l.b16 %v586
    %v2904 = vunpack.c.h.b16 %v586
    %v2905 = vunpack.c.l.b16 %v587
    %v2906 = vunpack.c.h.b16 %v587
    %v2907 = vunpack.c.l.b16 %v588
    %v2908 = vunpack.c.l.b16 %v589
    %v2909 = vunpack.c.h.b16 %v589
    %v2910 = vunpack.c.l.b16 %v590
    %v2911 = vunpack.c.h.b16 %v590
    %v2912 = vunpack.c.l.b16 %v591
    %v2913 = vunpack.c.l.b16 %v592
    %v2914 = vunpack.c.h.b16 %v592
    %v2915 = vunpack.c.l.b16 %v593
    %v2916 = vunpack.c.h.b16 %v593
    %v2917 = vunpack.c.l.b16 %v594
    %v2918 = vunpack.c.l.b16 %v595
    %v2919 = vunpack.c.h.b16 %v595
    %v2920 = vunpack.c.l.b16 %v596
    %v2921 = vunpack.c.h.b16 %v596
    %v2922 = vunpack.c.l.b16 %v597
    %v2923 = vunpack.c.l.b16 %v598
    %v2924 = vunpack.c.h.b16 %v598
    %v2925 = vunpack.c.l.b16 %v599
    %v2926 = vunpack.c.h.b16 %v599
    %v2927 = vunpack.c.l.b16 %v600
    %v2928 = vunpack.c.l.b16 %v601
    %v2929 = vunpack.c.h.b16 %v601
    %v2930 = vunpack.c.l.b16 %v602
    %v2931 = vunpack.c.h.b16 %v602
    %v2932 = vunpack.c.l.b16 %v603
    %v2933 = vunpack.c.l.b16 %v604
    %v2934 = vunpack.c.h.b16 %v604
    %v2935 = vunpack.c.l.b16 %v605
    %v2936 = vunpack.c.h.b16 %v605
    %v2937 = vunpack.c.l.b16 %v606
    %v2938 = vunpack.c.l.b16 %v607
    %v2939 = vunpack.c.h.b16 %v607
    %v2940 = vunpack.c.l.b16 %v608
    %v2941 = vunpack.c.h.b16 %v608
    %v2942 = vunpack.c.l.b16 %v609
    %v2943 = vunpack.c.l.b16 %v610
    %v2944 = vunpack.c.h.b16 %v610
    %v2945 = vunpack.c.l.b16 %v611
    %v2946 = vunpack.c.h.b16 %v611
    %v2947 = vunpack.c.l.b16 %v612
    %v2948 = vunpack.c.l.b16 %v613
    %v2949 = vunpack.c.h.b16 %v613
    %v2950 = vunpack.c.l.b16 %v614
    %v2951 = vunpack.c.h.b16 %v614
    %v2952 = vunpack.c.l.b16 %v615
    %v2953 = vunpack.c.l.b16 %v616
    %v2954 = vunpack.c.h.b16 %v616
    %v2955 = vunpack.c.l.b16 %v617
    %v2956 = vunpack.c.h.b16 %v617
    %v2957 = vunpack.c.l.b16 %v618
    %v2958 = vunpack.c.l.b16 %v619
    %v2959 = vunpack.c.h.b16 %v619
    %v2960 = vunpack.c.l.b16 %v620
    %v2961 = vunpack.c.h.b16 %v620
    %v2962 = vunpack.c.l.b16 %v621
    %v2963 = vunpack.c.l.b16 %v622
    %v2964 = vunpack.c.h.b16 %v622
    %v2965 = vunpack.c.l.b16 %v623
    %v2966 = vunpack.c.h.b16 %v623
    %v2967 = vunpack.c.l.b16 %v624
    %v2968 = vunpack.c.l.b16 %v625
    %v2969 = vunpack.c.h.b16 %v625
    %v2970 = vunpack.c.l.b16 %v626
    %v2971 = vunpack.c.h.b16 %v626
    %v2972 = vunpack.c.l.b16 %v627
    %v2973 = vunpack.c.l.b16 %v628
    %v2974 = vunpack.c.h.b16 %v628
    %v2975 = vunpack.c.l.b16 %v629
    %v2976 = vunpack.c.h.b16 %v629
    %v2977 = vunpack.c.l.b16 %v630
    %v2978 = vunpack.c.l.b16 %v631
    %v2979 = vunpack.c.h.b16 %v631
    %v2980 = vunpack.c.l.b16 %v632
    %v2981 = vunpack.c.h.b16 %v632
    %v2982 = vunpack.c.l.b16 %v633
    %v2983 = vunpack.c.l.b16 %v634
    %v2984 = vunpack.c.h.b16 %v634
    %v2985 = vunpack.c.l.b16 %v635
    %v2986 = vunpack.c.h.b16 %v635
    %v2987 = vunpack.c.l.b16 %v636
    %v2988 = vunpack.c.l.b16 %v637
    %v2989 = vunpack.c.h.b16 %v637
    %v2990 = vunpack.c.l.b16 %v638
    %v2991 = vunpack.c.h.b16 %v638
    %v2992 = vunpack.c.l.b16 %v639
    %v2993 = vunpack.c.l.b16 %v640
    %v2994 = vunpack.c.h.b16 %v640
    %v2995 = vunpack.c.l.b16 %v641
    %v2996 = vunpack.c.h.b16 %v641
    %v2997 = vunpack.c.l.b16 %v642
    %v2998 = vunpack.c.l.b16 %v643
    %v2999 = vunpack.c.h.b16 %v643
    %v3000 = vunpack.c.l.b16 %v644
    %v3001 = vunpack.c.h.b16 %v644
    %v3002 = vunpack.c.l.b16 %v645
    %v3003 = vunpack.c.l.b16 %v646
    %v3004 = vunpack.c.h.b16 %v646
    %v3005 = vunpack.c.l.b16 %v647
    %v3006 = vunpack.c.h.b16 %v647
    %v3007 = vunpack.c.l.b16 %v648
    %v3008 = vunpack.c.l.b16 %v649
    %v3009 = vunpack.c.h.b16 %v649
    %v3010 = vunpack.c.l.b16 %v650
    %v3011 = vunpack.c.h.b16 %v650
    %v3012 = vunpack.c.l.b16 %v651
    %v3013 = vunpack.c.l.b16 %v652
    %v3014 = vunpack.c.h.b16 %v652
    %v3015 = vunpack.c.l.b16 %v653
    %v3016 = vunpack.c.h.b16 %v653
    %v3017 = vunpack.c.l.b16 %v654
    %v3018 = vunpack.c.l.b16 %v655
    %v3019 = vunpack.c.h.b16 %v655
    %v3020 = vunpack.c.l.b16 %v656
    %v3021 = vunpack.c.h.b16 %v656
    %v3022 = vunpack.c.l.b16 %v657
    %v3023 = vunpack.c.l.b16 %v658
    %v3024 = vunpack.c.h.b16 %v658
    %v3025 = vunpack.c.l.b16 %v659
    %v3026 = vunpack.c.h.b16 %v659
    %v3027 = vunpack.c.l.b16 %v660
    %v3028 = vunpack.c.l.b16 %v661
    %v3029 = vunpack.c.h.b16 %v661
    %v3030 = vunpack.c.l.b16 %v662
    %v3031 = vunpack.c.h.b16 %v662
    %v3032 = vunpack.c.l.b16 %v663
    %v3033 = vunpack.c.l.b16 %v664
    %v3034 = vunpack.c.h.b16 %v664
    %v3035 = vunpack.c.l.b16 %v665
    %v3036 = vunpack.c.h.b16 %v665
    %v3037 = vunpack.c.l.b16 %v666
    %v3038 = vunpack.c.l.b16 %v667
    %v3039 = vunpack.c.h.b16 %v667
    %v3040 = vunpack.c.l.b16 %v668
    %v3041 = vunpack.c.h.b16 %v668
    %v3042 = vunpack.c.l.b16 %v669
    %v3043 = vunpack.c.l.b16 %v670
    %v3044 = vunpack.c.h.b16 %v670
    %v3045 = vunpack.c.l.b16 %v671
    %v3046 = vunpack.c.h.b16 %v671
    %v3047 = vunpack.c.l.b16 %v672
    %v3048 = vunpack.c.l.b16 %v673
    %v3049 = vunpack.c.h.b16 %v673
    %v3050 = vunpack.c.l.b16 %v674
    %v3051 = vunpack.c.h.b16 %v674
    %v3052 = vunpack.c.l.b16 %v675
    %v3053 = vunpack.c.l.b16 %v676
    %v3054 = vunpack.c.h.b16 %v676
    %v3055 = vunpack.c.l.b16 %v677
    %v3056 = vunpack.c.h.b16 %v677
    %v3057 = vunpack.c.l.b16 %v678
    %v3058 = vunpack.c.l.b16 %v679
    %v3059 = vunpack.c.h.b16 %v679
    %v3060 = vunpack.c.l.b16 %v680
    %v3061 = vunpack.c.h.b16 %v680
    %v3062 = vunpack.c.l.b16 %v681
    %v3063 = vunpack.c.l.b16 %v682
    %v3064 = vunpack.c.h.b16 %v682
    %v3065 = vunpack.c.l.b16 %v683
    %v3066 = vunpack.c.h.b16 %v683
    %v3067 = vunpack.c.l.b16 %v684
    %v3068 = vunpack.c.l.b16 %v685
    %v3069 = vunpack.c.h.b16 %v685
    %v3070 = vunpack.c.l.b16 %v686
    %v3071 = vunpack.c.h.b16 %v686
    %v3072 = vunpack.c.l.b16 %v687
    %v3073 = vunpack.c.l.b16 %v688
    %v3074 = vunpack.c.h.b16 %v688
    %v3075 = vunpack.c.l.b16 %v689
    %v3076 = vunpack.c.h.b16 %v689
    %v3077 = vunpack.c.l.b16 %v690
    %v3078 = vunpack.c.l.b16 %v691
    %v3079 = vunpack.c.h.b16 %v691
    %v3080 = vunpack.c.l.b16 %v692
    %v3081 = vunpack.c.h.b16 %v692
    %v3082 = vunpack.c.l.b16 %v693
    %v3083 = vunpack.c.l.b16 %v694
    %v3084 = vunpack.c.h.b16 %v694
    %v3085 = vunpack.c.l.b16 %v695
    %v3086 = vunpack.c.h.b16 %v695
    %v3087 = vunpack.c.l.b16 %v696
    %v3088 = vunpack.c.l.b16 %v697
    %v3089 = vunpack.c.h.b16 %v697
    %v3090 = vunpack.c.l.b16 %v698
    %v3091 = vunpack.c.h.b16 %v698
    %v3092 = vunpack.c.l.b16 %v699
    %v3093 = vunpack.c.l.b16 %v700
    %v3094 = vunpack.c.h.b16 %v700
    %v3095 = vunpack.c.l.b16 %v701
    %v3096 = vunpack.c.h.b16 %v701
    %v3097 = vunpack.c.l.b16 %v702
    %v3098 = vunpack.c.l.b16 %v703
    %v3099 = vunpack.c.h.b16 %v703
    %v3100 = vunpack.c.l.b16 %v704
    %v3101 = vunpack.c.h.b16 %v704
    %v3102 = vunpack.c.l.b16 %v705
    %v3103 = vunpack.c.l.b16 %v706
    %v3104 = vunpack.c.h.b16 %v706
    %v3105 = vunpack.c.l.b16 %v707
    %v3106 = vunpack.c.h.b16 %v707
    %v3107 = vunpack.c.l.b16 %v708
    %v3108 = vunpack.c.l.b16 %v709
    %v3109 = vunpack.c.h.b16 %v709
    %v3110 = vunpack.c.l.b16 %v710
    %v3111 = vunpack.c.h.b16 %v710
    %v3112 = vunpack.c.l.b16 %v711
    %v3113 = vunpack.c.l.b16 %v712
    %v3114 = vunpack.c.h.b16 %v712
    %v3115 = vunpack.c.l.b16 %v713
    %v3116 = vunpack.c.h.b16 %v713
    %v3117 = vunpack.c.l.b16 %v714
    %v3118 = vunpack.c.l.b16 %v715
    %v3119 = vunpack.c.h.b16 %v715
    %v3120 = vunpack.c.l.b16 %v716
    %v3121 = vunpack.c.h.b16 %v716
    %v3122 = vunpack.c.l.b16 %v717
    %v3123 = vunpack.c.l.b16 %v718
    %v3124 = vunpack.c.h.b16 %v718
    %v3125 = vunpack.c.l.b16 %v719
    %v3126 = vunpack.c.h.b16 %v719
    %v3127 = vunpack.c.l.b16 %v720
    %v3128 = vunpack.c.l.b16 %v721
    %v3129 = vunpack.c.h.b16 %v721
    %v3130 = vunpack.c.l.b16 %v722
    %v3131 = vunpack.c.h.b16 %v722
    %v3132 = vunpack.c.l.b16 %v723
    %v3133 = vunpack.c.l.b16 %v724
    %v3134 = vunpack.c.h.b16 %v724
    %v3135 = vunpack.c.l.b16 %v725
    %v3136 = vunpack.c.h.b16 %v725
    %v3137 = vunpack.c.l.b16 %v726
    %v3138 = vunpack.c.l.b16 %v727
    %v3139 = vunpack.c.h.b16 %v727
    %v3140 = vunpack.c.l.b16 %v728
    %v3141 = vunpack.c.h.b16 %v728
    %v3142 = vunpack.c.l.b16 %v729
    %v3143 = vunpack.c.l.b16 %v730
    %v3144 = vunpack.c.h.b16 %v730
    %v3145 = vunpack.c.l.b16 %v731
    %v3146 = vunpack.c.h.b16 %v731
    %v3147 = vunpack.c.l.b16 %v732
    %v3148 = vunpack.c.l.b16 %v733
    %v3149 = vunpack.c.h.b16 %v733
    %v3150 = vunpack.c.l.b16 %v734
    %v3151 = vunpack.c.h.b16 %v734
    %v3152 = vunpack.c.l.b16 %v735
    %v3153 = vunpack.c.l.b16 %v736
    %v3154 = vunpack.c.h.b16 %v736
    %v3155 = vunpack.c.l.b16 %v737
    %v3156 = vunpack.c.h.b16 %v737
    %v3157 = vunpack.c.l.b16 %v738
    %v3158 = vunpack.c.l.b16 %v739
    %v3159 = vunpack.c.h.b16 %v739
    %v3160 = vunpack.c.l.b16 %v740
    %v3161 = vunpack.c.h.b16 %v740
    %v3162 = vunpack.c.l.b16 %v741
    %v3163 = vunpack.c.l.b16 %v742
    %v3164 = vunpack.c.h.b16 %v742
    %v3165 = vunpack.c.l.b16 %v743
    %v3166 = vunpack.c.h.b16 %v743
    %v3167 = vunpack.c.l.b16 %v744
    %v3168 = vunpack.c.l.b16 %v745
    %v3169 = vunpack.c.h.b16 %v745
    %v3170 = vunpack.c.l.b16 %v746
    %v3171 = vunpack.c.h.b16 %v746
    %v3172 = vunpack.c.l.b16 %v747
    %v3173 = vunpack.c.l.b16 %v748
    %v3174 = vunpack.c.h.b16 %v748
    %v3175 = vunpack.c.l.b16 %v749
    %v3176 = vunpack.c.h.b16 %v749
    %v3177 = vunpack.c.l.b16 %v750
    %v3178 = vunpack.c.l.b16 %v751
    %v3179 = vunpack.c.h.b16 %v751
    %v3180 = vunpack.c.l.b16 %v752
    %v3181 = vunpack.c.h.b16 %v752
    %v3182 = vunpack.c.l.b16 %v753
    %v3183 = vunpack.c.l.b16 %v754
    %v3184 = vunpack.c.h.b16 %v754
    %v3185 = vunpack.c.l.b16 %v755
    %v3186 = vunpack.c.h.b16 %v755
    %v3187 = vunpack.c.l.b16 %v756
    %v3188 = vunpack.c.l.b16 %v757
    %v3189 = vunpack.c.h.b16 %v757
    %v3190 = vunpack.c.l.b16 %v758
    %v3191 = vunpack.c.h.b16 %v758
    %v3192 = vunpack.c.l.b16 %v759
    %v3193 = vunpack.c.l.b16 %v760
    %v3194 = vunpack.c.h.b16 %v760
    %v3195 = vunpack.c.l.b16 %v761
    %v3196 = vunpack.c.h.b16 %v761
    %v3197 = vunpack.c.l.b16 %v762
    %v3198 = vunpack.c.l.b16 %v763
    %v3199 = vunpack.c.h.b16 %v763
    %v3200 = vunpack.c.l.b16 %v764
    %v3201 = vunpack.c.h.b16 %v764
    %v3202 = vunpack.c.l.b16 %v765
    %v3203 = vunpack.c.l.b16 %v766
    %v3204 = vunpack.c.h.b16 %v766
    %v3205 = vunpack.c.l.b16 %v767
    %v3206 = vunpack.c.h.b16 %v767
    %v3207 = vunpack.c.l.b16 %v768
    %v3208 = vunpack.c.l.b16 %v769
    %v3209 = vunpack.c.h.b16 %v769
    %v3210 = vunpack.c.l.b16 %v770
    %v3211 = vunpack.c.h.b16 %v770
    %v3212 = vunpack.c.l.b16 %v771
    %v3213 = vunpack.c.l.b16 %v772
    %v3214 = vunpack.c.h.b16 %v772
    %v3215 = vunpack.c.l.b16 %v773
    %v3216 = vunpack.c.h.b16 %v773
    %v3217 = vunpack.c.l.b16 %v774
    %v3218 = vunpack.c.l.b16 %v775
    %v3219 = vunpack.c.h.b16 %v775
    %v3220 = vunpack.c.l.b16 %v776
    %v3221 = vunpack.c.h.b16 %v776
    %v3222 = vunpack.c.l.b16 %v777
    %v3223 = vunpack.c.l.b16 %v778
    %v3224 = vunpack.c.h.b16 %v778
    %v3225 = vunpack.c.l.b16 %v779
    %v3226 = vunpack.c.h.b16 %v779
    %v3227 = vunpack.c.l.b16 %v780
    %v3228 = vunpack.c.l.b16 %v781
    %v3229 = vunpack.c.h.b16 %v781
    %v3230 = vunpack.c.l.b16 %v782
    %v3231 = vunpack.c.h.b16 %v782
    %v3232 = vunpack.c.l.b16 %v783
    %v3233 = vunpack.c.l.b16 %v784
    %v3234 = vunpack.c.h.b16 %v784
    %v3235 = vunpack.c.l.b16 %v785
    %v3236 = vunpack.c.h.b16 %v785
    %v3237 = vunpack.c.l.b16 %v786
    %v3238 = vunpack.c.l.b16 %v787
    %v3239 = vunpack.c.h.b16 %v787
    %v3240 = vunpack.c.l.b16 %v788
    %v3241 = vunpack.c.h.b16 %v788
    %v3242 = vunpack.c.l.b16 %v789
    %v3243 = vunpack.c.l.b16 %v790
    %v3244 = vunpack.c.h.b16 %v790
    %v3245 = vunpack.c.l.b16 %v791
    %v3246 = vunpack.c.h.b16 %v791
    %v3247 = vunpack.c.l.b16 %v792
    %v3248 = vunpack.c.l.b16 %v793
    %v3249 = vunpack.c.h.b16 %v793
    %v3250 = vunpack.c.l.b16 %v794
    %v3251 = vunpack.c.h.b16 %v794
    %v3252 = vunpack.c.l.b16 %v795
    %v3253 = vunpack.c.l.b16 %v796
    %v3254 = vunpack.c.h.b16 %v796
    %v3255 = vunpack.c.l.b16 %v797
    %v3256 = vunpack.c.h.b16 %v797
    %v3257 = vunpack.c.l.b16 %v798
    %v3258 = vunpack.c.l.b16 %v799
    %v3259 = vunpack.c.h.b16 %v799
    %v3260 = vunpack.c.l.b16 %v800
    %v3261 = vunpack.c.h.b16 %v800
    %v3262 = vunpack.c.l.b16 %v801
    %v3263 = vunpack.c.l.b16 %v802
    %v3264 = vunpack.c.h.b16 %v802
    %v3265 = vunpack.c.l.b16 %v803
    %v3266 = vunpack.c.h.b16 %v803
    %v3267 = vunpack.c.l.b16 %v804
    %v3268 = vunpack.c.l.b16 %v805
    %v3269 = vunpack.c.h.b16 %v805
    %v3270 = vunpack.c.l.b16 %v806
    %v3271 = vunpack.c.h.b16 %v806
    %v3272 = vunpack.c.l.b16 %v807
    %v3273 = vunpack.c.l.b16 %v808
    %v3274 = vunpack.c.h.b16 %v808
    %v3275 = vunpack.c.l.b16 %v809
    %v3276 = vunpack.c.h.b16 %v809
    %v3277 = vunpack.c.l.b16 %v810
    %v3278 = vunpack.c.l.b16 %v811
    %v3279 = vunpack.c.h.b16 %v811
    %v3280 = vunpack.c.l.b16 %v812
    %v3281 = vunpack.c.h.b16 %v812
    %v3282 = vunpack.c.l.b16 %v813
    %v3283 = vunpack.c.l.b16 %v814
    %v3284 = vunpack.c.h.b16 %v814
    %v3285 = vunpack.c.l.b16 %v815
    %v3286 = vunpack.c.h.b16 %v815
    %v3287 = vunpack.c.l.b16 %v816
    %v3288 = vunpack.c.l.b16 %v817
    %v3289 = vunpack.c.h.b16 %v817
    %v3290 = vunpack.c.l.b16 %v818
    %v3291 = vunpack.c.h.b16 %v818
    %v3292 = vunpack.c.l.b16 %v819
    %v3293 = vunpack.c.l.b16 %v820
    %v3294 = vunpack.c.h.b16 %v820
    %v3295 = vunpack.c.l.b16 %v821
    %v3296 = vunpack.c.h.b16 %v821
    %v3297 = vunpack.c.l.b16 %v822
    %v3298 = vunpack.c.l.b16 %v823
    %v3299 = vunpack.c.h.b16 %v823
    %v3300 = vunpack.c.l.b16 %v824
    %v3301 = vunpack.c.h.b16 %v824
    %v3302 = vunpack.c.l.b16 %v825
    %v3303 = vunpack.c.l.b16 %v826
    %v3304 = vunpack.c.h.b16 %v826
    %v3305 = vunpack.c.l.b16 %v827
    %v3306 = vunpack.c.h.b16 %v827
    %v3307 = vunpack.c.l.b16 %v828
    %v3308 = vunpack.c.l.b16 %v829
    %v3309 = vunpack.c.h.b16 %v829
    %v3310 = vunpack.c.l.b16 %v830
    %v3311 = vunpack.c.h.b16 %v830
    %v3312 = vunpack.c.l.b16 %v831
    %v3313 = vunpack.c.l.b16 %v832
    %v3314 = vunpack.c.h.b16 %v832
    %v3315 = vunpack.c.l.b16 %v833
    %v3316 = vunpack.c.h.b16 %v833
    %v3317 = vunpack.c.l.b16 %v834
    %v3318 = vunpack.c.l.b16 %v835
    %v3319 = vunpack.c.h.b16 %v835
    %v3320 = vunpack.c.l.b16 %v836
    %v3321 = vunpack.c.h.b16 %v836
    %v3322 = vunpack.c.l.b16 %v837
    %v3323 = vunpack.c.l.b16 %v838
    %v3324 = vunpack.c.h.b16 %v838
    %v3325 = vunpack.c.l.b16 %v839
    %v3326 = vunpack.c.h.b16 %v839
    %v3327 = vunpack.c.l.b16 %v840
    %v3328 = vunpack.c.l.b16 %v841
    %v3329 = vunpack.c.h.b16 %v841
    %v3330 = vunpack.c.l.b16 %v842
    %v3331 = vunpack.c.h.b16 %v842
    %v3332 = vunpack.c.l.b16 %v843
    %v3333 = vunpack.c.l.b16 %v844
    %v3334 = vunpack.c.h.b16 %v844
    %v3335 = vunpack.c.l.b16 %v845
    %v3336 = vunpack.c.h.b16 %v845
    %v3337 = vunpack.c.l.b16 %v846
    %v3338 = vunpack.c.l.b16 %v847
    %v3339 = vunpack.c.h.b16 %v847
    %v3340 = vunpack.c.l.b16 %v848
    %v3341 = vunpack.c.h.b16 %v848
    %v3342 = vunpack.c.l.b16 %v849
    %v3343 = vunpack.c.l.b16 %v850
    %v3344 = vunpack.c.h.b16 %v850
    %v3345 = vunpack.c.l.b16 %v851
    %v3346 = vunpack.c.h.b16 %v851
    %v3347 = vunpack.c.l.b16 %v852
    %v3348 = vunpack.c.l.b16 %v853
    %v3349 = vunpack.c.h.b16 %v853
    %v3350 = vunpack.c.l.b16 %v854
    %v3351 = vunpack.c.h.b16 %v854
    %v3352 = vunpack.c.l.b16 %v855
    %v3353 = vunpack.c.l.b16 %v856
    %v3354 = vunpack.c.h.b16 %v856
    %v3355 = vunpack.c.l.b16 %v857
    %v3356 = vunpack.c.h.b16 %v857
    %v3357 = vunpack.c.l.b16 %v858
    %v3358 = vunpack.c.l.b16 %v859
    %v3359 = vunpack.c.h.b16 %v859
    %v3360 = vunpack.c.l.b16 %v860
    %v3361 = vunpack.c.h.b16 %v860
    %v3362 = vunpack.c.l.b16 %v861
    %v3363 = vunpack.c.l.b16 %v862
    %v3364 = vunpack.c.h.b16 %v862
    %v3365 = vunpack.c.l.b16 %v863
    %v3366 = vunpack.c.h.b16 %v863
    %v3367 = vunpack.c.l.b16 %v864
    %v3368 = vunpack.c.l.b16 %v865
    %v3369 = vunpack.c.h.b16 %v865
    %v3370 = vunpack.c.l.b16 %v866
    %v3371 = vunpack.c.h.b16 %v866
    %v3372 = vunpack.c.l.b16 %v867
    %v3373 = vunpack.c.l.b16 %v868
    %v3374 = vunpack.c.h.b16 %v868
    %v3375 = vunpack.c.l.b16 %v869
    %v3376 = vunpack.c.h.b16 %v869
    %v3377 = vunpack.c.l.b16 %v870
    %v3378 = vunpack.c.l.b16 %v871
    %v3379 = vunpack.c.h.b16 %v871
    %v3380 = vunpack.c.l.b16 %v872
    %v3381 = vunpack.c.h.b16 %v872
    %v3382 = vunpack.c.l.b16 %v873
    %v3383 = vunpack.c.l.b16 %v874
    %v3384 = vunpack.c.h.b16 %v874
    %v3385 = vunpack.c.l.b16 %v875
    %v3386 = vunpack.c.h.b16 %v875
    %v3387 = vunpack.c.l.b16 %v876
    %v3388 = vunpack.c.l.b16 %v877
    %v3389 = vunpack.c.h.b16 %v877
    %v3390 = vunpack.c.l.b16 %v878
    %v3391 = vunpack.c.h.b16 %v878
    %v3392 = vunpack.c.l.b16 %v879
    %v3393 = vunpack.c.l.b16 %v880
    %v3394 = vunpack.c.h.b16 %v880
    %v3395 = vunpack.c.l.b16 %v881
    %v3396 = vunpack.c.h.b16 %v881
    %v3397 = vunpack.c.l.b16 %v882
    %v3398 = vunpack.c.l.b16 %v883
    %v3399 = vunpack.c.h.b16 %v883
    %v3400 = vunpack.c.l.b16 %v884
    %v3401 = vunpack.c.h.b16 %v884
    %v3402 = vunpack.c.l.b16 %v885
    %v3403 = vunpack.c.l.b16 %v886
    %v3404 = vunpack.c.h.b16 %v886
    %v3405 = vunpack.c.l.b16 %v887
    %v3406 = vunpack.c.h.b16 %v887
    %v3407 = vunpack.c.l.b16 %v888
    %v3408 = vunpack.c.l.b16 %v889
    %v3409 = vunpack.c.h.b16 %v889
    %v3410 = vunpack.c.l.b16 %v890
    %v3411 = vunpack.c.h.b16 %v890
    %v3412 = vunpack.c.l.b16 %v891
    %v3413 = vunpack.c.l.b16 %v892
    %v3414 = vunpack.c.h.b16 %v892
    %v3415 = vunpack.c.l.b16 %v893
    %v3416 = vunpack.c.h.b16 %v893
    %v3417 = vunpack.c.l.b16 %v894
    %v3418 = vunpack.c.l.b16 %v895
    %v3419 = vunpack.c.h.b16 %v895
    %v3420 = vunpack.c.l.b16 %v896
    %v3421 = vunpack.c.h.b16 %v896
    %v3422 = vunpack.c.l.b16 %v897
    %v3423 = vunpack.c.l.b16 %v898
    %v3424 = vunpack.c.h.b16 %v898
    %v3425 = vunpack.c.l.b16 %v899
    %v3426 = vunpack.c.h.b16 %v899
    %v3427 = vunpack.c.l.b16 %v900
    %v3428 = vunpack.c.l.b16 %v901
    %v3429 = vunpack.c.h.b16 %v901
    %v3430 = vunpack.c.l.b16 %v902
    %v3431 = vunpack.c.h.b16 %v902
    %v3432 = vunpack.c.l.b16 %v903
    %v3433 = vpack.c.b16 %v1998, %v1993
    %v3434 = vpack.c.b16 %v1999, %v1994
    %v3435 = vpack.c.b16 %v2000, %v1995
    %v3436 = vpack.c.b16 %v2001, %v1996
    %v3437 = vpack.c.b16 %v2002, %v1997
    %v3438 = vpack.c.b16 %v2008, %v2003
    %v3439 = vpack.c.b16 %v2009, %v2004
    %v3440 = vpack.c.b16 %v2010, %v2005
    %v3441 = vpack.c.b16 %v2011, %v2006
    %v3442 = vpack.c.b16 %v2012, %v2007
    %v3443 = vpack.c.b16 %v2018, %v2013
    %v3444 = vpack.c.b16 %v2019, %v2014
    %v3445 = vpack.c.b16 %v2020, %v2015
    %v3446 = vpack.c.b16 %v2021, %v2016
    %v3447 = vpack.c.b16 %v2022, %v2017
    %v3448 = vpack.c.b16 %v2028, %v2023
    %v3449 = vpack.c.b16 %v2029, %v2024
    %v3450 = vpack.c.b16 %v2030, %v2025
    %v3451 = vpack.c.b16 %v2031, %v2026
    %v3452 = vpack.c.b16 %v2032, %v2027
    %v3453 = vpack.c.b16 %v2038, %v2033
    %v3454 = vpack.c.b16 %v2039, %v2034
    %v3455 = vpack.c.b16 %v2040, %v2035
    %v3456 = vpack.c.b16 %v2041, %v2036
    %v3457 = vpack.c.b16 %v2042, %v2037
    %v3458 = vpack.c.b16 %v2048, %v2043
    %v3459 = vpack.c.b16 %v2049, %v2044
    %v3460 = vpack.c.b16 %v2050, %v2045
    %v3461 = vpack.c.b16 %v2051, %v2046
    %v3462 = vpack.c.b16 %v2052, %v2047
    %v3463 = vpack.c.b16 %v2058, %v2053
    %v3464 = vpack.c.b16 %v2059, %v2054
    %v3465 = vpack.c.b16 %v2060, %v2055
    %v3466 = vpack.c.b16 %v2061, %v2056
    %v3467 = vpack.c.b16 %v2062, %v2057
    %v3468 = vpack.c.b16 %v2068, %v2063
    %v3469 = vpack.c.b16 %v2069, %v2064
    %v3470 = vpack.c.b16 %v2070, %v2065
    %v3471 = vpack.c.b16 %v2071, %v2066
    %v3472 = vpack.c.b16 %v2072, %v2067
    %v3473 = vpack.c.b16 %v2078, %v2073
    %v3474 = vpack.c.b16 %v2079, %v2074
    %v3475 = vpack.c.b16 %v2080, %v2075
    %v3476 = vpack.c.b16 %v2081, %v2076
    %v3477 = vpack.c.b16 %v2082, %v2077
    %v3478 = vpack.c.b16 %v2088, %v2083
    %v3479 = vpack.c.b16 %v2089, %v2084
    %v3480 = vpack.c.b16 %v2090, %v2085
    %v3481 = vpack.c.b16 %v2091, %v2086
    %v3482 = vpack.c.b16 %v2092, %v2087
    %v3483 = vpack.c.b16 %v2098, %v2093
    %v3484 = vpack.c.b16 %v2099, %v2094
    %v3485 = vpack.c.b16 %v2100, %v2095
    %v3486 = vpack.c.b16 %v2101, %v2096
    %v3487 = vpack.c.b16 %v2102, %v2097
    %v3488 = vpack.c.b16 %v2108, %v2103
    %v3489 = vpack.c.b16 %v2109, %v2104
    %v3490 = vpack.c.b16 %v2110, %v2105
    %v3491 = vpack.c.b16 %v2111, %v2106
    %v3492 = vpack.c.b16 %v2112, %v2107
    %v3493 = vpack.c.b16 %v2118, %v2113
    %v3494 = vpack.c.b16 %v2119, %v2114
    %v3495 = vpack.c.b16 %v2120, %v2115
    %v3496 = vpack.c.b16 %v2121, %v2116
    %v3497 = vpack.c.b16 %v2122, %v2117
    %v3498 = vpack.c.b16 %v2128, %v2123
    %v3499 = vpack.c.b16 %v2129, %v2124
    %v3500 = vpack.c.b16 %v2130, %v2125
    %v3501 = vpack.c.b16 %v2131, %v2126
    %v3502 = vpack.c.b16 %v2132, %v2127
    %v3503 = vpack.c.b16 %v2138, %v2133
    %v3504 = vpack.c.b16 %v2139, %v2134
    %v3505 = vpack.c.b16 %v2140, %v2135
    %v3506 = vpack.c.b16 %v2141, %v2136
    %v3507 = vpack.c.b16 %v2142, %v2137
    %v3508 = vpack.c.b16 %v2148, %v2143
    %v3509 = vpack.c.b16 %v2149, %v2144
    %v3510 = vpack.c.b16 %v2150, %v2145
    %v3511 = vpack.c.b16 %v2151, %v2146
    %v3512 = vpack.c.b16 %v2152, %v2147
    %v3513 = vpack.c.b16 %v2158, %v2153
    %v3514 = vpack.c.b16 %v2159, %v2154
    %v3515 = vpack.c.b16 %v2160, %v2155
    %v3516 = vpack.c.b16 %v2161, %v2156
    %v3517 = vpack.c.b16 %v2162, %v2157
    %v3518 = vpack.c.b16 %v2168, %v2163
    %v3519 = vpack.c.b16 %v2169, %v2164
    %v3520 = vpack.c.b16 %v2170, %v2165
    %v3521 = vpack.c.b16 %v2171, %v2166
    %v3522 = vpack.c.b16 %v2172, %v2167
    %v3523 = vpack.c.b16 %v2178, %v2173
    %v3524 = vpack.c.b16 %v2179, %v2174
    %v3525 = vpack.c.b16 %v2180, %v2175
    %v3526 = vpack.c.b16 %v2181, %v2176
    %v3527 = vpack.c.b16 %v2182, %v2177
    %v3528 = vpack.c.b16 %v2188, %v2183
    %v3529 = vpack.c.b16 %v2189, %v2184
    %v3530 = vpack.c.b16 %v2190, %v2185
    %v3531 = vpack.c.b16 %v2191, %v2186
    %v3532 = vpack.c.b16 %v2192, %v2187
    %v3533 = vpack.c.b16 %v2198, %v2193
    %v3534 = vpack.c.b16 %v2199, %v2194
    %v3535 = vpack.c.b16 %v2200, %v2195
    %v3536 = vpack.c.b16 %v2201, %v2196
    %v3537 = vpack.c.b16 %v2202, %v2197
    %v3538 = vpack.c.b16 %v2208, %v2203
    %v3539 = vpack.c.b16 %v2209, %v2204
    %v3540 = vpack.c.b16 %v2210, %v2205
    %v3541 = vpack.c.b16 %v2211, %v2206
    %v3542 = vpack.c.b16 %v2212, %v2207
    %v3543 = vpack.c.b16 %v2218, %v2213
    %v3544 = vpack.c.b16 %v2219, %v2214
    %v3545 = vpack.c.b16 %v2220, %v2215
    %v3546 = vpack.c.b16 %v2221, %v2216
    %v3547 = vpack.c.b16 %v2222, %v2217
    %v3548 = vpack.c.b16 %v2228, %v2223
    %v3549 = vpack.c.b16 %v2229, %v2224
    %v3550 = vpack.c.b16 %v2230, %v2225
    %v3551 = vpack.c.b16 %v2231, %v2226
    %v3552 = vpack.c.b16 %v2232, %v2227
    %v3553 = vpack.c.b16 %v2238, %v2233
    %v3554 = vpack.c.b16 %v2239, %v2234
    %v3555 = vpack.c.b16 %v2240, %v2235
    %v3556 = vpack.c.b16 %v2241, %v2236
    %v3557 = vpack.c.b16 %v2242, %v2237
    %v3558 = vpack.c.b16 %v2248, %v2243
    %v3559 = vpack.c.b16 %v2249, %v2244
    %v3560 = vpack.c.b16 %v2250, %v2245
    %v3561 = vpack.c.b16 %v2251, %v2246
    %v3562 = vpack.c.b16 %v2252, %v2247
    %v3563 = vpack.c.b16 %v2258, %v2253
    %v3564 = vpack.c.b16 %v2259, %v2254
    %v3565 = vpack.c.b16 %v2260, %v2255
    %v3566 = vpack.c.b16 %v2261, %v2256
    %v3567 = vpack.c.b16 %v2262, %v2257
    %v3568 = vpack.c.b16 %v2268, %v2263
    %v3569 = vpack.c.b16 %v2269, %v2264
    %v3570 = vpack.c.b16 %v2270, %v2265
    %v3571 = vpack.c.b16 %v2271, %v2266
    %v3572 = vpack.c.b16 %v2272, %v2267
    %v3573 = vpack.c.b16 %v2278, %v2273
    %v3574 = vpack.c.b16 %v2279, %v2274
    %v3575 = vpack.c.b16 %v2280, %v2275
    %v3576 = vpack.c.b16 %v2281, %v2276
    %v3577 = vpack.c.b16 %v2282, %v2277
    %v3578 = vpack.c.b16 %v2288, %v2283
    %v3579 = vpack.c.b16 %v2289, %v2284
    %v3580 = vpack.c.b16 %v2290, %v2285
    %v3581 = vpack.c.b16 %v2291, %v2286
    %v3582 = vpack.c.b16 %v2292, %v2287
    %v3583 = vpack.c.b16 %v2298, %v2293
    %v3584 = vpack.c.b16 %v2299, %v2294
    %v3585 = vpack.c.b16 %v2300, %v2295
    %v3586 = vpack.c.b16 %v2301, %v2296
    %v3587 = vpack.c.b16 %v2302, %v2297
    %v3588 = vpack.c.b16 %v2308, %v2303
    %v3589 = vpack.c.b16 %v2309, %v2304
    %v3590 = vpack.c.b16 %v2310, %v2305
    %v3591 = vpack.c.b16 %v2311, %v2306
    %v3592 = vpack.c.b16 %v2312, %v2307
    %v3593 = vpack.c.b16 %v2318, %v2313
    %v3594 = vpack.c.b16 %v2319, %v2314
    %v3595 = vpack.c.b16 %v2320, %v2315
    %v3596 = vpack.c.b16 %v2321, %v2316
    %v3597 = vpack.c.b16 %v2322, %v2317
    %v3598 = vpack.c.b16 %v2328, %v2323
    %v3599 = vpack.c.b16 %v2329, %v2324
    %v3600 = vpack.c.b16 %v2330, %v2325
    %v3601 = vpack.c.b16 %v2331, %v2326
    %v3602 = vpack.c.b16 %v2332, %v2327
    %v3603 = vpack.c.b16 %v2338, %v2333
    %v3604 = vpack.c.b16 %v2339, %v2334
    %v3605 = vpack.c.b16 %v2340, %v2335
    %v3606 = vpack.c.b16 %v2341, %v2336
    %v3607 = vpack.c.b16 %v2342, %v2337
    %v3608 = vpack.c.b16 %v2348, %v2343
    %v3609 = vpack.c.b16 %v2349, %v2344
    %v3610 = vpack.c.b16 %v2350, %v2345
    %v3611 = vpack.c.b16 %v2351, %v2346
    %v3612 = vpack.c.b16 %v2352, %v2347
    %v3613 = vpack.c.b16 %v2358, %v2353
    %v3614 = vpack.c.b16 %v2359, %v2354
    %v3615 = vpack.c.b16 %v2360, %v2355
    %v3616 = vpack.c.b16 %v2361, %v2356
    %v3617 = vpack.c.b16 %v2362, %v2357
    %v3618 = vpack.c.b16 %v2368, %v2363
    %v3619 = vpack.c.b16 %v2369, %v2364
    %v3620 = vpack.c.b16 %v2370, %v2365
    %v3621 = vpack.c.b16 %v2371, %v2366
    %v3622 = vpack.c.b16 %v2372, %v2367
    %v3623 = vpack.c.b16 %v2378, %v2373
    %v3624 = vpack.c.b16 %v2379, %v2374
    %v3625 = vpack.c.b16 %v2380, %v2375
    %v3626 = vpack.c.b16 %v2381, %v2376
    %v3627 = vpack.c.b16 %v2382, %v2377
    %v3628 = vpack.c.b16 %v2388, %v2383
    %v3629 = vpack.c.b16 %v2389, %v2384
    %v3630 = vpack.c.b16 %v2390, %v2385
    %v3631 = vpack.c.b16 %v2391, %v2386
    %v3632 = vpack.c.b16 %v2392, %v2387
    %v3633 = vpack.c.b16 %v2398, %v2393
    %v3634 = vpack.c.b16 %v2399, %v2394
    %v3635 = vpack.c.b16 %v2400, %v2395
    %v3636 = vpack.c.b16 %v2401, %v2396
    %v3637 = vpack.c.b16 %v2402, %v2397
    %v3638 = vpack.c.b16 %v2408, %v2403
    %v3639 = vpack.c.b16 %v2409, %v2404
    %v3640 = vpack.c.b16 %v2410, %v2405
    %v3641 = vpack.c.b16 %v2411, %v2406
    %v3642 = vpack.c.b16 %v2412, %v2407
    %v3643 = vpack.c.b16 %v2418, %v2413
    %v3644 = vpack.c.b16 %v2419, %v2414
    %v3645 = vpack.c.b16 %v2420, %v2415
    %v3646 = vpack.c.b16 %v2421, %v2416
    %v3647 = vpack.c.b16 %v2422, %v2417
    %v3648 = vpack.c.b16 %v2428, %v2423
    %v3649 = vpack.c.b16 %v2429, %v2424
    %v3650 = vpack.c.b16 %v2430, %v2425
    %v3651 = vpack.c.b16 %v2431, %v2426
    %v3652 = vpack.c.b16 %v2432, %v2427
    %v3653 = vpack.c.b16 %v2438, %v2433
    %v3654 = vpack.c.b16 %v2439, %v2434
    %v3655 = vpack.c.b16 %v2440, %v2435
    %v3656 = vpack.c.b16 %v2441, %v2436
    %v3657 = vpack.c.b16 %v2442, %v2437
    %v3658 = vpack.c.b16 %v2448, %v2443
    %v3659 = vpack.c.b16 %v2449, %v2444
    %v3660 = vpack.c.b16 %v2450, %v2445
    %v3661 = vpack.c.b16 %v2451, %v2446
    %v3662 = vpack.c.b16 %v2452, %v2447
    %v3663 = vpack.c.b16 %v2458, %v2453
    %v3664 = vpack.c.b16 %v2459, %v2454
    %v3665 = vpack.c.b16 %v2460, %v2455
    %v3666 = vpack.c.b16 %v2461, %v2456
    %v3667 = vpack.c.b16 %v2462, %v2457
    %v3668 = vpack.c.b16 %v2468, %v2463
    %v3669 = vpack.c.b16 %v2469, %v2464
    %v3670 = vpack.c.b16 %v2470, %v2465
    %v3671 = vpack.c.b16 %v2471, %v2466
    %v3672 = vpack.c.b16 %v2472, %v2467
    %v3673 = vpack.c.b16 %v2478, %v2473
    %v3674 = vpack.c.b16 %v2479, %v2474
    %v3675 = vpack.c.b16 %v2480, %v2475
    %v3676 = vpack.c.b16 %v2481, %v2476
    %v3677 = vpack.c.b16 %v2482, %v2477
    %v3678 = vpack.c.b16 %v2488, %v2483
    %v3679 = vpack.c.b16 %v2489, %v2484
    %v3680 = vpack.c.b16 %v2490, %v2485
    %v3681 = vpack.c.b16 %v2491, %v2486
    %v3682 = vpack.c.b16 %v2492, %v2487
    %v3683 = vpack.c.b16 %v2498, %v2493
    %v3684 = vpack.c.b16 %v2499, %v2494
    %v3685 = vpack.c.b16 %v2500, %v2495
    %v3686 = vpack.c.b16 %v2501, %v2496
    %v3687 = vpack.c.b16 %v2502, %v2497
    %v3688 = vpack.c.b16 %v2508, %v2503
    %v3689 = vpack.c.b16 %v2509, %v2504
    %v3690 = vpack.c.b16 %v2510, %v2505
    %v3691 = vpack.c.b16 %v2511, %v2506
    %v3692 = vpack.c.b16 %v2512, %v2507
    %v3693 = vpack.c.b16 %v2518, %v2513
    %v3694 = vpack.c.b16 %v2519, %v2514
    %v3695 = vpack.c.b16 %v2520, %v2515
    %v3696 = vpack.c.b16 %v2521, %v2516
    %v3697 = vpack.c.b16 %v2522, %v2517
    %v3698 = vpack.c.b16 %v2528, %v2523
    %v3699 = vpack.c.b16 %v2529, %v2524
    %v3700 = vpack.c.b16 %v2530, %v2525
    %v3701 = vpack.c.b16 %v2531, %v2526
    %v3702 = vpack.c.b16 %v2532, %v2527
    %v3703 = vpack.c.b16 %v2538, %v2533
    %v3704 = vpack.c.b16 %v2539, %v2534
    %v3705 = vpack.c.b16 %v2540, %v2535
    %v3706 = vpack.c.b16 %v2541, %v2536
    %v3707 = vpack.c.b16 %v2542, %v2537
    %v3708 = vpack.c.b16 %v2548, %v2543
    %v3709 = vpack.c.b16 %v2549, %v2544
    %v3710 = vpack.c.b16 %v2550, %v2545
    %v3711 = vpack.c.b16 %v2551, %v2546
    %v3712 = vpack.c.b16 %v2552, %v2547
    %v3713 = vpack.c.b16 %v2558, %v2553
    %v3714 = vpack.c.b16 %v2559, %v2554
    %v3715 = vpack.c.b16 %v2560, %v2555
    %v3716 = vpack.c.b16 %v2561, %v2556
    %v3717 = vpack.c.b16 %v2562, %v2557
    %v3718 = vpack.c.b16 %v2568, %v2563
    %v3719 = vpack.c.b16 %v2569, %v2564
    %v3720 = vpack.c.b16 %v2570, %v2565
    %v3721 = vpack.c.b16 %v2571, %v2566
    %v3722 = vpack.c.b16 %v2572, %v2567
    %v3723 = vpack.c.b16 %v2578, %v2573
    %v3724 = vpack.c.b16 %v2579, %v2574
    %v3725 = vpack.c.b16 %v2580, %v2575
    %v3726 = vpack.c.b16 %v2581, %v2576
    %v3727 = vpack.c.b16 %v2582, %v2577
    %v3728 = vpack.c.b16 %v2588, %v2583
    %v3729 = vpack.c.b16 %v2589, %v2584
    %v3730 = vpack.c.b16 %v2590, %v2585
    %v3731 = vpack.c.b16 %v2591, %v2586
    %v3732 = vpack.c.b16 %v2592, %v2587
    %v3733 = vpack.c.b16 %v2598, %v2593
    %v3734 = vpack.c.b16 %v2599, %v2594
    %v3735 = vpack.c.b16 %v2600, %v2595
    %v3736 = vpack.c.b16 %v2601, %v2596
    %v3737 = vpack.c.b16 %v2602, %v2597
    %v3738 = vpack.c.b16 %v2608, %v2603
    %v3739 = vpack.c.b16 %v2609, %v2604
    %v3740 = vpack.c.b16 %v2610, %v2605
    %v3741 = vpack.c.b16 %v2611, %v2606
    %v3742 = vpack.c.b16 %v2612, %v2607
    %v3743 = vpack.c.b16 %v2618, %v2613
    %v3744 = vpack.c.b16 %v2619, %v2614
    %v3745 = vpack.c.b16 %v2620, %v2615
    %v3746 = vpack.c.b16 %v2621, %v2616
    %v3747 = vpack.c.b16 %v2622, %v2617
    %v3748 = vpack.c.b16 %v2628, %v2623
    %v3749 = vpack.c.b16 %v2629, %v2624
    %v3750 = vpack.c.b16 %v2630, %v2625
    %v3751 = vpack.c.b16 %v2631, %v2626
    %v3752 = vpack.c.b16 %v2632, %v2627
    %v3753 = vpack.c.b16 %v2638, %v2633
    %v3754 = vpack.c.b16 %v2639, %v2634
    %v3755 = vpack.c.b16 %v2640, %v2635
    %v3756 = vpack.c.b16 %v2641, %v2636
    %v3757 = vpack.c.b16 %v2642, %v2637
    %v3758 = vpack.c.b16 %v2648, %v2643
    %v3759 = vpack.c.b16 %v2649, %v2644
    %v3760 = vpack.c.b16 %v2650, %v2645
    %v3761 = vpack.c.b16 %v2651, %v2646
    %v3762 = vpack.c.b16 %v2652, %v2647
    %v3763 = vpack.c.b16 %v2658, %v2653
    %v3764 = vpack.c.b16 %v2659, %v2654
    %v3765 = vpack.c.b16 %v2660, %v2655
    %v3766 = vpack.c.b16 %v2661, %v2656
    %v3767 = vpack.c.b16 %v2662, %v2657
    %v3768 = vpack.c.b16 %v2668, %v2663
    %v3769 = vpack.c.b16 %v2669, %v2664
    %v3770 = vpack.c.b16 %v2670, %v2665
    %v3771 = vpack.c.b16 %v2671, %v2666
    %v3772 = vpack.c.b16 %v2672, %v2667
    %v3773 = vpack.c.b16 %v2678, %v2673
    %v3774 = vpack.c.b16 %v2679, %v2674
    %v3775 = vpack.c.b16 %v2680, %v2675
    %v3776 = vpack.c.b16 %v2681, %v2676
    %v3777 = vpack.c.b16 %v2682, %v2677
    %v3778 = vpack.c.b16 %v2688, %v2683
    %v3779 = vpack.c.b16 %v2689, %v2684
    %v3780 = vpack.c.b16 %v2690, %v2685
    %v3781 = vpack.c.b16 %v2691, %v2686
    %v3782 = vpack.c.b16 %v2692, %v2687
    %v3783 = vpack.c.b16 %v2698, %v2693
    %v3784 = vpack.c.b16 %v2699, %v2694
    %v3785 = vpack.c.b16 %v2700, %v2695
    %v3786 = vpack.c.b16 %v2701, %v2696
    %v3787 = vpack.c.b16 %v2702, %v2697
    %v3788 = vpack.c.b16 %v2708, %v2703
    %v3789 = vpack.c.b16 %v2709, %v2704
    %v3790 = vpack.c.b16 %v2710, %v2705
    %v3791 = vpack.c.b16 %v2711, %v2706
    %v3792 = vpack.c.b16 %v2712, %v2707
    %v3793 = vpack.c.b16 %v2718, %v2713
    %v3794 = vpack.c.b16 %v2719, %v2714
    %v3795 = vpack.c.b16 %v2720, %v2715
    %v3796 = vpack.c.b16 %v2721, %v2716
    %v3797 = vpack.c.b16 %v2722, %v2717
    %v3798 = vpack.c.b16 %v2728, %v2723
    %v3799 = vpack.c.b16 %v2729, %v2724
    %v3800 = vpack.c.b16 %v2730, %v2725
    %v3801 = vpack.c.b16 %v2731, %v2726
    %v3802 = vpack.c.b16 %v2732, %v2727
    %v3803 = vpack.c.b16 %v2738, %v2733
    %v3804 = vpack.c.b16 %v2739, %v2734
    %v3805 = vpack.c.b16 %v2740, %v2735
    %v3806 = vpack.c.b16 %v2741, %v2736
    %v3807 = vpack.c.b16 %v2742, %v2737
    %v3808 = vpack.c.b16 %v2748, %v2743
    %v3809 = vpack.c.b16 %v2749, %v2744
    %v3810 = vpack.c.b16 %v2750, %v2745
    %v3811 = vpack.c.b16 %v2751, %v2746
    %v3812 = vpack.c.b16 %v2752, %v2747
    %v3813 = vpack.c.b16 %v2758, %v2753
    %v3814 = vpack.c.b16 %v2759, %v2754
    %v3815 = vpack.c.b16 %v2760, %v2755
    %v3816 = vpack.c.b16 %v2761, %v2756
    %v3817 = vpack.c.b16 %v2762, %v2757
    %v3818 = vpack.c.b16 %v2768, %v2763
    %v3819 = vpack.c.b16 %v2769, %v2764
    %v3820 = vpack.c.b16 %v2770, %v2765
    %v3821 = vpack.c.b16 %v2771, %v2766
    %v3822 = vpack.c.b16 %v2772, %v2767
    %v3823 = vpack.c.b16 %v2778, %v2773
    %v3824 = vpack.c.b16 %v2779, %v2774
    %v3825 = vpack.c.b16 %v2780, %v2775
    %v3826 = vpack.c.b16 %v2781, %v2776
    %v3827 = vpack.c.b16 %v2782, %v2777
    %v3828 = vpack.c.b16 %v2788, %v2783
    %v3829 = vpack.c.b16 %v2789, %v2784
    %v3830 = vpack.c.b16 %v2790, %v2785
    %v3831 = vpack.c.b16 %v2791, %v2786
    %v3832 = vpack.c.b16 %v2792, %v2787
    %v3833 = vpack.c.b16 %v2798, %v2793
    %v3834 = vpack.c.b16 %v2799, %v2794
    %v3835 = vpack.c.b16 %v2800, %v2795
    %v3836 = vpack.c.b16 %v2801, %v2796
    %v3837 = vpack.c.b16 %v2802, %v2797
    %v3838 = vpack.c.b16 %v2808, %v2803
    %v3839 = vpack.c.b16 %v2809, %v2804
    %v3840 = vpack.c.b16 %v2810, %v2805
    %v3841 = vpack.c.b16 %v2811, %v2806
    %v3842 = vpack.c.b16 %v2812, %v2807
    %v3843 = vpack.c.b16 %v2818, %v2813
    %v3844 = vpack.c.b16 %v2819, %v2814
    %v3845 = vpack.c.b16 %v2820, %v2815
    %v3846 = vpack.c.b16 %v2821, %v2816
    %v3847 = vpack.c.b16 %v2822, %v2817
    %v3848 = vpack.c.b16 %v2828, %v2823
    %v3849 = vpack.c.b16 %v2829, %v2824
    %v3850 = vpack.c.b16 %v2830, %v2825
    %v3851 = vpack.c.b16 %v2831, %v2826
    %v3852 = vpack.c.b16 %v2832, %v2827
    %v3853 = vpack.c.b16 %v2838, %v2833
    %v3854 = vpack.c.b16 %v2839, %v2834
    %v3855 = vpack.c.b16 %v2840, %v2835
    %v3856 = vpack.c.b16 %v2841, %v2836
    %v3857 = vpack.c.b16 %v2842, %v2837
    %v3858 = vpack.c.b16 %v2848, %v2843
    %v3859 = vpack.c.b16 %v2849, %v2844
    %v3860 = vpack.c.b16 %v2850, %v2845
    %v3861 = vpack.c.b16 %v2851, %v2846
    %v3862 = vpack.c.b16 %v2852, %v2847
    %v3863 = vpack.c.b16 %v2858, %v2853
    %v3864 = vpack.c.b16 %v2859, %v2854
    %v3865 = vpack.c.b16 %v2860, %v2855
    %v3866 = vpack.c.b16 %v2861, %v2856
    %v3867 = vpack.c.b16 %v2862, %v2857
    %v3868 = vpack.c.b16 %v2868, %v2863
    %v3869 = vpack.c.b16 %v2869, %v2864
    %v3870 = vpack.c.b16 %v2870, %v2865
    %v3871 = vpack.c.b16 %v2871, %v2866
    %v3872 = vpack.c.b16 %v2872, %v2867
    %v3873 = vpack.c.b16 %v2878, %v2873
    %v3874 = vpack.c.b16 %v2879, %v2874
    %v3875 = vpack.c.b16 %v2880, %v2875
    %v3876 = vpack.c.b16 %v2881, %v2876
    %v3877 = vpack.c.b16 %v2882, %v2877
    %v3878 = vpack.c.b16 %v2888, %v2883
    %v3879 = vpack.c.b16 %v2889, %v2884
    %v3880 = vpack.c.b16 %v2890, %v2885
    %v3881 = vpack.c.b16 %v2891, %v2886
    %v3882 = vpack.c.b16 %v2892, %v2887
    %v3883 = vpack.c.b16 %v2898, %v2893
    %v3884 = vpack.c.b16 %v2899, %v2894
    %v3885 = vpack.c.b16 %v2900, %v2895
    %v3886 = vpack.c.b16 %v2901, %v2896
    %v3887 = vpack.c.b16 %v2902, %v2897
    %v3888 = vpack.c.b16 %v2908, %v2903
    %v3889 = vpack.c.b16 %v2909, %v2904
    %v3890 = vpack.c.b16 %v2910, %v2905
    %v3891 = vpack.c.b16 %v2911, %v2906
    %v3892 = vpack.c.b16 %v2912, %v2907
    %v3893 = vpack.c.b16 %v2918, %v2913
    %v3894 = vpack.c.b16 %v2919, %v2914
    %v3895 = vpack.c.b16 %v2920, %v2915
    %v3896 = vpack.c.b16 %v2921, %v2916
    %v3897 = vpack.c.b16 %v2922, %v2917
    %v3898 = vpack.c.b16 %v2928, %v2923
    %v3899 = vpack.c.b16 %v2929, %v2924
    %v3900 = vpack.c.b16 %v2930, %v2925
    %v3901 = vpack.c.b16 %v2931, %v2926
    %v3902 = vpack.c.b16 %v2932, %v2927
    %v3903 = vpack.c.b16 %v2938, %v2933
    %v3904 = vpack.c.b16 %v2939, %v2934
    %v3905 = vpack.c.b16 %v2940, %v2935
    %v3906 = vpack.c.b16 %v2941, %v2936
    %v3907 = vpack.c.b16 %v2942, %v2937
    %v3908 = vpack.c.b16 %v2948, %v2943
    %v3909 = vpack.c.b16 %v2949, %v2944
    %v3910 = vpack.c.b16 %v2950, %v2945
    %v3911 = vpack.c.b16 %v2951, %v2946
    %v3912 = vpack.c.b16 %v2952, %v2947
    %v3913 = vpack.c.b16 %v2958, %v2953
    %v3914 = vpack.c.b16 %v2959, %v2954
    %v3915 = vpack.c.b16 %v2960, %v2955
    %v3916 = vpack.c.b16 %v2961, %v2956
    %v3917 = vpack.c.b16 %v2962, %v2957
    %v3918 = vpack.c.b16 %v2968, %v2963
    %v3919 = vpack.c.b16 %v2969, %v2964
    %v3920 = vpack.c.b16 %v2970, %v2965
    %v3921 = vpack.c.b16 %v2971, %v2966
    %v3922 = vpack.c.b16 %v2972, %v2967
    %v3923 = vpack.c.b16 %v2978, %v2973
    %v3924 = vpack.c.b16 %v2979, %v2974
    %v3925 = vpack.c.b16 %v2980, %v2975
    %v3926 = vpack.c.b16 %v2981, %v2976
    %v3927 = vpack.c.b16 %v2982, %v2977
    %v3928 = vpack.c.b16 %v2988, %v2983
    %v3929 = vpack.c.b16 %v2989, %v2984
    %v3930 = vpack.c.b16 %v2990, %v2985
    %v3931 = vpack.c.b16 %v2991, %v2986
    %v3932 = vpack.c.b16 %v2992, %v2987
    %v3933 = vpack.c.b16 %v2998, %v2993
    %v3934 = vpack.c.b16 %v2999, %v2994
    %v3935 = vpack.c.b16 %v3000, %v2995
    %v3936 = vpack.c.b16 %v3001, %v2996
    %v3937 = vpack.c.b16 %v3002, %v2997
    %v3938 = vpack.c.b16 %v3008, %v3003
    %v3939 = vpack.c.b16 %v3009, %v3004
    %v3940 = vpack.c.b16 %v3010, %v3005
    %v3941 = vpack.c.b16 %v3011, %v3006
    %v3942 = vpack.c.b16 %v3012, %v3007
    %v3943 = vpack.c.b16 %v3018, %v3013
    %v3944 = vpack.c.b16 %v3019, %v3014
    %v3945 = vpack.c.b16 %v3020, %v3015
    %v3946 = vpack.c.b16 %v3021, %v3016
    %v3947 = vpack.c.b16 %v3022, %v3017
    %v3948 = vpack.c.b16 %v3028, %v3023
    %v3949 = vpack.c.b16 %v3029, %v3024
    %v3950 = vpack.c.b16 %v3030, %v3025
    %v3951 = vpack.c.b16 %v3031, %v3026
    %v3952 = vpack.c.b16 %v3032, %v3027
    %v3953 = vpack.c.b16 %v3038, %v3033
    %v3954 = vpack.c.b16 %v3039, %v3034
    %v3955 = vpack.c.b16 %v3040, %v3035
    %v3956 = vpack.c.b16 %v3041, %v3036
    %v3957 = vpack.c.b16 %v3042, %v3037
    %v3958 = vpack.c.b16 %v3048, %v3043
    %v3959 = vpack.c.b16 %v3049, %v3044
    %v3960 = vpack.c.b16 %v3050, %v3045
    %v3961 = vpack.c.b16 %v3051, %v3046
    %v3962 = vpack.c.b16 %v3052, %v3047
    %v3963 = vpack.c.b16 %v3058, %v3053
    %v3964 = vpack.c.b16 %v3059, %v3054
    %v3965 = vpack.c.b16 %v3060, %v3055
    %v3966 = vpack.c.b16 %v3061, %v3056
    %v3967 = vpack.c.b16 %v3062, %v3057
    %v3968 = vpack.c.b16 %v3068, %v3063
    %v3969 = vpack.c.b16 %v3069, %v3064
    %v3970 = vpack.c.b16 %v3070, %v3065
    %v3971 = vpack.c.b16 %v3071, %v3066
    %v3972 = vpack.c.b16 %v3072, %v3067
    %v3973 = vpack.c.b16 %v3078, %v3073
    %v3974 = vpack.c.b16 %v3079, %v3074
    %v3975 = vpack.c.b16 %v3080, %v3075
    %v3976 = vpack.c.b16 %v3081, %v3076
    %v3977 = vpack.c.b16 %v3082, %v3077
    %v3978 = vpack.c.b16 %v3088, %v3083
    %v3979 = vpack.c.b16 %v3089, %v3084
    %v3980 = vpack.c.b16 %v3090, %v3085
    %v3981 = vpack.c.b16 %v3091, %v3086
    %v3982 = vpack.c.b16 %v3092, %v3087
    %v3983 = vpack.c.b16 %v3098, %v3093
    %v3984 = vpack.c.b16 %v3099, %v3094
    %v3985 = vpack.c.b16 %v3100, %v3095
    %v3986 = vpack.c.b16 %v3101, %v3096
    %v3987 = vpack.c.b16 %v3102, %v3097
    %v3988 = vpack.c.b16 %v3108, %v3103
    %v3989 = vpack.c.b16 %v3109, %v3104
    %v3990 = vpack.c.b16 %v3110, %v3105
    %v3991 = vpack.c.b16 %v3111, %v3106
    %v3992 = vpack.c.b16 %v3112, %v3107
    %v3993 = vpack.c.b16 %v3118, %v3113
    %v3994 = vpack.c.b16 %v3119, %v3114
    %v3995 = vpack.c.b16 %v3120, %v3115
    %v3996 = vpack.c.b16 %v3121, %v3116
    %v3997 = vpack.c.b16 %v3122, %v3117
    %v3998 = vpack.c.b16 %v3128, %v3123
    %v3999 = vpack.c.b16 %v3129, %v3124
    %v4000 = vpack.c.b16 %v3130, %v3125
    %v4001 = vpack.c.b16 %v3131, %v3126
    %v4002 = vpack.c.b16 %v3132, %v3127
    %v4003 = vpack.c.b16 %v3138, %v3133
    %v4004 = vpack.c.b16 %v3139, %v3134
    %v4005 = vpack.c.b16 %v3140, %v3135
    %v4006 = vpack.c.b16 %v3141, %v3136
    %v4007 = vpack.c.b16 %v3142, %v3137
    %v4008 = vpack.c.b16 %v3148, %v3143
    %v4009 = vpack.c.b16 %v3149, %v3144
    %v4010 = vpack.c.b16 %v3150, %v3145
    %v4011 = vpack.c.b16 %v3151, %v3146
    %v4012 = vpack.c.b16 %v3152, %v3147
    %v4013 = vpack.c.b16 %v3158, %v3153
    %v4014 = vpack.c.b16 %v3159, %v3154
    %v4015 = vpack.c.b16 %v3160, %v3155
    %v4016 = vpack.c.b16 %v3161, %v3156
    %v4017 = vpack.c.b16 %v3162, %v3157
    %v4018 = vpack.c.b16 %v3168, %v3163
    %v4019 = vpack.c.b16 %v3169, %v3164
    %v4020 = vpack.c.b16 %v3170, %v3165
    %v4021 = vpack.c.b16 %v3171, %v3166
    %v4022 = vpack.c.b16 %v3172, %v3167
    %v4023 = vpack.c.b16 %v3178, %v3173
    %v4024 = vpack.c.b16 %v3179, %v3174
    %v4025 = vpack.c.b16 %v3180, %v3175
    %v4026 = vpack.c.b16 %v3181, %v3176
    %v4027 = vpack.c.b16 %v3182, %v3177
    %v4028 = vpack.c.b16 %v3188, %v3183
    %v4029 = vpack.c.b16 %v3189, %v3184
    %v4030 = vpack.c.b16 %v3190, %v3185
    %v4031 = vpack.c.b16 %v3191, %v3186
    %v4032 = vpack.c.b16 %v3192, %v3187
    %v4033 = vpack.c.b16 %v3198, %v3193
    %v4034 = vpack.c.b16 %v3199, %v3194
    %v4035 = vpack.c.b16 %v3200, %v3195
    %v4036 = vpack.c.b16 %v3201, %v3196
    %v4037 = vpack.c.b16 %v3202, %v3197
    %v4038 = vpack.c.b16 %v3208, %v3203
    %v4039 = vpack.c.b16 %v3209, %v3204
    %v4040 = vpack.c.b16 %v3210, %v3205
    %v4041 = vpack.c.b16 %v3211, %v3206
    %v4042 = vpack.c.b16 %v3212, %v3207
    %v4043 = vpack.c.b16 %v3218, %v3213
    %v4044 = vpack.c.b16 %v3219, %v3214
    %v4045 = vpack.c.b16 %v3220, %v3215
    %v4046 = vpack.c.b16 %v3221, %v3216
    %v4047 = vpack.c.b16 %v3222, %v3217
    %v4048 = vpack.c.b16 %v3228, %v3223
    %v4049 = vpack.c.b16 %v3229, %v3224
    %v4050 = vpack.c.b16 %v3230, %v3225
    %v4051 = vpack.c.b16 %v3231, %v3226
    %v4052 = vpack.c.b16 %v3232, %v3227
    %v4053 = vpack.c.b16 %v3238, %v3233
    %v4054 = vpack.c.b16 %v3239, %v3234
    %v4055 = vpack.c.b16 %v3240, %v3235
    %v4056 = vpack.c.b16 %v3241, %v3236
    %v4057 = vpack.c.b16 %v3242, %v3237
    %v4058 = vpack.c.b16 %v3248, %v3243
    %v4059 = vpack.c.b16 %v3249, %v3244
    %v4060 = vpack.c.b16 %v3250, %v3245
    %v4061 = vpack.c.b16 %v3251, %v3246
    %v4062 = vpack.c.b16 %v3252, %v3247
    %v4063 = vpack.c.b16 %v3258, %v3253
    %v4064 = vpack.c.b16 %v3259, %v3254
    %v4065 = vpack.c.b16 %v3260, %v3255
    %v4066 = vpack.c.b16 %v3261, %v3256
    %v4067 = vpack.c.b16 %v3262, %v3257
    %v4068 = vpack.c.b16 %v3268, %v3263
    %v4069 = vpack.c.b16 %v3269, %v3264
    %v4070 = vpack.c.b16 %v3270, %v3265
    %v4071 = vpack.c.b16 %v3271, %v3266
    %v4072 = vpack.c.b16 %v3272, %v3267
    %v4073 = vpack.c.b16 %v3278, %v3273
    %v4074 = vpack.c.b16 %v3279, %v3274
    %v4075 = vpack.c.b16 %v3280, %v3275
    %v4076 = vpack.c.b16 %v3281, %v3276
    %v4077 = vpack.c.b16 %v3282, %v3277
    %v4078 = vpack.c.b16 %v3288, %v3283
    %v4079 = vpack.c.b16 %v3289, %v3284
    %v4080 = vpack.c.b16 %v3290, %v3285
    %v4081 = vpack.c.b16 %v3291, %v3286
    %v4082 = vpack.c.b16 %v3292, %v3287
    %v4083 = vpack.c.b16 %v3298, %v3293
    %v4084 = vpack.c.b16 %v3299, %v3294
    %v4085 = vpack.c.b16 %v3300, %v3295
    %v4086 = vpack.c.b16 %v3301, %v3296
    %v4087 = vpack.c.b16 %v3302, %v3297
    %v4088 = vpack.c.b16 %v3308, %v3303
    %v4089 = vpack.c.b16 %v3309, %v3304
    %v4090 = vpack.c.b16 %v3310, %v3305
    %v4091 = vpack.c.b16 %v3311, %v3306
    %v4092 = vpack.c.b16 %v3312, %v3307
    %v4093 = vpack.c.b16 %v3318, %v3313
    %v4094 = vpack.c.b16 %v3319, %v3314
    %v4095 = vpack.c.b16 %v3320, %v3315
    %v4096 = vpack.c.b16 %v3321, %v3316
    %v4097 = vpack.c.b16 %v3322, %v3317
    %v4098 = vpack.c.b16 %v3328, %v3323
    %v4099 = vpack.c.b16 %v3329, %v3324
    %v4100 = vpack.c.b16 %v3330, %v3325
    %v4101 = vpack.c.b16 %v3331, %v3326
    %v4102 = vpack.c.b16 %v3332, %v3327
    %v4103 = vpack.c.b16 %v3338, %v3333
    %v4104 = vpack.c.b16 %v3339, %v3334
    %v4105 = vpack.c.b16 %v3340, %v3335
    %v4106 = vpack.c.b16 %v3341, %v3336
    %v4107 = vpack.c.b16 %v3342, %v3337
    %v4108 = vpack.c.b16 %v3348, %v3343
    %v4109 = vpack.c.b16 %v3349, %v3344
    %v4110 = vpack.c.b16 %v3350, %v3345
    %v4111 = vpack.c.b16 %v3351, %v3346
    %v4112 = vpack.c.b16 %v3352, %v3347
    %v4113 = vpack.c.b16 %v3358, %v3353
    %v4114 = vpack.c.b16 %v3359, %v3354
    %v4115 = vpack.c.b16 %v3360, %v3355
    %v4116 = vpack.c.b16 %v3361, %v3356
    %v4117 = vpack.c.b16 %v3362, %v3357
    %v4118 = vpack.c.b16 %v3368, %v3363
    %v4119 = vpack.c.b16 %v3369, %v3364
    %v4120 = vpack.c.b16 %v3370, %v3365
    %v4121 = vpack.c.b16 %v3371, %v3366
    %v4122 = vpack.c.b16 %v3372, %v3367
    %v4123 = vpack.c.b16 %v3378, %v3373
    %v4124 = vpack.c.b16 %v3379, %v3374
    %v4125 = vpack.c.b16 %v3380, %v3375
    %v4126 = vpack.c.b16 %v3381, %v3376
    %v4127 = vpack.c.b16 %v3382, %v3377
    %v4128 = vpack.c.b16 %v3388, %v3383
    %v4129 = vpack.c.b16 %v3389, %v3384
    %v4130 = vpack.c.b16 %v3390, %v3385
    %v4131 = vpack.c.b16 %v3391, %v3386
    %v4132 = vpack.c.b16 %v3392, %v3387
    %v4133 = vpack.c.b16 %v3398, %v3393
    %v4134 = vpack.c.b16 %v3399, %v3394
    %v4135 = vpack.c.b16 %v3400, %v3395
    %v4136 = vpack.c.b16 %v3401, %v3396
    %v4137 = vpack.c.b16 %v3402, %v3397
    %v4138 = vpack.c.b16 %v3408, %v3403
    %v4139 = vpack.c.b16 %v3409, %v3404
    %v4140 = vpack.c.b16 %v3410, %v3405
    %v4141 = vpack.c.b16 %v3411, %v3406
    %v4142 = vpack.c.b16 %v3412, %v3407
    %v4143 = vpack.c.b16 %v3418, %v3413
    %v4144 = vpack.c.b16 %v3419, %v3414
    %v4145 = vpack.c.b16 %v3420, %v3415
    %v4146 = vpack.c.b16 %v3421, %v3416
    %v4147 = vpack.c.b16 %v3422, %v3417
    %v4148 = vpack.c.b16 %v3428, %v3423
    %v4149 = vpack.c.b16 %v3429, %v3424
    %v4150 = vpack.c.b16 %v3430, %v3425
    %v4151 = vpack.c.b16 %v3431, %v3426
    %v4152 = vpack.c.b16 %v3432, %v3427
    %4873 = vmatprep.subr.bf16.mxu0 %v3434
    %4874 = vmatpush1.bf16.msra.mxu0 %v3433
    %4875 = vmatprep.subr.bf16.mxu0 %v3439
    %4876 = vmatpush1.bf16.msra.mxu0 %v3438
    %4877 = vmatprep.subr.bf16.mxu0 %v3444
    %4878 = vmatpush1.bf16.msra.mxu0 %v3443
    %4879 = vmatprep.subr.bf16.mxu0 %v3449
    %4880 = vmatpush1.bf16.msra.mxu0 %v3448
    %4881 = vmatprep.subr.bf16.mxu0 %v3454
    %4882 = vmatpush1.bf16.msra.mxu0 %v3453
    %4883 = vmatprep.subr.bf16.mxu0 %v3459
    %4884 = vmatpush1.bf16.msra.mxu0 %v3458
    %4885 = vmatprep.subr.bf16.mxu0 %v3464
    %4886 = vmatpush1.bf16.msra.mxu0 %v3463
    %4887 = vmatprep.subr.bf16.mxu0 %v3469
    %4888 = vmatpush1.bf16.msra.mxu0 %v3468
    %4889 = vmatprep.subr.bf16.mxu0 %v3474
    %4890 = vmatpush1.bf16.msra.mxu0 %v3473
    %4891 = vmatprep.subr.bf16.mxu0 %v3479
    %4892 = vmatpush1.bf16.msra.mxu0 %v3478
    %4893 = vmatprep.subr.bf16.mxu0 %v3484
    %4894 = vmatpush1.bf16.msra.mxu0 %v3483
    %4895 = vmatprep.subr.bf16.mxu0 %v3489
    %4896 = vmatpush1.bf16.msra.mxu0 %v3488
    %4897 = vmatprep.subr.bf16.mxu0 %v3494
    %4898 = vmatpush1.bf16.msra.mxu0 %v3493
    %4899 = vmatprep.subr.bf16.mxu0 %v3499
    %4900 = vmatpush1.bf16.msra.mxu0 %v3498
    %4901 = vmatprep.subr.bf16.mxu0 %v3504
    %4902 = vmatpush1.bf16.msra.mxu0 %v3503
    %4903 = vmatprep.subr.bf16.mxu0 %v3509
    %4904 = vmatpush1.bf16.msra.mxu0 %v3508
    %4905 = vmatprep.mubr.bf16.mxu0 %v999
    %4906 = vmatmul.mubr.bf16.gmra.mrb[0].mxu0 %v985
    %v4907 = vpop.f32.mrb[0].mxu0
    %v4908 = vadd.f32 %v909, %v4907
    %v4909 = vpop.f32.mrb[0].mxu0
    %v4910 = vadd.f32 %v913, %v4909
    %v4911 = vpop.f32.mrb[0].mxu0
    %v4912 = vpop.f32.mrb[0].mxu0
    %4913 = vdwg.mxu0
    %4914 = vmatprep.subr.bf16.mxu0 %v3514
    %4915 = vmatpush1.bf16.msra.mxu0 %v3513
    %4916 = vmatprep.subr.bf16.mxu0 %v3519
    %4917 = vmatpush1.bf16.msra.mxu0 %v3518
    %4918 = vmatprep.subr.bf16.mxu0 %v3524
    %4919 = vmatpush1.bf16.msra.mxu0 %v3523
    %4920 = vmatprep.subr.bf16.mxu0 %v3529
    %4921 = vmatpush1.bf16.msra.mxu0 %v3528
    %4922 = vmatprep.subr.bf16.mxu0 %v3534
    %4923 = vmatpush1.bf16.msra.mxu0 %v3533
    %4924 = vmatprep.subr.bf16.mxu0 %v3539
    %4925 = vmatpush1.bf16.msra.mxu0 %v3538
    %4926 = vmatprep.subr.bf16.mxu0 %v3544
    %4927 = vmatpush1.bf16.msra.mxu0 %v3543
    %4928 = vmatprep.subr.bf16.mxu0 %v3549
    %4929 = vmatpush1.bf16.msra.mxu0 %v3548
    %4930 = vmatprep.subr.bf16.mxu0 %v3554
    %4931 = vmatpush1.bf16.msra.mxu0 %v3553
    %4932 = vmatprep.subr.bf16.mxu0 %v3559
    %4933 = vmatpush1.bf16.msra.mxu0 %v3558
    %4934 = vmatprep.subr.bf16.mxu0 %v3564
    %4935 = vmatpush1.bf16.msra.mxu0 %v3563
    %4936 = vmatprep.subr.bf16.mxu0 %v3569
    %4937 = vmatpush1.bf16.msra.mxu0 %v3568
    %4938 = vmatprep.subr.bf16.mxu0 %v3574
    %4939 = vmatpush1.bf16.msra.mxu0 %v3573
    %4940 = vmatprep.subr.bf16.mxu0 %v3579
    %4941 = vmatpush1.bf16.msra.mxu0 %v3578
    %4942 = vmatprep.subr.bf16.mxu0 %v3584
    %4943 = vmatpush1.bf16.msra.mxu0 %v3583
    %4944 = vmatprep.subr.bf16.mxu0 %v3589
    %4945 = vmatpush1.bf16.msra.mxu0 %v3588
    %4946 = vmatprep.mubr.bf16.mxu0 %v1009
    %4947 = vmatmul.mubr.bf16.gmra.mrb[0].mxu0 %v1007
    %v4948 = vpop.f32.mrb[0].mxu0
    %v4949 = vadd.f32 %v4908, %v4948
    %v4950 = vpop.f32.mrb[0].mxu0
    %v4951 = vadd.f32 %v4910, %v4950
    %v4952 = vpop.f32.mrb[0].mxu0
    %v4953 = vpop.f32.mrb[0].mxu0
    %4954 = vdwg.mxu0
    %4955 = vmatprep.subr.bf16.mxu0 %v3594
    %4956 = vmatpush1.bf16.msra.mxu0 %v3593
    %4957 = vmatprep.subr.bf16.mxu0 %v3599
    %4958 = vmatpush1.bf16.msra.mxu0 %v3598
    %4959 = vmatprep.subr.bf16.mxu0 %v3604
    %4960 = vmatpush1.bf16.msra.mxu0 %v3603
    %4961 = vmatprep.subr.bf16.mxu0 %v3609
    %4962 = vmatpush1.bf16.msra.mxu0 %v3608
    %4963 = vmatprep.subr.bf16.mxu0 %v3614
    %4964 = vmatpush1.bf16.msra.mxu0 %v3613
    %4965 = vmatprep.subr.bf16.mxu0 %v3619
    %4966 = vmatpush1.bf16.msra.mxu0 %v3618
    %4967 = vmatprep.subr.bf16.mxu0 %v3624
    %4968 = vmatpush1.bf16.msra.mxu0 %v3623
    %4969 = vmatprep.subr.bf16.mxu0 %v3629
    %4970 = vmatpush1.bf16.msra.mxu0 %v3628
    %4971 = vmatprep.subr.bf16.mxu0 %v3634
    %4972 = vmatpush1.bf16.msra.mxu0 %v3633
    %4973 = vmatprep.subr.bf16.mxu0 %v3639
    %4974 = vmatpush1.bf16.msra.mxu0 %v3638
    %4975 = vmatprep.subr.bf16.mxu0 %v3644
    %4976 = vmatpush1.bf16.msra.mxu0 %v3643
    %4977 = vmatprep.subr.bf16.mxu0 %v3649
    %4978 = vmatpush1.bf16.msra.mxu0 %v3648
    %4979 = vmatprep.subr.bf16.mxu0 %v3654
    %4980 = vmatpush1.bf16.msra.mxu0 %v3653
    %4981 = vmatprep.subr.bf16.mxu0 %v3659
    %4982 = vmatpush1.bf16.msra.mxu0 %v3658
    %4983 = vmatprep.subr.bf16.mxu0 %v3664
    %4984 = vmatpush1.bf16.msra.mxu0 %v3663
    %4985 = vmatprep.subr.bf16.mxu0 %v3669
    %4986 = vmatpush1.bf16.msra.mxu0 %v3668
    %4987 = vmatprep.mubr.bf16.mxu0 %v1006
    %4988 = vmatmul.mubr.bf16.gmra.mrb[0].mxu0 %v992
    %v4989 = vpop.f32.mrb[0].mxu0
    %v4990 = vadd.f32 %v4949, %v4989
    %v4991 = vpop.f32.mrb[0].mxu0
    %v4992 = vadd.f32 %v4951, %v4991
    %v4993 = vpop.f32.mrb[0].mxu0
    %v4994 = vpop.f32.mrb[0].mxu0
    %4995 = vdwg.mxu0
    %4996 = vmatprep.subr.bf16.mxu0 %v3674
    %4997 = vmatpush1.bf16.msra.mxu0 %v3673
    %4998 = vmatprep.subr.bf16.mxu0 %v3679
    %4999 = vmatpush1.bf16.msra.mxu0 %v3678
    %5000 = vmatprep.subr.bf16.mxu0 %v3684
    %5001 = vmatpush1.bf16.msra.mxu0 %v3683
    %5002 = vmatprep.subr.bf16.mxu0 %v3689
    %5003 = vmatpush1.bf16.msra.mxu0 %v3688
    %5004 = vmatprep.subr.bf16.mxu0 %v3694
    %5005 = vmatpush1.bf16.msra.mxu0 %v3693
    %5006 = vmatprep.subr.bf16.mxu0 %v3699
    %5007 = vmatpush1.bf16.msra.mxu0 %v3698
    %5008 = vmatprep.subr.bf16.mxu0 %v3704
    %5009 = vmatpush1.bf16.msra.mxu0 %v3703
    %5010 = vmatprep.subr.bf16.mxu0 %v3709
    %5011 = vmatpush1.bf16.msra.mxu0 %v3708
    %5012 = vmatprep.subr.bf16.mxu0 %v3714
    %5013 = vmatpush1.bf16.msra.mxu0 %v3713
    %5014 = vmatprep.subr.bf16.mxu0 %v3719
    %5015 = vmatpush1.bf16.msra.mxu0 %v3718
    %5016 = vmatprep.subr.bf16.mxu0 %v3724
    %5017 = vmatpush1.bf16.msra.mxu0 %v3723
    %5018 = vmatprep.subr.bf16.mxu0 %v3729
    %5019 = vmatpush1.bf16.msra.mxu0 %v3728
    %5020 = vmatprep.subr.bf16.mxu0 %v3734
    %5021 = vmatpush1.bf16.msra.mxu0 %v3733
    %5022 = vmatprep.subr.bf16.mxu0 %v3739
    %5023 = vmatpush1.bf16.msra.mxu0 %v3738
    %5024 = vmatprep.subr.bf16.mxu0 %v3744
    %5025 = vmatpush1.bf16.msra.mxu0 %v3743
    %5026 = vmatprep.subr.bf16.mxu0 %v3749
    %5027 = vmatpush1.bf16.msra.mxu0 %v3748
    %5028 = vmatprep.mubr.bf16.mxu0 %v1010
    %5029 = vmatmul.mubr.bf16.gmra.mrb[0].mxu0 %v1008
    %v5030 = vpop.f32.mrb[0].mxu0
    %v5031 = vadd.f32 %v4990, %v5030
    %v5032 = vpop.f32.mrb[0].mxu0
    %v5033 = vadd.f32 %v4992, %v5032
    %v5034 = vpop.f32.mrb[0].mxu0
    %v5035 = vpop.f32.mrb[0].mxu0
    %5036 = vdwg.mxu0
    %5037 = vmatprep.subr.bf16.mxu0 %v3754
    %5038 = vmatpush1.bf16.msra.mxu0 %v3753
    %5039 = vmatprep.subr.bf16.mxu0 %v3759
    %5040 = vmatpush1.bf16.msra.mxu0 %v3758
    %5041 = vmatprep.subr.bf16.mxu0 %v3764
    %5042 = vmatpush1.bf16.msra.mxu0 %v3763
    %5043 = vmatprep.subr.bf16.mxu0 %v3769
    %5044 = vmatpush1.bf16.msra.mxu0 %v3768
    %5045 = vmatprep.subr.bf16.mxu0 %v3774
    %5046 = vmatpush1.bf16.msra.mxu0 %v3773
    %5047 = vmatprep.subr.bf16.mxu0 %v3779
    %5048 = vmatpush1.bf16.msra.mxu0 %v3778
    %5049 = vmatprep.subr.bf16.mxu0 %v3784
    %5050 = vmatpush1.bf16.msra.mxu0 %v3783
    %5051 = vmatprep.subr.bf16.mxu0 %v3789
    %5052 = vmatpush1.bf16.msra.mxu0 %v3788
    %5053 = vmatprep.subr.bf16.mxu0 %v3794
    %5054 = vmatpush1.bf16.msra.mxu0 %v3793
    %5055 = vmatprep.subr.bf16.mxu0 %v3799
    %5056 = vmatpush1.bf16.msra.mxu0 %v3798
    %5057 = vmatprep.subr.bf16.mxu0 %v3804
    %5058 = vmatpush1.bf16.msra.mxu0 %v3803
    %5059 = vmatprep.subr.bf16.mxu0 %v3809
    %5060 = vmatpush1.bf16.msra.mxu0 %v3808
    %5061 = vmatprep.subr.bf16.mxu0 %v3814
    %5062 = vmatpush1.bf16.msra.mxu0 %v3813
    %5063 = vmatprep.subr.bf16.mxu0 %v3819
    %5064 = vmatpush1.bf16.msra.mxu0 %v3818
    %5065 = vmatprep.subr.bf16.mxu0 %v3824
    %5066 = vmatpush1.bf16.msra.mxu0 %v3823
    %5067 = vmatprep.subr.bf16.mxu0 %v3829
    %5068 = vmatpush1.bf16.msra.mxu0 %v3828
    %5069 = vmatprep.mubr.bf16.mxu0 %v1067
    %5070 = vmatmul.mubr.bf16.gmra.mrb[0].mxu0 %v1053
    %v5071 = vpop.f32.mrb[0].mxu0
    %v5072 = vadd.f32 %v5031, %v5071
    %v5073 = vpop.f32.mrb[0].mxu0
    %v5074 = vadd.f32 %v5033, %v5073
    %v5075 = vpop.f32.mrb[0].mxu0
    %v5076 = vpop.f32.mrb[0].mxu0
    %5077 = vdwg.mxu0
    %5078 = vmatprep.subr.bf16.mxu0 %v3834
    %5079 = vmatpush1.bf16.msra.mxu0 %v3833
    %5080 = vmatprep.subr.bf16.mxu0 %v3839
    %5081 = vmatpush1.bf16.msra.mxu0 %v3838
    %5082 = vmatprep.subr.bf16.mxu0 %v3844
    %5083 = vmatpush1.bf16.msra.mxu0 %v3843
    %5084 = vmatprep.subr.bf16.mxu0 %v3849
    %5085 = vmatpush1.bf16.msra.mxu0 %v3848
    %5086 = vmatprep.subr.bf16.mxu0 %v3854
    %5087 = vmatpush1.bf16.msra.mxu0 %v3853
    %5088 = vmatprep.subr.bf16.mxu0 %v3859
    %5089 = vmatpush1.bf16.msra.mxu0 %v3858
    %5090 = vmatprep.subr.bf16.mxu0 %v3864
    %5091 = vmatpush1.bf16.msra.mxu0 %v3863
    %5092 = vmatprep.subr.bf16.mxu0 %v3869
    %5093 = vmatpush1.bf16.msra.mxu0 %v3868
    %5094 = vmatprep.subr.bf16.mxu0 %v3874
    %5095 = vmatpush1.bf16.msra.mxu0 %v3873
    %5096 = vmatprep.subr.bf16.mxu0 %v3879
    %5097 = vmatpush1.bf16.msra.mxu0 %v3878
    %5098 = vmatprep.subr.bf16.mxu0 %v3884
    %5099 = vmatpush1.bf16.msra.mxu0 %v3883
    %5100 = vmatprep.subr.bf16.mxu0 %v3889
    %5101 = vmatpush1.bf16.msra.mxu0 %v3888
    %5102 = vmatprep.subr.bf16.mxu0 %v3894
    %5103 = vmatpush1.bf16.msra.mxu0 %v3893
    %5104 = vmatprep.subr.bf16.mxu0 %v3899
    %5105 = vmatpush1.bf16.msra.mxu0 %v3898
    %5106 = vmatprep.subr.bf16.mxu0 %v3904
    %5107 = vmatpush1.bf16.msra.mxu0 %v3903
    %5108 = vmatprep.subr.bf16.mxu0 %v3909
    %5109 = vmatpush1.bf16.msra.mxu0 %v3908
    %5110 = vmatprep.mubr.bf16.mxu0 %v1077
    %5111 = vmatmul.mubr.bf16.gmra.mrb[0].mxu0 %v1075
    %v5112 = vpop.f32.mrb[0].mxu0
    %v5113 = vadd.f32 %v5072, %v5112
    %v5114 = vpop.f32.mrb[0].mxu0
    %v5115 = vadd.f32 %v5074, %v5114
    %v5116 = vpop.f32.mrb[0].mxu0
    %v5117 = vpop.f32.mrb[0].mxu0
    %5118 = vdwg.mxu0
    %5119 = vmatprep.subr.bf16.mxu0 %v3914
    %5120 = vmatpush1.bf16.msra.mxu0 %v3913
    %5121 = vmatprep.subr.bf16.mxu0 %v3919
    %5122 = vmatpush1.bf16.msra.mxu0 %v3918
    %5123 = vmatprep.subr.bf16.mxu0 %v3924
    %5124 = vmatpush1.bf16.msra.mxu0 %v3923
    %5125 = vmatprep.subr.bf16.mxu0 %v3929
    %5126 = vmatpush1.bf16.msra.mxu0 %v3928
    %5127 = vmatprep.subr.bf16.mxu0 %v3934
    %5128 = vmatpush1.bf16.msra.mxu0 %v3933
    %5129 = vmatprep.subr.bf16.mxu0 %v3939
    %5130 = vmatpush1.bf16.msra.mxu0 %v3938
    %5131 = vmatprep.subr.bf16.mxu0 %v3944
    %5132 = vmatpush1.bf16.msra.mxu0 %v3943
    %5133 = vmatprep.subr.bf16.mxu0 %v3949
    %5134 = vmatpush1.bf16.msra.mxu0 %v3948
    %5135 = vmatprep.subr.bf16.mxu0 %v3954
    %5136 = vmatpush1.bf16.msra.mxu0 %v3953
    %5137 = vmatprep.subr.bf16.mxu0 %v3959
    %5138 = vmatpush1.bf16.msra.mxu0 %v3958
    %5139 = vmatprep.subr.bf16.mxu0 %v3964
    %5140 = vmatpush1.bf16.msra.mxu0 %v3963
    %5141 = vmatprep.subr.bf16.mxu0 %v3969
    %5142 = vmatpush1.bf16.msra.mxu0 %v3968
    %5143 = vmatprep.subr.bf16.mxu0 %v3974
    %5144 = vmatpush1.bf16.msra.mxu0 %v3973
    %5145 = vmatprep.subr.bf16.mxu0 %v3979
    %5146 = vmatpush1.bf16.msra.mxu0 %v3978
    %5147 = vmatprep.subr.bf16.mxu0 %v3984
    %5148 = vmatpush1.bf16.msra.mxu0 %v3983
    %5149 = vmatprep.subr.bf16.mxu0 %v3989
    %5150 = vmatpush1.bf16.msra.mxu0 %v3988
    %5151 = vmatprep.mubr.bf16.mxu0 %v1074
    %5152 = vmatmul.mubr.bf16.gmra.mrb[0].mxu0 %v1060
    %v5153 = vpop.f32.mrb[0].mxu0
    %v5154 = vadd.f32 %v5113, %v5153
    %v5155 = vpop.f32.mrb[0].mxu0
    %v5156 = vadd.f32 %v5115, %v5155
    %v5157 = vpop.f32.mrb[0].mxu0
    %v5158 = vpop.f32.mrb[0].mxu0
    %5159 = vdwg.mxu0
    %5160 = vmatprep.subr.bf16.mxu0 %v3994
    %5161 = vmatpush1.bf16.msra.mxu0 %v3993
    %5162 = vmatprep.subr.bf16.mxu0 %v3999
    %5163 = vmatpush1.bf16.msra.mxu0 %v3998
    %5164 = vmatprep.subr.bf16.mxu0 %v4004
    %5165 = vmatpush1.bf16.msra.mxu0 %v4003
    %5166 = vmatprep.subr.bf16.mxu0 %v4009
    %5167 = vmatpush1.bf16.msra.mxu0 %v4008
    %5168 = vmatprep.subr.bf16.mxu0 %v4014
    %5169 = vmatpush1.bf16.msra.mxu0 %v4013
    %5170 = vmatprep.subr.bf16.mxu0 %v4019
    %5171 = vmatpush1.bf16.msra.mxu0 %v4018
    %5172 = vmatprep.subr.bf16.mxu0 %v4024
    %5173 = vmatpush1.bf16.msra.mxu0 %v4023
    %5174 = vmatprep.subr.bf16.mxu0 %v4029
    %5175 = vmatpush1.bf16.msra.mxu0 %v4028
    %5176 = vmatprep.subr.bf16.mxu0 %v4034
    %5177 = vmatpush1.bf16.msra.mxu0 %v4033
    %5178 = vmatprep.subr.bf16.mxu0 %v4039
    %5179 = vmatpush1.bf16.msra.mxu0 %v4038
    %5180 = vmatprep.subr.bf16.mxu0 %v4044
    %5181 = vmatpush1.bf16.msra.mxu0 %v4043
    %5182 = vmatprep.subr.bf16.mxu0 %v4049
    %5183 = vmatpush1.bf16.msra.mxu0 %v4048
    %5184 = vmatprep.subr.bf16.mxu0 %v4054
    %5185 = vmatpush1.bf16.msra.mxu0 %v4053
    %5186 = vmatprep.subr.bf16.mxu0 %v4059
    %5187 = vmatpush1.bf16.msra.mxu0 %v4058
    %5188 = vmatprep.subr.bf16.mxu0 %v4064
    %5189 = vmatpush1.bf16.msra.mxu0 %v4063
    %5190 = vmatprep.subr.bf16.mxu0 %v4069
    %5191 = vmatpush1.bf16.msra.mxu0 %v4068
    %5192 = vmatprep.mubr.bf16.mxu0 %v1078
    %5193 = vmatmul.mubr.bf16.gmra.mrb[0].mxu0 %v1076
    %v5194 = vpop.f32.mrb[0].mxu0
    %v5195 = vadd.f32 %v5154, %v5194
    %v5196 = vpop.f32.mrb[0].mxu0
    %v5197 = vadd.f32 %v5156, %v5196
    %v5198 = vpop.f32.mrb[0].mxu0
    %v5199 = vpop.f32.mrb[0].mxu0
    %5200 = vdwg.mxu0
    %5201 = vmatprep.subr.bf16.mxu0 %v4074
    %5202 = vmatpush1.bf16.msra.mxu0 %v4073
    %5203 = vmatprep.subr.bf16.mxu0 %v4079
    %5204 = vmatpush1.bf16.msra.mxu0 %v4078
    %5205 = vmatprep.subr.bf16.mxu0 %v4084
    %5206 = vmatpush1.bf16.msra.mxu0 %v4083
    %5207 = vmatprep.subr.bf16.mxu0 %v4089
    %5208 = vmatpush1.bf16.msra.mxu0 %v4088
    %5209 = vmatprep.subr.bf16.mxu0 %v4094
    %5210 = vmatpush1.bf16.msra.mxu0 %v4093
    %5211 = vmatprep.subr.bf16.mxu0 %v4099
    %5212 = vmatpush1.bf16.msra.mxu0 %v4098
    %5213 = vmatprep.subr.bf16.mxu0 %v4104
    %5214 = vmatpush1.bf16.msra.mxu0 %v4103
    %5215 = vmatprep.subr.bf16.mxu0 %v4109
    %5216 = vmatpush1.bf16.msra.mxu0 %v4108
    %5217 = vmatprep.subr.bf16.mxu0 %v4114
    %5218 = vmatpush1.bf16.msra.mxu0 %v4113
    %5219 = vmatprep.subr.bf16.mxu0 %v4119
    %5220 = vmatpush1.bf16.msra.mxu0 %v4118
    %5221 = vmatprep.subr.bf16.mxu0 %v4124
    %5222 = vmatpush1.bf16.msra.mxu0 %v4123
    %5223 = vmatprep.subr.bf16.mxu0 %v4129
    %5224 = vmatpush1.bf16.msra.mxu0 %v4128
    %5225 = vmatprep.subr.bf16.mxu0 %v4134
    %5226 = vmatpush1.bf16.msra.mxu0 %v4133
    %5227 = vmatprep.subr.bf16.mxu0 %v4139
    %5228 = vmatpush1.bf16.msra.mxu0 %v4138
    %5229 = vmatprep.subr.bf16.mxu0 %v4144
    %5230 = vmatpush1.bf16.msra.mxu0 %v4143
    %5231 = vmatprep.subr.bf16.mxu0 %v4149
    %5232 = vmatpush1.bf16.msra.mxu0 %v4148
    %5233 = vmatprep.mubr.bf16.mxu0 %v1110
    %5234 = vmatmul.mubr.bf16.gmra.mrb[0].mxu0 %v1103
    %v5235 = vpop.f32.mrb[0].mxu0
    %v5236 = vadd.f32 %v5195, %v5235
    %v5237 = vpop.f32.mrb[0].mxu0
    %v5238 = vadd.f32 %v5197, %v5237
    %v5239 = vpop.f32.mrb[0].mxu0
    %v5240 = vpop.f32.mrb[0].mxu0
    %5241 = vdwg.mxu0
    %5242 = vmatprep.subr.bf16.mxu0 %v3436
    %5243 = vmatpush1.bf16.msra.mxu0 %v3435
    %5244 = vmatprep.subr.bf16.mxu0 %v3441
    %5245 = vmatpush1.bf16.msra.mxu0 %v3440
    %5246 = vmatprep.subr.bf16.mxu0 %v3446
    %5247 = vmatpush1.bf16.msra.mxu0 %v3445
    %5248 = vmatprep.subr.bf16.mxu0 %v3451
    %5249 = vmatpush1.bf16.msra.mxu0 %v3450
    %5250 = vmatprep.subr.bf16.mxu0 %v3456
    %5251 = vmatpush1.bf16.msra.mxu0 %v3455
    %5252 = vmatprep.subr.bf16.mxu0 %v3461
    %5253 = vmatpush1.bf16.msra.mxu0 %v3460
    %5254 = vmatprep.subr.bf16.mxu0 %v3466
    %5255 = vmatpush1.bf16.msra.mxu0 %v3465
    %5256 = vmatprep.subr.bf16.mxu0 %v3471
    %5257 = vmatpush1.bf16.msra.mxu0 %v3470
    %5258 = vmatprep.subr.bf16.mxu0 %v3476
    %5259 = vmatpush1.bf16.msra.mxu0 %v3475
    %5260 = vmatprep.subr.bf16.mxu0 %v3481
    %5261 = vmatpush1.bf16.msra.mxu0 %v3480
    %5262 = vmatprep.subr.bf16.mxu0 %v3486
    %5263 = vmatpush1.bf16.msra.mxu0 %v3485
    %5264 = vmatprep.subr.bf16.mxu0 %v3491
    %5265 = vmatpush1.bf16.msra.mxu0 %v3490
    %5266 = vmatprep.subr.bf16.mxu0 %v3496
    %5267 = vmatpush1.bf16.msra.mxu0 %v3495
    %5268 = vmatprep.subr.bf16.mxu0 %v3501
    %5269 = vmatpush1.bf16.msra.mxu0 %v3500
    %5270 = vmatprep.subr.bf16.mxu0 %v3506
    %5271 = vmatpush1.bf16.msra.mxu0 %v3505
    %5272 = vmatprep.subr.bf16.mxu0 %v3511
    %5273 = vmatpush1.bf16.msra.mxu0 %v3510
    %5274 = vmatprep.mubr.bf16.mxu0 %v999
    %5275 = vmatmul.mubr.bf16.gmra.mrb[0].mxu0 %v985
    %v5276 = vpop.f32.mrb[0].mxu0
    %v5277 = vadd.f32 %v917, %v5276
    %v5278 = vpop.f32.mrb[0].mxu0
    %v5279 = vadd.f32 %v921, %v5278
    %v5280 = vpop.f32.mrb[0].mxu0
    %v5281 = vpop.f32.mrb[0].mxu0
    %5282 = vdwg.mxu0
    %5283 = vmatprep.subr.bf16.mxu0 %v3516
    %5284 = vmatpush1.bf16.msra.mxu0 %v3515
    %5285 = vmatprep.subr.bf16.mxu0 %v3521
    %5286 = vmatpush1.bf16.msra.mxu0 %v3520
    %5287 = vmatprep.subr.bf16.mxu0 %v3526
    %5288 = vmatpush1.bf16.msra.mxu0 %v3525
    %5289 = vmatprep.subr.bf16.mxu0 %v3531
    %5290 = vmatpush1.bf16.msra.mxu0 %v3530
    %5291 = vmatprep.subr.bf16.mxu0 %v3536
    %5292 = vmatpush1.bf16.msra.mxu0 %v3535
    %5293 = vmatprep.subr.bf16.mxu0 %v3541
    %5294 = vmatpush1.bf16.msra.mxu0 %v3540
    %5295 = vmatprep.subr.bf16.mxu0 %v3546
    %5296 = vmatpush1.bf16.msra.mxu0 %v3545
    %5297 = vmatprep.subr.bf16.mxu0 %v3551
    %5298 = vmatpush1.bf16.msra.mxu0 %v3550
    %5299 = vmatprep.subr.bf16.mxu0 %v3556
    %5300 = vmatpush1.bf16.msra.mxu0 %v3555
    %5301 = vmatprep.subr.bf16.mxu0 %v3561
    %5302 = vmatpush1.bf16.msra.mxu0 %v3560
    %5303 = vmatprep.subr.bf16.mxu0 %v3566
    %5304 = vmatpush1.bf16.msra.mxu0 %v3565
    %5305 = vmatprep.subr.bf16.mxu0 %v3571
    %5306 = vmatpush1.bf16.msra.mxu0 %v3570
    %5307 = vmatprep.subr.bf16.mxu0 %v3576
    %5308 = vmatpush1.bf16.msra.mxu0 %v3575
    %5309 = vmatprep.subr.bf16.mxu0 %v3581
    %5310 = vmatpush1.bf16.msra.mxu0 %v3580
    %5311 = vmatprep.subr.bf16.mxu0 %v3586
    %5312 = vmatpush1.bf16.msra.mxu0 %v3585
    %5313 = vmatprep.subr.bf16.mxu0 %v3591
    %5314 = vmatpush1.bf16.msra.mxu0 %v3590
    %5315 = vmatprep.mubr.bf16.mxu0 %v1009
    %5316 = vmatmul.mubr.bf16.gmra.mrb[0].mxu0 %v1007
    %v5317 = vpop.f32.mrb[0].mxu0
    %v5318 = vadd.f32 %v5277, %v5317
    %v5319 = vpop.f32.mrb[0].mxu0
    %v5320 = vadd.f32 %v5279, %v5319
    %v5321 = vpop.f32.mrb[0].mxu0
    %v5322 = vpop.f32.mrb[0].mxu0
    %5323 = vdwg.mxu0
    %5324 = vmatprep.subr.bf16.mxu0 %v3596
    %5325 = vmatpush1.bf16.msra.mxu0 %v3595
    %5326 = vmatprep.subr.bf16.mxu0 %v3601
    %5327 = vmatpush1.bf16.msra.mxu0 %v3600
    %5328 = vmatprep.subr.bf16.mxu0 %v3606
    %5329 = vmatpush1.bf16.msra.mxu0 %v3605
    %5330 = vmatprep.subr.bf16.mxu0 %v3611
    %5331 = vmatpush1.bf16.msra.mxu0 %v3610
    %5332 = vmatprep.subr.bf16.mxu0 %v3616
    %5333 = vmatpush1.bf16.msra.mxu0 %v3615
    %5334 = vmatprep.subr.bf16.mxu0 %v3621
    %5335 = vmatpush1.bf16.msra.mxu0 %v3620
    %5336 = vmatprep.subr.bf16.mxu0 %v3626
    %5337 = vmatpush1.bf16.msra.mxu0 %v3625
    %5338 = vmatprep.subr.bf16.mxu0 %v3631
    %5339 = vmatpush1.bf16.msra.mxu0 %v3630
    %5340 = vmatprep.subr.bf16.mxu0 %v3636
    %5341 = vmatpush1.bf16.msra.mxu0 %v3635
    %5342 = vmatprep.subr.bf16.mxu0 %v3641
    %5343 = vmatpush1.bf16.msra.mxu0 %v3640
    %5344 = vmatprep.subr.bf16.mxu0 %v3646
    %5345 = vmatpush1.bf16.msra.mxu0 %v3645
    %5346 = vmatprep.subr.bf16.mxu0 %v3651
    %5347 = vmatpush1.bf16.msra.mxu0 %v3650
    %5348 = vmatprep.subr.bf16.mxu0 %v3656
    %5349 = vmatpush1.bf16.msra.mxu0 %v3655
    %5350 = vmatprep.subr.bf16.mxu0 %v3661
    %5351 = vmatpush1.bf16.msra.mxu0 %v3660
    %5352 = vmatprep.subr.bf16.mxu0 %v3666
    %5353 = vmatpush1.bf16.msra.mxu0 %v3665
    %5354 = vmatprep.subr.bf16.mxu0 %v3671
    %5355 = vmatpush1.bf16.msra.mxu0 %v3670
    %5356 = vmatprep.mubr.bf16.mxu0 %v1006
    %5357 = vmatmul.mubr.bf16.gmra.mrb[0].mxu0 %v992
    %v5358 = vpop.f32.mrb[0].mxu0
    %v5359 = vadd.f32 %v5318, %v5358
    %v5360 = vpop.f32.mrb[0].mxu0
    %v5361 = vadd.f32 %v5320, %v5360
    %v5362 = vpop.f32.mrb[0].mxu0
    %v5363 = vpop.f32.mrb[0].mxu0
    %5364 = vdwg.mxu0
    %5365 = vmatprep.subr.bf16.mxu0 %v3676
    %5366 = vmatpush1.bf16.msra.mxu0 %v3675
    %5367 = vmatprep.subr.bf16.mxu0 %v3681
    %5368 = vmatpush1.bf16.msra.mxu0 %v3680
    %5369 = vmatprep.subr.bf16.mxu0 %v3686
    %5370 = vmatpush1.bf16.msra.mxu0 %v3685
    %5371 = vmatprep.subr.bf16.mxu0 %v3691
    %5372 = vmatpush1.bf16.msra.mxu0 %v3690
    %5373 = vmatprep.subr.bf16.mxu0 %v3696
    %5374 = vmatpush1.bf16.msra.mxu0 %v3695
    %5375 = vmatprep.subr.bf16.mxu0 %v3701
    %5376 = vmatpush1.bf16.msra.mxu0 %v3700
    %5377 = vmatprep.subr.bf16.mxu0 %v3706
    %5378 = vmatpush1.bf16.msra.mxu0 %v3705
    %5379 = vmatprep.subr.bf16.mxu0 %v3711
    %5380 = vmatpush1.bf16.msra.mxu0 %v3710
    %5381 = vmatprep.subr.bf16.mxu0 %v3716
    %5382 = vmatpush1.bf16.msra.mxu0 %v3715
    %5383 = vmatprep.subr.bf16.mxu0 %v3721
    %5384 = vmatpush1.bf16.msra.mxu0 %v3720
    %5385 = vmatprep.subr.bf16.mxu0 %v3726
    %5386 = vmatpush1.bf16.msra.mxu0 %v3725
    %5387 = vmatprep.subr.bf16.mxu0 %v3731
    %5388 = vmatpush1.bf16.msra.mxu0 %v3730
    %5389 = vmatprep.subr.bf16.mxu0 %v3736
    %5390 = vmatpush1.bf16.msra.mxu0 %v3735
    %5391 = vmatprep.subr.bf16.mxu0 %v3741
    %5392 = vmatpush1.bf16.msra.mxu0 %v3740
    %5393 = vmatprep.subr.bf16.mxu0 %v3746
    %5394 = vmatpush1.bf16.msra.mxu0 %v3745
    %5395 = vmatprep.subr.bf16.mxu0 %v3751
    %5396 = vmatpush1.bf16.msra.mxu0 %v3750
    %5397 = vmatprep.mubr.bf16.mxu0 %v1010
    %5398 = vmatmul.mubr.bf16.gmra.mrb[0].mxu0 %v1008
    %v5399 = vpop.f32.mrb[0].mxu0
    %v5400 = vadd.f32 %v5359, %v5399
    %v5401 = vpop.f32.mrb[0].mxu0
    %v5402 = vadd.f32 %v5361, %v5401
    %v5403 = vpop.f32.mrb[0].mxu0
    %v5404 = vpop.f32.mrb[0].mxu0
    %5405 = vdwg.mxu0
    %5406 = vmatprep.subr.bf16.mxu0 %v3756
    %5407 = vmatpush1.bf16.msra.mxu0 %v3755
    %5408 = vmatprep.subr.bf16.mxu0 %v3761
    %5409 = vmatpush1.bf16.msra.mxu0 %v3760
    %5410 = vmatprep.subr.bf16.mxu0 %v3766
    %5411 = vmatpush1.bf16.msra.mxu0 %v3765
    %5412 = vmatprep.subr.bf16.mxu0 %v3771
    %5413 = vmatpush1.bf16.msra.mxu0 %v3770
    %5414 = vmatprep.subr.bf16.mxu0 %v3776
    %5415 = vmatpush1.bf16.msra.mxu0 %v3775
    %5416 = vmatprep.subr.bf16.mxu0 %v3781
    %5417 = vmatpush1.bf16.msra.mxu0 %v3780
    %5418 = vmatprep.subr.bf16.mxu0 %v3786
    %5419 = vmatpush1.bf16.msra.mxu0 %v3785
    %5420 = vmatprep.subr.bf16.mxu0 %v3791
    %5421 = vmatpush1.bf16.msra.mxu0 %v3790
    %5422 = vmatprep.subr.bf16.mxu0 %v3796
    %5423 = vmatpush1.bf16.msra.mxu0 %v3795
    %5424 = vmatprep.subr.bf16.mxu0 %v3801
    %5425 = vmatpush1.bf16.msra.mxu0 %v3800
    %5426 = vmatprep.subr.bf16.mxu0 %v3806
    %5427 = vmatpush1.bf16.msra.mxu0 %v3805
    %5428 = vmatprep.subr.bf16.mxu0 %v3811
    %5429 = vmatpush1.bf16.msra.mxu0 %v3810
    %5430 = vmatprep.subr.bf16.mxu0 %v3816
    %5431 = vmatpush1.bf16.msra.mxu0 %v3815
    %5432 = vmatprep.subr.bf16.mxu0 %v3821
    %5433 = vmatpush1.bf16.msra.mxu0 %v3820
    %5434 = vmatprep.subr.bf16.mxu0 %v3826
    %5435 = vmatpush1.bf16.msra.mxu0 %v3825
    %5436 = vmatprep.subr.bf16.mxu0 %v3831
    %5437 = vmatpush1.bf16.msra.mxu0 %v3830
    %5438 = vmatprep.mubr.bf16.mxu0 %v1067
    %5439 = vmatmul.mubr.bf16.gmra.mrb[0].mxu0 %v1053
    %v5440 = vpop.f32.mrb[0].mxu0
    %v5441 = vadd.f32 %v5400, %v5440
    %v5442 = vpop.f32.mrb[0].mxu0
    %v5443 = vadd.f32 %v5402, %v5442
    %v5444 = vpop.f32.mrb[0].mxu0
    %v5445 = vpop.f32.mrb[0].mxu0
    %5446 = vdwg.mxu0
    %5447 = vmatprep.subr.bf16.mxu0 %v3836
    %5448 = vmatpush1.bf16.msra.mxu0 %v3835
    %5449 = vmatprep.subr.bf16.mxu0 %v3841
    %5450 = vmatpush1.bf16.msra.mxu0 %v3840
    %5451 = vmatprep.subr.bf16.mxu0 %v3846
    %5452 = vmatpush1.bf16.msra.mxu0 %v3845
    %5453 = vmatprep.subr.bf16.mxu0 %v3851
    %5454 = vmatpush1.bf16.msra.mxu0 %v3850
    %5455 = vmatprep.subr.bf16.mxu0 %v3856
    %5456 = vmatpush1.bf16.msra.mxu0 %v3855
    %5457 = vmatprep.subr.bf16.mxu0 %v3861
    %5458 = vmatpush1.bf16.msra.mxu0 %v3860
    %5459 = vmatprep.subr.bf16.mxu0 %v3866
    %5460 = vmatpush1.bf16.msra.mxu0 %v3865
    %5461 = vmatprep.subr.bf16.mxu0 %v3871
    %5462 = vmatpush1.bf16.msra.mxu0 %v3870
    %5463 = vmatprep.subr.bf16.mxu0 %v3876
    %5464 = vmatpush1.bf16.msra.mxu0 %v3875
    %5465 = vmatprep.subr.bf16.mxu0 %v3881
    %5466 = vmatpush1.bf16.msra.mxu0 %v3880
    %5467 = vmatprep.subr.bf16.mxu0 %v3886
    %5468 = vmatpush1.bf16.msra.mxu0 %v3885
    %5469 = vmatprep.subr.bf16.mxu0 %v3891
    %5470 = vmatpush1.bf16.msra.mxu0 %v3890
    %5471 = vmatprep.subr.bf16.mxu0 %v3896
    %5472 = vmatpush1.bf16.msra.mxu0 %v3895
    %5473 = vmatprep.subr.bf16.mxu0 %v3901
    %5474 = vmatpush1.bf16.msra.mxu0 %v3900
    %5475 = vmatprep.subr.bf16.mxu0 %v3906
    %5476 = vmatpush1.bf16.msra.mxu0 %v3905
    %5477 = vmatprep.subr.bf16.mxu0 %v3911
    %5478 = vmatpush1.bf16.msra.mxu0 %v3910
    %5479 = vmatprep.mubr.bf16.mxu0 %v1077
    %5480 = vmatmul.mubr.bf16.gmra.mrb[0].mxu0 %v1075
    %v5481 = vpop.f32.mrb[0].mxu0
    %v5482 = vadd.f32 %v5441, %v5481
    %v5483 = vpop.f32.mrb[0].mxu0
    %v5484 = vadd.f32 %v5443, %v5483
    %v5485 = vpop.f32.mrb[0].mxu0
    %v5486 = vpop.f32.mrb[0].mxu0
    %5487 = vdwg.mxu0
    %5488 = vmatprep.subr.bf16.mxu0 %v3916
    %5489 = vmatpush1.bf16.msra.mxu0 %v3915
    %5490 = vmatprep.subr.bf16.mxu0 %v3921
    %5491 = vmatpush1.bf16.msra.mxu0 %v3920
    %5492 = vmatprep.subr.bf16.mxu0 %v3926
    %5493 = vmatpush1.bf16.msra.mxu0 %v3925
    %5494 = vmatprep.subr.bf16.mxu0 %v3931
    %5495 = vmatpush1.bf16.msra.mxu0 %v3930
    %5496 = vmatprep.subr.bf16.mxu0 %v3936
    %5497 = vmatpush1.bf16.msra.mxu0 %v3935
    %5498 = vmatprep.subr.bf16.mxu0 %v3941
    %5499 = vmatpush1.bf16.msra.mxu0 %v3940
    %5500 = vmatprep.subr.bf16.mxu0 %v3946
    %5501 = vmatpush1.bf16.msra.mxu0 %v3945
    %5502 = vmatprep.subr.bf16.mxu0 %v3951
    %5503 = vmatpush1.bf16.msra.mxu0 %v3950
    %5504 = vmatprep.subr.bf16.mxu0 %v3956
    %5505 = vmatpush1.bf16.msra.mxu0 %v3955
    %5506 = vmatprep.subr.bf16.mxu0 %v3961
    %5507 = vmatpush1.bf16.msra.mxu0 %v3960
    %5508 = vmatprep.subr.bf16.mxu0 %v3966
    %5509 = vmatpush1.bf16.msra.mxu0 %v3965
    %5510 = vmatprep.subr.bf16.mxu0 %v3971
    %5511 = vmatpush1.bf16.msra.mxu0 %v3970
    %5512 = vmatprep.subr.bf16.mxu0 %v3976
    %5513 = vmatpush1.bf16.msra.mxu0 %v3975
    %5514 = vmatprep.subr.bf16.mxu0 %v3981
    %5515 = vmatpush1.bf16.msra.mxu0 %v3980
    %5516 = vmatprep.subr.bf16.mxu0 %v3986
    %5517 = vmatpush1.bf16.msra.mxu0 %v3985
    %5518 = vmatprep.subr.bf16.mxu0 %v3991
    %5519 = vmatpush1.bf16.msra.mxu0 %v3990
    %5520 = vmatprep.mubr.bf16.mxu0 %v1074
    %5521 = vmatmul.mubr.bf16.gmra.mrb[0].mxu0 %v1060
    %v5522 = vpop.f32.mrb[0].mxu0
    %v5523 = vadd.f32 %v5482, %v5522
    %v5524 = vpop.f32.mrb[0].mxu0
    %v5525 = vadd.f32 %v5484, %v5524
    %v5526 = vpop.f32.mrb[0].mxu0
    %v5527 = vpop.f32.mrb[0].mxu0
    %5528 = vdwg.mxu0
    %5529 = vmatprep.subr.bf16.mxu0 %v3996
    %5530 = vmatpush1.bf16.msra.mxu0 %v3995
    %5531 = vmatprep.subr.bf16.mxu0 %v4001
    %5532 = vmatpush1.bf16.msra.mxu0 %v4000
    %5533 = vmatprep.subr.bf16.mxu0 %v4006
    %5534 = vmatpush1.bf16.msra.mxu0 %v4005
    %5535 = vmatprep.subr.bf16.mxu0 %v4011
    %5536 = vmatpush1.bf16.msra.mxu0 %v4010
    %5537 = vmatprep.subr.bf16.mxu0 %v4016
    %5538 = vmatpush1.bf16.msra.mxu0 %v4015
    %5539 = vmatprep.subr.bf16.mxu0 %v4021
    %5540 = vmatpush1.bf16.msra.mxu0 %v4020
    %5541 = vmatprep.subr.bf16.mxu0 %v4026
    %5542 = vmatpush1.bf16.msra.mxu0 %v4025
    %5543 = vmatprep.subr.bf16.mxu0 %v4031
    %5544 = vmatpush1.bf16.msra.mxu0 %v4030
    %5545 = vmatprep.subr.bf16.mxu0 %v4036
    %5546 = vmatpush1.bf16.msra.mxu0 %v4035
    %5547 = vmatprep.subr.bf16.mxu0 %v4041
    %5548 = vmatpush1.bf16.msra.mxu0 %v4040
    %5549 = vmatprep.subr.bf16.mxu0 %v4046
    %5550 = vmatpush1.bf16.msra.mxu0 %v4045
    %5551 = vmatprep.subr.bf16.mxu0 %v4051
    %5552 = vmatpush1.bf16.msra.mxu0 %v4050
    %5553 = vmatprep.subr.bf16.mxu0 %v4056
    %5554 = vmatpush1.bf16.msra.mxu0 %v4055
    %5555 = vmatprep.subr.bf16.mxu0 %v4061
    %5556 = vmatpush1.bf16.msra.mxu0 %v4060
    %5557 = vmatprep.subr.bf16.mxu0 %v4066
    %5558 = vmatpush1.bf16.msra.mxu0 %v4065
    %5559 = vmatprep.subr.bf16.mxu0 %v4071
    %5560 = vmatpush1.bf16.msra.mxu0 %v4070
    %5561 = vmatprep.mubr.bf16.mxu0 %v1078
    %5562 = vmatmul.mubr.bf16.gmra.mrb[0].mxu0 %v1076
    %v5563 = vpop.f32.mrb[0].mxu0
    %v5564 = vadd.f32 %v5523, %v5563
    %v5565 = vpop.f32.mrb[0].mxu0
    %v5566 = vadd.f32 %v5525, %v5565
    %v5567 = vpop.f32.mrb[0].mxu0
    %v5568 = vpop.f32.mrb[0].mxu0
    %5569 = vdwg.mxu0
    %5570 = vmatprep.subr.bf16.mxu0 %v4076
    %5571 = vmatpush1.bf16.msra.mxu0 %v4075
    %5572 = vmatprep.subr.bf16.mxu0 %v4081
    %5573 = vmatpush1.bf16.msra.mxu0 %v4080
    %5574 = vmatprep.subr.bf16.mxu0 %v4086
    %5575 = vmatpush1.bf16.msra.mxu0 %v4085
    %5576 = vmatprep.subr.bf16.mxu0 %v4091
    %5577 = vmatpush1.bf16.msra.mxu0 %v4090
    %5578 = vmatprep.subr.bf16.mxu0 %v4096
    %5579 = vmatpush1.bf16.msra.mxu0 %v4095
    %5580 = vmatprep.subr.bf16.mxu0 %v4101
    %5581 = vmatpush1.bf16.msra.mxu0 %v4100
    %5582 = vmatprep.subr.bf16.mxu0 %v4106
    %5583 = vmatpush1.bf16.msra.mxu0 %v4105
    %5584 = vmatprep.subr.bf16.mxu0 %v4111
    %5585 = vmatpush1.bf16.msra.mxu0 %v4110
    %5586 = vmatprep.subr.bf16.mxu0 %v4116
    %5587 = vmatpush1.bf16.msra.mxu0 %v4115
    %5588 = vmatprep.subr.bf16.mxu0 %v4121
    %5589 = vmatpush1.bf16.msra.mxu0 %v4120
    %5590 = vmatprep.subr.bf16.mxu0 %v4126
    %5591 = vmatpush1.bf16.msra.mxu0 %v4125
    %5592 = vmatprep.subr.bf16.mxu0 %v4131
    %5593 = vmatpush1.bf16.msra.mxu0 %v4130
    %5594 = vmatprep.subr.bf16.mxu0 %v4136
    %5595 = vmatpush1.bf16.msra.mxu0 %v4135
    %5596 = vmatprep.subr.bf16.mxu0 %v4141
    %5597 = vmatpush1.bf16.msra.mxu0 %v4140
    %5598 = vmatprep.subr.bf16.mxu0 %v4146
    %5599 = vmatpush1.bf16.msra.mxu0 %v4145
    %5600 = vmatprep.subr.bf16.mxu0 %v4151
    %5601 = vmatpush1.bf16.msra.mxu0 %v4150
    %5602 = vmatprep.mubr.bf16.mxu0 %v1110
    %5603 = vmatmul.mubr.bf16.gmra.mrb[0].mxu0 %v1103
    %v5604 = vpop.f32.mrb[0].mxu0
    %v5605 = vadd.f32 %v5564, %v5604
    %v5606 = vpop.f32.mrb[0].mxu0
    %v5607 = vadd.f32 %v5566, %v5606
    %v5608 = vpop.f32.mrb[0].mxu0
    %v5609 = vpop.f32.mrb[0].mxu0
    %5610 = vdwg.mxu0
    %5611 = vmatprep.subr.bf16.mxu0 0
    %5612 = vmatpush1.bf16.msra.mxu0 %v3437
    %5613 = vmatprep.subr.bf16.mxu0 0
    %5614 = vmatpush1.bf16.msra.mxu0 %v3442
    %5615 = vmatprep.subr.bf16.mxu0 0
    %5616 = vmatpush1.bf16.msra.mxu0 %v3447
    %5617 = vmatprep.subr.bf16.mxu0 0
    %5618 = vmatpush1.bf16.msra.mxu0 %v3452
    %5619 = vmatprep.subr.bf16.mxu0 0
    %5620 = vmatpush1.bf16.msra.mxu0 %v3457
    %5621 = vmatprep.subr.bf16.mxu0 0
    %5622 = vmatpush1.bf16.msra.mxu0 %v3462
    %5623 = vmatprep.subr.bf16.mxu0 0
    %5624 = vmatpush1.bf16.msra.mxu0 %v3467
    %5625 = vmatprep.subr.bf16.mxu0 0
    %5626 = vmatpush1.bf16.msra.mxu0 %v3472
    %5627 = vmatprep.subr.bf16.mxu0 0
    %5628 = vmatpush1.bf16.msra.mxu0 %v3477
    %5629 = vmatprep.subr.bf16.mxu0 0
    %5630 = vmatpush1.bf16.msra.mxu0 %v3482
    %5631 = vmatprep.subr.bf16.mxu0 0
    %5632 = vmatpush1.bf16.msra.mxu0 %v3487
    %5633 = vmatprep.subr.bf16.mxu0 0
    %5634 = vmatpush1.bf16.msra.mxu0 %v3492
    %5635 = vmatprep.subr.bf16.mxu0 0
    %5636 = vmatpush1.bf16.msra.mxu0 %v3497
    %5637 = vmatprep.subr.bf16.mxu0 0
    %5638 = vmatpush1.bf16.msra.mxu0 %v3502
    %5639 = vmatprep.subr.bf16.mxu0 0
    %5640 = vmatpush1.bf16.msra.mxu0 %v3507
    %5641 = vmatprep.subr.bf16.mxu0 0
    %5642 = vmatpush1.bf16.msra.mxu0 %v3512
    %5643 = vmatprep.mubr.bf16.mxu0 %v999
    %5644 = vmatmul.mubr.bf16.gmra.mrb[0].mxu0 %v985
    %v5645 = vpop.f32.mrb[0].mxu0
    %v5646 = vadd.f32 %v925, %v5645
    %v5647 = vpop.f32.mrb[0].mxu0
    %v5648 = vpop.f32.mrb[0].mxu0
    %v5649 = vpop.f32.mrb[0].mxu0
    %5650 = vdwg.mxu0
    %5651 = vmatprep.subr.bf16.mxu0 0
    %5652 = vmatpush1.bf16.msra.mxu0 %v3517
    %5653 = vmatprep.subr.bf16.mxu0 0
    %5654 = vmatpush1.bf16.msra.mxu0 %v3522
    %5655 = vmatprep.subr.bf16.mxu0 0
    %5656 = vmatpush1.bf16.msra.mxu0 %v3527
    %5657 = vmatprep.subr.bf16.mxu0 0
    %5658 = vmatpush1.bf16.msra.mxu0 %v3532
    %5659 = vmatprep.subr.bf16.mxu0 0
    %5660 = vmatpush1.bf16.msra.mxu0 %v3537
    %5661 = vmatprep.subr.bf16.mxu0 0
    %5662 = vmatpush1.bf16.msra.mxu0 %v3542
    %5663 = vmatprep.subr.bf16.mxu0 0
    %5664 = vmatpush1.bf16.msra.mxu0 %v3547
    %5665 = vmatprep.subr.bf16.mxu0 0
    %5666 = vmatpush1.bf16.msra.mxu0 %v3552
    %5667 = vmatprep.subr.bf16.mxu0 0
    %5668 = vmatpush1.bf16.msra.mxu0 %v3557
    %5669 = vmatprep.subr.bf16.mxu0 0
    %5670 = vmatpush1.bf16.msra.mxu0 %v3562
    %5671 = vmatprep.subr.bf16.mxu0 0
    %5672 = vmatpush1.bf16.msra.mxu0 %v3567
    %5673 = vmatprep.subr.bf16.mxu0 0
    %5674 = vmatpush1.bf16.msra.mxu0 %v3572
    %5675 = vmatprep.subr.bf16.mxu0 0
    %5676 = vmatpush1.bf16.msra.mxu0 %v3577
    %5677 = vmatprep.subr.bf16.mxu0 0
    %5678 = vmatpush1.bf16.msra.mxu0 %v3582
    %5679 = vmatprep.subr.bf16.mxu0 0
    %5680 = vmatpush1.bf16.msra.mxu0 %v3587
    %5681 = vmatprep.subr.bf16.mxu0 0
    %5682 = vmatpush1.bf16.msra.mxu0 %v3592
    %5683 = vmatprep.mubr.bf16.mxu0 %v1009
    %5684 = vmatmul.mubr.bf16.gmra.mrb[0].mxu0 %v1007
    %v5685 = vpop.f32.mrb[0].mxu0
    %v5686 = vadd.f32 %v5646, %v5685
    %v5687 = vpop.f32.mrb[0].mxu0
    %v5688 = vpop.f32.mrb[0].mxu0
    %v5689 = vpop.f32.mrb[0].mxu0
    %5690 = vdwg.mxu0
    %5691 = vmatprep.subr.bf16.mxu0 0
    %5692 = vmatpush1.bf16.msra.mxu0 %v3597
    %5693 = vmatprep.subr.bf16.mxu0 0
    %5694 = vmatpush1.bf16.msra.mxu0 %v3602
    %5695 = vmatprep.subr.bf16.mxu0 0
    %5696 = vmatpush1.bf16.msra.mxu0 %v3607
    %5697 = vmatprep.subr.bf16.mxu0 0
    %5698 = vmatpush1.bf16.msra.mxu0 %v3612
    %5699 = vmatprep.subr.bf16.mxu0 0
    %5700 = vmatpush1.bf16.msra.mxu0 %v3617
    %5701 = vmatprep.subr.bf16.mxu0 0
    %5702 = vmatpush1.bf16.msra.mxu0 %v3622
    %5703 = vmatprep.subr.bf16.mxu0 0
    %5704 = vmatpush1.bf16.msra.mxu0 %v3627
    %5705 = vmatprep.subr.bf16.mxu0 0
    %5706 = vmatpush1.bf16.msra.mxu0 %v3632
    %5707 = vmatprep.subr.bf16.mxu0 0
    %5708 = vmatpush1.bf16.msra.mxu0 %v3637
    %5709 = vmatprep.subr.bf16.mxu0 0
    %5710 = vmatpush1.bf16.msra.mxu0 %v3642
    %5711 = vmatprep.subr.bf16.mxu0 0
    %5712 = vmatpush1.bf16.msra.mxu0 %v3647
    %5713 = vmatprep.subr.bf16.mxu0 0
    %5714 = vmatpush1.bf16.msra.mxu0 %v3652
    %5715 = vmatprep.subr.bf16.mxu0 0
    %5716 = vmatpush1.bf16.msra.mxu0 %v3657
    %5717 = vmatprep.subr.bf16.mxu0 0
    %5718 = vmatpush1.bf16.msra.mxu0 %v3662
    %5719 = vmatprep.subr.bf16.mxu0 0
    %5720 = vmatpush1.bf16.msra.mxu0 %v3667
    %5721 = vmatprep.subr.bf16.mxu0 0
    %5722 = vmatpush1.bf16.msra.mxu0 %v3672
    %5723 = vmatprep.mubr.bf16.mxu0 %v1006
    %5724 = vmatmul.mubr.bf16.gmra.mrb[0].mxu0 %v992
    %v5725 = vpop.f32.mrb[0].mxu0
    %v5726 = vadd.f32 %v5686, %v5725
    %v5727 = vpop.f32.mrb[0].mxu0
    %v5728 = vpop.f32.mrb[0].mxu0
    %v5729 = vpop.f32.mrb[0].mxu0
    %5730 = vdwg.mxu0
    %5731 = vmatprep.subr.bf16.mxu0 0
    %5732 = vmatpush1.bf16.msra.mxu0 %v3677
    %5733 = vmatprep.subr.bf16.mxu0 0
    %5734 = vmatpush1.bf16.msra.mxu0 %v3682
    %5735 = vmatprep.subr.bf16.mxu0 0
    %5736 = vmatpush1.bf16.msra.mxu0 %v3687
    %5737 = vmatprep.subr.bf16.mxu0 0
    %5738 = vmatpush1.bf16.msra.mxu0 %v3692
    %5739 = vmatprep.subr.bf16.mxu0 0
    %5740 = vmatpush1.bf16.msra.mxu0 %v3697
    %5741 = vmatprep.subr.bf16.mxu0 0
    %5742 = vmatpush1.bf16.msra.mxu0 %v3702
    %5743 = vmatprep.subr.bf16.mxu0 0
    %5744 = vmatpush1.bf16.msra.mxu0 %v3707
    %5745 = vmatprep.subr.bf16.mxu0 0
    %5746 = vmatpush1.bf16.msra.mxu0 %v3712
    %5747 = vmatprep.subr.bf16.mxu0 0
    %5748 = vmatpush1.bf16.msra.mxu0 %v3717
    %5749 = vmatprep.subr.bf16.mxu0 0
    %5750 = vmatpush1.bf16.msra.mxu0 %v3722
    %5751 = vmatprep.subr.bf16.mxu0 0
    %5752 = vmatpush1.bf16.msra.mxu0 %v3727
    %5753 = vmatprep.subr.bf16.mxu0 0
    %5754 = vmatpush1.bf16.msra.mxu0 %v3732
    %5755 = vmatprep.subr.bf16.mxu0 0
    %5756 = vmatpush1.bf16.msra.mxu0 %v3737
    %5757 = vmatprep.subr.bf16.mxu0 0
    %5758 = vmatpush1.bf16.msra.mxu0 %v3742
    %5759 = vmatprep.subr.bf16.mxu0 0
    %5760 = vmatpush1.bf16.msra.mxu0 %v3747
    %5761 = vmatprep.subr.bf16.mxu0 0
    %5762 = vmatpush1.bf16.msra.mxu0 %v3752
    %5763 = vmatprep.mubr.bf16.mxu0 %v1010
    %5764 = vmatmul.mubr.bf16.gmra.mrb[0].mxu0 %v1008
    %v5765 = vpop.f32.mrb[0].mxu0
    %v5766 = vadd.f32 %v5726, %v5765
    %v5767 = vpop.f32.mrb[0].mxu0
    %v5768 = vpop.f32.mrb[0].mxu0
    %v5769 = vpop.f32.mrb[0].mxu0
    %5770 = vdwg.mxu0
    %5771 = vmatprep.subr.bf16.mxu0 0
    %5772 = vmatpush1.bf16.msra.mxu0 %v3757
    %5773 = vmatprep.subr.bf16.mxu0 0
    %5774 = vmatpush1.bf16.msra.mxu0 %v3762
    %5775 = vmatprep.subr.bf16.mxu0 0
    %5776 = vmatpush1.bf16.msra.mxu0 %v3767
    %5777 = vmatprep.subr.bf16.mxu0 0
    %5778 = vmatpush1.bf16.msra.mxu0 %v3772
    %5779 = vmatprep.subr.bf16.mxu0 0
    %5780 = vmatpush1.bf16.msra.mxu0 %v3777
    %5781 = vmatprep.subr.bf16.mxu0 0
    %5782 = vmatpush1.bf16.msra.mxu0 %v3782
    %5783 = vmatprep.subr.bf16.mxu0 0
    %5784 = vmatpush1.bf16.msra.mxu0 %v3787
    %5785 = vmatprep.subr.bf16.mxu0 0
    %5786 = vmatpush1.bf16.msra.mxu0 %v3792
    %5787 = vmatprep.subr.bf16.mxu0 0
    %5788 = vmatpush1.bf16.msra.mxu0 %v3797
    %5789 = vmatprep.subr.bf16.mxu0 0
    %5790 = vmatpush1.bf16.msra.mxu0 %v3802
    %5791 = vmatprep.subr.bf16.mxu0 0
    %5792 = vmatpush1.bf16.msra.mxu0 %v3807
    %5793 = vmatprep.subr.bf16.mxu0 0
    %5794 = vmatpush1.bf16.msra.mxu0 %v3812
    %5795 = vmatprep.subr.bf16.mxu0 0
    %5796 = vmatpush1.bf16.msra.mxu0 %v3817
    %5797 = vmatprep.subr.bf16.mxu0 0
    %5798 = vmatpush1.bf16.msra.mxu0 %v3822
    %5799 = vmatprep.subr.bf16.mxu0 0
    %5800 = vmatpush1.bf16.msra.mxu0 %v3827
    %5801 = vmatprep.subr.bf16.mxu0 0
    %5802 = vmatpush1.bf16.msra.mxu0 %v3832
    %5803 = vmatprep.mubr.bf16.mxu0 %v1067
    %5804 = vmatmul.mubr.bf16.gmra.mrb[0].mxu0 %v1053
    %v5805 = vpop.f32.mrb[0].mxu0
    %v5806 = vadd.f32 %v5766, %v5805
    %v5807 = vpop.f32.mrb[0].mxu0
    %v5808 = vpop.f32.mrb[0].mxu0
    %v5809 = vpop.f32.mrb[0].mxu0
    %5810 = vdwg.mxu0
    %5811 = vmatprep.subr.bf16.mxu0 0
    %5812 = vmatpush1.bf16.msra.mxu0 %v3837
    %5813 = vmatprep.subr.bf16.mxu0 0
    %5814 = vmatpush1.bf16.msra.mxu0 %v3842
    %5815 = vmatprep.subr.bf16.mxu0 0
    %5816 = vmatpush1.bf16.msra.mxu0 %v3847
    %5817 = vmatprep.subr.bf16.mxu0 0
    %5818 = vmatpush1.bf16.msra.mxu0 %v3852
    %5819 = vmatprep.subr.bf16.mxu0 0
    %5820 = vmatpush1.bf16.msra.mxu0 %v3857
    %5821 = vmatprep.subr.bf16.mxu0 0
    %5822 = vmatpush1.bf16.msra.mxu0 %v3862
    %5823 = vmatprep.subr.bf16.mxu0 0
    %5824 = vmatpush1.bf16.msra.mxu0 %v3867
    %5825 = vmatprep.subr.bf16.mxu0 0
    %5826 = vmatpush1.bf16.msra.mxu0 %v3872
    %5827 = vmatprep.subr.bf16.mxu0 0
    %5828 = vmatpush1.bf16.msra.mxu0 %v3877
    %5829 = vmatprep.subr.bf16.mxu0 0
    %5830 = vmatpush1.bf16.msra.mxu0 %v3882
    %5831 = vmatprep.subr.bf16.mxu0 0
    %5832 = vmatpush1.bf16.msra.mxu0 %v3887
    %5833 = vmatprep.subr.bf16.mxu0 0
    %5834 = vmatpush1.bf16.msra.mxu0 %v3892
    %5835 = vmatprep.subr.bf16.mxu0 0
    %5836 = vmatpush1.bf16.msra.mxu0 %v3897
    %5837 = vmatprep.subr.bf16.mxu0 0
    %5838 = vmatpush1.bf16.msra.mxu0 %v3902
    %5839 = vmatprep.subr.bf16.mxu0 0
    %5840 = vmatpush1.bf16.msra.mxu0 %v3907
    %5841 = vmatprep.subr.bf16.mxu0 0
    %5842 = vmatpush1.bf16.msra.mxu0 %v3912
    %5843 = vmatprep.mubr.bf16.mxu0 %v1077
    %5844 = vmatmul.mubr.bf16.gmra.mrb[0].mxu0 %v1075
    %v5845 = vpop.f32.mrb[0].mxu0
    %v5846 = vadd.f32 %v5806, %v5845
    %v5847 = vpop.f32.mrb[0].mxu0
    %v5848 = vpop.f32.mrb[0].mxu0
    %v5849 = vpop.f32.mrb[0].mxu0
    %5850 = vdwg.mxu0
    %5851 = vmatprep.subr.bf16.mxu0 0
    %5852 = vmatpush1.bf16.msra.mxu0 %v3917
    %5853 = vmatprep.subr.bf16.mxu0 0
    %5854 = vmatpush1.bf16.msra.mxu0 %v3922
    %5855 = vmatprep.subr.bf16.mxu0 0
    %5856 = vmatpush1.bf16.msra.mxu0 %v3927
    %5857 = vmatprep.subr.bf16.mxu0 0
    %5858 = vmatpush1.bf16.msra.mxu0 %v3932
    %5859 = vmatprep.subr.bf16.mxu0 0
    %5860 = vmatpush1.bf16.msra.mxu0 %v3937
    %5861 = vmatprep.subr.bf16.mxu0 0
    %5862 = vmatpush1.bf16.msra.mxu0 %v3942
    %5863 = vmatprep.subr.bf16.mxu0 0
    %5864 = vmatpush1.bf16.msra.mxu0 %v3947
    %5865 = vmatprep.subr.bf16.mxu0 0
    %5866 = vmatpush1.bf16.msra.mxu0 %v3952
    %5867 = vmatprep.subr.bf16.mxu0 0
    %5868 = vmatpush1.bf16.msra.mxu0 %v3957
    %5869 = vmatprep.subr.bf16.mxu0 0
    %5870 = vmatpush1.bf16.msra.mxu0 %v3962
    %5871 = vmatprep.subr.bf16.mxu0 0
    %5872 = vmatpush1.bf16.msra.mxu0 %v3967
    %5873 = vmatprep.subr.bf16.mxu0 0
    %5874 = vmatpush1.bf16.msra.mxu0 %v3972
    %5875 = vmatprep.subr.bf16.mxu0 0
    %5876 = vmatpush1.bf16.msra.mxu0 %v3977
    %5877 = vmatprep.subr.bf16.mxu0 0
    %5878 = vmatpush1.bf16.msra.mxu0 %v3982
    %5879 = vmatprep.subr.bf16.mxu0 0
    %5880 = vmatpush1.bf16.msra.mxu0 %v3987
    %5881 = vmatprep.subr.bf16.mxu0 0
    %5882 = vmatpush1.bf16.msra.mxu0 %v3992
    %5883 = vmatprep.mubr.bf16.mxu0 %v1074
    %5884 = vmatmul.mubr.bf16.gmra.mrb[0].mxu0 %v1060
    %v5885 = vpop.f32.mrb[0].mxu0
    %v5886 = vadd.f32 %v5846, %v5885
    %v5887 = vpop.f32.mrb[0].mxu0
    %v5888 = vpop.f32.mrb[0].mxu0
    %v5889 = vpop.f32.mrb[0].mxu0
    %5890 = vdwg.mxu0
    %5891 = vmatprep.subr.bf16.mxu0 0
    %5892 = vmatpush1.bf16.msra.mxu0 %v3997
    %5893 = vmatprep.subr.bf16.mxu0 0
    %5894 = vmatpush1.bf16.msra.mxu0 %v4002
    %5895 = vmatprep.subr.bf16.mxu0 0
    %5896 = vmatpush1.bf16.msra.mxu0 %v4007
    %5897 = vmatprep.subr.bf16.mxu0 0
    %5898 = vmatpush1.bf16.msra.mxu0 %v4012
    %5899 = vmatprep.subr.bf16.mxu0 0
    %5900 = vmatpush1.bf16.msra.mxu0 %v4017
    %5901 = vmatprep.subr.bf16.mxu0 0
    %5902 = vmatpush1.bf16.msra.mxu0 %v4022
    %5903 = vmatprep.subr.bf16.mxu0 0
    %5904 = vmatpush1.bf16.msra.mxu0 %v4027
    %5905 = vmatprep.subr.bf16.mxu0 0
    %5906 = vmatpush1.bf16.msra.mxu0 %v4032
    %5907 = vmatprep.subr.bf16.mxu0 0
    %5908 = vmatpush1.bf16.msra.mxu0 %v4037
    %5909 = vmatprep.subr.bf16.mxu0 0
    %5910 = vmatpush1.bf16.msra.mxu0 %v4042
    %5911 = vmatprep.subr.bf16.mxu0 0
    %5912 = vmatpush1.bf16.msra.mxu0 %v4047
    %5913 = vmatprep.subr.bf16.mxu0 0
    %5914 = vmatpush1.bf16.msra.mxu0 %v4052
    %5915 = vmatprep.subr.bf16.mxu0 0
    %5916 = vmatpush1.bf16.msra.mxu0 %v4057
    %5917 = vmatprep.subr.bf16.mxu0 0
    %5918 = vmatpush1.bf16.msra.mxu0 %v4062
    %5919 = vmatprep.subr.bf16.mxu0 0
    %5920 = vmatpush1.bf16.msra.mxu0 %v4067
    %5921 = vmatprep.subr.bf16.mxu0 0
    %5922 = vmatpush1.bf16.msra.mxu0 %v4072
    %5923 = vmatprep.mubr.bf16.mxu0 %v1078
    %5924 = vmatmul.mubr.bf16.gmra.mrb[0].mxu0 %v1076
    %v5925 = vpop.f32.mrb[0].mxu0
    %v5926 = vadd.f32 %v5886, %v5925
    %v5927 = vpop.f32.mrb[0].mxu0
    %v5928 = vpop.f32.mrb[0].mxu0
    %v5929 = vpop.f32.mrb[0].mxu0
    %5930 = vdwg.mxu0
    %5931 = vmatprep.subr.bf16.mxu0 0
    %5932 = vmatpush1.bf16.msra.mxu0 %v4077
    %5933 = vmatprep.subr.bf16.mxu0 0
    %5934 = vmatpush1.bf16.msra.mxu0 %v4082
    %5935 = vmatprep.subr.bf16.mxu0 0
    %5936 = vmatpush1.bf16.msra.mxu0 %v4087
    %5937 = vmatprep.subr.bf16.mxu0 0
    %5938 = vmatpush1.bf16.msra.mxu0 %v4092
    %5939 = vmatprep.subr.bf16.mxu0 0
    %5940 = vmatpush1.bf16.msra.mxu0 %v4097
    %5941 = vmatprep.subr.bf16.mxu0 0
    %5942 = vmatpush1.bf16.msra.mxu0 %v4102
    %5943 = vmatprep.subr.bf16.mxu0 0
    %5944 = vmatpush1.bf16.msra.mxu0 %v4107
    %5945 = vmatprep.subr.bf16.mxu0 0
    %5946 = vmatpush1.bf16.msra.mxu0 %v4112
    %5947 = vmatprep.subr.bf16.mxu0 0
    %5948 = vmatpush1.bf16.msra.mxu0 %v4117
    %5949 = vmatprep.subr.bf16.mxu0 0
    %5950 = vmatpush1.bf16.msra.mxu0 %v4122
    %5951 = vmatprep.subr.bf16.mxu0 0
    %5952 = vmatpush1.bf16.msra.mxu0 %v4127
    %5953 = vmatprep.subr.bf16.mxu0 0
    %5954 = vmatpush1.bf16.msra.mxu0 %v4132
    %5955 = vmatprep.subr.bf16.mxu0 0
    %5956 = vmatpush1.bf16.msra.mxu0 %v4137
    %5957 = vmatprep.subr.bf16.mxu0 0
    %5958 = vmatpush1.bf16.msra.mxu0 %v4142
    %5959 = vmatprep.subr.bf16.mxu0 0
    %5960 = vmatpush1.bf16.msra.mxu0 %v4147
    %5961 = vmatprep.subr.bf16.mxu0 0
    %5962 = vmatpush1.bf16.msra.mxu0 %v4152
    %5963 = vmatprep.mubr.bf16.mxu0 %v1110
    %5964 = vmatmul.mubr.bf16.gmra.mrb[0].mxu0 %v1103
    %v5965 = vpop.f32.mrb[0].mxu0
    %v5966 = vadd.f32 %v5926, %v5965
    %v5967 = vpop.f32.mrb[0].mxu0
    %v5968 = vpop.f32.mrb[0].mxu0
    %v5969 = vpop.f32.mrb[0].mxu0
    %5970 = vdwg.mxu0
    %v5971 = vpack.c.bf16 %v5236, %v5236
    %v5972 = vpack.c.bf16 %v5238, %v5238
    %v5973 = vpack.c.bf16 %v5605, %v5605
    %v5974 = vpack.c.bf16 %v5607, %v5607
    %v5975 = vpack.c.bf16 %v5966, %v5966
    %v5976 = vld [vmem:[%s3] sm:$0xf]
    %v5977 = vld [vmem:[%s3 + $0x4] sm:$0xf]
    %v5978 = vld [vmem:[%s3 + $0x8] sm:$0xf]
    %v5979 = vld [vmem:[%s3 + $0xc] sm:$0xf]
    %v5980 = vld [vmem:[%s3 + $0x10] sm:$0xf]
    %v5981 = vld [vmem:[%s3 + $0x14] sm:$0xf]
    %v5982 = vld [vmem:[%s3 + $0x18] sm:$0xf]
    %v5983 = vld [vmem:[%s3 + $0x1c] sm:$0xf]
    %v5984 = vld [vmem:[%s3 + $0x20] sm:$0xf]
    %v5985 = vld [vmem:[%s3 + $0x24] sm:$0xf]
    %v5986 = vld [vmem:[%s3 + $0x28] sm:$0xf]
    %v5987 = vld [vmem:[%s3 + $0x2c] sm:$0xf]
    %v5988 = vld [vmem:[%s3 + $0x30] sm:$0xf]
    %v5989 = vld [vmem:[%s3 + $0x34] sm:$0xf]
    %v5990 = vld [vmem:[%s3 + $0x38] sm:$0xf]
    %v5991 = vld [vmem:[%s3 + $0x3c] sm:$0xf]
    %v5992 = vld [vmem:[%s3 + $0x40] sm:$0xf]
    %v5993 = vld [vmem:[%s3 + $0x44] sm:$0xf]
    %v5994 = vld [vmem:[%s3 + $0x48] sm:$0xf]
    %v5995 = vld [vmem:[%s3 + $0x4c] sm:$0xf]
    %v5996 = vld [vmem:[%s3 + $0x50] sm:$0xf]
    %v5997 = vld [vmem:[%s3 + $0x54] sm:$0xf]
    %v5998 = vld [vmem:[%s3 + $0x58] sm:$0xf]
    %v5999 = vld [vmem:[%s3 + $0x5c] sm:$0xf]
    %v6000 = vld [vmem:[%s3 + $0x60] sm:$0xf]
    %v6001 = vld [vmem:[%s3 + $0x64] sm:$0xf]
    %v6002 = vld [vmem:[%s3 + $0x68] sm:$0xf]
    %v6003 = vld [vmem:[%s3 + $0x6c] sm:$0xf]
    %v6004 = vld [vmem:[%s3 + $0x70] sm:$0xf]
    %v6005 = vld [vmem:[%s3 + $0x74] sm:$0xf]
    %v6006 = vld [vmem:[%s3 + $0x78] sm:$0xf]
    %v6007 = vld [vmem:[%s3 + $0x7c] sm:$0xf]
    %v6008 = vld [vmem:[%s3 + $0x80] sm:$0xf]
    %v6009 = vld [vmem:[%s3 + $0x84] sm:$0xf]
    %v6010 = vld [vmem:[%s3 + $0x88] sm:$0xf]
    %v6011 = vld [vmem:[%s3 + $0x8c] sm:$0xf]
    %v6012 = vld [vmem:[%s3 + $0x90] sm:$0xf]
    %v6013 = vld [vmem:[%s3 + $0x94] sm:$0xf]
    %v6014 = vld [vmem:[%s3 + $0x98] sm:$0xf]
    %v6015 = vld [vmem:[%s3 + $0x9c] sm:$0xf]
    %v6016 = vld [vmem:[%s3 + $0xa0] sm:$0xf]
    %v6017 = vld [vmem:[%s3 + $0xa4] sm:$0xf]
    %v6018 = vld [vmem:[%s3 + $0xa8] sm:$0xf]
    %v6019 = vld [vmem:[%s3 + $0xac] sm:$0xf]
    %v6020 = vld [vmem:[%s3 + $0xb0] sm:$0xf]
    %v6021 = vld [vmem:[%s3 + $0xb4] sm:$0xf]
    %v6022 = vld [vmem:[%s3 + $0xb8] sm:$0xf]
    %v6023 = vld [vmem:[%s3 + $0xbc] sm:$0xf]
    %v6024 = vld [vmem:[%s3 + $0xc0] sm:$0xf]
    %v6025 = vld [vmem:[%s3 + $0xc4] sm:$0xf]
    %v6026 = vld [vmem:[%s3 + $0xc8] sm:$0xf]
    %v6027 = vld [vmem:[%s3 + $0xcc] sm:$0xf]
    %v6028 = vld [vmem:[%s3 + $0xd0] sm:$0xf]
    %v6029 = vld [vmem:[%s3 + $0xd4] sm:$0xf]
    %v6030 = vld [vmem:[%s3 + $0xd8] sm:$0xf]
    %v6031 = vld [vmem:[%s3 + $0xdc] sm:$0xf]
    %v6032 = vld [vmem:[%s3 + $0xe0] sm:$0xf]
    %v6033 = vld [vmem:[%s3 + $0xe4] sm:$0xf]
    %v6034 = vld [vmem:[%s3 + $0xe8] sm:$0xf]
    %v6035 = vld [vmem:[%s3 + $0xec] sm:$0xf]
    %v6036 = vld [vmem:[%s3 + $0xf0] sm:$0xf]
    %v6037 = vld [vmem:[%s3 + $0xf4] sm:$0xf]
    %v6038 = vld [vmem:[%s3 + $0xf8] sm:$0xf]
    %v6039 = vld [vmem:[%s3 + $0xfc] sm:$0xf]
    %v6040 = vld [vmem:[%s3 + $0x100] sm:$0xf]
    %v6041 = vld [vmem:[%s3 + $0x104] sm:$0xf]
    %v6042 = vld [vmem:[%s3 + $0x108] sm:$0xf]
    %v6043 = vld [vmem:[%s3 + $0x10c] sm:$0xf]
    %v6044 = vld [vmem:[%s3 + $0x110] sm:$0xf]
    %v6045 = vld [vmem:[%s3 + $0x114] sm:$0xf]
    %v6046 = vld [vmem:[%s3 + $0x118] sm:$0xf]
    %v6047 = vld [vmem:[%s3 + $0x11c] sm:$0xf]
    %v6048 = vld [vmem:[%s3 + $0x120] sm:$0xf]
    %v6049 = vld [vmem:[%s3 + $0x124] sm:$0xf]
    %v6050 = vld [vmem:[%s3 + $0x128] sm:$0xf]
    %v6051 = vld [vmem:[%s4] sm:$0x1]
    %v6053 = vlaneseq
    %v6054 = vshrl.u32 %v6053, 7
    %v6055 = vsub.s32 0, %v6054
    %v6056 = vrot.slane %v6051, %v6055
    %v6133 = vunpack.c.l.b16 %v5976
    %v6134 = vunpack.c.l.b16 %v5977
    %v6135 = vunpack.c.l.b16 %v5978
    %v6136 = vunpack.c.l.b16 %v5979
    %v6137 = vunpack.c.l.b16 %v5980
    %v6138 = vunpack.c.l.b16 %v5981
    %v6139 = vunpack.c.l.b16 %v5982
    %v6140 = vunpack.c.l.b16 %v5983
    %v6141 = vunpack.c.l.b16 %v5984
    %v6142 = vunpack.c.l.b16 %v5985
    %v6143 = vunpack.c.l.b16 %v5986
    %v6144 = vunpack.c.l.b16 %v5987
    %v6145 = vunpack.c.l.b16 %v5988
    %v6146 = vunpack.c.l.b16 %v5989
    %v6147 = vunpack.c.l.b16 %v5990
    %v6148 = vunpack.c.l.b16 %v5991
    %v6149 = vunpack.c.l.b16 %v5992
    %v6150 = vunpack.c.l.b16 %v5993
    %v6151 = vunpack.c.l.b16 %v5994
    %v6152 = vunpack.c.l.b16 %v5995
    %v6153 = vunpack.c.l.b16 %v5996
    %v6154 = vunpack.c.l.b16 %v5997
    %v6155 = vunpack.c.l.b16 %v5998
    %v6156 = vunpack.c.l.b16 %v5999
    %v6157 = vunpack.c.l.b16 %v6000
    %v6158 = vunpack.c.l.b16 %v6001
    %v6159 = vunpack.c.l.b16 %v6002
    %v6160 = vunpack.c.l.b16 %v6003
    %v6161 = vunpack.c.l.b16 %v6004
    %v6162 = vunpack.c.l.b16 %v6005
    %v6163 = vunpack.c.l.b16 %v6006
    %v6164 = vunpack.c.l.b16 %v6007
    %v6165 = vunpack.c.l.b16 %v6008
    %v6166 = vunpack.c.l.b16 %v6009
    %v6167 = vunpack.c.l.b16 %v6010
    %v6168 = vunpack.c.l.b16 %v6011
    %v6169 = vunpack.c.l.b16 %v6012
    %v6170 = vunpack.c.l.b16 %v6013
    %v6171 = vunpack.c.l.b16 %v6014
    %v6172 = vunpack.c.l.b16 %v6015
    %v6173 = vunpack.c.l.b16 %v6016
    %v6174 = vunpack.c.l.b16 %v6017
    %v6175 = vunpack.c.l.b16 %v6018
    %v6176 = vunpack.c.l.b16 %v6019
    %v6177 = vunpack.c.l.b16 %v6020
    %v6178 = vunpack.c.l.b16 %v6021
    %v6179 = vunpack.c.l.b16 %v6022
    %v6180 = vunpack.c.l.b16 %v6023
    %v6181 = vunpack.c.l.b16 %v6024
    %v6182 = vunpack.c.l.b16 %v6025
    %v6183 = vunpack.c.l.b16 %v6026
    %v6184 = vunpack.c.l.b16 %v6027
    %v6185 = vunpack.c.l.b16 %v6028
    %v6186 = vunpack.c.l.b16 %v6029
    %v6187 = vunpack.c.l.b16 %v6030
    %v6188 = vunpack.c.l.b16 %v6031
    %v6189 = vunpack.c.l.b16 %v6032
    %v6190 = vunpack.c.l.b16 %v6033
    %v6191 = vunpack.c.l.b16 %v6034
    %v6192 = vunpack.c.l.b16 %v6035
    %v6193 = vunpack.c.l.b16 %v6036
    %v6194 = vunpack.c.l.b16 %v6037
    %v6195 = vunpack.c.l.b16 %v6038
    %v6196 = vunpack.c.l.b16 %v6039
    %v6197 = vunpack.c.l.b16 %v6040
    %v6198 = vunpack.c.l.b16 %v6041
    %v6199 = vunpack.c.l.b16 %v6042
    %v6200 = vunpack.c.l.b16 %v6043
    %v6201 = vunpack.c.l.b16 %v6044
    %v6202 = vunpack.c.l.b16 %v6045
    %v6203 = vunpack.c.l.b16 %v6046
    %v6204 = vunpack.c.l.b16 %v6047
    %v6205 = vunpack.c.l.b16 %v6048
    %v6206 = vunpack.c.l.b16 %v6049
    %v6207 = vunpack.c.l.b16 %v6050
    %v6208 = vpack.c.b16 %v6134, %v6133
    %v6209 = vpack.c.b16 %v6136, %v6135
    %v6210 = vpack.c.b16 %v6138, %v6137
    %v6211 = vpack.c.b16 %v6140, %v6139
    %v6212 = vpack.c.b16 %v6142, %v6141
    %v6213 = vpack.c.b16 %v6144, %v6143
    %v6214 = vpack.c.b16 %v6146, %v6145
    %v6215 = vpack.c.b16 %v6148, %v6147
    %v6216 = vpack.c.b16 %v6150, %v6149
    %v6217 = vpack.c.b16 %v6152, %v6151
    %v6218 = vpack.c.b16 %v6154, %v6153
    %v6219 = vpack.c.b16 %v6156, %v6155
    %v6220 = vpack.c.b16 %v6158, %v6157
    %v6221 = vpack.c.b16 %v6160, %v6159
    %v6222 = vpack.c.b16 %v6162, %v6161
    %v6223 = vpack.c.b16 %v6164, %v6163
    %v6224 = vpack.c.b16 %v6166, %v6165
    %v6225 = vpack.c.b16 %v6168, %v6167
    %v6226 = vpack.c.b16 %v6170, %v6169
    %v6227 = vpack.c.b16 %v6172, %v6171
    %v6228 = vpack.c.b16 %v6174, %v6173
    %v6229 = vpack.c.b16 %v6176, %v6175
    %v6230 = vpack.c.b16 %v6178, %v6177
    %v6231 = vpack.c.b16 %v6180, %v6179
    %v6232 = vpack.c.b16 %v6182, %v6181
    %v6233 = vpack.c.b16 %v6184, %v6183
    %v6234 = vpack.c.b16 %v6186, %v6185
    %v6235 = vpack.c.b16 %v6188, %v6187
    %v6236 = vpack.c.b16 %v6190, %v6189
    %v6237 = vpack.c.b16 %v6192, %v6191
    %v6238 = vpack.c.b16 %v6194, %v6193
    %v6239 = vpack.c.b16 %v6196, %v6195
    %v6240 = vpack.c.b16 %v6198, %v6197
    %v6241 = vpack.c.b16 %v6200, %v6199
    %v6242 = vpack.c.b16 %v6202, %v6201
    %v6243 = vpack.c.b16 %v6204, %v6203
    %v6244 = vpack.c.b16 %v6206, %v6205
    %v6245 = vpack.c.b16 %v6207, %v6207
    %vm6283 = vcmask 719872
    %v6285 = vsel %vm6283, %v5975, 0
    %vm6287 = vcmask 1043456
    %v6289 = vsel %vm6287, %v6245, 0
    %6291 = vmatprep.subr.bf16.mxu0 0
    %6292 = vmatpush1.bf16.msra.mxu0 %v6208
    %6293 = vmatprep.subr.bf16.mxu0 0
    %6294 = vmatpush1.bf16.msra.mxu0 %v6209
    %6295 = vmatprep.subr.bf16.mxu0 0
    %6296 = vmatpush1.bf16.msra.mxu0 %v6210
    %6297 = vmatprep.subr.bf16.mxu0 0
    %6298 = vmatpush1.bf16.msra.mxu0 %v6211
    %6299 = vmatprep.subr.bf16.mxu0 0
    %6300 = vmatpush1.bf16.msra.mxu0 %v6212
    %6301 = vmatprep.subr.bf16.mxu0 0
    %6302 = vmatpush1.bf16.msra.mxu0 %v6213
    %6303 = vmatprep.subr.bf16.mxu0 0
    %6304 = vmatpush1.bf16.msra.mxu0 %v6214
    %6305 = vmatprep.subr.bf16.mxu0 0
    %6306 = vmatpush1.bf16.msra.mxu0 %v6215
    %6307 = vmatprep.subr.bf16.mxu0 0
    %6308 = vmatpush1.bf16.msra.mxu0 %v6216
    %6309 = vmatprep.subr.bf16.mxu0 0
    %6310 = vmatpush1.bf16.msra.mxu0 %v6217
    %6311 = vmatprep.subr.bf16.mxu0 0
    %6312 = vmatpush1.bf16.msra.mxu0 %v6218
    %6313 = vmatprep.subr.bf16.mxu0 0
    %6314 = vmatpush1.bf16.msra.mxu0 %v6219
    %6315 = vmatprep.subr.bf16.mxu0 0
    %6316 = vmatpush1.bf16.msra.mxu0 %v6220
    %6317 = vmatprep.subr.bf16.mxu0 0
    %6318 = vmatpush1.bf16.msra.mxu0 %v6221
    %6319 = vmatprep.subr.bf16.mxu0 0
    %6320 = vmatpush1.bf16.msra.mxu0 %v6222
    %6321 = vmatprep.subr.bf16.mxu0 0
    %6322 = vmatpush1.bf16.msra.mxu0 %v6223
    %6323 = vmatprep.mubr.bf16.mxu0 %v5972
    %6324 = vmatmul.mubr.bf16.gmra.mrb[0].mxu0 %v5971
    %v6325 = vpop.f32.mrb[0].mxu0
    %v6326 = vadd.f32 %v6056, %v6325
    %v6327 = vpop.f32.mrb[0].mxu0
    %v6328 = vpop.f32.mrb[0].mxu0
    %v6329 = vpop.f32.mrb[0].mxu0
    %6330 = vdwg.mxu0
    %6331 = vmatprep.subr.bf16.mxu0 0
    %6332 = vmatpush1.bf16.msra.mxu0 %v6224
    %6333 = vmatprep.subr.bf16.mxu0 0
    %6334 = vmatpush1.bf16.msra.mxu0 %v6225
    %6335 = vmatprep.subr.bf16.mxu0 0
    %6336 = vmatpush1.bf16.msra.mxu0 %v6226
    %6337 = vmatprep.subr.bf16.mxu0 0
    %6338 = vmatpush1.bf16.msra.mxu0 %v6227
    %6339 = vmatprep.subr.bf16.mxu0 0
    %6340 = vmatpush1.bf16.msra.mxu0 %v6228
    %6341 = vmatprep.subr.bf16.mxu0 0
    %6342 = vmatpush1.bf16.msra.mxu0 %v6229
    %6343 = vmatprep.subr.bf16.mxu0 0
    %6344 = vmatpush1.bf16.msra.mxu0 %v6230
    %6345 = vmatprep.subr.bf16.mxu0 0
    %6346 = vmatpush1.bf16.msra.mxu0 %v6231
    %6347 = vmatprep.subr.bf16.mxu0 0
    %6348 = vmatpush1.bf16.msra.mxu0 %v6232
    %6349 = vmatprep.subr.bf16.mxu0 0
    %6350 = vmatpush1.bf16.msra.mxu0 %v6233
    %6351 = vmatprep.subr.bf16.mxu0 0
    %6352 = vmatpush1.bf16.msra.mxu0 %v6234
    %6353 = vmatprep.subr.bf16.mxu0 0
    %6354 = vmatpush1.bf16.msra.mxu0 %v6235
    %6355 = vmatprep.subr.bf16.mxu0 0
    %6356 = vmatpush1.bf16.msra.mxu0 %v6236
    %6357 = vmatprep.subr.bf16.mxu0 0
    %6358 = vmatpush1.bf16.msra.mxu0 %v6237
    %6359 = vmatprep.subr.bf16.mxu0 0
    %6360 = vmatpush1.bf16.msra.mxu0 %v6238
    %6361 = vmatprep.subr.bf16.mxu0 0
    %6362 = vmatpush1.bf16.msra.mxu0 %v6239
    %6363 = vmatprep.mubr.bf16.mxu0 %v5974
    %6364 = vmatmul.mubr.bf16.gmra.mrb[0].mxu0 %v5973
    %v6365 = vpop.f32.mrb[0].mxu0
    %v6366 = vadd.f32 %v6326, %v6365
    %v6367 = vpop.f32.mrb[0].mxu0
    %v6368 = vpop.f32.mrb[0].mxu0
    %v6369 = vpop.f32.mrb[0].mxu0
    %6370 = vdwg.mxu0
    %6371 = vmatprep.subr.bf16.mxu0 0
    %6372 = vmatpush1.bf16.msra.mxu0 %v6240
    %6373 = vmatprep.subr.bf16.mxu0 0
    %6374 = vmatpush1.bf16.msra.mxu0 %v6241
    %6375 = vmatprep.subr.bf16.mxu0 0
    %6376 = vmatpush1.bf16.msra.mxu0 %v6242
    %6377 = vmatprep.subr.bf16.mxu0 0
    %6378 = vmatpush1.bf16.msra.mxu0 %v6243
    %6379 = vmatprep.subr.bf16.mxu0 0
    %6380 = vmatpush1.bf16.msra.mxu0 %v6244
    %6381 = vmatprep.subr.bf16.mxu0 0
    %6382 = vmatpush1.bf16.msra.mxu0 %v6289
    %6383 = vmatprep.subr.bf16.mxu0 0
    %6384 = vmatpush1.bf16.msra.mxu0 0
    %6385 = vmatprep.subr.bf16.mxu0 0
    %6386 = vmatpush1.bf16.msra.mxu0 0
    %6387 = vmatprep.subr.bf16.mxu0 0
    %6388 = vmatpush1.bf16.msra.mxu0 0
    %6389 = vmatprep.subr.bf16.mxu0 0
    %6390 = vmatpush1.bf16.msra.mxu0 0
    %6391 = vmatprep.subr.bf16.mxu0 0
    %6392 = vmatpush1.bf16.msra.mxu0 0
    %6393 = vmatprep.subr.bf16.mxu0 0
    %6394 = vmatpush1.bf16.msra.mxu0 0
    %6395 = vmatprep.subr.bf16.mxu0 0
    %6396 = vmatpush1.bf16.msra.mxu0 0
    %6397 = vmatprep.subr.bf16.mxu0 0
    %6398 = vmatpush1.bf16.msra.mxu0 0
    %6399 = vmatprep.subr.bf16.mxu0 0
    %6400 = vmatpush1.bf16.msra.mxu0 0
    %6401 = vmatprep.subr.bf16.mxu0 0
    %6402 = vmatpush1.bf16.msra.mxu0 0
    %6403 = vmatprep.mubr.bf16.mxu0 0
    %6404 = vmatmul.mubr.bf16.gmra.mrb[0].mxu0 %v6285
    %v6405 = vpop.f32.mrb[0].mxu0
    %v6406 = vadd.f32 %v6366, %v6405
    %v6407 = vpop.f32.mrb[0].mxu0
    %v6408 = vpop.f32.mrb[0].mxu0
    %v6409 = vpop.f32.mrb[0].mxu0
    %6410 = vdwg.mxu0
    %v6411 = vpack.c.bf16 %v6406, %v6406
    %v6412 = vld [vmem:[%s5] sm:$0xf]
    %v6413 = vld [vmem:[%s5 + $0x4] sm:$0xf]
    %v6414 = vld [vmem:[%s5 + $0x8] sm:$0xf]
    %v6415 = vld [vmem:[%s5 + $0xc] sm:$0xf]
    %v6416 = vld [vmem:[%s5 + $0x10] sm:$0xf]
    %v6417 = vld [vmem:[%s5 + $0x14] sm:$0xf]
    %v6418 = vld [vmem:[%s5 + $0x18] sm:$0xf]
    %v6419 = vld [vmem:[%s5 + $0x1c] sm:$0xf]
    %v6420 = vld [vmem:[%s5 + $0x20] sm:$0xf]
    %v6421 = vld [vmem:[%s5 + $0x24] sm:$0xf]
    %v6422 = vld [vmem:[%s5 + $0x28] sm:$0xf]
    %v6423 = vld [vmem:[%s5 + $0x2c] sm:$0xf]
    %v6424 = vld [vmem:[%s5 + $0x30] sm:$0xf]
    %v6425 = vld [vmem:[%s5 + $0x34] sm:$0xf]
    %v6426 = vld [vmem:[%s5 + $0x38] sm:$0xf]
    %v6427 = vld [vmem:[%s6] sm:$0x1]
    %v6429 = vlaneseq
    %v6430 = vshrl.u32 %v6429, 7
    %v6431 = vsub.s32 0, %v6430
    %v6432 = vrot.slane %v6427, %v6431
    %v6449 = vunpack.c.l.b16 %v6412
    %v6450 = vunpack.c.l.b16 %v6413
    %v6451 = vunpack.c.l.b16 %v6414
    %v6452 = vunpack.c.l.b16 %v6415
    %v6453 = vunpack.c.l.b16 %v6416
    %v6454 = vunpack.c.l.b16 %v6417
    %v6455 = vunpack.c.l.b16 %v6418
    %v6456 = vunpack.c.l.b16 %v6419
    %v6457 = vunpack.c.l.b16 %v6420
    %v6458 = vunpack.c.l.b16 %v6421
    %v6459 = vunpack.c.l.b16 %v6422
    %v6460 = vunpack.c.l.b16 %v6423
    %v6461 = vunpack.c.l.b16 %v6424
    %v6462 = vunpack.c.l.b16 %v6425
    %v6463 = vunpack.c.l.b16 %v6426
    %v6464 = vpack.c.b16 %v6450, %v6449
    %v6465 = vpack.c.b16 %v6452, %v6451
    %v6466 = vpack.c.b16 %v6454, %v6453
    %v6467 = vpack.c.b16 %v6456, %v6455
    %v6468 = vpack.c.b16 %v6458, %v6457
    %v6469 = vpack.c.b16 %v6460, %v6459
    %v6470 = vpack.c.b16 %v6462, %v6461
    %v6471 = vpack.c.b16 %v6463, %v6463
    %vm6479 = vcmask 982016
    %v6481 = vsel %vm6479, %v6411, 0
    %v6484 = vsel %vm6287, %v6471, 0
    %6486 = vmatprep.subr.bf16.mxu0 0
    %6487 = vmatpush1.bf16.msra.mxu0 %v6464
    %6488 = vmatprep.subr.bf16.mxu0 0
    %6489 = vmatpush1.bf16.msra.mxu0 %v6465
    %6490 = vmatprep.subr.bf16.mxu0 0
    %6491 = vmatpush1.bf16.msra.mxu0 %v6466
    %6492 = vmatprep.subr.bf16.mxu0 0
    %6493 = vmatpush1.bf16.msra.mxu0 %v6467
    %6494 = vmatprep.subr.bf16.mxu0 0
    %6495 = vmatpush1.bf16.msra.mxu0 %v6468
    %6496 = vmatprep.subr.bf16.mxu0 0
    %6497 = vmatpush1.bf16.msra.mxu0 %v6469
    %6498 = vmatprep.subr.bf16.mxu0 0
    %6499 = vmatpush1.bf16.msra.mxu0 %v6470
    %6500 = vmatprep.subr.bf16.mxu0 0
    %6501 = vmatpush1.bf16.msra.mxu0 %v6484
    %6502 = vmatprep.subr.bf16.mxu0 0
    %6503 = vmatpush1.bf16.msra.mxu0 0
    %6504 = vmatprep.subr.bf16.mxu0 0
    %6505 = vmatpush1.bf16.msra.mxu0 0
    %6506 = vmatprep.subr.bf16.mxu0 0
    %6507 = vmatpush1.bf16.msra.mxu0 0
    %6508 = vmatprep.subr.bf16.mxu0 0
    %6509 = vmatpush1.bf16.msra.mxu0 0
    %6510 = vmatprep.subr.bf16.mxu0 0
    %6511 = vmatpush1.bf16.msra.mxu0 0
    %6512 = vmatprep.subr.bf16.mxu0 0
    %6513 = vmatpush1.bf16.msra.mxu0 0
    %6514 = vmatprep.subr.bf16.mxu0 0
    %6515 = vmatpush1.bf16.msra.mxu0 0
    %6516 = vmatprep.subr.bf16.mxu0 0
    %6517 = vmatpush1.bf16.msra.mxu0 0
    %6518 = vmatprep.mubr.bf16.mxu0 0
    %6519 = vmatmul.mubr.bf16.gmra.mrb[0].mxu0 %v6481
    %v6520 = vpop.f32.mrb[0].mxu0
    %v6521 = vadd.f32 %v6432, %v6520
    %v6522 = vpop.f32.mrb[0].mxu0
    %v6523 = vpop.f32.mrb[0].mxu0
    %v6524 = vpop.f32.mrb[0].mxu0
    %6525 = vdwg.mxu0
    %vm6526 = vcmask 80896
    %6527 = vst.msk [vmem:[#allocation2] sm:$0xff] %vm6526, %v6521
    // Predicated region
    $region30: #{fashion_cnn_forward.5} parent=1 // pred_check
      _
    $region31: #{fashion_cnn_forward.5} parent=1 // pred_check_branch
      %6529 = sbr.rel (0) target = $region33
    $region32: #{fashion_cnn_forward.5} parent=1 // pred_region
      %s6531 = ssub.s32 128, 32
      %6532 = vsyncadd [#allocation3], %s6531
      %s6533 = sshll.u32 [#allocation2], 4
      %s6534 = int_to_ptr.vmem [resolvable:$true] %s6533
      %6539 = dma.vmem_to_hbm [thread:$0]  %s6534, 32, %s7, [#allocation3], 32, 32, 2
    $region33: #{fashion_cnn_forward.5} parent=1 // pred_fallthru
      _
    // Predicated region
    $region34: #{fashion_cnn_forward.5} parent=1 // pred_check
      _
    $region35: #{fashion_cnn_forward.5} parent=1 // pred_check_branch
      %6541 = sbr.rel (0) target = $region37
    $region36: #{fashion_cnn_forward.5} parent=1 // pred_region
      %6542 = dma.done [#allocation3], 128
    $region37: #{fashion_cnn_forward.5} parent=1 // pred_fallthru
      _
    %6543 = vsyncpa [#allocation3], 1

</llo_original>
